<compile_context>
chip_gen: v5e
topology: v5e:2x2
jax: 0.10.0
libtpu: 0.0.40
codegen_flags: <defaults>
</compile_context>

<pallas_src>
import functools

import jax
import jax.numpy as jnp
from jax import lax
from jax.experimental import pallas as pl
from jax.experimental.pallas import tpu as pltpu


# ----------------------------------------------------------------------------
# Generation-aware VMEM budgeting.
# ----------------------------------------------------------------------------
def _vmem_budget():
    cap = 64 * 1024 * 1024                      # conservative default (v7x per-TC)
    try:
        info_fn = getattr(pltpu, "get_tpu_info", None)
        if info_fn is not None:
            cap = int(getattr(info_fn(), "vmem_capacity_bytes", cap)) or cap
    except Exception:
        pass
    vmem_limit = min(cap * 3 // 4, 100 * 1024 * 1024)   # 48 MiB on v7x, 96 MiB on v5e/v6e
    block_budget = max(vmem_limit // 6, 1 * 1024 * 1024)
    return vmem_limit, block_budget


_VMEM_LIMIT, _BLOCK_BUDGET = _vmem_budget()


def _compiler_params(n_axes=2):
    return pltpu.CompilerParams(
        dimension_semantics=("parallel",) * n_axes,
        vmem_limit_bytes=_VMEM_LIMIT,
    )


def _pick_n_tile(n, per_point_bytes, budget_bytes=_BLOCK_BUDGET):
    """Largest layout-legal N tile: multiple of 128 dividing n, or full n."""
    cap = max(1, budget_bytes // max(2 * per_point_bytes, 1))  # x2: double-buffering
    if n <= cap:
        return n
    t = (cap // 128) * 128
    while t >= 128:
        if n % t == 0:
            return t
        t -= 128
    # TODO(synk): pad N (and neigh_idx) for shapes with no 128-multiple divisor.
    return n


# ----------------------------------------------------------------------------
# Kernel 1: mlp1 (1x1 conv + folded BN + ReLU).
#           Input channels-first (B, d_in, N); output channels-LAST (B, N, d2)
#           because its only consumer is the point-axis neighbour gather.
# ----------------------------------------------------------------------------
def _mlp1_kernel(x_ref, w_ref, s_ref, b_ref, o_ref):
    # x: (1, d_in, TN); contract dim0 of both operands (x^T @ W) -> (TN, d2).
    y = lax.dot_general(x_ref[0], w_ref[...], (((0,), (0,)), ((), ())),
                        preferred_element_type=jnp.float32)
    y = jnp.maximum(y * s_ref[...] + b_ref[...], 0.0)
    o_ref[0] = y.astype(o_ref.dtype)


def mlp1_point_conv(x_cf, w, scale, bias):
    B, d_in, N = x_cf.shape
    d2 = w.shape[1]
    tn = _pick_n_tile(N, 4 * (d_in + d2))
    return pl.pallas_call(
        _mlp1_kernel,
        out_shape=jax.ShapeDtypeStruct((B, N, d2), jnp.float32),
        grid=(N // tn, B),
        in_specs=[
            pl.BlockSpec((1, d_in, tn), lambda n, b: (b, 0, n)),
            pl.BlockSpec((d_in, d2), lambda n, b: (0, 0)),
            pl.BlockSpec((1, d2), lambda n, b: (0, 0)),
            pl.BlockSpec((1, d2), lambda n, b: (0, 0)),
        ],
        out_specs=pl.BlockSpec((1, tn, d2), lambda n, b: (b, n, 0)),
        compiler_params=_compiler_params(2),
    )(x_cf, w, scale.reshape(1, -1), bias.reshape(1, -1))


# ----------------------------------------------------------------------------
# Kernel 2: fused [relative-pos encoding + lfa.mlp1 (+ lfa.mlp2)] + Att_pooling.
#           The channel-concat of the original module is fused away by
#           pre-splitting the fc/mlp weights; the softmax is done per half.
# ----------------------------------------------------------------------------
def _att_pool_kernel(xyz_ref, nxyz_ref, fngh_ref,
                     wd_ref, wxyz_ref, wngh_ref, s1_ref, b1_ref,
                     *rest, use_mlp2, out_cf):
    if use_mlp2:
        (w2_ref, s2_ref, b2_ref,
         fc_nn_ref, fc_nx_ref, fc_xn_ref, fc_xx_ref,
         wm_n_ref, wm_x_ref, sm_ref, bm_ref, o_ref) = rest
    else:
        (fc_nn_ref, fc_nx_ref, fc_xn_ref, fc_xx_ref,
         wm_n_ref, wm_x_ref, sm_ref, bm_ref, o_ref) = rest

    neigh = nxyz_ref[0]                                     # (TN, K, 3) f32
    tn, k, _ = neigh.shape
    xyz_pt = xyz_ref[0]                                     # (TN, 1, 3)
    c1 = wd_ref.shape[1]

    # Relative positional encoding + lfa.mlp1, algebraically folded:
    #   dist*Wd + rel@Wr + tile@Wt + neigh@Wn
    # = dist*Wd + xyz@(Wr+Wt) (broadcast over K) + neigh@(Wn-Wr)
    rel = xyz_pt - neigh                                    # (TN, K, 3)
    dist = jnp.sqrt(jnp.sum(rel * rel, axis=-1, keepdims=True))   # (TN, K, 1)
    xyz_term = jnp.dot(xyz_pt.reshape(tn, 3), wxyz_ref[...],
                       preferred_element_type=jnp.float32)        # (TN, c1)
    ngh_term = jnp.dot(neigh.reshape(tn * k, 3), wngh_ref[...],
                       preferred_element_type=jnp.float32).reshape(tn, k, c1)
    f_xyz = dist * wd_ref[...] + ngh_term + xyz_term.reshape(tn, 1, c1)
    f_xyz = jnp.maximum(f_xyz * s1_ref[...] + b1_ref[...], 0.0)   # (TN, K, c1)

    if use_mlp2:
        # lfa.mlp2 recomputed in-kernel (no (B,N,K,d2) HBM round-trip).
        c2 = w2_ref.shape[1]
        f_xyz = jnp.dot(f_xyz.reshape(tn * k, c1), w2_ref[...],
                        preferred_element_type=jnp.float32)
        f_xyz = jnp.maximum(f_xyz * s2_ref[...] + b2_ref[...], 0.0)
        f_xyz = f_xyz.reshape(tn, k, c2)

    d2 = f_xyz.shape[-1]
    f_ngh = fngh_ref[0].astype(jnp.float32)                 # (TN, K, d2)
    fn_flat = f_ngh.reshape(tn * k, d2)
    fx_flat = f_xyz.reshape(tn * k, d2)

    # Attention fc of the (fused-away) concat [f_ngh ; f_xyz]; weights are
    # pre-split by input rows and output columns -> no lane-offset slicing.
    att_n = (jnp.dot(fn_flat, fc_nn_ref[...], preferred_element_type=jnp.float32)
             + jnp.dot(fx_flat, fc_xn_ref[...], preferred_element_type=jnp.float32)
             ).reshape(tn, k, d2)
    att_x = (jnp.dot(fn_flat, fc_nx_ref[...], preferred_element_type=jnp.float32)
             + jnp.dot(fx_flat, fc_xx_ref[...], preferred_element_type=jnp.float32)
             ).reshape(tn, k, d2)

    def _softmax_k(a):                                      # softmax over K (dim 1)
        m = jnp.max(a, axis=1, keepdims=True)
        e = jnp.exp(a - m)
        return e * pl.reciprocal(jnp.sum(e, axis=1, keepdims=True), approx=True)

    agg_n = jnp.sum(f_ngh * _softmax_k(att_n), axis=1)      # (TN, d2)
    agg_x = jnp.sum(f_xyz * _softmax_k(att_x), axis=1)      # (TN, d2)

    if out_cf:
        # wm_* passed pre-transposed (cout, d2); transposed-RHS dot_general
        # yields a channels-first (cout, TN) tile -> lane-dense store.
        y = (lax.dot_general(wm_n_ref[...], agg_n, (((1,), (1,)), ((), ())),
                             preferred_element_type=jnp.float32)
             + lax.dot_general(wm_x_ref[...], agg_x, (((1,), (1,)), ((), ())),
                               preferred_element_type=jnp.float32))
        y = jnp.maximum(y * sm_ref[...] + bm_ref[...], 0.0)          # (cout, TN)
    else:
        y = (jnp.dot(agg_n, wm_n_ref[...], preferred_element_type=jnp.float32)
             + jnp.dot(agg_x, wm_x_ref[...], preferred_element_type=jnp.float32))
        y = jnp.maximum(y * sm_ref[...] + bm_ref[...], 0.0)          # (TN, cout)
    o_ref[0] = y.astype(o_ref.dtype)


def att_pool_fused(xyz4, neigh_xyz, f_neigh,
                   wd, wxyz, wngh, s1, b1,
                   fc_w, mlp_w, mlp_s, mlp_b,
                   mlp2=None, *, out_cf):
    """Fused relpos(+mlp1[+mlp2]) + Att_pooling.

    f_neigh: (B, N, K, d2) gathered neighbour features (bf16 ok).
    fc_w:    (2*d2, 2*d2) attention fc (no bias);  mlp_w: (2*d2, cout).
    Returns (B, N, cout) if not out_cf, else (B, cout, N) channels-first.
    """
    B, N, K, d2 = f_neigh.shape
    c1 = wd.shape[1]
    cout = mlp_w.shape[1]
    use_mlp2 = mlp2 is not None
    c2 = mlp2[0].shape[1] if use_mlp2 else c1

    per_pt = (4 * K * 3 + 2 * K * d2 + 4 * cout              # streamed HBM tensors
              + 4 * K * (4 + c1 + c2 + 4 * d2))              # in-kernel f32 intermediates
    tn = _pick_n_tile(N, per_pt)

    fc_nn, fc_nx = fc_w[:d2, :d2], fc_w[:d2, d2:]
    fc_xn, fc_xx = fc_w[d2:, :d2], fc_w[d2:, d2:]
    if out_cf:
        wm_n, wm_x = mlp_w[:d2].T, mlp_w[d2:].T              # (cout, d2)
        sm, bm = mlp_s.reshape(-1, 1), mlp_b.reshape(-1, 1)
        out_shape = jax.ShapeDtypeStruct((B, cout, N), jnp.float32)
        out_spec = pl.BlockSpec((1, cout, tn), lambda n, b: (b, 0, n))
    else:
        wm_n, wm_x = mlp_w[:d2], mlp_w[d2:]                  # (d2, cout)
        sm, bm = mlp_s.reshape(1, -1), mlp_b.reshape(1, -1)
        out_shape = jax.ShapeDtypeStruct((B, N, cout), jnp.float32)
        out_spec = pl.BlockSpec((1, tn, cout), lambda n, b: (b, n, 0))

    def const(shape):
        return pl.BlockSpec(tuple(shape), lambda n, b: tuple(0 for _ in shape))

    in_specs = [
        pl.BlockSpec((1, tn, 1, 3), lambda n, b: (b, n, 0, 0)),
        pl.BlockSpec((1, tn, K, 3), lambda n, b: (b, n, 0, 0)),
        pl.BlockSpec((1, tn, K, d2), lambda n, b: (b, n, 0, 0)),
        const(wd.shape), const(wxyz.shape), const(wngh.shape),
        const((1, c1)), const((1, c1)),
    ]
    args = [xyz4, neigh_xyz, f_neigh, wd, wxyz, wngh,
            s1.reshape(1, -1), b1.reshape(1, -1)]
    if use_mlp2:
        w2, s2, b2 = mlp2
        in_specs += [const(w2.shape), const((1, c2)), const((1, c2))]
        args += [w2, s2.reshape(1, -1), b2.reshape(1, -1)]
    in_specs += [const(fc_nn.shape), const(fc_nx.shape),
                 const(fc_xn.shape), const(fc_xx.shape),
                 const(wm_n.shape), const(wm_x.shape),
                 const(sm.shape), const(bm.shape)]
    args += [fc_nn, fc_nx, fc_xn, fc_xx, wm_n, wm_x, sm, bm]

    return pl.pallas_call(
        functools.partial(_att_pool_kernel, use_mlp2=use_mlp2, out_cf=out_cf),
        out_shape=out_shape,
        grid=(N // tn, B),
        in_specs=in_specs,
        out_specs=out_spec,
        compiler_params=_compiler_params(2),
    )(*args)


# ----------------------------------------------------------------------------
# Kernel 3: mlp2 + shortcut (conv1x1 + BN) + residual add + leaky_relu(0.2),
#           fully channels-first (lane-dense over points, NCHW output layout).
# ----------------------------------------------------------------------------
def _res_out_kernel(fa_ref, x_ref, w2t_ref, s2_ref, b2_ref,
                    wsct_ref, ssc_ref, bsc_ref, o_ref):
    y1 = jnp.dot(w2t_ref[...], fa_ref[0], preferred_element_type=jnp.float32)
    y1 = y1 * s2_ref[...] + b2_ref[...]
    y2 = jnp.dot(wsct_ref[...], x_ref[0], preferred_element_type=jnp.float32)
    y2 = y2 * ssc_ref[...] + bsc_ref[...]
    y = y1 + y2
    o_ref[0] = jnp.where(y >= 0.0, y, 0.2 * y).astype(o_ref.dtype)


def res_out_cf(f_agg_cf, x_cf, w2_t, s2, b2, wsc_t, ssc, bsc):
    B, d, N = f_agg_cf.shape
    d_in = x_cf.shape[1]
    d2out = w2_t.shape[0]
    tn = _pick_n_tile(N, 4 * (d + d_in + d2out))
    return pl.pallas_call(
        _res_out_kernel,
        out_shape=jax.ShapeDtypeStruct((B, d2out, N), jnp.float32),
        grid=(N // tn, B),
        in_specs=[
            pl.BlockSpec((1, d, tn), lambda n, b: (b, 0, n)),
            pl.BlockSpec((1, d_in, tn), lambda n, b: (b, 0, n)),
            pl.BlockSpec((d2out, d), lambda n, b: (0, 0)),
            pl.BlockSpec((d2out, 1), lambda n, b: (0, 0)),
            pl.BlockSpec((d2out, 1), lambda n, b: (0, 0)),
            pl.BlockSpec((d2out, d_in), lambda n, b: (0, 0)),
            pl.BlockSpec((d2out, 1), lambda n, b: (0, 0)),
            pl.BlockSpec((d2out, 1), lambda n, b: (0, 0)),
        ],
        out_specs=pl.BlockSpec((1, d2out, tn), lambda n, b: (b, 0, n)),
        compiler_params=_compiler_params(2),
    )(f_agg_cf, x_cf, w2_t, s2.reshape(-1, 1), b2.reshape(-1, 1),
      wsc_t, ssc.reshape(-1, 1), bsc.reshape(-1, 1))


# ----------------------------------------------------------------------------
# Plain-JAX glue: neighbour gather (dynamic index gather, kept outside Pallas).
# ----------------------------------------------------------------------------
def gather_neighbour(pc, neigh_idx, out_dtype=None):
    # pc: (B, N, D), neigh_idx: (B, N, K)  ->  (B, N, K, D)
    # TODO(synk): in-kernel gather (VMEM-resident pc + SMEM idx) would remove
    #             this K-expanded HBM materialization entirely.
    B, N, D = pc.shape
    K = neigh_idx.shape[-1]
    idx = neigh_idx.reshape(B, N * K)[..., None]
    g = jnp.take_along_axis(pc, idx, axis=1)
    if out_dtype is not None:
        g = g.astype(out_dtype)                  # fused into the gather by XLA
    return g.reshape(B, N, K, D)


# ----------------------------------------------------------------------------
# Parameters (deterministic synthetic init; BN folded to scale/bias).
# ----------------------------------------------------------------------------
def init_params(key, d_in, d_out):
    eps = 1e-5

    def dense(k, cin, cout):
        return 0.1 * jax.random.normal(k, (cin, cout), jnp.float32)

    def bn(k, c):
        kg, kb = jax.random.split(k)
        gamma = 1.0 + 0.1 * jax.random.normal(kg, (c,), jnp.float32)
        beta = 0.1 * jax.random.normal(kb, (c,), jnp.float32)
        rm = jnp.zeros((c,), jnp.float32)
        rv = jnp.ones((c,), jnp.float32)
        scale = gamma / jnp.sqrt(rv + eps)
        return scale, beta - rm * scale

    d2 = d_out // 2
    keys = jax.random.split(key, 16)
    p = {}
    p["mlp1_w"] = dense(keys[0], d_in, d2)
    p["mlp1_s"], p["mlp1_b"] = bn(keys[1], d2)
    p["lfa_mlp1_w"] = dense(keys[2], 10, d2)
    p["lfa_mlp1_s"], p["lfa_mlp1_b"] = bn(keys[3], d2)
    p["att1_fc_w"] = dense(keys[4], d_out, d_out)
    p["att1_mlp_w"] = dense(keys[5], d_out, d2)
    p["att1_mlp_s"], p["att1_mlp_b"] = bn(keys[6], d2)
    p["lfa_mlp2_w"] = dense(keys[7], d2, d2)
    p["lfa_mlp2_s"], p["lfa_mlp2_b"] = bn(keys[8], d2)
    p["att2_fc_w"] = dense(keys[9], d_out, d_out)
    p["att2_mlp_w"] = dense(keys[10], d_out, d_out)
    p["att2_mlp_s"], p["att2_mlp_b"] = bn(keys[11], d_out)
    p["mlp2_w"] = dense(keys[12], d_out, 2 * d_out)
    p["mlp2_s"], p["mlp2_b"] = bn(keys[13], 2 * d_out)
    p["sc_w"] = dense(keys[14], d_in, 2 * d_out)
    p["sc_s"], p["sc_b"] = bn(keys[15], 2 * d_out)
    return p


# ----------------------------------------------------------------------------
# Dilated_res_block forward.
# feature: (B, d_in, N, 1) NCHW; xyz: (B, N, 3); neigh_idx: (B, N, K) int32.
# returns: (B, 2*d_out, N, 1)
# ----------------------------------------------------------------------------
def dilated_res_block(params, feature, xyz, neigh_idx):
    x_cf = feature[..., 0]                                   # (B, d_in, N)
    xyz4 = xyz[:, :, None, :]                                # (B, N, 1, 3)

    # mlp1: per-point conv + BN + ReLU, channels-last output (feeds the gather).
    f_pc = mlp1_point_conv(x_cf, params["mlp1_w"],
                           params["mlp1_s"], params["mlp1_b"])        # (B, N, d2)

    # relpos-weight algebraic fold: dist*Wd + xyz@(Wr+Wt) + neigh@(Wn-Wr).
    w1 = params["lfa_mlp1_w"]                                # rows: [dist|rel|tile|neigh]
    wd = w1[0:1]
    wxyz = w1[1:4] + w1[4:7]
    wngh = w1[7:10] - w1[1:4]

    # Neighbour gathers (plain JAX); K-expanded features stored as bf16.
    neigh_xyz = gather_neighbour(xyz, neigh_idx)                      # (B, N, K, 3)
    f_neigh = gather_neighbour(f_pc, neigh_idx, jnp.bfloat16)         # (B, N, K, d2)

    # Att_pooling 1: relpos+mlp1 recomputed in-kernel; channels-last output.
    f_pc_agg = att_pool_fused(
        xyz4, neigh_xyz, f_neigh,
        wd, wxyz, wngh, params["lfa_mlp1_s"], params["lfa_mlp1_b"],
        params["att1_fc_w"], params["att1_mlp_w"],
        params["att1_mlp_s"], params["att1_mlp_b"],
        mlp2=None, out_cf=False)                                      # (B, N, d2)

    f_neigh2 = gather_neighbour(f_pc_agg, neigh_idx, jnp.bfloat16)    # (B, N, K, d2)

    # Att_pooling 2: f_xyz2 = lfa.mlp2(lfa.mlp1(relpos)) recomputed in-kernel;
    # output emitted channels-first for the residual kernel.
    f_pc_agg2_cf = att_pool_fused(
        xyz4, neigh_xyz, f_neigh2,
        wd, wxyz, wngh, params["lfa_mlp1_s"], params["lfa_mlp1_b"],
        params["att2_fc_w"], params["att2_mlp_w"],
        params["att2_mlp_s"], params["att2_mlp_b"],
        mlp2=(params["lfa_mlp2_w"], params["lfa_mlp2_s"], params["lfa_mlp2_b"]),
        out_cf=True)                                                  # (B, d_out, N)

    # mlp2 + shortcut + residual + leaky_relu(0.2), fused, NCHW output.
    out_cf = res_out_cf(f_pc_agg2_cf, x_cf,
                        params["mlp2_w"].T, params["mlp2_s"], params["mlp2_b"],
                        params["sc_w"].T, params["sc_s"], params["sc_b"])
    return out_cf[..., None]                                          # (B, 2*d_out, N, 1)


if __name__ == "__main__":
    B, d_in, d_out, N, K = 2, 4, 16, 16, 8
    key = jax.random.PRNGKey(0)
    kf, kx, ki, kp = jax.random.split(key, 4)
    feature = jax.random.normal(kf, (B, d_in, N, 1), jnp.float32)
    xyz = jax.random.normal(kx, (B, N, 3), jnp.float32)
    neigh_idx = jax.random.randint(ki, (B, N, K), 0, N, dtype=jnp.int32)
    params = init_params(kp, d_in, d_out)

    fwd = jax.jit(dilated_res_block)
    out = fwd(params, feature, xyz, neigh_idx)
    jax.block_until_ready(out)
    assert out.shape == (B, 2 * d_out, N, 1), out.shape
    assert bool(jnp.all(jnp.isfinite(out)))
    print("KERNEL_OK")
</pallas_src>

<mosaic_0001>
module attributes {stable_mosaic.version = 11 : i64} {
  func.func @_mlp1_kernel(%arg0: i32, %arg1: i32, %arg2: memref<1x4x16xf32, #tpu.memory_space<vmem>>, %arg3: memref<4x8xf32, #tpu.memory_space<vmem>>, %arg4: memref<1x8xf32, #tpu.memory_space<vmem>>, %arg5: memref<1x8xf32, #tpu.memory_space<vmem>>, %arg6: memref<1x16x8xf32, #tpu.memory_space<vmem>>) attributes {dimension_semantics = [#tpu.dimension_semantics<parallel>, #tpu.dimension_semantics<parallel>], iteration_bounds = array<i64: 1, 2>, scalar_prefetch = 0 : i64, scratch_operands = 0 : i64, tpu.core_type = #tpu.core_type<tc>, window_params = [{transform_indices = @transform_0, window_bounds = array<i64: 1, 4, 16>}, {pipeline_mode = #tpu.pipeline_mode<synchronous>, transform_indices = @transform_1, window_bounds = array<i64: 4, 8>}, {pipeline_mode = #tpu.pipeline_mode<synchronous>, transform_indices = @transform_2, window_bounds = array<i64: 1, 8>}, {pipeline_mode = #tpu.pipeline_mode<synchronous>, transform_indices = @transform_3, window_bounds = array<i64: 1, 8>}, {transform_indices = @transform_4, window_bounds = array<i64: 1, 16, 8>}]} {
    %c0 = arith.constant 0 : index
    %c0_0 = arith.constant 0 : index
    %c0_1 = arith.constant 0 : index
    %0 = vector.load %arg2[%c0, %c0_0, %c0_1] : memref<1x4x16xf32, #tpu.memory_space<vmem>>, vector<1x4x16xf32>
    %1 = vector.shape_cast %0 : vector<1x4x16xf32> to vector<4x16xf32>
    %c0_2 = arith.constant 0 : index
    %c0_3 = arith.constant 0 : index
    %2 = vector.load %arg3[%c0_2, %c0_3] : memref<4x8xf32, #tpu.memory_space<vmem>>, vector<4x8xf32>
    %cst = arith.constant dense<0.000000e+00> : vector<16x8xf32>
    %3 = tpu.matmul %1, %2, %cst {dimension_numbers = #tpu.dot_dimension_numbers<[0], [0], [1], [1], [0, 1, 1, 1], [], []>} : vector<4x16xf32>, vector<4x8xf32>, vector<16x8xf32> -> vector<16x8xf32>
    %c0_4 = arith.constant 0 : index
    %c0_5 = arith.constant 0 : index
    %4 = vector.load %arg4[%c0_4, %c0_5] : memref<1x8xf32, #tpu.memory_space<vmem>>, vector<1x8xf32>
    %5 = vector.broadcast %4 : vector<1x8xf32> to vector<16x8xf32>
    %6 = arith.mulf %3, %5 : vector<16x8xf32>
    %c0_6 = arith.constant 0 : index
    %c0_7 = arith.constant 0 : index
    %7 = vector.load %arg5[%c0_6, %c0_7] : memref<1x8xf32, #tpu.memory_space<vmem>>, vector<1x8xf32>
    %8 = vector.broadcast %7 : vector<1x8xf32> to vector<16x8xf32>
    %9 = arith.addf %6, %8 : vector<16x8xf32>
    %cst_8 = arith.constant 0.000000e+00 : f32
    %10 = vector.broadcast %cst_8 : f32 to vector<16x8xf32>
    %11 = arith.maximumf %9, %10 : vector<16x8xf32>
    %c0_9 = arith.constant 0 : index
    %c0_10 = arith.constant 0 : index
    %c0_11 = arith.constant 0 : index
    %12 = vector.load %arg6[%c0_9, %c0_10, %c0_11] : memref<1x16x8xf32, #tpu.memory_space<vmem>>, vector<1x16x8xf32>
    %13 = vector.shape_cast %12 : vector<1x16x8xf32> to vector<16x8xf32>
    %14 = vector.shape_cast %11 : vector<16x8xf32> to vector<1x16x8xf32>
    tpu.vector_store %arg6[%c0_9, %c0_10, %c0_11], %14 {strides = array<i32>} : memref<1x16x8xf32, #tpu.memory_space<vmem>>, vector<1x16x8xf32>,
    return
  }
  func.func @transform_0(%arg0: i32, %arg1: i32) -> (i32, i32, i32) {
    %c0_i32 = arith.constant 0 : i32
    %c0_i32_0 = arith.constant 0 : i32
    return %arg1, %c0_i32, %arg0 : i32, i32, i32
  }
  func.func @transform_1(%arg0: i32, %arg1: i32) -> (i32, i32) {
    %c0_i32 = arith.constant 0 : i32
    %c0_i32_0 = arith.constant 0 : i32
    %c0_i32_1 = arith.constant 0 : i32
    return %c0_i32, %c0_i32_0 : i32, i32
  }
  func.func @transform_2(%arg0: i32, %arg1: i32) -> (i32, i32) {
    %c0_i32 = arith.constant 0 : i32
    %c0_i32_0 = arith.constant 0 : i32
    %c0_i32_1 = arith.constant 0 : i32
    return %c0_i32, %c0_i32_0 : i32, i32
  }
  func.func @transform_3(%arg0: i32, %arg1: i32) -> (i32, i32) {
    %c0_i32 = arith.constant 0 : i32
    %c0_i32_0 = arith.constant 0 : i32
    %c0_i32_1 = arith.constant 0 : i32
    return %c0_i32, %c0_i32_0 : i32, i32
  }
  func.func @transform_4(%arg0: i32, %arg1: i32) -> (i32, i32, i32) {
    %c0_i32 = arith.constant 0 : i32
    %c0_i32_0 = arith.constant 0 : i32
    return %arg1, %arg0, %c0_i32 : i32, i32, i32
  }
}

module attributes {stable_mosaic.version = 11 : i64} {
  func.func @_att_pool_kernel(%arg0: i32, %arg1: i32, %arg2: memref<1x16x1x3xf32, #tpu.memory_space<vmem>>, %arg3: memref<1x16x8x3xf32, #tpu.memory_space<vmem>>, %arg4: memref<1x16x8x8xbf16, #tpu.memory_space<vmem>>, %arg5: memref<1x8xf32, #tpu.memory_space<vmem>>, %arg6: memref<3x8xf32, #tpu.memory_space<vmem>>, %arg7: memref<3x8xf32, #tpu.memory_space<vmem>>, %arg8: memref<1x8xf32, #tpu.memory_space<vmem>>, %arg9: memref<1x8xf32, #tpu.memory_space<vmem>>, %arg10: memref<8x8xf32, #tpu.memory_space<vmem>>, %arg11: memref<8x8xf32, #tpu.memory_space<vmem>>, %arg12: memref<8x8xf32, #tpu.memory_space<vmem>>, %arg13: memref<8x8xf32, #tpu.memory_space<vmem>>, %arg14: memref<8x8xf32, #tpu.memory_space<vmem>>, %arg15: memref<8x8xf32, #tpu.memory_space<vmem>>, %arg16: memref<1x8xf32, #tpu.memory_space<vmem>>, %arg17: memref<1x8xf32, #tpu.memory_space<vmem>>, %arg18: memref<1x16x8xf32, #tpu.memory_space<vmem>>) attributes {dimension_semantics = [#tpu.dimension_semantics<parallel>, #tpu.dimension_semantics<parallel>], iteration_bounds = array<i64: 1, 2>, scalar_prefetch = 0 : i64, scratch_operands = 0 : i64, tpu.core_type = #tpu.core_type<tc>, window_params = [{transform_indices = @transform_0, window_bounds = array<i64: 1, 16, 1, 3>}, {transform_indices = @transform_1, window_bounds = array<i64: 1, 16, 8, 3>}, {transform_indices = @transform_2, window_bounds = array<i64: 1, 16, 8, 8>}, {pipeline_mode = #tpu.pipeline_mode<synchronous>, transform_indices = @transform_3, window_bounds = array<i64: 1, 8>}, {pipeline_mode = #tpu.pipeline_mode<synchronous>, transform_indices = @transform_4, window_bounds = array<i64: 3, 8>}, {pipeline_mode = #tpu.pipeline_mode<synchronous>, transform_indices = @transform_5, window_bounds = array<i64: 3, 8>}, {pipeline_mode = #tpu.pipeline_mode<synchronous>, transform_indices = @transform_6, window_bounds = array<i64: 1, 8>}, {pipeline_mode = #tpu.pipeline_mode<synchronous>, transform_indices = @transform_7, window_bounds = array<i64: 1, 8>}, {pipeline_mode = #tpu.pipeline_mode<synchronous>, transform_indices = @transform_8, window_bounds = array<i64: 8, 8>}, {pipeline_mode = #tpu.pipeline_mode<synchronous>, transform_indices = @transform_9, window_bounds = array<i64: 8, 8>}, {pipeline_mode = #tpu.pipeline_mode<synchronous>, transform_indices = @transform_10, window_bounds = array<i64: 8, 8>}, {pipeline_mode = #tpu.pipeline_mode<synchronous>, transform_indices = @transform_11, window_bounds = array<i64: 8, 8>}, {pipeline_mode = #tpu.pipeline_mode<synchronous>, transform_indices = @transform_12, window_bounds = array<i64: 8, 8>}, {pipeline_mode = #tpu.pipeline_mode<synchronous>, transform_indices = @transform_13, window_bounds = array<i64: 8, 8>}, {pipeline_mode = #tpu.pipeline_mode<synchronous>, transform_indices = @transform_14, window_bounds = array<i64: 1, 8>}, {pipeline_mode = #tpu.pipeline_mode<synchronous>, transform_indices = @transform_15, window_bounds = array<i64: 1, 8>}, {transform_indices = @transform_16, window_bounds = array<i64: 1, 16, 8>}]} {
    %c0 = arith.constant 0 : index
    %c0_0 = arith.constant 0 : index
    %c0_1 = arith.constant 0 : index
    %c0_2 = arith.constant 0 : index
    %0 = vector.load %arg3[%c0, %c0_0, %c0_1, %c0_2] : memref<1x16x8x3xf32, #tpu.memory_space<vmem>>, vector<1x16x8x3xf32>
    %1 = vector.shape_cast %0 : vector<1x16x8x3xf32> to vector<16x8x3xf32>
    %c0_3 = arith.constant 0 : index
    %c0_4 = arith.constant 0 : index
    %c0_5 = arith.constant 0 : index
    %c0_6 = arith.constant 0 : index
    %2 = vector.load %arg2[%c0_3, %c0_4, %c0_5, %c0_6] : memref<1x16x1x3xf32, #tpu.memory_space<vmem>>, vector<1x16x1x3xf32>
    %3 = vector.shape_cast %2 : vector<1x16x1x3xf32> to vector<16x1x3xf32>
    %4 = vector.broadcast %3 : vector<16x1x3xf32> to vector<16x8x3xf32>
    %5 = arith.subf %4, %1 : vector<16x8x3xf32>
    %6 = arith.mulf %5, %5 : vector<16x8x3xf32>
    %cst = arith.constant dense<0.000000e+00> : vector<16x8xf32>
    %7 = vector.multi_reduction <add>, %6, %cst [2] : vector<16x8x3xf32> to vector<16x8xf32>
    %8 = vector.shape_cast %7 : vector<16x8xf32> to vector<16x8x1xf32>
    %9 = math.sqrt %8 : vector<16x8x1xf32>
    %10 = vector.shape_cast %3 : vector<16x1x3xf32> to vector<16x3xf32>
    %c0_7 = arith.constant 0 : index
    %c0_8 = arith.constant 0 : index
    %11 = vector.load %arg6[%c0_7, %c0_8] : memref<3x8xf32, #tpu.memory_space<vmem>>, vector<3x8xf32>
    %cst_9 = arith.constant dense<0.000000e+00> : vector<16x8xf32>
    %12 = tpu.matmul %10, %11, %cst_9 {dimension_numbers = #tpu.dot_dimension_numbers<[1], [0], [0], [1], [0, 0, 1, 1], [], []>} : vector<16x3xf32>, vector<3x8xf32>, vector<16x8xf32> -> vector<16x8xf32>
    %13 = vector.shape_cast %1 : vector<16x8x3xf32> to vector<128x3xf32>
    %c0_10 = arith.constant 0 : index
    %c0_11 = arith.constant 0 : index
    %14 = vector.load %arg7[%c0_10, %c0_11] : memref<3x8xf32, #tpu.memory_space<vmem>>, vector<3x8xf32>
    %cst_12 = arith.constant dense<0.000000e+00> : vector<128x8xf32>
    %15 = tpu.matmul %13, %14, %cst_12 {dimension_numbers = #tpu.dot_dimension_numbers<[1], [0], [0], [1], [0, 0, 1, 1], [], []>} : vector<128x3xf32>, vector<3x8xf32>, vector<128x8xf32> -> vector<128x8xf32>
    %16 = vector.shape_cast %15 : vector<128x8xf32> to vector<16x8x8xf32>
    %c0_13 = arith.constant 0 : index
    %c0_14 = arith.constant 0 : index
    %17 = vector.load %arg5[%c0_13, %c0_14] : memref<1x8xf32, #tpu.memory_space<vmem>>, vector<1x8xf32>
    %18 = vector.shape_cast %17 : vector<1x8xf32> to vector<1x1x8xf32>
    %19 = vector.broadcast %9 : vector<16x8x1xf32> to vector<16x8x8xf32>
    %20 = vector.broadcast %18 : vector<1x1x8xf32> to vector<16x8x8xf32>
    %21 = arith.mulf %19, %20 : vector<16x8x8xf32>
    %22 = arith.addf %21, %16 : vector<16x8x8xf32>
    %23 = vector.shape_cast %12 : vector<16x8xf32> to vector<16x1x8xf32>
    %24 = vector.broadcast %23 : vector<16x1x8xf32> to vector<16x8x8xf32>
    %25 = arith.addf %22, %24 : vector<16x8x8xf32>
    %c0_15 = arith.constant 0 : index
    %c0_16 = arith.constant 0 : index
    %26 = vector.load %arg8[%c0_15, %c0_16] : memref<1x8xf32, #tpu.memory_space<vmem>>, vector<1x8xf32>
    %27 = vector.shape_cast %26 : vector<1x8xf32> to vector<1x1x8xf32>
    %28 = vector.broadcast %27 : vector<1x1x8xf32> to vector<16x8x8xf32>
    %29 = arith.mulf %25, %28 : vector<16x8x8xf32>
    %c0_17 = arith.constant 0 : index
    %c0_18 = arith.constant 0 : index
    %30 = vector.load %arg9[%c0_17, %c0_18] : memref<1x8xf32, #tpu.memory_space<vmem>>, vector<1x8xf32>
    %31 = vector.shape_cast %30 : vector<1x8xf32> to vector<1x1x8xf32>
    %32 = vector.broadcast %31 : vector<1x1x8xf32> to vector<16x8x8xf32>
    %33 = arith.addf %29, %32 : vector<16x8x8xf32>
    %cst_19 = arith.constant 0.000000e+00 : f32
    %34 = vector.broadcast %cst_19 : f32 to vector<16x8x8xf32>
    %35 = arith.maximumf %33, %34 : vector<16x8x8xf32>
    %c0_20 = arith.constant 0 : index
    %c0_21 = arith.constant 0 : index
    %c0_22 = arith.constant 0 : index
    %c0_23 = arith.constant 0 : index
    %36 = vector.load %arg4[%c0_20, %c0_21, %c0_22, %c0_23] : memref<1x16x8x8xbf16, #tpu.memory_space<vmem>>, vector<1x16x8x8xbf16>
    %37 = vector.shape_cast %36 : vector<1x16x8x8xbf16> to vector<16x8x8xbf16>
    %38 = arith.extf %37 : vector<16x8x8xbf16> to vector<16x8x8xf32>
    %39 = vector.shape_cast %38 : vector<16x8x8xf32> to vector<128x8xf32>
    %40 = vector.shape_cast %35 : vector<16x8x8xf32> to vector<128x8xf32>
    %c0_24 = arith.constant 0 : index
    %c0_25 = arith.constant 0 : index
    %41 = vector.load %arg10[%c0_24, %c0_25] : memref<8x8xf32, #tpu.memory_space<vmem>>, vector<8x8xf32>
    %cst_26 = arith.constant dense<0.000000e+00> : vector<128x8xf32>
    %42 = tpu.matmul %39, %41, %cst_26 {dimension_numbers = #tpu.dot_dimension_numbers<[1], [0], [0], [1], [0, 0, 1, 1], [], []>} : vector<128x8xf32>, vector<8x8xf32>, vector<128x8xf32> -> vector<128x8xf32>
    %c0_27 = arith.constant 0 : index
    %c0_28 = arith.constant 0 : index
    %43 = vector.load %arg12[%c0_27, %c0_28] : memref<8x8xf32, #tpu.memory_space<vmem>>, vector<8x8xf32>
    %cst_29 = arith.constant dense<0.000000e+00> : vector<128x8xf32>
    %44 = tpu.matmul %40, %43, %cst_29 {dimension_numbers = #tpu.dot_dimension_numbers<[1], [0], [0], [1], [0, 0, 1, 1], [], []>} : vector<128x8xf32>, vector<8x8xf32>, vector<128x8xf32> -> vector<128x8xf32>
    %45 = arith.addf %42, %44 : vector<128x8xf32>
    %46 = vector.shape_cast %45 : vector<128x8xf32> to vector<16x8x8xf32>
    %c0_30 = arith.constant 0 : index
    %c0_31 = arith.constant 0 : index
    %47 = vector.load %arg11[%c0_30, %c0_31] : memref<8x8xf32, #tpu.memory_space<vmem>>, vector<8x8xf32>
    %cst_32 = arith.constant dense<0.000000e+00> : vector<128x8xf32>
    %48 = tpu.matmul %39, %47, %cst_32 {dimension_numbers = #tpu.dot_dimension_numbers<[1], [0], [0], [1], [0, 0, 1, 1], [], []>} : vector<128x8xf32>, vector<8x8xf32>, vector<128x8xf32> -> vector<128x8xf32>
    %c0_33 = arith.constant 0 : index
    %c0_34 = arith.constant 0 : index
    %49 = vector.load %arg13[%c0_33, %c0_34] : memref<8x8xf32, #tpu.memory_space<vmem>>, vector<8x8xf32>
    %cst_35 = arith.constant dense<0.000000e+00> : vector<128x8xf32>
    %50 = tpu.matmul %40, %49, %cst_35 {dimension_numbers = #tpu.dot_dimension_numbers<[1], [0], [0], [1], [0, 0, 1, 1], [], []>} : vector<128x8xf32>, vector<8x8xf32>, vector<128x8xf32> -> vector<128x8xf32>
    %51 = arith.addf %48, %50 : vector<128x8xf32>
    %52 = vector.shape_cast %51 : vector<128x8xf32> to vector<16x8x8xf32>
    %cst_36 = arith.constant dense<0xFF800000> : vector<16x8xf32>
    %53 = vector.multi_reduction <maximumf>, %46, %cst_36 [1] : vector<16x8x8xf32> to vector<16x8xf32>
    %54 = vector.shape_cast %53 : vector<16x8xf32> to vector<16x1x8xf32>
    %55 = vector.broadcast %54 : vector<16x1x8xf32> to vector<16x8x8xf32>
    %56 = arith.subf %46, %55 : vector<16x8x8xf32>
    %57 = math.exp %56 : vector<16x8x8xf32>
    %cst_37 = arith.constant dense<0.000000e+00> : vector<16x8xf32>
    %58 = vector.multi_reduction <add>, %57, %cst_37 [1] : vector<16x8x8xf32> to vector<16x8xf32>
    %59 = vector.shape_cast %58 : vector<16x8xf32> to vector<16x1x8xf32>
    %60 = tpu.reciprocal %59 {approx = true} : vector<16x1x8xf32> -> vector<16x1x8xf32>
    %61 = vector.broadcast %60 : vector<16x1x8xf32> to vector<16x8x8xf32>
    %62 = arith.mulf %57, %61 : vector<16x8x8xf32>
    %63 = arith.mulf %38, %62 : vector<16x8x8xf32>
    %cst_38 = arith.constant dense<0.000000e+00> : vector<16x8xf32>
    %64 = vector.multi_reduction <add>, %63, %cst_38 [1] : vector<16x8x8xf32> to vector<16x8xf32>
    %cst_39 = arith.constant dense<0xFF800000> : vector<16x8xf32>
    %65 = vector.multi_reduction <maximumf>, %52, %cst_39 [1] : vector<16x8x8xf32> to vector<16x8xf32>
    %66 = vector.shape_cast %65 : vector<16x8xf32> to vector<16x1x8xf32>
    %67 = vector.broadcast %66 : vector<16x1x8xf32> to vector<16x8x8xf32>
    %68 = arith.subf %52, %67 : vector<16x8x8xf32>
    %69 = math.exp %68 : vector<16x8x8xf32>
    %cst_40 = arith.constant dense<0.000000e+00> : vector<16x8xf32>
    %70 = vector.multi_reduction <add>, %69, %cst_40 [1] : vector<16x8x8xf32> to vector<16x8xf32>
    %71 = vector.shape_cast %70 : vector<16x8xf32> to vector<16x1x8xf32>
    %72 = tpu.reciprocal %71 {approx = true} : vector<16x1x8xf32> -> vector<16x1x8xf32>
    %73 = vector.broadcast %72 : vector<16x1x8xf32> to vector<16x8x8xf32>
    %74 = arith.mulf %69, %73 : vector<16x8x8xf32>
    %75 = arith.mulf %35, %74 : vector<16x8x8xf32>
    %cst_41 = arith.constant dense<0.000000e+00> : vector<16x8xf32>
    %76 = vector.multi_reduction <add>, %75, %cst_41 [1] : vector<16x8x8xf32> to vector<16x8xf32>
    %c0_42 = arith.constant 0 : index
    %c0_43 = arith.constant 0 : index
    %77 = vector.load %arg14[%c0_42, %c0_43] : memref<8x8xf32, #tpu.memory_space<vmem>>, vector<8x8xf32>
    %cst_44 = arith.constant dense<0.000000e+00> : vector<16x8xf32>
    %78 = tpu.matmul %64, %77, %cst_44 {dimension_numbers = #tpu.dot_dimension_numbers<[1], [0], [0], [1], [0, 0, 1, 1], [], []>} : vector<16x8xf32>, vector<8x8xf32>, vector<16x8xf32> -> vector<16x8xf32>
    %c0_45 = arith.constant 0 : index
    %c0_46 = arith.constant 0 : index
    %79 = vector.load %arg15[%c0_45, %c0_46] : memref<8x8xf32, #tpu.memory_space<vmem>>, vector<8x8xf32>
    %cst_47 = arith.constant dense<0.000000e+00> : vector<16x8xf32>
    %80 = tpu.matmul %76, %79, %cst_47 {dimension_numbers = #tpu.dot_dimension_numbers<[1], [0], [0], [1], [0, 0, 1, 1], [], []>} : vector<16x8xf32>, vector<8x8xf32>, vector<16x8xf32> -> vector<16x8xf32>
    %81 = arith.addf %78, %80 : vector<16x8xf32>
    %c0_48 = arith.constant 0 : index
    %c0_49 = arith.constant 0 : index
    %82 = vector.load %arg16[%c0_48, %c0_49] : memref<1x8xf32, #tpu.memory_space<vmem>>, vector<1x8xf32>
    %83 = vector.broadcast %82 : vector<1x8xf32> to vector<16x8xf32>
    %84 = arith.mulf %81, %83 : vector<16x8xf32>
    %c0_50 = arith.constant 0 : index
    %c0_51 = arith.constant 0 : index
    %85 = vector.load %arg17[%c0_50, %c0_51] : memref<1x8xf32, #tpu.memory_space<vmem>>, vector<1x8xf32>
    %86 = vector.broadcast %85 : vector<1x8xf32> to vector<16x8xf32>
    %87 = arith.addf %84, %86 : vector<16x8xf32>
    %cst_52 = arith.constant 0.000000e+00 : f32
    %88 = vector.broadcast %cst_52 : f32 to vector<16x8xf32>
    %89 = arith.maximumf %87, %88 : vector<16x8xf32>
    %c0_53 = arith.constant 0 : index
    %c0_54 = arith.constant 0 : index
    %c0_55 = arith.constant 0 : index
    %90 = vector.load %arg18[%c0_53, %c0_54, %c0_55] : memref<1x16x8xf32, #tpu.memory_space<vmem>>, vector<1x16x8xf32>
    %91 = vector.shape_cast %90 : vector<1x16x8xf32> to vector<16x8xf32>
    %92 = vector.shape_cast %89 : vector<16x8xf32> to vector<1x16x8xf32>
    tpu.vector_store %arg18[%c0_53, %c0_54, %c0_55], %92 {strides = array<i32>} : memref<1x16x8xf32, #tpu.memory_space<vmem>>, vector<1x16x8xf32>,
    return
  }
  func.func @transform_0(%arg0: i32, %arg1: i32) -> (i32, i32, i32, i32) {
    %c0_i32 = arith.constant 0 : i32
    %c0_i32_0 = arith.constant 0 : i32
    %c0_i32_1 = arith.constant 0 : i32
    return %arg1, %arg0, %c0_i32, %c0_i32_0 : i32, i32, i32, i32
  }
  func.func @transform_1(%arg0: i32, %arg1: i32) -> (i32, i32, i32, i32) {
    %c0_i32 = arith.constant 0 : i32
    %c0_i32_0 = arith.constant 0 : i32
    %c0_i32_1 = arith.constant 0 : i32
    return %arg1, %arg0, %c0_i32, %c0_i32_0 : i32, i32, i32, i32
  }
  func.func @transform_2(%arg0: i32, %arg1: i32) -> (i32, i32, i32, i32) {
    %c0_i32 = arith.constant 0 : i32
    %c0_i32_0 = arith.constant 0 : i32
    %c0_i32_1 = arith.constant 0 : i32
    return %arg1, %arg0, %c0_i32, %c0_i32_0 : i32, i32, i32, i32
  }
  func.func @transform_3(%arg0: i32, %arg1: i32) -> (i32, i32) {
    %c0_i32 = arith.constant 0 : i32
    %c0_i32_0 = arith.constant 0 : i32
    %c0_i32_1 = arith.constant 0 : i32
    return %c0_i32, %c0_i32_0 : i32, i32
  }
  func.func @transform_4(%arg0: i32, %arg1: i32) -> (i32, i32) {
    %c0_i32 = arith.constant 0 : i32
    %c0_i32_0 = arith.constant 0 : i32
    %c0_i32_1 = arith.constant 0 : i32
    return %c0_i32, %c0_i32_0 : i32, i32
  }
  func.func @transform_5(%arg0: i32, %arg1: i32) -> (i32, i32) {
    %c0_i32 = arith.constant 0 : i32
    %c0_i32_0 = arith.constant 0 : i32
    %c0_i32_1 = arith.constant 0 : i32
    return %c0_i32, %c0_i32_0 : i32, i32
  }
  func.func @transform_6(%arg0: i32, %arg1: i32) -> (i32, i32) {
    %c0_i32 = arith.constant 0 : i32
    %c0_i32_0 = arith.constant 0 : i32
    %c0_i32_1 = arith.constant 0 : i32
    return %c0_i32, %c0_i32_0 : i32, i32
  }
  func.func @transform_7(%arg0: i32, %arg1: i32) -> (i32, i32) {
    %c0_i32 = arith.constant 0 : i32
    %c0_i32_0 = arith.constant 0 : i32
    %c0_i32_1 = arith.constant 0 : i32
    return %c0_i32, %c0_i32_0 : i32, i32
  }
  func.func @transform_8(%arg0: i32, %arg1: i32) -> (i32, i32) {
    %c0_i32 = arith.constant 0 : i32
    %c0_i32_0 = arith.constant 0 : i32
    %c0_i32_1 = arith.constant 0 : i32
    return %c0_i32, %c0_i32_0 : i32, i32
  }
  func.func @transform_9(%arg0: i32, %arg1: i32) -> (i32, i32) {
    %c0_i32 = arith.constant 0 : i32
    %c0_i32_0 = arith.constant 0 : i32
    %c0_i32_1 = arith.constant 0 : i32
    return %c0_i32, %c0_i32_0 : i32, i32
  }
  func.func @transform_10(%arg0: i32, %arg1: i32) -> (i32, i32) {
    %c0_i32 = arith.constant 0 : i32
    %c0_i32_0 = arith.constant 0 : i32
    %c0_i32_1 = arith.constant 0 : i32
    return %c0_i32, %c0_i32_0 : i32, i32
  }
  func.func @transform_11(%arg0: i32, %arg1: i32) -> (i32, i32) {
    %c0_i32 = arith.constant 0 : i32
    %c0_i32_0 = arith.constant 0 : i32
    %c0_i32_1 = arith.constant 0 : i32
    return %c0_i32, %c0_i32_0 : i32, i32
  }
  func.func @transform_12(%arg0: i32, %arg1: i32) -> (i32, i32) {
    %c0_i32 = arith.constant 0 : i32
    %c0_i32_0 = arith.constant 0 : i32
    %c0_i32_1 = arith.constant 0 : i32
    return %c0_i32, %c0_i32_0 : i32, i32
  }
  func.func @transform_13(%arg0: i32, %arg1: i32) -> (i32, i32) {
    %c0_i32 = arith.constant 0 : i32
    %c0_i32_0 = arith.constant 0 : i32
    %c0_i32_1 = arith.constant 0 : i32
    return %c0_i32, %c0_i32_0 : i32, i32
  }
  func.func @transform_14(%arg0: i32, %arg1: i32) -> (i32, i32) {
    %c0_i32 = arith.constant 0 : i32
    %c0_i32_0 = arith.constant 0 : i32
    %c0_i32_1 = arith.constant 0 : i32
    return %c0_i32, %c0_i32_0 : i32, i32
  }
  func.func @transform_15(%arg0: i32, %arg1: i32) -> (i32, i32) {
    %c0_i32 = arith.constant 0 : i32
    %c0_i32_0 = arith.constant 0 : i32
    %c0_i32_1 = arith.constant 0 : i32
    return %c0_i32, %c0_i32_0 : i32, i32
  }
  func.func @transform_16(%arg0: i32, %arg1: i32) -> (i32, i32, i32) {
    %c0_i32 = arith.constant 0 : i32
    %c0_i32_0 = arith.constant 0 : i32
    return %arg1, %arg0, %c0_i32 : i32, i32, i32
  }
}

module attributes {stable_mosaic.version = 11 : i64} {
  func.func @_att_pool_kernel(%arg0: i32, %arg1: i32, %arg2: memref<1x16x1x3xf32, #tpu.memory_space<vmem>>, %arg3: memref<1x16x8x3xf32, #tpu.memory_space<vmem>>, %arg4: memref<1x16x8x8xbf16, #tpu.memory_space<vmem>>, %arg5: memref<1x8xf32, #tpu.memory_space<vmem>>, %arg6: memref<3x8xf32, #tpu.memory_space<vmem>>, %arg7: memref<3x8xf32, #tpu.memory_space<vmem>>, %arg8: memref<1x8xf32, #tpu.memory_space<vmem>>, %arg9: memref<1x8xf32, #tpu.memory_space<vmem>>, %arg10: memref<8x8xf32, #tpu.memory_space<vmem>>, %arg11: memref<1x8xf32, #tpu.memory_space<vmem>>, %arg12: memref<1x8xf32, #tpu.memory_space<vmem>>, %arg13: memref<8x8xf32, #tpu.memory_space<vmem>>, %arg14: memref<8x8xf32, #tpu.memory_space<vmem>>, %arg15: memref<8x8xf32, #tpu.memory_space<vmem>>, %arg16: memref<8x8xf32, #tpu.memory_space<vmem>>, %arg17: memref<16x8xf32, #tpu.memory_space<vmem>>, %arg18: memref<16x8xf32, #tpu.memory_space<vmem>>, %arg19: memref<16x1xf32, #tpu.memory_space<vmem>>, %arg20: memref<16x1xf32, #tpu.memory_space<vmem>>, %arg21: memref<1x16x16xf32, #tpu.memory_space<vmem>>) attributes {dimension_semantics = [#tpu.dimension_semantics<parallel>, #tpu.dimension_semantics<parallel>], iteration_bounds = array<i64: 1, 2>, scalar_prefetch = 0 : i64, scratch_operands = 0 : i64, tpu.core_type = #tpu.core_type<tc>, window_params = [{transform_indices = @transform_0, window_bounds = array<i64: 1, 16, 1, 3>}, {transform_indices = @transform_1, window_bounds = array<i64: 1, 16, 8, 3>}, {transform_indices = @transform_2, window_bounds = array<i64: 1, 16, 8, 8>}, {pipeline_mode = #tpu.pipeline_mode<synchronous>, transform_indices = @transform_3, window_bounds = array<i64: 1, 8>}, {pipeline_mode = #tpu.pipeline_mode<synchronous>, transform_indices = @transform_4, window_bounds = array<i64: 3, 8>}, {pipeline_mode = #tpu.pipeline_mode<synchronous>, transform_indices = @transform_5, window_bounds = array<i64: 3, 8>}, {pipeline_mode = #tpu.pipeline_mode<synchronous>, transform_indices = @transform_6, window_bounds = array<i64: 1, 8>}, {pipeline_mode = #tpu.pipeline_mode<synchronous>, transform_indices = @transform_7, window_bounds = array<i64: 1, 8>}, {pipeline_mode = #tpu.pipeline_mode<synchronous>, transform_indices = @transform_8, window_bounds = array<i64: 8, 8>}, {pipeline_mode = #tpu.pipeline_mode<synchronous>, transform_indices = @transform_9, window_bounds = array<i64: 1, 8>}, {pipeline_mode = #tpu.pipeline_mode<synchronous>, transform_indices = @transform_10, window_bounds = array<i64: 1, 8>}, {pipeline_mode = #tpu.pipeline_mode<synchronous>, transform_indices = @transform_11, window_bounds = array<i64: 8, 8>}, {pipeline_mode = #tpu.pipeline_mode<synchronous>, transform_indices = @transform_12, window_bounds = array<i64: 8, 8>}, {pipeline_mode = #tpu.pipeline_mode<synchronous>, transform_indices = @transform_13, window_bounds = array<i64: 8, 8>}, {pipeline_mode = #tpu.pipeline_mode<synchronous>, transform_indices = @transform_14, window_bounds = array<i64: 8, 8>}, {pipeline_mode = #tpu.pipeline_mode<synchronous>, transform_indices = @transform_15, window_bounds = array<i64: 16, 8>}, {pipeline_mode = #tpu.pipeline_mode<synchronous>, transform_indices = @transform_16, window_bounds = array<i64: 16, 8>}, {pipeline_mode = #tpu.pipeline_mode<synchronous>, transform_indices = @transform_17, window_bounds = array<i64: 16, 1>}, {pipeline_mode = #tpu.pipeline_mode<synchronous>, transform_indices = @transform_18, window_bounds = array<i64: 16, 1>}, {transform_indices = @transform_19, window_bounds = array<i64: 1, 16, 16>}]} {
    %c0 = arith.constant 0 : index
    %c0_0 = arith.constant 0 : index
    %c0_1 = arith.constant 0 : index
    %c0_2 = arith.constant 0 : index
    %0 = vector.load %arg3[%c0, %c0_0, %c0_1, %c0_2] : memref<1x16x8x3xf32, #tpu.memory_space<vmem>>, vector<1x16x8x3xf32>
    %1 = vector.shape_cast %0 : vector<1x16x8x3xf32> to vector<16x8x3xf32>
    %c0_3 = arith.constant 0 : index
    %c0_4 = arith.constant 0 : index
    %c0_5 = arith.constant 0 : index
    %c0_6 = arith.constant 0 : index
    %2 = vector.load %arg2[%c0_3, %c0_4, %c0_5, %c0_6] : memref<1x16x1x3xf32, #tpu.memory_space<vmem>>, vector<1x16x1x3xf32>
    %3 = vector.shape_cast %2 : vector<1x16x1x3xf32> to vector<16x1x3xf32>
    %4 = vector.broadcast %3 : vector<16x1x3xf32> to vector<16x8x3xf32>
    %5 = arith.subf %4, %1 : vector<16x8x3xf32>
    %6 = arith.mulf %5, %5 : vector<16x8x3xf32>
    %cst = arith.constant dense<0.000000e+00> : vector<16x8xf32>
    %7 = vector.multi_reduction <add>, %6, %cst [2] : vector<16x8x3xf32> to vector<16x8xf32>
    %8 = vector.shape_cast %7 : vector<16x8xf32> to vector<16x8x1xf32>
    %9 = math.sqrt %8 : vector<16x8x1xf32>
    %10 = vector.shape_cast %3 : vector<16x1x3xf32> to vector<16x3xf32>
    %c0_7 = arith.constant 0 : index
    %c0_8 = arith.constant 0 : index
    %11 = vector.load %arg6[%c0_7, %c0_8] : memref<3x8xf32, #tpu.memory_space<vmem>>, vector<3x8xf32>
    %cst_9 = arith.constant dense<0.000000e+00> : vector<16x8xf32>
    %12 = tpu.matmul %10, %11, %cst_9 {dimension_numbers = #tpu.dot_dimension_numbers<[1], [0], [0], [1], [0, 0, 1, 1], [], []>} : vector<16x3xf32>, vector<3x8xf32>, vector<16x8xf32> -> vector<16x8xf32>
    %13 = vector.shape_cast %1 : vector<16x8x3xf32> to vector<128x3xf32>
    %c0_10 = arith.constant 0 : index
    %c0_11 = arith.constant 0 : index
    %14 = vector.load %arg7[%c0_10, %c0_11] : memref<3x8xf32, #tpu.memory_space<vmem>>, vector<3x8xf32>
    %cst_12 = arith.constant dense<0.000000e+00> : vector<128x8xf32>
    %15 = tpu.matmul %13, %14, %cst_12 {dimension_numbers = #tpu.dot_dimension_numbers<[1], [0], [0], [1], [0, 0, 1, 1], [], []>} : vector<128x3xf32>, vector<3x8xf32>, vector<128x8xf32> -> vector<128x8xf32>
    %16 = vector.shape_cast %15 : vector<128x8xf32> to vector<16x8x8xf32>
    %c0_13 = arith.constant 0 : index
    %c0_14 = arith.constant 0 : index
    %17 = vector.load %arg5[%c0_13, %c0_14] : memref<1x8xf32, #tpu.memory_space<vmem>>, vector<1x8xf32>
    %18 = vector.shape_cast %17 : vector<1x8xf32> to vector<1x1x8xf32>
    %19 = vector.broadcast %9 : vector<16x8x1xf32> to vector<16x8x8xf32>
    %20 = vector.broadcast %18 : vector<1x1x8xf32> to vector<16x8x8xf32>
    %21 = arith.mulf %19, %20 : vector<16x8x8xf32>
    %22 = arith.addf %21, %16 : vector<16x8x8xf32>
    %23 = vector.shape_cast %12 : vector<16x8xf32> to vector<16x1x8xf32>
    %24 = vector.broadcast %23 : vector<16x1x8xf32> to vector<16x8x8xf32>
    %25 = arith.addf %22, %24 : vector<16x8x8xf32>
    %c0_15 = arith.constant 0 : index
    %c0_16 = arith.constant 0 : index
    %26 = vector.load %arg8[%c0_15, %c0_16] : memref<1x8xf32, #tpu.memory_space<vmem>>, vector<1x8xf32>
    %27 = vector.shape_cast %26 : vector<1x8xf32> to vector<1x1x8xf32>
    %28 = vector.broadcast %27 : vector<1x1x8xf32> to vector<16x8x8xf32>
    %29 = arith.mulf %25, %28 : vector<16x8x8xf32>
    %c0_17 = arith.constant 0 : index
    %c0_18 = arith.constant 0 : index
    %30 = vector.load %arg9[%c0_17, %c0_18] : memref<1x8xf32, #tpu.memory_space<vmem>>, vector<1x8xf32>
    %31 = vector.shape_cast %30 : vector<1x8xf32> to vector<1x1x8xf32>
    %32 = vector.broadcast %31 : vector<1x1x8xf32> to vector<16x8x8xf32>
    %33 = arith.addf %29, %32 : vector<16x8x8xf32>
    %cst_19 = arith.constant 0.000000e+00 : f32
    %34 = vector.broadcast %cst_19 : f32 to vector<16x8x8xf32>
    %35 = arith.maximumf %33, %34 : vector<16x8x8xf32>
    %36 = vector.shape_cast %35 : vector<16x8x8xf32> to vector<128x8xf32>
    %c0_20 = arith.constant 0 : index
    %c0_21 = arith.constant 0 : index
    %37 = vector.load %arg10[%c0_20, %c0_21] : memref<8x8xf32, #tpu.memory_space<vmem>>, vector<8x8xf32>
    %cst_22 = arith.constant dense<0.000000e+00> : vector<128x8xf32>
    %38 = tpu.matmul %36, %37, %cst_22 {dimension_numbers = #tpu.dot_dimension_numbers<[1], [0], [0], [1], [0, 0, 1, 1], [], []>} : vector<128x8xf32>, vector<8x8xf32>, vector<128x8xf32> -> vector<128x8xf32>
    %c0_23 = arith.constant 0 : index
    %c0_24 = arith.constant 0 : index
    %39 = vector.load %arg11[%c0_23, %c0_24] : memref<1x8xf32, #tpu.memory_space<vmem>>, vector<1x8xf32>
    %40 = vector.broadcast %39 : vector<1x8xf32> to vector<128x8xf32>
    %41 = arith.mulf %38, %40 : vector<128x8xf32>
    %c0_25 = arith.constant 0 : index
    %c0_26 = arith.constant 0 : index
    %42 = vector.load %arg12[%c0_25, %c0_26] : memref<1x8xf32, #tpu.memory_space<vmem>>, vector<1x8xf32>
    %43 = vector.broadcast %42 : vector<1x8xf32> to vector<128x8xf32>
    %44 = arith.addf %41, %43 : vector<128x8xf32>
    %cst_27 = arith.constant 0.000000e+00 : f32
    %45 = vector.broadcast %cst_27 : f32 to vector<128x8xf32>
    %46 = arith.maximumf %44, %45 : vector<128x8xf32>
    %47 = vector.shape_cast %46 : vector<128x8xf32> to vector<16x8x8xf32>
    %c0_28 = arith.constant 0 : index
    %c0_29 = arith.constant 0 : index
    %c0_30 = arith.constant 0 : index
    %c0_31 = arith.constant 0 : index
    %48 = vector.load %arg4[%c0_28, %c0_29, %c0_30, %c0_31] : memref<1x16x8x8xbf16, #tpu.memory_space<vmem>>, vector<1x16x8x8xbf16>
    %49 = vector.shape_cast %48 : vector<1x16x8x8xbf16> to vector<16x8x8xbf16>
    %50 = arith.extf %49 : vector<16x8x8xbf16> to vector<16x8x8xf32>
    %51 = vector.shape_cast %50 : vector<16x8x8xf32> to vector<128x8xf32>
    %52 = vector.shape_cast %47 : vector<16x8x8xf32> to vector<128x8xf32>
    %c0_32 = arith.constant 0 : index
    %c0_33 = arith.constant 0 : index
    %53 = vector.load %arg13[%c0_32, %c0_33] : memref<8x8xf32, #tpu.memory_space<vmem>>, vector<8x8xf32>
    %cst_34 = arith.constant dense<0.000000e+00> : vector<128x8xf32>
    %54 = tpu.matmul %51, %53, %cst_34 {dimension_numbers = #tpu.dot_dimension_numbers<[1], [0], [0], [1], [0, 0, 1, 1], [], []>} : vector<128x8xf32>, vector<8x8xf32>, vector<128x8xf32> -> vector<128x8xf32>
    %c0_35 = arith.constant 0 : index
    %c0_36 = arith.constant 0 : index
    %55 = vector.load %arg15[%c0_35, %c0_36] : memref<8x8xf32, #tpu.memory_space<vmem>>, vector<8x8xf32>
    %cst_37 = arith.constant dense<0.000000e+00> : vector<128x8xf32>
    %56 = tpu.matmul %52, %55, %cst_37 {dimension_numbers = #tpu.dot_dimension_numbers<[1], [0], [0], [1], [0, 0, 1, 1], [], []>} : vector<128x8xf32>, vector<8x8xf32>, vector<128x8xf32> -> vector<128x8xf32>
    %57 = arith.addf %54, %56 : vector<128x8xf32>
    %58 = vector.shape_cast %57 : vector<128x8xf32> to vector<16x8x8xf32>
    %c0_38 = arith.constant 0 : index
    %c0_39 = arith.constant 0 : index
    %59 = vector.load %arg14[%c0_38, %c0_39] : memref<8x8xf32, #tpu.memory_space<vmem>>, vector<8x8xf32>
    %cst_40 = arith.constant dense<0.000000e+00> : vector<128x8xf32>
    %60 = tpu.matmul %51, %59, %cst_40 {dimension_numbers = #tpu.dot_dimension_numbers<[1], [0], [0], [1], [0, 0, 1, 1], [], []>} : vector<128x8xf32>, vector<8x8xf32>, vector<128x8xf32> -> vector<128x8xf32>
    %c0_41 = arith.constant 0 : index
    %c0_42 = arith.constant 0 : index
    %61 = vector.load %arg16[%c0_41, %c0_42] : memref<8x8xf32, #tpu.memory_space<vmem>>, vector<8x8xf32>
    %cst_43 = arith.constant dense<0.000000e+00> : vector<128x8xf32>
    %62 = tpu.matmul %52, %61, %cst_43 {dimension_numbers = #tpu.dot_dimension_numbers<[1], [0], [0], [1], [0, 0, 1, 1], [], []>} : vector<128x8xf32>, vector<8x8xf32>, vector<128x8xf32> -> vector<128x8xf32>
    %63 = arith.addf %60, %62 : vector<128x8xf32>
    %64 = vector.shape_cast %63 : vector<128x8xf32> to vector<16x8x8xf32>
    %cst_44 = arith.constant dense<0xFF800000> : vector<16x8xf32>
    %65 = vector.multi_reduction <maximumf>, %58, %cst_44 [1] : vector<16x8x8xf32> to vector<16x8xf32>
    %66 = vector.shape_cast %65 : vector<16x8xf32> to vector<16x1x8xf32>
    %67 = vector.broadcast %66 : vector<16x1x8xf32> to vector<16x8x8xf32>
    %68 = arith.subf %58, %67 : vector<16x8x8xf32>
    %69 = math.exp %68 : vector<16x8x8xf32>
    %cst_45 = arith.constant dense<0.000000e+00> : vector<16x8xf32>
    %70 = vector.multi_reduction <add>, %69, %cst_45 [1] : vector<16x8x8xf32> to vector<16x8xf32>
    %71 = vector.shape_cast %70 : vector<16x8xf32> to vector<16x1x8xf32>
    %72 = tpu.reciprocal %71 {approx = true} : vector<16x1x8xf32> -> vector<16x1x8xf32>
    %73 = vector.broadcast %72 : vector<16x1x8xf32> to vector<16x8x8xf32>
    %74 = arith.mulf %69, %73 : vector<16x8x8xf32>
    %75 = arith.mulf %50, %74 : vector<16x8x8xf32>
    %cst_46 = arith.constant dense<0.000000e+00> : vector<16x8xf32>
    %76 = vector.multi_reduction <add>, %75, %cst_46 [1] : vector<16x8x8xf32> to vector<16x8xf32>
    %cst_47 = arith.constant dense<0xFF800000> : vector<16x8xf32>
    %77 = vector.multi_reduction <maximumf>, %64, %cst_47 [1] : vector<16x8x8xf32> to vector<16x8xf32>
    %78 = vector.shape_cast %77 : vector<16x8xf32> to vector<16x1x8xf32>
    %79 = vector.broadcast %78 : vector<16x1x8xf32> to vector<16x8x8xf32>
    %80 = arith.subf %64, %79 : vector<16x8x8xf32>
    %81 = math.exp %80 : vector<16x8x8xf32>
    %cst_48 = arith.constant dense<0.000000e+00> : vector<16x8xf32>
    %82 = vector.multi_reduction <add>, %81, %cst_48 [1] : vector<16x8x8xf32> to vector<16x8xf32>
    %83 = vector.shape_cast %82 : vector<16x8xf32> to vector<16x1x8xf32>
    %84 = tpu.reciprocal %83 {approx = true} : vector<16x1x8xf32> -> vector<16x1x8xf32>
    %85 = vector.broadcast %84 : vector<16x1x8xf32> to vector<16x8x8xf32>
    %86 = arith.mulf %81, %85 : vector<16x8x8xf32>
    %87 = arith.mulf %47, %86 : vector<16x8x8xf32>
    %cst_49 = arith.constant dense<0.000000e+00> : vector<16x8xf32>
    %88 = vector.multi_reduction <add>, %87, %cst_49 [1] : vector<16x8x8xf32> to vector<16x8xf32>
    %c0_50 = arith.constant 0 : index
    %c0_51 = arith.constant 0 : index
    %89 = vector.load %arg17[%c0_50, %c0_51] : memref<16x8xf32, #tpu.memory_space<vmem>>, vector<16x8xf32>
    %cst_52 = arith.constant dense<0.000000e+00> : vector<16x16xf32>
    %90 = tpu.matmul %89, %76, %cst_52 {dimension_numbers = #tpu.dot_dimension_numbers<[1], [1], [0], [0], [0, 0, 1, 0], [], []>} : vector<16x8xf32>, vector<16x8xf32>, vector<16x16xf32> -> vector<16x16xf32>
    %c0_53 = arith.constant 0 : index
    %c0_54 = arith.constant 0 : index
    %91 = vector.load %arg18[%c0_53, %c0_54] : memref<16x8xf32, #tpu.memory_space<vmem>>, vector<16x8xf32>
    %cst_55 = arith.constant dense<0.000000e+00> : vector<16x16xf32>
    %92 = tpu.matmul %91, %88, %cst_55 {dimension_numbers = #tpu.dot_dimension_numbers<[1], [1], [0], [0], [0, 0, 1, 0], [], []>} : vector<16x8xf32>, vector<16x8xf32>, vector<16x16xf32> -> vector<16x16xf32>
    %93 = arith.addf %90, %92 : vector<16x16xf32>
    %c0_56 = arith.constant 0 : index
    %c0_57 = arith.constant 0 : index
    %94 = vector.load %arg19[%c0_56, %c0_57] : memref<16x1xf32, #tpu.memory_space<vmem>>, vector<16x1xf32>
    %95 = vector.broadcast %94 : vector<16x1xf32> to vector<16x16xf32>
    %96 = arith.mulf %93, %95 : vector<16x16xf32>
    %c0_58 = arith.constant 0 : index
    %c0_59 = arith.constant 0 : index
    %97 = vector.load %arg20[%c0_58, %c0_59] : memref<16x1xf32, #tpu.memory_space<vmem>>, vector<16x1xf32>
    %98 = vector.broadcast %97 : vector<16x1xf32> to vector<16x16xf32>
    %99 = arith.addf %96, %98 : vector<16x16xf32>
    %cst_60 = arith.constant 0.000000e+00 : f32
    %100 = vector.broadcast %cst_60 : f32 to vector<16x16xf32>
    %101 = arith.maximumf %99, %100 : vector<16x16xf32>
    %c0_61 = arith.constant 0 : index
    %c0_62 = arith.constant 0 : index
    %c0_63 = arith.constant 0 : index
    %102 = vector.load %arg21[%c0_61, %c0_62, %c0_63] : memref<1x16x16xf32, #tpu.memory_space<vmem>>, vector<1x16x16xf32>
    %103 = vector.shape_cast %102 : vector<1x16x16xf32> to vector<16x16xf32>
    %104 = vector.shape_cast %101 : vector<16x16xf32> to vector<1x16x16xf32>
    tpu.vector_store %arg21[%c0_61, %c0_62, %c0_63], %104 {strides = array<i32>} : memref<1x16x16xf32, #tpu.memory_space<vmem>>, vector<1x16x16xf32>,
    return
  }
  func.func @transform_0(%arg0: i32, %arg1: i32) -> (i32, i32, i32, i32) {
    %c0_i32 = arith.constant 0 : i32
    %c0_i32_0 = arith.constant 0 : i32
    %c0_i32_1 = arith.constant 0 : i32
    return %arg1, %arg0, %c0_i32, %c0_i32_0 : i32, i32, i32, i32
  }
  func.func @transform_1(%arg0: i32, %arg1: i32) -> (i32, i32, i32, i32) {
    %c0_i32 = arith.constant 0 : i32
    %c0_i32_0 = arith.constant 0 : i32
    %c0_i32_1 = arith.constant 0 : i32
    return %arg1, %arg0, %c0_i32, %c0_i32_0 : i32, i32, i32, i32
  }
  func.func @transform_2(%arg0: i32, %arg1: i32) -> (i32, i32, i32, i32) {
    %c0_i32 = arith.constant 0 : i32
    %c0_i32_0 = arith.constant 0 : i32
    %c0_i32_1 = arith.constant 0 : i32
    return %arg1, %arg0, %c0_i32, %c0_i32_0 : i32, i32, i32, i32
  }
  func.func @transform_3(%arg0: i32, %arg1: i32) -> (i32, i32) {
    %c0_i32 = arith.constant 0 : i32
    %c0_i32_0 = arith.constant 0 : i32
    %c0_i32_1 = arith.constant 0 : i32
    return %c0_i32, %c0_i32_0 : i32, i32
  }
  func.func @transform_4(%arg0: i32, %arg1: i32) -> (i32, i32) {
    %c0_i32 = arith.constant 0 : i32
    %c0_i32_0 = arith.constant 0 : i32
    %c0_i32_1 = arith.constant 0 : i32
    return %c0_i32, %c0_i32_0 : i32, i32
  }
  func.func @transform_5(%arg0: i32, %arg1: i32) -> (i32, i32) {
    %c0_i32 = arith.constant 0 : i32
    %c0_i32_0 = arith.constant 0 : i32
    %c0_i32_1 = arith.constant 0 : i32
    return %c0_i32, %c0_i32_0 : i32, i32
  }
  func.func @transform_6(%arg0: i32, %arg1: i32) -> (i32, i32) {
    %c0_i32 = arith.constant 0 : i32
    %c0_i32_0 = arith.constant 0 : i32
    %c0_i32_1 = arith.constant 0 : i32
    return %c0_i32, %c0_i32_0 : i32, i32
  }
  func.func @transform_7(%arg0: i32, %arg1: i32) -> (i32, i32) {
    %c0_i32 = arith.constant 0 : i32
    %c0_i32_0 = arith.constant 0 : i32
    %c0_i32_1 = arith.constant 0 : i32
    return %c0_i32, %c0_i32_0 : i32, i32
  }
  func.func @transform_8(%arg0: i32, %arg1: i32) -> (i32, i32) {
    %c0_i32 = arith.constant 0 : i32
    %c0_i32_0 = arith.constant 0 : i32
    %c0_i32_1 = arith.constant 0 : i32
    return %c0_i32, %c0_i32_0 : i32, i32
  }
  func.func @transform_9(%arg0: i32, %arg1: i32) -> (i32, i32) {
    %c0_i32 = arith.constant 0 : i32
    %c0_i32_0 = arith.constant 0 : i32
    %c0_i32_1 = arith.constant 0 : i32
    return %c0_i32, %c0_i32_0 : i32, i32
  }
  func.func @transform_10(%arg0: i32, %arg1: i32) -> (i32, i32) {
    %c0_i32 = arith.constant 0 : i32
    %c0_i32_0 = arith.constant 0 : i32
    %c0_i32_1 = arith.constant 0 : i32
    return %c0_i32, %c0_i32_0 : i32, i32
  }
  func.func @transform_11(%arg0: i32, %arg1: i32) -> (i32, i32) {
    %c0_i32 = arith.constant 0 : i32
    %c0_i32_0 = arith.constant 0 : i32
    %c0_i32_1 = arith.constant 0 : i32
    return %c0_i32, %c0_i32_0 : i32, i32
  }
  func.func @transform_12(%arg0: i32, %arg1: i32) -> (i32, i32) {
    %c0_i32 = arith.constant 0 : i32
    %c0_i32_0 = arith.constant 0 : i32
    %c0_i32_1 = arith.constant 0 : i32
    return %c0_i32, %c0_i32_0 : i32, i32
  }
  func.func @transform_13(%arg0: i32, %arg1: i32) -> (i32, i32) {
    %c0_i32 = arith.constant 0 : i32
    %c0_i32_0 = arith.constant 0 : i32
    %c0_i32_1 = arith.constant 0 : i32
    return %c0_i32, %c0_i32_0 : i32, i32
  }
  func.func @transform_14(%arg0: i32, %arg1: i32) -> (i32, i32) {
    %c0_i32 = arith.constant 0 : i32
    %c0_i32_0 = arith.constant 0 : i32
    %c0_i32_1 = arith.constant 0 : i32
    return %c0_i32, %c0_i32_0 : i32, i32
  }
  func.func @transform_15(%arg0: i32, %arg1: i32) -> (i32, i32) {
    %c0_i32 = arith.constant 0 : i32
    %c0_i32_0 = arith.constant 0 : i32
    %c0_i32_1 = arith.constant 0 : i32
    return %c0_i32, %c0_i32_0 : i32, i32
  }
  func.func @transform_16(%arg0: i32, %arg1: i32) -> (i32, i32) {
    %c0_i32 = arith.constant 0 : i32
    %c0_i32_0 = arith.constant 0 : i32
    %c0_i32_1 = arith.constant 0 : i32
    return %c0_i32, %c0_i32_0 : i32, i32
  }
  func.func @transform_17(%arg0: i32, %arg1: i32) -> (i32, i32) {
    %c0_i32 = arith.constant 0 : i32
    %c0_i32_0 = arith.constant 0 : i32
    %c0_i32_1 = arith.constant 0 : i32
    return %c0_i32, %c0_i32_0 : i32, i32
  }
  func.func @transform_18(%arg0: i32, %arg1: i32) -> (i32, i32) {
    %c0_i32 = arith.constant 0 : i32
    %c0_i32_0 = arith.constant 0 : i32
    %c0_i32_1 = arith.constant 0 : i32
    return %c0_i32, %c0_i32_0 : i32, i32
  }
  func.func @transform_19(%arg0: i32, %arg1: i32) -> (i32, i32, i32) {
    %c0_i32 = arith.constant 0 : i32
    %c0_i32_0 = arith.constant 0 : i32
    return %arg1, %c0_i32, %arg0 : i32, i32, i32
  }
}

module attributes {stable_mosaic.version = 11 : i64} {
  func.func @_res_out_kernel(%arg0: i32, %arg1: i32, %arg2: memref<1x16x16xf32, #tpu.memory_space<vmem>>, %arg3: memref<1x4x16xf32, #tpu.memory_space<vmem>>, %arg4: memref<32x16xf32, #tpu.memory_space<vmem>>, %arg5: memref<32x1xf32, #tpu.memory_space<vmem>>, %arg6: memref<32x1xf32, #tpu.memory_space<vmem>>, %arg7: memref<32x4xf32, #tpu.memory_space<vmem>>, %arg8: memref<32x1xf32, #tpu.memory_space<vmem>>, %arg9: memref<32x1xf32, #tpu.memory_space<vmem>>, %arg10: memref<1x32x16xf32, #tpu.memory_space<vmem>>) attributes {dimension_semantics = [#tpu.dimension_semantics<parallel>, #tpu.dimension_semantics<parallel>], iteration_bounds = array<i64: 1, 2>, scalar_prefetch = 0 : i64, scratch_operands = 0 : i64, tpu.core_type = #tpu.core_type<tc>, window_params = [{transform_indices = @transform_0, window_bounds = array<i64: 1, 16, 16>}, {transform_indices = @transform_1, window_bounds = array<i64: 1, 4, 16>}, {pipeline_mode = #tpu.pipeline_mode<synchronous>, transform_indices = @transform_2, window_bounds = array<i64: 32, 16>}, {pipeline_mode = #tpu.pipeline_mode<synchronous>, transform_indices = @transform_3, window_bounds = array<i64: 32, 1>}, {pipeline_mode = #tpu.pipeline_mode<synchronous>, transform_indices = @transform_4, window_bounds = array<i64: 32, 1>}, {pipeline_mode = #tpu.pipeline_mode<synchronous>, transform_indices = @transform_5, window_bounds = array<i64: 32, 4>}, {pipeline_mode = #tpu.pipeline_mode<synchronous>, transform_indices = @transform_6, window_bounds = array<i64: 32, 1>}, {pipeline_mode = #tpu.pipeline_mode<synchronous>, transform_indices = @transform_7, window_bounds = array<i64: 32, 1>}, {transform_indices = @transform_8, window_bounds = array<i64: 1, 32, 16>}]} {
    %c0 = arith.constant 0 : index
    %c0_0 = arith.constant 0 : index
    %0 = vector.load %arg4[%c0, %c0_0] : memref<32x16xf32, #tpu.memory_space<vmem>>, vector<32x16xf32>
    %c0_1 = arith.constant 0 : index
    %c0_2 = arith.constant 0 : index
    %c0_3 = arith.constant 0 : index
    %1 = vector.load %arg2[%c0_1, %c0_2, %c0_3] : memref<1x16x16xf32, #tpu.memory_space<vmem>>, vector<1x16x16xf32>
    %2 = vector.shape_cast %1 : vector<1x16x16xf32> to vector<16x16xf32>
    %cst = arith.constant dense<0.000000e+00> : vector<32x16xf32>
    %3 = tpu.matmul %0, %2, %cst {dimension_numbers = #tpu.dot_dimension_numbers<[1], [0], [0], [1], [0, 0, 1, 1], [], []>} : vector<32x16xf32>, vector<16x16xf32>, vector<32x16xf32> -> vector<32x16xf32>
    %c0_4 = arith.constant 0 : index
    %c0_5 = arith.constant 0 : index
    %4 = vector.load %arg5[%c0_4, %c0_5] : memref<32x1xf32, #tpu.memory_space<vmem>>, vector<32x1xf32>
    %5 = vector.broadcast %4 : vector<32x1xf32> to vector<32x16xf32>
    %6 = arith.mulf %3, %5 : vector<32x16xf32>
    %c0_6 = arith.constant 0 : index
    %c0_7 = arith.constant 0 : index
    %7 = vector.load %arg6[%c0_6, %c0_7] : memref<32x1xf32, #tpu.memory_space<vmem>>, vector<32x1xf32>
    %8 = vector.broadcast %7 : vector<32x1xf32> to vector<32x16xf32>
    %9 = arith.addf %6, %8 : vector<32x16xf32>
    %c0_8 = arith.constant 0 : index
    %c0_9 = arith.constant 0 : index
    %10 = vector.load %arg7[%c0_8, %c0_9] : memref<32x4xf32, #tpu.memory_space<vmem>>, vector<32x4xf32>
    %c0_10 = arith.constant 0 : index
    %c0_11 = arith.constant 0 : index
    %c0_12 = arith.constant 0 : index
    %11 = vector.load %arg3[%c0_10, %c0_11, %c0_12] : memref<1x4x16xf32, #tpu.memory_space<vmem>>, vector<1x4x16xf32>
    %12 = vector.shape_cast %11 : vector<1x4x16xf32> to vector<4x16xf32>
    %cst_13 = arith.constant dense<0.000000e+00> : vector<32x16xf32>
    %13 = tpu.matmul %10, %12, %cst_13 {dimension_numbers = #tpu.dot_dimension_numbers<[1], [0], [0], [1], [0, 0, 1, 1], [], []>} : vector<32x4xf32>, vector<4x16xf32>, vector<32x16xf32> -> vector<32x16xf32>
    %c0_14 = arith.constant 0 : index
    %c0_15 = arith.constant 0 : index
    %14 = vector.load %arg8[%c0_14, %c0_15] : memref<32x1xf32, #tpu.memory_space<vmem>>, vector<32x1xf32>
    %15 = vector.broadcast %14 : vector<32x1xf32> to vector<32x16xf32>
    %16 = arith.mulf %13, %15 : vector<32x16xf32>
    %c0_16 = arith.constant 0 : index
    %c0_17 = arith.constant 0 : index
    %17 = vector.load %arg9[%c0_16, %c0_17] : memref<32x1xf32, #tpu.memory_space<vmem>>, vector<32x1xf32>
    %18 = vector.broadcast %17 : vector<32x1xf32> to vector<32x16xf32>
    %19 = arith.addf %16, %18 : vector<32x16xf32>
    %20 = arith.addf %9, %19 : vector<32x16xf32>
    %cst_18 = arith.constant 0.000000e+00 : f32
    %21 = vector.broadcast %cst_18 : f32 to vector<32x16xf32>
    %22 = arith.cmpf oge, %20, %21 : vector<32x16xf32>
    %cst_19 = arith.constant 2.000000e-01 : f32
    %23 = vector.broadcast %cst_19 : f32 to vector<32x16xf32>
    %24 = arith.mulf %23, %20 : vector<32x16xf32>
    %25 = arith.select %22, %20, %24 : vector<32x16xi1>, vector<32x16xf32>
    %c0_20 = arith.constant 0 : index
    %c0_21 = arith.constant 0 : index
    %c0_22 = arith.constant 0 : index
    %26 = vector.load %arg10[%c0_20, %c0_21, %c0_22] : memref<1x32x16xf32, #tpu.memory_space<vmem>>, vector<1x32x16xf32>
    %27 = vector.shape_cast %26 : vector<1x32x16xf32> to vector<32x16xf32>
    %28 = vector.shape_cast %25 : vector<32x16xf32> to vector<1x32x16xf32>
    tpu.vector_store %arg10[%c0_20, %c0_21, %c0_22], %28 {strides = array<i32>} : memref<1x32x16xf32, #tpu.memory_space<vmem>>, vector<1x32x16xf32>,
    return
  }
  func.func @transform_0(%arg0: i32, %arg1: i32) -> (i32, i32, i32) {
    %c0_i32 = arith.constant 0 : i32
    %c0_i32_0 = arith.constant 0 : i32
    return %arg1, %c0_i32, %arg0 : i32, i32, i32
  }
  func.func @transform_1(%arg0: i32, %arg1: i32) -> (i32, i32, i32) {
    %c0_i32 = arith.constant 0 : i32
    %c0_i32_0 = arith.constant 0 : i32
    return %arg1, %c0_i32, %arg0 : i32, i32, i32
  }
  func.func @transform_2(%arg0: i32, %arg1: i32) -> (i32, i32) {
    %c0_i32 = arith.constant 0 : i32
    %c0_i32_0 = arith.constant 0 : i32
    %c0_i32_1 = arith.constant 0 : i32
    return %c0_i32, %c0_i32_0 : i32, i32
  }
  func.func @transform_3(%arg0: i32, %arg1: i32) -> (i32, i32) {
    %c0_i32 = arith.constant 0 : i32
    %c0_i32_0 = arith.constant 0 : i32
    %c0_i32_1 = arith.constant 0 : i32
    return %c0_i32, %c0_i32_0 : i32, i32
  }
  func.func @transform_4(%arg0: i32, %arg1: i32) -> (i32, i32) {
    %c0_i32 = arith.constant 0 : i32
    %c0_i32_0 = arith.constant 0 : i32
    %c0_i32_1 = arith.constant 0 : i32
    return %c0_i32, %c0_i32_0 : i32, i32
  }
  func.func @transform_5(%arg0: i32, %arg1: i32) -> (i32, i32) {
    %c0_i32 = arith.constant 0 : i32
    %c0_i32_0 = arith.constant 0 : i32
    %c0_i32_1 = arith.constant 0 : i32
    return %c0_i32, %c0_i32_0 : i32, i32
  }
  func.func @transform_6(%arg0: i32, %arg1: i32) -> (i32, i32) {
    %c0_i32 = arith.constant 0 : i32
    %c0_i32_0 = arith.constant 0 : i32
    %c0_i32_1 = arith.constant 0 : i32
    return %c0_i32, %c0_i32_0 : i32, i32
  }
  func.func @transform_7(%arg0: i32, %arg1: i32) -> (i32, i32) {
    %c0_i32 = arith.constant 0 : i32
    %c0_i32_0 = arith.constant 0 : i32
    %c0_i32_1 = arith.constant 0 : i32
    return %c0_i32, %c0_i32_0 : i32, i32
  }
  func.func @transform_8(%arg0: i32, %arg1: i32) -> (i32, i32, i32) {
    %c0_i32 = arith.constant 0 : i32
    %c0_i32_0 = arith.constant 0 : i32
    return %arg1, %c0_i32, %arg0 : i32, i32, i32
  }
}

</mosaic_0001>

<llo_original>
// kernel: dilated_res_block.4
$region0: #{dilated_res_block.4}
  #allocation0 [shape = 'u32[]', space=smem, size = 0x4, offset = 0x4, fixed_abs, tag = 'smem constant byte address 0x4 - core index']
  #allocation1 [shape = 'u32[72,128]{1,0:T(1,128)}', space=vmem, size = 0x9000, scoped, tag = 'internal scratch']
  %s0 = inlined_call_operand.vmem [shape: f32[2,4,16], index: 0, kind: input, shape index: {}]
  %s1 = inlined_call_operand.vmem [shape: f32[4,8], index: 1, kind: input, shape index: {}]
  %s2 = inlined_call_operand.vmem [shape: f32[1,8], index: 2, kind: input, shape index: {}]
  %s3 = inlined_call_operand.vmem [shape: f32[1,8], index: 3, kind: input, shape index: {}]
  %s4 = inlined_call_operand.vmem [shape: f32[2,16,8], index: 4, kind: output, shape index: {}]
  %s5 = sld [smem:[#allocation0]]
  $region49: #{dilated_res_block.4} parent=0
    _
  %s7 = ssub.s32 1, %s5
  %s8 = scalar_select 0, %s7, %s5
  loop: start=0, step=1, limit=4
  $region2: #{dilated_res_block.4} parent=0 // loop_pre_header
    _
  $region3: #{dilated_res_block.4} parent=0 // loop_header
    %s10 = sphi 0, %s14
    %p11 = scmp.ge.s32.totalorder %s10, 4
    %s17 = sphi 0, %s29
    %s18 = sphi 0, %s25
    %s19 = sphi 0, %s17
    %s20 = sphi 0, %s18
    %s21 = sphi 0, %s19
    %s22 = sphi 0, %s20
    %s34 = sphi 0, %s36
    %s37 = sphi 0, %s34
    %s38 = sphi 0, %s37
    %s54 = sphi 0, %s38
    %s58 = sphi 0, %s58
    %s60 = sphi 0, %s58
    %s61 = sphi 0, %s60
    %s75 = sphi 0, %s61
    %s79 = sphi 0, %s79
    %s81 = sphi 0, %s79
    %s82 = sphi 0, %s81
    %s96 = sphi 0, %s82
    %s100 = sphi 0, %s100
    %s102 = sphi 0, %s100
    %s103 = sphi 0, %s102
    %s117 = sphi 0, %s103
    %s125 = sphi 0, %s127
    %s128 = sphi 0, %s125
    %s129 = sphi 0, %s128
    %s145 = sphi 0, %s129
  $region4: #{dilated_res_block.4} parent=0 // loop_header_branch
    %13 = sbr.rel (%p11) target = $region8
  $region5: #{dilated_res_block.4} parent=0 // loop_body
    %s15 = ssub.s32 %s10, 1
    %s16 = ssub.s32 %s10, 2
    %s23 = sadd.s32 1, %s18
    %p24 = scmp.ge.s32.totalorder %s23, 2
    %s25 = scalar_select %p24, 0, %s23
    %s26 = sadd.s32 1, %s17
    %s27 = scalar_select %p24, %s26, %s17
    %p28 = scmp.ge.s32.totalorder %s27, 1
    %s29 = scalar_select %p28, 0, %s27
    %s30 = ssub.s32 %s18, %s25
    %s31 = ssub.s32 %s17, %s29
    %s32 = sor.u32 %s30, %s31
    %p33 = scmp.eq.s32.totalorder %s32, 0
    %s35 = sadd.s32 %s34, 1
    %s36 = scalar_select %p33, %s34, %s35
    %p39 = pneg %p33
    %p40 = scmp.eq.s32.totalorder %s10, 1
    %p41 = por %p39, %p40
    %p42 = scmp.ne.s32.totalorder %s34, %s37
    %p43 = scmp.eq.s32.totalorder %s10, 0
    %p44 = por %p42, %p43
    %p45 = scmp.ne.s32.totalorder %s34, %s37
    %p46 = scmp.eq.s32.totalorder %s15, 1
    %p47 = por %p45, %p46
    %p48 = scmp.ne.s32.totalorder %s37, %s38
    %p49 = scmp.eq.s32.totalorder %s15, 0
    %p50 = por %p48, %p49
    %p51 = scmp.ne.s32.totalorder %s37, %s38
    %p52 = scmp.eq.s32.totalorder %s16, 1
    %p53 = por %p51, %p52
    %p55 = scmp.ne.s32.totalorder %s38, %s54
    %p56 = scmp.eq.s32.totalorder %s16, 0
    %p57 = por %p55, %p56
    %s59 = sadd.s32 %s58, 1
    %p62 = scmp.eq.s32.totalorder %s10, 1
    %p63 = scmp.ne.s32.totalorder %s58, %s60
    %p64 = scmp.eq.s32.totalorder %s10, 0
    %p65 = por %p63, %p64
    %p66 = scmp.ne.s32.totalorder %s58, %s60
    %p67 = scmp.eq.s32.totalorder %s15, 1
    %p68 = por %p66, %p67
    %p69 = scmp.ne.s32.totalorder %s60, %s61
    %p70 = scmp.eq.s32.totalorder %s15, 0
    %p71 = por %p69, %p70
    %p72 = scmp.ne.s32.totalorder %s60, %s61
    %p73 = scmp.eq.s32.totalorder %s16, 1
    %p74 = por %p72, %p73
    %p76 = scmp.ne.s32.totalorder %s61, %s75
    %p77 = scmp.eq.s32.totalorder %s16, 0
    %p78 = por %p76, %p77
    %s80 = sadd.s32 %s79, 1
    %p83 = scmp.eq.s32.totalorder %s10, 1
    %p84 = scmp.ne.s32.totalorder %s79, %s81
    %p85 = scmp.eq.s32.totalorder %s10, 0
    %p86 = por %p84, %p85
    %p87 = scmp.ne.s32.totalorder %s79, %s81
    %p88 = scmp.eq.s32.totalorder %s15, 1
    %p89 = por %p87, %p88
    %p90 = scmp.ne.s32.totalorder %s81, %s82
    %p91 = scmp.eq.s32.totalorder %s15, 0
    %p92 = por %p90, %p91
    %p93 = scmp.ne.s32.totalorder %s81, %s82
    %p94 = scmp.eq.s32.totalorder %s16, 1
    %p95 = por %p93, %p94
    %p97 = scmp.ne.s32.totalorder %s82, %s96
    %p98 = scmp.eq.s32.totalorder %s16, 0
    %p99 = por %p97, %p98
    %s101 = sadd.s32 %s100, 1
    %p104 = scmp.eq.s32.totalorder %s10, 1
    %p105 = scmp.ne.s32.totalorder %s100, %s102
    %p106 = scmp.eq.s32.totalorder %s10, 0
    %p107 = por %p105, %p106
    %p108 = scmp.ne.s32.totalorder %s100, %s102
    %p109 = scmp.eq.s32.totalorder %s15, 1
    %p110 = por %p108, %p109
    %p111 = scmp.ne.s32.totalorder %s102, %s103
    %p112 = scmp.eq.s32.totalorder %s15, 0
    %p113 = por %p111, %p112
    %p114 = scmp.ne.s32.totalorder %s102, %s103
    %p115 = scmp.eq.s32.totalorder %s16, 1
    %p116 = por %p114, %p115
    %p118 = scmp.ne.s32.totalorder %s103, %s117
    %p119 = scmp.eq.s32.totalorder %s16, 0
    %p120 = por %p118, %p119
    %s121 = ssub.s32 %s18, %s25
    %s122 = ssub.s32 %s17, %s29
    %s123 = sor.u32 %s121, %s122
    %p124 = scmp.eq.s32.totalorder %s123, 0
    %s126 = sadd.s32 %s125, 1
    %s127 = scalar_select %p124, %s125, %s126
    %p130 = pneg %p124
    %p131 = scmp.eq.s32.totalorder %s10, 1
    %p132 = por %p130, %p131
    %p133 = scmp.ne.s32.totalorder %s125, %s128
    %p134 = scmp.eq.s32.totalorder %s10, 0
    %p135 = por %p133, %p134
    %p136 = scmp.ne.s32.totalorder %s125, %s128
    %p137 = scmp.eq.s32.totalorder %s15, 1
    %p138 = por %p136, %p137
    %p139 = scmp.ne.s32.totalorder %s128, %s129
    %p140 = scmp.eq.s32.totalorder %s15, 0
    %p141 = por %p139, %p140
    %p142 = scmp.ne.s32.totalorder %s128, %s129
    %p143 = scmp.eq.s32.totalorder %s16, 1
    %p144 = por %p142, %p143
    %p146 = scmp.ne.s32.totalorder %s129, %s145
    %p147 = scmp.eq.s32.totalorder %s16, 0
    %p148 = por %p146, %p147
    %p149 = scmp.le.s32.totalorder 1, %s10
    %p150 = scmp.lt.s32.totalorder %s10, 3
    %p151 = pnand %p149, %p150
    %p152 = pneg %p151
    // Predicated region
    $region9: #{dilated_res_block.4} parent=5 // pred_check
      _
    $region10: #{dilated_res_block.4} parent=5 // pred_check_branch
      %154 = sbr.rel (%p151) target = $region12
    $region11: #{dilated_res_block.4} parent=5 // pred_region
      %s155 = ssub.s32 %s10, 1
      // Predicated region
      $region13: #{dilated_res_block.4} parent=11 // pred_check
        %p156 = pneg %p71
      $region14: #{dilated_res_block.4} parent=11 // pred_check_branch
        %158 = sbr.rel (%p156) target = $region16
      $region15: #{dilated_res_block.4} parent=11 // pred_region
        _
      $region16: #{dilated_res_block.4} parent=11 // pred_fallthru
        _
      // Predicated region
      $region17: #{dilated_res_block.4} parent=11 // pred_check
        %p159 = pneg %p92
      $region18: #{dilated_res_block.4} parent=11 // pred_check_branch
        %161 = sbr.rel (%p159) target = $region20
      $region19: #{dilated_res_block.4} parent=11 // pred_region
        _
      $region20: #{dilated_res_block.4} parent=11 // pred_fallthru
        _
      // Predicated region
      $region21: #{dilated_res_block.4} parent=11 // pred_check
        %p162 = pneg %p113
      $region22: #{dilated_res_block.4} parent=11 // pred_check_branch
        %164 = sbr.rel (%p162) target = $region24
      $region23: #{dilated_res_block.4} parent=11 // pred_region
        _
      $region24: #{dilated_res_block.4} parent=11 // pred_fallthru
        _
    $region12: #{dilated_res_block.4} parent=5 // pred_fallthru
      _
    %p165 = scmp.lt.s32.totalorder %s10, 2
    // Predicated region
    $region25: #{dilated_res_block.4} parent=5 // pred_check
      %p166 = pneg %p165
    $region26: #{dilated_res_block.4} parent=5 // pred_check_branch
      %168 = sbr.rel (%p166) target = $region28
    $region27: #{dilated_res_block.4} parent=5 // pred_region
      // Predicated region
      $region29: #{dilated_res_block.4} parent=27 // pred_check
        %p169 = pneg %p44
      $region30: #{dilated_res_block.4} parent=27 // pred_check_branch
        %171 = sbr.rel (%p169) target = $region32
      $region31: #{dilated_res_block.4} parent=27 // pred_region
        %p172 = scmp.lt.s32.totalorder %s18, 1
        %s173 = scalar_select %p172, %s18, 1
        %p174 = scmp.lt.s32.totalorder %s17, 0
        %s175 = scalar_select %p174, %s17, 0
        %s176 = sadd.s32 %s175, %s173
        %s177 = smul.addr %s176, 4
        %s178 = scalar_lea.vmem %s0, %s177
      $region32: #{dilated_res_block.4} parent=27 // pred_fallthru
        _
    $region28: #{dilated_res_block.4} parent=5 // pred_fallthru
      _
    %p179 = scmp.le.s32.totalorder 1, %s10
    %p180 = scmp.lt.s32.totalorder %s10, 3
    %p181 = pnand %p179, %p180
    %p182 = pneg %p181
    // Predicated region
    $region33: #{dilated_res_block.4} parent=5 // pred_check
      _
    $region34: #{dilated_res_block.4} parent=5 // pred_check_branch
      %184 = sbr.rel (%p181) target = $region36
    $region35: #{dilated_res_block.4} parent=5 // pred_region
      %s185 = ssub.s32 %s10, 1
      %p186 = scmp.lt.s32.totalorder %s20, 1
      %s187 = scalar_select %p186, %s20, 1
      %p188 = scmp.lt.s32.totalorder %s19, 0
      %s189 = scalar_select %p188, %s19, 0
      %s190 = sadd.s32 %s189, %s187
      %s191 = smul.addr %s190, 4
      %s192 = scalar_lea.vmem %s0, %s191
      %p193 = pneg %p50
      %p194 = pneg %p47
      %p195 = pneg %p71
      %p196 = pneg %p68
      %p197 = pneg %p92
      %p198 = pneg %p89
      %p199 = pneg %p113
      %p200 = pneg %p110
      %p201 = pneg %p141
      %p202 = pneg %p138
      %s203 = smul.u32 2, %s19
      %p204 = scmp.lt.s32.totalorder %s20, 1
      %s205 = scalar_select %p204, %s20, 1
      %p206 = scmp.lt.s32.totalorder %s203, 1
      %s207 = scalar_select %p206, %s203, 1
      %s208 = smul.addr %s205, 2
      %s209 = sadd.s32 %s207, %s208
      %s210 = smul.addr %s209, 8
      %s211 = scalar_lea.vmem %s4, %s210
      %p212 = scmp.lt.s32.totalorder %s20, 1
      %s213 = scalar_select %p212, %s20, 1
      %p214 = scmp.lt.s32.totalorder %s19, 0
      %s215 = scalar_select %p214, %s19, 0
      %s216 = sadd.s32 %s215, %s213
      %s217 = smul.addr %s216, 4
      %s218 = scalar_lea.vmem %s0, %s217
      %s219 = smul.u32 2, %s19
      %p220 = scmp.lt.s32.totalorder %s20, 1
      %s221 = scalar_select %p220, %s20, 1
      %p222 = scmp.lt.s32.totalorder %s219, 1
      %s223 = scalar_select %p222, %s219, 1
      %s224 = smul.addr %s221, 2
      %s225 = sadd.s32 %s223, %s224
      %s226 = smul.addr %s225, 8
      %s227 = scalar_lea.vmem %s4, %s226
      %s228 = smul.u32 2, %s19
      %v229 = vld [vmem:[%s218] sm:$0xf]
      %v230 = vld [vmem:[%s1] sm:$0xf]
      %231 = vxpose.xlu0.b32.start [1/16] %v229, 128
      %232 = vxpose.xlu0.b32.cont [2/16] 0.0, 128
      %233 = vxpose.xlu0.b32.cont [3/16] 0.0, 128
      %234 = vxpose.xlu0.b32.cont [4/16] 0.0, 128
      %235 = vxpose.xlu0.b32.cont [5/16] 0.0, 128
      %236 = vxpose.xlu0.b32.cont [6/16] 0.0, 128
      %237 = vxpose.xlu0.b32.cont [7/16] 0.0, 128
      %238 = vxpose.xlu0.b32.cont [8/16] 0.0, 128
      %239 = vxpose.xlu0.b32.cont [9/16] 0.0, 128
      %240 = vxpose.xlu0.b32.cont [10/16] 0.0, 128
      %241 = vxpose.xlu0.b32.cont [11/16] 0.0, 128
      %242 = vxpose.xlu0.b32.cont [12/16] 0.0, 128
      %243 = vxpose.xlu0.b32.cont [13/16] 0.0, 128
      %244 = vxpose.xlu0.b32.cont [14/16] 0.0, 128
      %245 = vxpose.xlu0.b32.cont [15/16] 0.0, 128
      %246 = vxpose.xlu0.b32.end [16/16] 0.0, 128
      %v247 = vpop.trf.xlu0
      %v248 = vpop.trf.xlu0
      %v249 = vpop.trf.xlu0
      %v250 = vpop.trf.xlu0
      %v251 = vpop.trf.xlu0
      %v252 = vpop.trf.xlu0
      %v253 = vpop.trf.xlu0
      %v254 = vpop.trf.xlu0
      %v255 = vpop.trf.xlu0
      %v256 = vpop.trf.xlu0
      %v257 = vpop.trf.xlu0
      %v258 = vpop.trf.xlu0
      %v259 = vpop.trf.xlu0
      %v260 = vpop.trf.xlu0
      %v261 = vpop.trf.xlu0
      %v262 = vpop.trf.xlu0
      %vm263 = vcmask 31744
      %v265 = vsel %vm263, %v247, 0
      %v268 = vsel %vm263, %v248, 0
      %vm270 = vcmask 1043456
      %v272 = vsel %vm270, %v230, 0
      %274 = vmatpush.msra.mxu0 0.0
      %275 = vmatpush.msra.mxu0 0.0
      %276 = vmatpush.msra.mxu0 0.0
      %277 = vmatpush.msra.mxu0 0.0
      %278 = vmatpush.msra.mxu0 0.0
      %279 = vmatpush.msra.mxu0 0.0
      %280 = vmatpush.msra.mxu0 0.0
      %281 = vmatpush.msra.mxu0 0.0
      %282 = vmatpush.msra.mxu0 0.0
      %283 = vmatpush.msra.mxu0 0.0
      %284 = vmatpush.msra.mxu0 0.0
      %285 = vmatpush.msra.mxu0 0.0
      %286 = vmatpush.msra.mxu0 0.0
      %287 = vmatpush.msra.mxu0 0.0
      %288 = vmatpush.msra.mxu0 0.0
      %289 = vmatpush.msra.mxu0 %v272
      %290 = vmatmul.f32.gmra.mxu0 %v265
      %v291 = vpop.f32.mrf.mxu0
      %v292 = vadd.f32 0.0, %v291
      %293 = vmatmul.f32.gmra.mxu0 %v268
      %v294 = vpop.f32.mrf.mxu0
      %v295 = vadd.f32 0.0, %v294
      %296 = vdwg.mxu0
      %v297 = vld [vmem:[%s2] sm:$0x1]
      %v299 = vperm.slane %v297, 0
      %v301 = vmul.f32 %v292, %v299
      %v302 = vmul.f32 %v295, %v299
      %v303 = vld [vmem:[%s3] sm:$0x1]
      %v305 = vperm.slane %v303, 0
      %v307 = vadd.f32 %v301, %v305
      %v308 = vadd.f32 %v302, %v305
      %v309 = vmax.f32 %v307, 0.0
      %v310 = vmax.f32 %v308, 0.0
      %vm311 = vcmask 64512
      %312 = vst.msk [vmem:[%s227] sm:$0xff] %vm311, %v309
      %313 = vst.msk [vmem:[%s227 + $0x8] sm:$0xff] %vm311, %v310
      %s314 = smul.u32 2, %s19
      %p315 = scmp.lt.s32.totalorder %s20, 1
      %s316 = scalar_select %p315, %s20, 1
      %p317 = scmp.lt.s32.totalorder %s314, 1
      %s318 = scalar_select %p317, %s314, 1
      %s319 = smul.addr %s316, 2
      %s320 = sadd.s32 %s318, %s319
      %s321 = smul.addr %s320, 8
      %s322 = scalar_lea.vmem %s4, %s321
      // Predicated region
      $region37: #{dilated_res_block.4} parent=35 // pred_check
        %p323 = pneg %p138
      $region38: #{dilated_res_block.4} parent=35 // pred_check_branch
        %325 = sbr.rel (%p323) target = $region40
      $region39: #{dilated_res_block.4} parent=35 // pred_region
        %s326 = smul.u32 2, %s19
      $region40: #{dilated_res_block.4} parent=35 // pred_fallthru
        _
    $region36: #{dilated_res_block.4} parent=5 // pred_fallthru
      _
    %p327 = scmp.le.s32.totalorder 2, %s10
    // Predicated region
    $region41: #{dilated_res_block.4} parent=5 // pred_check
      %p328 = pneg %p327
    $region42: #{dilated_res_block.4} parent=5 // pred_check_branch
      %330 = sbr.rel (%p328) target = $region44
    $region43: #{dilated_res_block.4} parent=5 // pred_region
      %s331 = ssub.s32 %s10, 2
      // Predicated region
      $region45: #{dilated_res_block.4} parent=43 // pred_check
        %p332 = pneg %p144
      $region46: #{dilated_res_block.4} parent=43 // pred_check_branch
        %334 = sbr.rel (%p332) target = $region48
      $region47: #{dilated_res_block.4} parent=43 // pred_region
        %s335 = smul.u32 2, %s21
        %p336 = scmp.lt.s32.totalorder %s22, 1
        %s337 = scalar_select %p336, %s22, 1
        %p338 = scmp.lt.s32.totalorder %s335, 1
        %s339 = scalar_select %p338, %s335, 1
        %s340 = smul.addr %s337, 2
        %s341 = sadd.s32 %s339, %s340
        %s342 = smul.addr %s341, 8
        %s343 = scalar_lea.vmem %s4, %s342
      $region48: #{dilated_res_block.4} parent=43 // pred_fallthru
        _
    $region44: #{dilated_res_block.4} parent=5 // pred_fallthru
      _
  $region6: #{dilated_res_block.4} parent=0 // loop_footer
    %s14 = sadd.s32 1, %s10
  $region7: #{dilated_res_block.4} parent=0 // loop_footer_branch
    %9 = sbr.rel target = $region3
  $region8: #{dilated_res_block.4} parent=0 // loop_exit
    _

// kernel: dilated_res_block.5
$region0: #{dilated_res_block.5}
  #allocation0 [shape = 'u32[]', space=smem, size = 0x4, offset = 0x4, fixed_abs, tag = 'smem constant byte address 0x4 - core index']
  #allocation1 [shape = 'u32[72,128]{1,0:T(1,128)}', space=vmem, size = 0x9000, scoped, tag = 'internal scratch']
  %s0 = inlined_call_operand.vmem [shape: f32[2,16,1,3], index: 0, kind: input, shape index: {}]
  %s1 = inlined_call_operand.vmem [shape: f32[2,16,8,3], index: 1, kind: input, shape index: {}]
  %s2 = inlined_call_operand.vmem [shape: bf16[2,16,8,8], index: 2, kind: input, shape index: {}]
  %s3 = inlined_call_operand.vmem [shape: f32[1,8], index: 3, kind: input, shape index: {}]
  %s4 = inlined_call_operand.vmem [shape: f32[3,8], index: 4, kind: input, shape index: {}]
  %s5 = inlined_call_operand.vmem [shape: f32[3,8], index: 5, kind: input, shape index: {}]
  %s6 = inlined_call_operand.vmem [shape: f32[1,8], index: 6, kind: input, shape index: {}]
  %s7 = inlined_call_operand.vmem [shape: f32[1,8], index: 7, kind: input, shape index: {}]
  %s8 = inlined_call_operand.vmem [shape: f32[8,8], index: 8, kind: input, shape index: {}]
  %s9 = inlined_call_operand.vmem [shape: f32[8,8], index: 9, kind: input, shape index: {}]
  %s10 = inlined_call_operand.vmem [shape: f32[8,8], index: 10, kind: input, shape index: {}]
  %s11 = inlined_call_operand.vmem [shape: f32[8,8], index: 11, kind: input, shape index: {}]
  %s12 = inlined_call_operand.vmem [shape: f32[8,8], index: 12, kind: input, shape index: {}]
  %s13 = inlined_call_operand.vmem [shape: f32[8,8], index: 13, kind: input, shape index: {}]
  %s14 = inlined_call_operand.vmem [shape: f32[1,8], index: 14, kind: input, shape index: {}]
  %s15 = inlined_call_operand.vmem [shape: f32[1,8], index: 15, kind: input, shape index: {}]
  %s16 = inlined_call_operand.vmem [shape: f32[2,16,8], index: 16, kind: output, shape index: {}]
  %s17 = sld [smem:[#allocation0]]
  $region97: #{dilated_res_block.5} parent=0
    _
  %s19 = ssub.s32 1, %s17
  %s20 = scalar_select 0, %s19, %s17
  loop: start=0, step=1, limit=4
  $region2: #{dilated_res_block.5} parent=0 // loop_pre_header
    _
  $region3: #{dilated_res_block.5} parent=0 // loop_header
    %s22 = sphi 0, %s26
    %p23 = scmp.ge.s32.totalorder %s22, 4
    %s29 = sphi 0, %s41
    %s30 = sphi 0, %s37
    %s31 = sphi 0, %s29
    %s32 = sphi 0, %s30
    %s33 = sphi 0, %s31
    %s34 = sphi 0, %s32
    %s46 = sphi 0, %s48
    %s49 = sphi 0, %s46
    %s50 = sphi 0, %s49
    %s66 = sphi 0, %s50
    %s74 = sphi 0, %s76
    %s77 = sphi 0, %s74
    %s78 = sphi 0, %s77
    %s94 = sphi 0, %s78
    %s102 = sphi 0, %s104
    %s105 = sphi 0, %s102
    %s106 = sphi 0, %s105
    %s122 = sphi 0, %s106
    %s126 = sphi 0, %s126
    %s128 = sphi 0, %s126
    %s129 = sphi 0, %s128
    %s143 = sphi 0, %s129
    %s147 = sphi 0, %s147
    %s149 = sphi 0, %s147
    %s150 = sphi 0, %s149
    %s164 = sphi 0, %s150
    %s168 = sphi 0, %s168
    %s170 = sphi 0, %s168
    %s171 = sphi 0, %s170
    %s185 = sphi 0, %s171
    %s189 = sphi 0, %s189
    %s191 = sphi 0, %s189
    %s192 = sphi 0, %s191
    %s206 = sphi 0, %s192
    %s210 = sphi 0, %s210
    %s212 = sphi 0, %s210
    %s213 = sphi 0, %s212
    %s227 = sphi 0, %s213
    %s231 = sphi 0, %s231
    %s233 = sphi 0, %s231
    %s234 = sphi 0, %s233
    %s248 = sphi 0, %s234
    %s252 = sphi 0, %s252
    %s254 = sphi 0, %s252
    %s255 = sphi 0, %s254
    %s269 = sphi 0, %s255
    %s273 = sphi 0, %s273
    %s275 = sphi 0, %s273
    %s276 = sphi 0, %s275
    %s290 = sphi 0, %s276
    %s294 = sphi 0, %s294
    %s296 = sphi 0, %s294
    %s297 = sphi 0, %s296
    %s311 = sphi 0, %s297
    %s315 = sphi 0, %s315
    %s317 = sphi 0, %s315
    %s318 = sphi 0, %s317
    %s332 = sphi 0, %s318
    %s336 = sphi 0, %s336
    %s338 = sphi 0, %s336
    %s339 = sphi 0, %s338
    %s353 = sphi 0, %s339
    %s357 = sphi 0, %s357
    %s359 = sphi 0, %s357
    %s360 = sphi 0, %s359
    %s374 = sphi 0, %s360
    %s378 = sphi 0, %s378
    %s380 = sphi 0, %s378
    %s381 = sphi 0, %s380
    %s395 = sphi 0, %s381
    %s403 = sphi 0, %s405
    %s406 = sphi 0, %s403
    %s407 = sphi 0, %s406
    %s423 = sphi 0, %s407
  $region4: #{dilated_res_block.5} parent=0 // loop_header_branch
    %25 = sbr.rel (%p23) target = $region8
  $region5: #{dilated_res_block.5} parent=0 // loop_body
    %s27 = ssub.s32 %s22, 1
    %s28 = ssub.s32 %s22, 2
    %s35 = sadd.s32 1, %s30
    %p36 = scmp.ge.s32.totalorder %s35, 2
    %s37 = scalar_select %p36, 0, %s35
    %s38 = sadd.s32 1, %s29
    %s39 = scalar_select %p36, %s38, %s29
    %p40 = scmp.ge.s32.totalorder %s39, 1
    %s41 = scalar_select %p40, 0, %s39
    %s42 = ssub.s32 %s30, %s37
    %s43 = ssub.s32 %s29, %s41
    %s44 = sor.u32 %s42, %s43
    %p45 = scmp.eq.s32.totalorder %s44, 0
    %s47 = sadd.s32 %s46, 1
    %s48 = scalar_select %p45, %s46, %s47
    %p51 = pneg %p45
    %p52 = scmp.eq.s32.totalorder %s22, 1
    %p53 = por %p51, %p52
    %p54 = scmp.ne.s32.totalorder %s46, %s49
    %p55 = scmp.eq.s32.totalorder %s22, 0
    %p56 = por %p54, %p55
    %p57 = scmp.ne.s32.totalorder %s46, %s49
    %p58 = scmp.eq.s32.totalorder %s27, 1
    %p59 = por %p57, %p58
    %p60 = scmp.ne.s32.totalorder %s49, %s50
    %p61 = scmp.eq.s32.totalorder %s27, 0
    %p62 = por %p60, %p61
    %p63 = scmp.ne.s32.totalorder %s49, %s50
    %p64 = scmp.eq.s32.totalorder %s28, 1
    %p65 = por %p63, %p64
    %p67 = scmp.ne.s32.totalorder %s50, %s66
    %p68 = scmp.eq.s32.totalorder %s28, 0
    %p69 = por %p67, %p68
    %s70 = ssub.s32 %s30, %s37
    %s71 = ssub.s32 %s29, %s41
    %s72 = sor.u32 %s70, %s71
    %p73 = scmp.eq.s32.totalorder %s72, 0
    %s75 = sadd.s32 %s74, 1
    %s76 = scalar_select %p73, %s74, %s75
    %p79 = pneg %p73
    %p80 = scmp.eq.s32.totalorder %s22, 1
    %p81 = por %p79, %p80
    %p82 = scmp.ne.s32.totalorder %s74, %s77
    %p83 = scmp.eq.s32.totalorder %s22, 0
    %p84 = por %p82, %p83
    %p85 = scmp.ne.s32.totalorder %s74, %s77
    %p86 = scmp.eq.s32.totalorder %s27, 1
    %p87 = por %p85, %p86
    %p88 = scmp.ne.s32.totalorder %s77, %s78
    %p89 = scmp.eq.s32.totalorder %s27, 0
    %p90 = por %p88, %p89
    %p91 = scmp.ne.s32.totalorder %s77, %s78
    %p92 = scmp.eq.s32.totalorder %s28, 1
    %p93 = por %p91, %p92
    %p95 = scmp.ne.s32.totalorder %s78, %s94
    %p96 = scmp.eq.s32.totalorder %s28, 0
    %p97 = por %p95, %p96
    %s98 = ssub.s32 %s30, %s37
    %s99 = ssub.s32 %s29, %s41
    %s100 = sor.u32 %s98, %s99
    %p101 = scmp.eq.s32.totalorder %s100, 0
    %s103 = sadd.s32 %s102, 1
    %s104 = scalar_select %p101, %s102, %s103
    %p107 = pneg %p101
    %p108 = scmp.eq.s32.totalorder %s22, 1
    %p109 = por %p107, %p108
    %p110 = scmp.ne.s32.totalorder %s102, %s105
    %p111 = scmp.eq.s32.totalorder %s22, 0
    %p112 = por %p110, %p111
    %p113 = scmp.ne.s32.totalorder %s102, %s105
    %p114 = scmp.eq.s32.totalorder %s27, 1
    %p115 = por %p113, %p114
    %p116 = scmp.ne.s32.totalorder %s105, %s106
    %p117 = scmp.eq.s32.totalorder %s27, 0
    %p118 = por %p116, %p117
    %p119 = scmp.ne.s32.totalorder %s105, %s106
    %p120 = scmp.eq.s32.totalorder %s28, 1
    %p121 = por %p119, %p120
    %p123 = scmp.ne.s32.totalorder %s106, %s122
    %p124 = scmp.eq.s32.totalorder %s28, 0
    %p125 = por %p123, %p124
    %s127 = sadd.s32 %s126, 1
    %p130 = scmp.eq.s32.totalorder %s22, 1
    %p131 = scmp.ne.s32.totalorder %s126, %s128
    %p132 = scmp.eq.s32.totalorder %s22, 0
    %p133 = por %p131, %p132
    %p134 = scmp.ne.s32.totalorder %s126, %s128
    %p135 = scmp.eq.s32.totalorder %s27, 1
    %p136 = por %p134, %p135
    %p137 = scmp.ne.s32.totalorder %s128, %s129
    %p138 = scmp.eq.s32.totalorder %s27, 0
    %p139 = por %p137, %p138
    %p140 = scmp.ne.s32.totalorder %s128, %s129
    %p141 = scmp.eq.s32.totalorder %s28, 1
    %p142 = por %p140, %p141
    %p144 = scmp.ne.s32.totalorder %s129, %s143
    %p145 = scmp.eq.s32.totalorder %s28, 0
    %p146 = por %p144, %p145
    %s148 = sadd.s32 %s147, 1
    %p151 = scmp.eq.s32.totalorder %s22, 1
    %p152 = scmp.ne.s32.totalorder %s147, %s149
    %p153 = scmp.eq.s32.totalorder %s22, 0
    %p154 = por %p152, %p153
    %p155 = scmp.ne.s32.totalorder %s147, %s149
    %p156 = scmp.eq.s32.totalorder %s27, 1
    %p157 = por %p155, %p156
    %p158 = scmp.ne.s32.totalorder %s149, %s150
    %p159 = scmp.eq.s32.totalorder %s27, 0
    %p160 = por %p158, %p159
    %p161 = scmp.ne.s32.totalorder %s149, %s150
    %p162 = scmp.eq.s32.totalorder %s28, 1
    %p163 = por %p161, %p162
    %p165 = scmp.ne.s32.totalorder %s150, %s164
    %p166 = scmp.eq.s32.totalorder %s28, 0
    %p167 = por %p165, %p166
    %s169 = sadd.s32 %s168, 1
    %p172 = scmp.eq.s32.totalorder %s22, 1
    %p173 = scmp.ne.s32.totalorder %s168, %s170
    %p174 = scmp.eq.s32.totalorder %s22, 0
    %p175 = por %p173, %p174
    %p176 = scmp.ne.s32.totalorder %s168, %s170
    %p177 = scmp.eq.s32.totalorder %s27, 1
    %p178 = por %p176, %p177
    %p179 = scmp.ne.s32.totalorder %s170, %s171
    %p180 = scmp.eq.s32.totalorder %s27, 0
    %p181 = por %p179, %p180
    %p182 = scmp.ne.s32.totalorder %s170, %s171
    %p183 = scmp.eq.s32.totalorder %s28, 1
    %p184 = por %p182, %p183
    %p186 = scmp.ne.s32.totalorder %s171, %s185
    %p187 = scmp.eq.s32.totalorder %s28, 0
    %p188 = por %p186, %p187
    %s190 = sadd.s32 %s189, 1
    %p193 = scmp.eq.s32.totalorder %s22, 1
    %p194 = scmp.ne.s32.totalorder %s189, %s191
    %p195 = scmp.eq.s32.totalorder %s22, 0
    %p196 = por %p194, %p195
    %p197 = scmp.ne.s32.totalorder %s189, %s191
    %p198 = scmp.eq.s32.totalorder %s27, 1
    %p199 = por %p197, %p198
    %p200 = scmp.ne.s32.totalorder %s191, %s192
    %p201 = scmp.eq.s32.totalorder %s27, 0
    %p202 = por %p200, %p201
    %p203 = scmp.ne.s32.totalorder %s191, %s192
    %p204 = scmp.eq.s32.totalorder %s28, 1
    %p205 = por %p203, %p204
    %p207 = scmp.ne.s32.totalorder %s192, %s206
    %p208 = scmp.eq.s32.totalorder %s28, 0
    %p209 = por %p207, %p208
    %s211 = sadd.s32 %s210, 1
    %p214 = scmp.eq.s32.totalorder %s22, 1
    %p215 = scmp.ne.s32.totalorder %s210, %s212
    %p216 = scmp.eq.s32.totalorder %s22, 0
    %p217 = por %p215, %p216
    %p218 = scmp.ne.s32.totalorder %s210, %s212
    %p219 = scmp.eq.s32.totalorder %s27, 1
    %p220 = por %p218, %p219
    %p221 = scmp.ne.s32.totalorder %s212, %s213
    %p222 = scmp.eq.s32.totalorder %s27, 0
    %p223 = por %p221, %p222
    %p224 = scmp.ne.s32.totalorder %s212, %s213
    %p225 = scmp.eq.s32.totalorder %s28, 1
    %p226 = por %p224, %p225
    %p228 = scmp.ne.s32.totalorder %s213, %s227
    %p229 = scmp.eq.s32.totalorder %s28, 0
    %p230 = por %p228, %p229
    %s232 = sadd.s32 %s231, 1
    %p235 = scmp.eq.s32.totalorder %s22, 1
    %p236 = scmp.ne.s32.totalorder %s231, %s233
    %p237 = scmp.eq.s32.totalorder %s22, 0
    %p238 = por %p236, %p237
    %p239 = scmp.ne.s32.totalorder %s231, %s233
    %p240 = scmp.eq.s32.totalorder %s27, 1
    %p241 = por %p239, %p240
    %p242 = scmp.ne.s32.totalorder %s233, %s234
    %p243 = scmp.eq.s32.totalorder %s27, 0
    %p244 = por %p242, %p243
    %p245 = scmp.ne.s32.totalorder %s233, %s234
    %p246 = scmp.eq.s32.totalorder %s28, 1
    %p247 = por %p245, %p246
    %p249 = scmp.ne.s32.totalorder %s234, %s248
    %p250 = scmp.eq.s32.totalorder %s28, 0
    %p251 = por %p249, %p250
    %s253 = sadd.s32 %s252, 1
    %p256 = scmp.eq.s32.totalorder %s22, 1
    %p257 = scmp.ne.s32.totalorder %s252, %s254
    %p258 = scmp.eq.s32.totalorder %s22, 0
    %p259 = por %p257, %p258
    %p260 = scmp.ne.s32.totalorder %s252, %s254
    %p261 = scmp.eq.s32.totalorder %s27, 1
    %p262 = por %p260, %p261
    %p263 = scmp.ne.s32.totalorder %s254, %s255
    %p264 = scmp.eq.s32.totalorder %s27, 0
    %p265 = por %p263, %p264
    %p266 = scmp.ne.s32.totalorder %s254, %s255
    %p267 = scmp.eq.s32.totalorder %s28, 1
    %p268 = por %p266, %p267
    %p270 = scmp.ne.s32.totalorder %s255, %s269
    %p271 = scmp.eq.s32.totalorder %s28, 0
    %p272 = por %p270, %p271
    %s274 = sadd.s32 %s273, 1
    %p277 = scmp.eq.s32.totalorder %s22, 1
    %p278 = scmp.ne.s32.totalorder %s273, %s275
    %p279 = scmp.eq.s32.totalorder %s22, 0
    %p280 = por %p278, %p279
    %p281 = scmp.ne.s32.totalorder %s273, %s275
    %p282 = scmp.eq.s32.totalorder %s27, 1
    %p283 = por %p281, %p282
    %p284 = scmp.ne.s32.totalorder %s275, %s276
    %p285 = scmp.eq.s32.totalorder %s27, 0
    %p286 = por %p284, %p285
    %p287 = scmp.ne.s32.totalorder %s275, %s276
    %p288 = scmp.eq.s32.totalorder %s28, 1
    %p289 = por %p287, %p288
    %p291 = scmp.ne.s32.totalorder %s276, %s290
    %p292 = scmp.eq.s32.totalorder %s28, 0
    %p293 = por %p291, %p292
    %s295 = sadd.s32 %s294, 1
    %p298 = scmp.eq.s32.totalorder %s22, 1
    %p299 = scmp.ne.s32.totalorder %s294, %s296
    %p300 = scmp.eq.s32.totalorder %s22, 0
    %p301 = por %p299, %p300
    %p302 = scmp.ne.s32.totalorder %s294, %s296
    %p303 = scmp.eq.s32.totalorder %s27, 1
    %p304 = por %p302, %p303
    %p305 = scmp.ne.s32.totalorder %s296, %s297
    %p306 = scmp.eq.s32.totalorder %s27, 0
    %p307 = por %p305, %p306
    %p308 = scmp.ne.s32.totalorder %s296, %s297
    %p309 = scmp.eq.s32.totalorder %s28, 1
    %p310 = por %p308, %p309
    %p312 = scmp.ne.s32.totalorder %s297, %s311
    %p313 = scmp.eq.s32.totalorder %s28, 0
    %p314 = por %p312, %p313
    %s316 = sadd.s32 %s315, 1
    %p319 = scmp.eq.s32.totalorder %s22, 1
    %p320 = scmp.ne.s32.totalorder %s315, %s317
    %p321 = scmp.eq.s32.totalorder %s22, 0
    %p322 = por %p320, %p321
    %p323 = scmp.ne.s32.totalorder %s315, %s317
    %p324 = scmp.eq.s32.totalorder %s27, 1
    %p325 = por %p323, %p324
    %p326 = scmp.ne.s32.totalorder %s317, %s318
    %p327 = scmp.eq.s32.totalorder %s27, 0
    %p328 = por %p326, %p327
    %p329 = scmp.ne.s32.totalorder %s317, %s318
    %p330 = scmp.eq.s32.totalorder %s28, 1
    %p331 = por %p329, %p330
    %p333 = scmp.ne.s32.totalorder %s318, %s332
    %p334 = scmp.eq.s32.totalorder %s28, 0
    %p335 = por %p333, %p334
    %s337 = sadd.s32 %s336, 1
    %p340 = scmp.eq.s32.totalorder %s22, 1
    %p341 = scmp.ne.s32.totalorder %s336, %s338
    %p342 = scmp.eq.s32.totalorder %s22, 0
    %p343 = por %p341, %p342
    %p344 = scmp.ne.s32.totalorder %s336, %s338
    %p345 = scmp.eq.s32.totalorder %s27, 1
    %p346 = por %p344, %p345
    %p347 = scmp.ne.s32.totalorder %s338, %s339
    %p348 = scmp.eq.s32.totalorder %s27, 0
    %p349 = por %p347, %p348
    %p350 = scmp.ne.s32.totalorder %s338, %s339
    %p351 = scmp.eq.s32.totalorder %s28, 1
    %p352 = por %p350, %p351
    %p354 = scmp.ne.s32.totalorder %s339, %s353
    %p355 = scmp.eq.s32.totalorder %s28, 0
    %p356 = por %p354, %p355
    %s358 = sadd.s32 %s357, 1
    %p361 = scmp.eq.s32.totalorder %s22, 1
    %p362 = scmp.ne.s32.totalorder %s357, %s359
    %p363 = scmp.eq.s32.totalorder %s22, 0
    %p364 = por %p362, %p363
    %p365 = scmp.ne.s32.totalorder %s357, %s359
    %p366 = scmp.eq.s32.totalorder %s27, 1
    %p367 = por %p365, %p366
    %p368 = scmp.ne.s32.totalorder %s359, %s360
    %p369 = scmp.eq.s32.totalorder %s27, 0
    %p370 = por %p368, %p369
    %p371 = scmp.ne.s32.totalorder %s359, %s360
    %p372 = scmp.eq.s32.totalorder %s28, 1
    %p373 = por %p371, %p372
    %p375 = scmp.ne.s32.totalorder %s360, %s374
    %p376 = scmp.eq.s32.totalorder %s28, 0
    %p377 = por %p375, %p376
    %s379 = sadd.s32 %s378, 1
    %p382 = scmp.eq.s32.totalorder %s22, 1
    %p383 = scmp.ne.s32.totalorder %s378, %s380
    %p384 = scmp.eq.s32.totalorder %s22, 0
    %p385 = por %p383, %p384
    %p386 = scmp.ne.s32.totalorder %s378, %s380
    %p387 = scmp.eq.s32.totalorder %s27, 1
    %p388 = por %p386, %p387
    %p389 = scmp.ne.s32.totalorder %s380, %s381
    %p390 = scmp.eq.s32.totalorder %s27, 0
    %p391 = por %p389, %p390
    %p392 = scmp.ne.s32.totalorder %s380, %s381
    %p393 = scmp.eq.s32.totalorder %s28, 1
    %p394 = por %p392, %p393
    %p396 = scmp.ne.s32.totalorder %s381, %s395
    %p397 = scmp.eq.s32.totalorder %s28, 0
    %p398 = por %p396, %p397
    %s399 = ssub.s32 %s30, %s37
    %s400 = ssub.s32 %s29, %s41
    %s401 = sor.u32 %s399, %s400
    %p402 = scmp.eq.s32.totalorder %s401, 0
    %s404 = sadd.s32 %s403, 1
    %s405 = scalar_select %p402, %s403, %s404
    %p408 = pneg %p402
    %p409 = scmp.eq.s32.totalorder %s22, 1
    %p410 = por %p408, %p409
    %p411 = scmp.ne.s32.totalorder %s403, %s406
    %p412 = scmp.eq.s32.totalorder %s22, 0
    %p413 = por %p411, %p412
    %p414 = scmp.ne.s32.totalorder %s403, %s406
    %p415 = scmp.eq.s32.totalorder %s27, 1
    %p416 = por %p414, %p415
    %p417 = scmp.ne.s32.totalorder %s406, %s407
    %p418 = scmp.eq.s32.totalorder %s27, 0
    %p419 = por %p417, %p418
    %p420 = scmp.ne.s32.totalorder %s406, %s407
    %p421 = scmp.eq.s32.totalorder %s28, 1
    %p422 = por %p420, %p421
    %p424 = scmp.ne.s32.totalorder %s407, %s423
    %p425 = scmp.eq.s32.totalorder %s28, 0
    %p426 = por %p424, %p425
    %p427 = scmp.le.s32.totalorder 1, %s22
    %p428 = scmp.lt.s32.totalorder %s22, 3
    %p429 = pnand %p427, %p428
    %p430 = pneg %p429
    // Predicated region
    $region9: #{dilated_res_block.5} parent=5 // pred_check
      _
    $region10: #{dilated_res_block.5} parent=5 // pred_check_branch
      %432 = sbr.rel (%p429) target = $region12
    $region11: #{dilated_res_block.5} parent=5 // pred_region
      %s433 = ssub.s32 %s22, 1
      // Predicated region
      $region13: #{dilated_res_block.5} parent=11 // pred_check
        %p434 = pneg %p139
      $region14: #{dilated_res_block.5} parent=11 // pred_check_branch
        %436 = sbr.rel (%p434) target = $region16
      $region15: #{dilated_res_block.5} parent=11 // pred_region
        _
      $region16: #{dilated_res_block.5} parent=11 // pred_fallthru
        _
      // Predicated region
      $region17: #{dilated_res_block.5} parent=11 // pred_check
        %p437 = pneg %p160
      $region18: #{dilated_res_block.5} parent=11 // pred_check_branch
        %439 = sbr.rel (%p437) target = $region20
      $region19: #{dilated_res_block.5} parent=11 // pred_region
        _
      $region20: #{dilated_res_block.5} parent=11 // pred_fallthru
        _
      // Predicated region
      $region21: #{dilated_res_block.5} parent=11 // pred_check
        %p440 = pneg %p181
      $region22: #{dilated_res_block.5} parent=11 // pred_check_branch
        %442 = sbr.rel (%p440) target = $region24
      $region23: #{dilated_res_block.5} parent=11 // pred_region
        _
      $region24: #{dilated_res_block.5} parent=11 // pred_fallthru
        _
      // Predicated region
      $region25: #{dilated_res_block.5} parent=11 // pred_check
        %p443 = pneg %p202
      $region26: #{dilated_res_block.5} parent=11 // pred_check_branch
        %445 = sbr.rel (%p443) target = $region28
      $region27: #{dilated_res_block.5} parent=11 // pred_region
        _
      $region28: #{dilated_res_block.5} parent=11 // pred_fallthru
        _
      // Predicated region
      $region29: #{dilated_res_block.5} parent=11 // pred_check
        %p446 = pneg %p223
      $region30: #{dilated_res_block.5} parent=11 // pred_check_branch
        %448 = sbr.rel (%p446) target = $region32
      $region31: #{dilated_res_block.5} parent=11 // pred_region
        _
      $region32: #{dilated_res_block.5} parent=11 // pred_fallthru
        _
      // Predicated region
      $region33: #{dilated_res_block.5} parent=11 // pred_check
        %p449 = pneg %p244
      $region34: #{dilated_res_block.5} parent=11 // pred_check_branch
        %451 = sbr.rel (%p449) target = $region36
      $region35: #{dilated_res_block.5} parent=11 // pred_region
        _
      $region36: #{dilated_res_block.5} parent=11 // pred_fallthru
        _
      // Predicated region
      $region37: #{dilated_res_block.5} parent=11 // pred_check
        %p452 = pneg %p265
      $region38: #{dilated_res_block.5} parent=11 // pred_check_branch
        %454 = sbr.rel (%p452) target = $region40
      $region39: #{dilated_res_block.5} parent=11 // pred_region
        _
      $region40: #{dilated_res_block.5} parent=11 // pred_fallthru
        _
      // Predicated region
      $region41: #{dilated_res_block.5} parent=11 // pred_check
        %p455 = pneg %p286
      $region42: #{dilated_res_block.5} parent=11 // pred_check_branch
        %457 = sbr.rel (%p455) target = $region44
      $region43: #{dilated_res_block.5} parent=11 // pred_region
        _
      $region44: #{dilated_res_block.5} parent=11 // pred_fallthru
        _
      // Predicated region
      $region45: #{dilated_res_block.5} parent=11 // pred_check
        %p458 = pneg %p307
      $region46: #{dilated_res_block.5} parent=11 // pred_check_branch
        %460 = sbr.rel (%p458) target = $region48
      $region47: #{dilated_res_block.5} parent=11 // pred_region
        _
      $region48: #{dilated_res_block.5} parent=11 // pred_fallthru
        _
      // Predicated region
      $region49: #{dilated_res_block.5} parent=11 // pred_check
        %p461 = pneg %p328
      $region50: #{dilated_res_block.5} parent=11 // pred_check_branch
        %463 = sbr.rel (%p461) target = $region52
      $region51: #{dilated_res_block.5} parent=11 // pred_region
        _
      $region52: #{dilated_res_block.5} parent=11 // pred_fallthru
        _
      // Predicated region
      $region53: #{dilated_res_block.5} parent=11 // pred_check
        %p464 = pneg %p349
      $region54: #{dilated_res_block.5} parent=11 // pred_check_branch
        %466 = sbr.rel (%p464) target = $region56
      $region55: #{dilated_res_block.5} parent=11 // pred_region
        _
      $region56: #{dilated_res_block.5} parent=11 // pred_fallthru
        _
      // Predicated region
      $region57: #{dilated_res_block.5} parent=11 // pred_check
        %p467 = pneg %p370
      $region58: #{dilated_res_block.5} parent=11 // pred_check_branch
        %469 = sbr.rel (%p467) target = $region60
      $region59: #{dilated_res_block.5} parent=11 // pred_region
        _
      $region60: #{dilated_res_block.5} parent=11 // pred_fallthru
        _
      // Predicated region
      $region61: #{dilated_res_block.5} parent=11 // pred_check
        %p470 = pneg %p391
      $region62: #{dilated_res_block.5} parent=11 // pred_check_branch
        %472 = sbr.rel (%p470) target = $region64
      $region63: #{dilated_res_block.5} parent=11 // pred_region
        _
      $region64: #{dilated_res_block.5} parent=11 // pred_fallthru
        _
    $region12: #{dilated_res_block.5} parent=5 // pred_fallthru
      _
    %p473 = scmp.lt.s32.totalorder %s22, 2
    // Predicated region
    $region65: #{dilated_res_block.5} parent=5 // pred_check
      %p474 = pneg %p473
    $region66: #{dilated_res_block.5} parent=5 // pred_check_branch
      %476 = sbr.rel (%p474) target = $region68
    $region67: #{dilated_res_block.5} parent=5 // pred_region
      // Predicated region
      $region69: #{dilated_res_block.5} parent=67 // pred_check
        %p477 = pneg %p56
      $region70: #{dilated_res_block.5} parent=67 // pred_check_branch
        %479 = sbr.rel (%p477) target = $region72
      $region71: #{dilated_res_block.5} parent=67 // pred_region
        %s480 = smul.u32 16, %s29
        %p481 = scmp.lt.s32.totalorder %s30, 1
        %s482 = scalar_select %p481, %s30, 1
        %p483 = scmp.lt.s32.totalorder %s480, 15
        %s484 = scalar_select %p483, %s480, 15
        %s485 = smul.addr %s482, 16
        %s486 = sadd.s32 %s484, %s485
        %s487 = scalar_lea.vmem %s0, %s486
        %s488 = smul.u32 16, %s29
      $region72: #{dilated_res_block.5} parent=67 // pred_fallthru
        _
      // Predicated region
      $region73: #{dilated_res_block.5} parent=67 // pred_check
        %p489 = pneg %p84
      $region74: #{dilated_res_block.5} parent=67 // pred_check_branch
        %491 = sbr.rel (%p489) target = $region76
      $region75: #{dilated_res_block.5} parent=67 // pred_region
        %s492 = smul.u32 16, %s29
        %p493 = scmp.lt.s32.totalorder %s30, 1
        %s494 = scalar_select %p493, %s30, 1
        %p495 = scmp.lt.s32.totalorder %s492, 15
        %s496 = scalar_select %p495, %s492, 15
        %s497 = smul.addr %s494, 16
        %s498 = sadd.s32 %s496, %s497
        %s499 = smul.addr %s498, 8
        %s500 = scalar_lea.vmem %s1, %s499
        %s501 = smul.u32 16, %s29
      $region76: #{dilated_res_block.5} parent=67 // pred_fallthru
        _
      // Predicated region
      $region77: #{dilated_res_block.5} parent=67 // pred_check
        %p502 = pneg %p112
      $region78: #{dilated_res_block.5} parent=67 // pred_check_branch
        %504 = sbr.rel (%p502) target = $region80
      $region79: #{dilated_res_block.5} parent=67 // pred_region
        %s505 = smul.u32 16, %s29
        %p506 = scmp.lt.s32.totalorder %s30, 1
        %s507 = scalar_select %p506, %s30, 1
        %p508 = scmp.lt.s32.totalorder %s505, 15
        %s509 = scalar_select %p508, %s505, 15
        %s510 = smul.addr %s507, 16
        %s511 = sadd.s32 %s509, %s510
        %s512 = smul.addr %s511, 4
        %s513 = scalar_lea.vmem %s2, %s512
        %s514 = smul.u32 16, %s29
      $region80: #{dilated_res_block.5} parent=67 // pred_fallthru
        _
    $region68: #{dilated_res_block.5} parent=5 // pred_fallthru
      _
    %p515 = scmp.le.s32.totalorder 1, %s22
    %p516 = scmp.lt.s32.totalorder %s22, 3
    %p517 = pnand %p515, %p516
    %p518 = pneg %p517
    // Predicated region
    $region81: #{dilated_res_block.5} parent=5 // pred_check
      _
    $region82: #{dilated_res_block.5} parent=5 // pred_check_branch
      %520 = sbr.rel (%p517) target = $region84
    $region83: #{dilated_res_block.5} parent=5 // pred_region
      %s521 = ssub.s32 %s22, 1
      %s522 = smul.u32 16, %s31
      %p523 = scmp.lt.s32.totalorder %s32, 1
      %s524 = scalar_select %p523, %s32, 1
      %p525 = scmp.lt.s32.totalorder %s522, 15
      %s526 = scalar_select %p525, %s522, 15
      %s527 = smul.addr %s524, 16
      %s528 = sadd.s32 %s526, %s527
      %s529 = scalar_lea.vmem %s0, %s528
      %p530 = pneg %p62
      %p531 = pneg %p59
      %s532 = smul.u32 16, %s31
      %p533 = scmp.lt.s32.totalorder %s32, 1
      %s534 = scalar_select %p533, %s32, 1
      %p535 = scmp.lt.s32.totalorder %s532, 15
      %s536 = scalar_select %p535, %s532, 15
      %s537 = smul.addr %s534, 16
      %s538 = sadd.s32 %s536, %s537
      %s539 = smul.addr %s538, 8
      %s540 = scalar_lea.vmem %s1, %s539
      %p541 = pneg %p90
      %p542 = pneg %p87
      %s543 = smul.u32 16, %s31
      %p544 = scmp.lt.s32.totalorder %s32, 1
      %s545 = scalar_select %p544, %s32, 1
      %p546 = scmp.lt.s32.totalorder %s543, 15
      %s547 = scalar_select %p546, %s543, 15
      %s548 = smul.addr %s545, 16
      %s549 = sadd.s32 %s547, %s548
      %s550 = smul.addr %s549, 4
      %s551 = scalar_lea.vmem %s2, %s550
      %p552 = pneg %p118
      %p553 = pneg %p115
      %p554 = pneg %p139
      %p555 = pneg %p136
      %p556 = pneg %p160
      %p557 = pneg %p157
      %p558 = pneg %p181
      %p559 = pneg %p178
      %p560 = pneg %p202
      %p561 = pneg %p199
      %p562 = pneg %p223
      %p563 = pneg %p220
      %p564 = pneg %p244
      %p565 = pneg %p241
      %p566 = pneg %p265
      %p567 = pneg %p262
      %p568 = pneg %p286
      %p569 = pneg %p283
      %p570 = pneg %p307
      %p571 = pneg %p304
      %p572 = pneg %p328
      %p573 = pneg %p325
      %p574 = pneg %p349
      %p575 = pneg %p346
      %p576 = pneg %p370
      %p577 = pneg %p367
      %p578 = pneg %p391
      %p579 = pneg %p388
      %p580 = pneg %p419
      %p581 = pneg %p416
      %s582 = smul.u32 2, %s31
      %p583 = scmp.lt.s32.totalorder %s32, 1
      %s584 = scalar_select %p583, %s32, 1
      %p585 = scmp.lt.s32.totalorder %s582, 1
      %s586 = scalar_select %p585, %s582, 1
      %s587 = smul.addr %s584, 2
      %s588 = sadd.s32 %s586, %s587
      %s589 = smul.addr %s588, 8
      %s590 = scalar_lea.vmem %s16, %s589
      %s591 = smul.u32 16, %s31
      %p592 = scmp.lt.s32.totalorder %s32, 1
      %s593 = scalar_select %p592, %s32, 1
      %p594 = scmp.lt.s32.totalorder %s591, 15
      %s595 = scalar_select %p594, %s591, 15
      %s596 = smul.addr %s593, 16
      %s597 = sadd.s32 %s595, %s596
      %s598 = scalar_lea.vmem %s0, %s597
      %s599 = smul.u32 16, %s31
      %s600 = smul.u32 16, %s31
      %p601 = scmp.lt.s32.totalorder %s32, 1
      %s602 = scalar_select %p601, %s32, 1
      %p603 = scmp.lt.s32.totalorder %s600, 15
      %s604 = scalar_select %p603, %s600, 15
      %s605 = smul.addr %s602, 16
      %s606 = sadd.s32 %s604, %s605
      %s607 = smul.addr %s606, 8
      %s608 = scalar_lea.vmem %s1, %s607
      %s609 = smul.u32 16, %s31
      %s610 = smul.u32 16, %s31
      %p611 = scmp.lt.s32.totalorder %s32, 1
      %s612 = scalar_select %p611, %s32, 1
      %p613 = scmp.lt.s32.totalorder %s610, 15
      %s614 = scalar_select %p613, %s610, 15
      %s615 = smul.addr %s612, 16
      %s616 = sadd.s32 %s614, %s615
      %s617 = smul.addr %s616, 4
      %s618 = scalar_lea.vmem %s2, %s617
      %s619 = smul.u32 16, %s31
      %s620 = smul.u32 2, %s31
      %p621 = scmp.lt.s32.totalorder %s32, 1
      %s622 = scalar_select %p621, %s32, 1
      %p623 = scmp.lt.s32.totalorder %s620, 1
      %s624 = scalar_select %p623, %s620, 1
      %s625 = smul.addr %s622, 2
      %s626 = sadd.s32 %s624, %s625
      %s627 = smul.addr %s626, 8
      %s628 = scalar_lea.vmem %s16, %s627
      %s629 = smul.u32 2, %s31
      %v630 = vld [vmem:[%s608] sm:$0xff]
      %v631 = vld [vmem:[%s608 + $0x8] sm:$0xff]
      %v632 = vld [vmem:[%s608 + $0x10] sm:$0xff]
      %v633 = vld [vmem:[%s608 + $0x18] sm:$0xff]
      %v634 = vld [vmem:[%s608 + $0x20] sm:$0xff]
      %v635 = vld [vmem:[%s608 + $0x28] sm:$0xff]
      %v636 = vld [vmem:[%s608 + $0x30] sm:$0xff]
      %v637 = vld [vmem:[%s608 + $0x38] sm:$0xff]
      %v638 = vld [vmem:[%s608 + $0x40] sm:$0xff]
      %v639 = vld [vmem:[%s608 + $0x48] sm:$0xff]
      %v640 = vld [vmem:[%s608 + $0x50] sm:$0xff]
      %v641 = vld [vmem:[%s608 + $0x58] sm:$0xff]
      %v642 = vld [vmem:[%s608 + $0x60] sm:$0xff]
      %v643 = vld [vmem:[%s608 + $0x68] sm:$0xff]
      %v644 = vld [vmem:[%s608 + $0x70] sm:$0xff]
      %v645 = vld [vmem:[%s608 + $0x78] sm:$0xff]
      %v646 = vld [vmem:[%s598] sm:$0x1]
      %v647 = vld [vmem:[%s598 + $0x1] sm:$0x1]
      %v648 = vld [vmem:[%s598 + $0x2] sm:$0x1]
      %v649 = vld [vmem:[%s598 + $0x3] sm:$0x1]
      %v650 = vld [vmem:[%s598 + $0x4] sm:$0x1]
      %v651 = vld [vmem:[%s598 + $0x5] sm:$0x1]
      %v652 = vld [vmem:[%s598 + $0x6] sm:$0x1]
      %v653 = vld [vmem:[%s598 + $0x7] sm:$0x1]
      %v654 = vld [vmem:[%s598 + $0x8] sm:$0x1]
      %v655 = vld [vmem:[%s598 + $0x9] sm:$0x1]
      %v656 = vld [vmem:[%s598 + $0xa] sm:$0x1]
      %v657 = vld [vmem:[%s598 + $0xb] sm:$0x1]
      %v658 = vld [vmem:[%s598 + $0xc] sm:$0x1]
      %v659 = vld [vmem:[%s598 + $0xd] sm:$0x1]
      %v660 = vld [vmem:[%s598 + $0xe] sm:$0x1]
      %v661 = vld [vmem:[%s598 + $0xf] sm:$0x1]
      %v678 = vperm.slane %v646, 0
      %v679 = vperm.slane %v647, 0
      %v680 = vperm.slane %v648, 0
      %v681 = vperm.slane %v649, 0
      %v682 = vperm.slane %v650, 0
      %v683 = vperm.slane %v651, 0
      %v684 = vperm.slane %v652, 0
      %v685 = vperm.slane %v653, 0
      %v686 = vperm.slane %v654, 0
      %v687 = vperm.slane %v655, 0
      %v688 = vperm.slane %v656, 0
      %v689 = vperm.slane %v657, 0
      %v690 = vperm.slane %v658, 0
      %v691 = vperm.slane %v659, 0
      %v692 = vperm.slane %v660, 0
      %v693 = vperm.slane %v661, 0
      %v710 = vsub.f32 %v678, %v630
      %v711 = vsub.f32 %v679, %v631
      %v712 = vsub.f32 %v680, %v632
      %v713 = vsub.f32 %v681, %v633
      %v714 = vsub.f32 %v682, %v634
      %v715 = vsub.f32 %v683, %v635
      %v716 = vsub.f32 %v684, %v636
      %v717 = vsub.f32 %v685, %v637
      %v718 = vsub.f32 %v686, %v638
      %v719 = vsub.f32 %v687, %v639
      %v720 = vsub.f32 %v688, %v640
      %v721 = vsub.f32 %v689, %v641
      %v722 = vsub.f32 %v690, %v642
      %v723 = vsub.f32 %v691, %v643
      %v724 = vsub.f32 %v692, %v644
      %v725 = vsub.f32 %v693, %v645
      %v726 = vmul.f32 %v710, %v710
      %v727 = vmul.f32 %v711, %v711
      %v728 = vmul.f32 %v712, %v712
      %v729 = vmul.f32 %v713, %v713
      %v730 = vmul.f32 %v714, %v714
      %v731 = vmul.f32 %v715, %v715
      %v732 = vmul.f32 %v716, %v716
      %v733 = vmul.f32 %v717, %v717
      %v734 = vmul.f32 %v718, %v718
      %v735 = vmul.f32 %v719, %v719
      %v736 = vmul.f32 %v720, %v720
      %v737 = vmul.f32 %v721, %v721
      %v738 = vmul.f32 %v722, %v722
      %v739 = vmul.f32 %v723, %v723
      %v740 = vmul.f32 %v724, %v724
      %v741 = vmul.f32 %v725, %v725
      %vm742 = vcmask 23552
      %v743 = vsel %vm742, %v726, 0.0
      %744 = vadd.xlane.f32.xlu0 %v743
      %v745 = vpop.xlane.xlu0 %744
      %v746 = vsel %vm742, %v727, 0.0
      %747 = vadd.xlane.f32.xlu0 %v746
      %v748 = vpop.xlane.xlu0 %747
      %v749 = vsel %vm742, %v728, 0.0
      %750 = vadd.xlane.f32.xlu0 %v749
      %v751 = vpop.xlane.xlu0 %750
      %v752 = vsel %vm742, %v729, 0.0
      %753 = vadd.xlane.f32.xlu0 %v752
      %v754 = vpop.xlane.xlu0 %753
      %v755 = vsel %vm742, %v730, 0.0
      %756 = vadd.xlane.f32.xlu0 %v755
      %v757 = vpop.xlane.xlu0 %756
      %v758 = vsel %vm742, %v731, 0.0
      %759 = vadd.xlane.f32.xlu0 %v758
      %v760 = vpop.xlane.xlu0 %759
      %v761 = vsel %vm742, %v732, 0.0
      %762 = vadd.xlane.f32.xlu0 %v761
      %v763 = vpop.xlane.xlu0 %762
      %v764 = vsel %vm742, %v733, 0.0
      %765 = vadd.xlane.f32.xlu0 %v764
      %v766 = vpop.xlane.xlu0 %765
      %v767 = vsel %vm742, %v734, 0.0
      %768 = vadd.xlane.f32.xlu0 %v767
      %v769 = vpop.xlane.xlu0 %768
      %v770 = vsel %vm742, %v735, 0.0
      %771 = vadd.xlane.f32.xlu0 %v770
      %v772 = vpop.xlane.xlu0 %771
      %v773 = vsel %vm742, %v736, 0.0
      %774 = vadd.xlane.f32.xlu0 %v773
      %v775 = vpop.xlane.xlu0 %774
      %v776 = vsel %vm742, %v737, 0.0
      %777 = vadd.xlane.f32.xlu0 %v776
      %v778 = vpop.xlane.xlu0 %777
      %v779 = vsel %vm742, %v738, 0.0
      %780 = vadd.xlane.f32.xlu0 %v779
      %v781 = vpop.xlane.xlu0 %780
      %v782 = vsel %vm742, %v739, 0.0
      %783 = vadd.xlane.f32.xlu0 %v782
      %v784 = vpop.xlane.xlu0 %783
      %v785 = vsel %vm742, %v740, 0.0
      %786 = vadd.xlane.f32.xlu0 %v785
      %v787 = vpop.xlane.xlu0 %786
      %v788 = vsel %vm742, %v741, 0.0
      %789 = vadd.xlane.f32.xlu0 %v788
      %v790 = vpop.xlane.xlu0 %789
      %v791 = vrsqrt.pop %v745
      %v792 = vmul.f32 %v791, %v745
      %v793 = vmul.f32 %v792, %v791
      %v794 = vmul.f32 0.5, %v793
      %v795 = vsub.f32 1.5, %v794
      %v796 = vmul.f32 %v791, %v795
      %v797 = vmul.f32 %v745, %v796
      %vm798 = vcmp.eq.f32.partialorder %v745, inf
      %v799 = vsel %vm798, %v745, %v797
      %vm800 = vcmp.eq.f32.partialorder %v745, 0.0
      %v801 = vand.u32 %v745, 2147483648
      %v802 = vsel %vm800, %v801, %v799
      %v803 = vrsqrt.pop %v748
      %v804 = vmul.f32 %v803, %v748
      %v805 = vmul.f32 %v804, %v803
      %v806 = vmul.f32 0.5, %v805
      %v807 = vsub.f32 1.5, %v806
      %v808 = vmul.f32 %v803, %v807
      %v809 = vmul.f32 %v748, %v808
      %vm810 = vcmp.eq.f32.partialorder %v748, inf
      %v811 = vsel %vm810, %v748, %v809
      %vm812 = vcmp.eq.f32.partialorder %v748, 0.0
      %v813 = vand.u32 %v748, 2147483648
      %v814 = vsel %vm812, %v813, %v811
      %v815 = vrsqrt.pop %v751
      %v816 = vmul.f32 %v815, %v751
      %v817 = vmul.f32 %v816, %v815
      %v818 = vmul.f32 0.5, %v817
      %v819 = vsub.f32 1.5, %v818
      %v820 = vmul.f32 %v815, %v819
      %v821 = vmul.f32 %v751, %v820
      %vm822 = vcmp.eq.f32.partialorder %v751, inf
      %v823 = vsel %vm822, %v751, %v821
      %vm824 = vcmp.eq.f32.partialorder %v751, 0.0
      %v825 = vand.u32 %v751, 2147483648
      %v826 = vsel %vm824, %v825, %v823
      %v827 = vrsqrt.pop %v754
      %v828 = vmul.f32 %v827, %v754
      %v829 = vmul.f32 %v828, %v827
      %v830 = vmul.f32 0.5, %v829
      %v831 = vsub.f32 1.5, %v830
      %v832 = vmul.f32 %v827, %v831
      %v833 = vmul.f32 %v754, %v832
      %vm834 = vcmp.eq.f32.partialorder %v754, inf
      %v835 = vsel %vm834, %v754, %v833
      %vm836 = vcmp.eq.f32.partialorder %v754, 0.0
      %v837 = vand.u32 %v754, 2147483648
      %v838 = vsel %vm836, %v837, %v835
      %v839 = vrsqrt.pop %v757
      %v840 = vmul.f32 %v839, %v757
      %v841 = vmul.f32 %v840, %v839
      %v842 = vmul.f32 0.5, %v841
      %v843 = vsub.f32 1.5, %v842
      %v844 = vmul.f32 %v839, %v843
      %v845 = vmul.f32 %v757, %v844
      %vm846 = vcmp.eq.f32.partialorder %v757, inf
      %v847 = vsel %vm846, %v757, %v845
      %vm848 = vcmp.eq.f32.partialorder %v757, 0.0
      %v849 = vand.u32 %v757, 2147483648
      %v850 = vsel %vm848, %v849, %v847
      %v851 = vrsqrt.pop %v760
      %v852 = vmul.f32 %v851, %v760
      %v853 = vmul.f32 %v852, %v851
      %v854 = vmul.f32 0.5, %v853
      %v855 = vsub.f32 1.5, %v854
      %v856 = vmul.f32 %v851, %v855
      %v857 = vmul.f32 %v760, %v856
      %vm858 = vcmp.eq.f32.partialorder %v760, inf
      %v859 = vsel %vm858, %v760, %v857
      %vm860 = vcmp.eq.f32.partialorder %v760, 0.0
      %v861 = vand.u32 %v760, 2147483648
      %v862 = vsel %vm860, %v861, %v859
      %v863 = vrsqrt.pop %v763
      %v864 = vmul.f32 %v863, %v763
      %v865 = vmul.f32 %v864, %v863
      %v866 = vmul.f32 0.5, %v865
      %v867 = vsub.f32 1.5, %v866
      %v868 = vmul.f32 %v863, %v867
      %v869 = vmul.f32 %v763, %v868
      %vm870 = vcmp.eq.f32.partialorder %v763, inf
      %v871 = vsel %vm870, %v763, %v869
      %vm872 = vcmp.eq.f32.partialorder %v763, 0.0
      %v873 = vand.u32 %v763, 2147483648
      %v874 = vsel %vm872, %v873, %v871
      %v875 = vrsqrt.pop %v766
      %v876 = vmul.f32 %v875, %v766
      %v877 = vmul.f32 %v876, %v875
      %v878 = vmul.f32 0.5, %v877
      %v879 = vsub.f32 1.5, %v878
      %v880 = vmul.f32 %v875, %v879
      %v881 = vmul.f32 %v766, %v880
      %vm882 = vcmp.eq.f32.partialorder %v766, inf
      %v883 = vsel %vm882, %v766, %v881
      %vm884 = vcmp.eq.f32.partialorder %v766, 0.0
      %v885 = vand.u32 %v766, 2147483648
      %v886 = vsel %vm884, %v885, %v883
      %v887 = vrsqrt.pop %v769
      %v888 = vmul.f32 %v887, %v769
      %v889 = vmul.f32 %v888, %v887
      %v890 = vmul.f32 0.5, %v889
      %v891 = vsub.f32 1.5, %v890
      %v892 = vmul.f32 %v887, %v891
      %v893 = vmul.f32 %v769, %v892
      %vm894 = vcmp.eq.f32.partialorder %v769, inf
      %v895 = vsel %vm894, %v769, %v893
      %vm896 = vcmp.eq.f32.partialorder %v769, 0.0
      %v897 = vand.u32 %v769, 2147483648
      %v898 = vsel %vm896, %v897, %v895
      %v899 = vrsqrt.pop %v772
      %v900 = vmul.f32 %v899, %v772
      %v901 = vmul.f32 %v900, %v899
      %v902 = vmul.f32 0.5, %v901
      %v903 = vsub.f32 1.5, %v902
      %v904 = vmul.f32 %v899, %v903
      %v905 = vmul.f32 %v772, %v904
      %vm906 = vcmp.eq.f32.partialorder %v772, inf
      %v907 = vsel %vm906, %v772, %v905
      %vm908 = vcmp.eq.f32.partialorder %v772, 0.0
      %v909 = vand.u32 %v772, 2147483648
      %v910 = vsel %vm908, %v909, %v907
      %v911 = vrsqrt.pop %v775
      %v912 = vmul.f32 %v911, %v775
      %v913 = vmul.f32 %v912, %v911
      %v914 = vmul.f32 0.5, %v913
      %v915 = vsub.f32 1.5, %v914
      %v916 = vmul.f32 %v911, %v915
      %v917 = vmul.f32 %v775, %v916
      %vm918 = vcmp.eq.f32.partialorder %v775, inf
      %v919 = vsel %vm918, %v775, %v917
      %vm920 = vcmp.eq.f32.partialorder %v775, 0.0
      %v921 = vand.u32 %v775, 2147483648
      %v922 = vsel %vm920, %v921, %v919
      %v923 = vrsqrt.pop %v778
      %v924 = vmul.f32 %v923, %v778
      %v925 = vmul.f32 %v924, %v923
      %v926 = vmul.f32 0.5, %v925
      %v927 = vsub.f32 1.5, %v926
      %v928 = vmul.f32 %v923, %v927
      %v929 = vmul.f32 %v778, %v928
      %vm930 = vcmp.eq.f32.partialorder %v778, inf
      %v931 = vsel %vm930, %v778, %v929
      %vm932 = vcmp.eq.f32.partialorder %v778, 0.0
      %v933 = vand.u32 %v778, 2147483648
      %v934 = vsel %vm932, %v933, %v931
      %v935 = vrsqrt.pop %v781
      %v936 = vmul.f32 %v935, %v781
      %v937 = vmul.f32 %v936, %v935
      %v938 = vmul.f32 0.5, %v937
      %v939 = vsub.f32 1.5, %v938
      %v940 = vmul.f32 %v935, %v939
      %v941 = vmul.f32 %v781, %v940
      %vm942 = vcmp.eq.f32.partialorder %v781, inf
      %v943 = vsel %vm942, %v781, %v941
      %vm944 = vcmp.eq.f32.partialorder %v781, 0.0
      %v945 = vand.u32 %v781, 2147483648
      %v946 = vsel %vm944, %v945, %v943
      %v947 = vrsqrt.pop %v784
      %v948 = vmul.f32 %v947, %v784
      %v949 = vmul.f32 %v948, %v947
      %v950 = vmul.f32 0.5, %v949
      %v951 = vsub.f32 1.5, %v950
      %v952 = vmul.f32 %v947, %v951
      %v953 = vmul.f32 %v784, %v952
      %vm954 = vcmp.eq.f32.partialorder %v784, inf
      %v955 = vsel %vm954, %v784, %v953
      %vm956 = vcmp.eq.f32.partialorder %v784, 0.0
      %v957 = vand.u32 %v784, 2147483648
      %v958 = vsel %vm956, %v957, %v955
      %v959 = vrsqrt.pop %v787
      %v960 = vmul.f32 %v959, %v787
      %v961 = vmul.f32 %v960, %v959
      %v962 = vmul.f32 0.5, %v961
      %v963 = vsub.f32 1.5, %v962
      %v964 = vmul.f32 %v959, %v963
      %v965 = vmul.f32 %v787, %v964
      %vm966 = vcmp.eq.f32.partialorder %v787, inf
      %v967 = vsel %vm966, %v787, %v965
      %vm968 = vcmp.eq.f32.partialorder %v787, 0.0
      %v969 = vand.u32 %v787, 2147483648
      %v970 = vsel %vm968, %v969, %v967
      %v971 = vrsqrt.pop %v790
      %v972 = vmul.f32 %v971, %v790
      %v973 = vmul.f32 %v972, %v971
      %v974 = vmul.f32 0.5, %v973
      %v975 = vsub.f32 1.5, %v974
      %v976 = vmul.f32 %v971, %v975
      %v977 = vmul.f32 %v790, %v976
      %vm978 = vcmp.eq.f32.partialorder %v790, inf
      %v979 = vsel %vm978, %v790, %v977
      %vm980 = vcmp.eq.f32.partialorder %v790, 0.0
      %v981 = vand.u32 %v790, 2147483648
      %v982 = vsel %vm980, %v981, %v979
      %v983 = vld [vmem:[%s4] sm:$0x7]
      %984 = vst [vmem:[#allocation1] ss:$9 sm:$0xff] %v646
      %s985 = scalar_lea.vmem [#allocation1], 1
      %986 = vst [vmem:[%s985] ss:$9 sm:$0xff] %v647
      %s987 = scalar_lea.vmem [#allocation1], 2
      %988 = vst [vmem:[%s987] ss:$9 sm:$0xff] %v648
      %s989 = scalar_lea.vmem [#allocation1], 3
      %990 = vst [vmem:[%s989] ss:$9 sm:$0xff] %v649
      %s991 = scalar_lea.vmem [#allocation1], 4
      %992 = vst [vmem:[%s991] ss:$9 sm:$0xff] %v650
      %s993 = scalar_lea.vmem [#allocation1], 5
      %994 = vst [vmem:[%s993] ss:$9 sm:$0xff] %v651
      %s995 = scalar_lea.vmem [#allocation1], 6
      %996 = vst [vmem:[%s995] ss:$9 sm:$0xff] %v652
      %s997 = scalar_lea.vmem [#allocation1], 7
      %998 = vst [vmem:[%s997] ss:$9 sm:$0xff] %v653
      %v999 = vld [vmem:[#allocation1] sm:$0xff]
      %1000 = vst [vmem:[#allocation1] ss:$9 sm:$0xff] %v654
      %1001 = vst [vmem:[%s985] ss:$9 sm:$0xff] %v655
      %1002 = vst [vmem:[%s987] ss:$9 sm:$0xff] %v656
      %1003 = vst [vmem:[%s989] ss:$9 sm:$0xff] %v657
      %1004 = vst [vmem:[%s991] ss:$9 sm:$0xff] %v658
      %1005 = vst [vmem:[%s993] ss:$9 sm:$0xff] %v659
      %1006 = vst [vmem:[%s995] ss:$9 sm:$0xff] %v660
      %1007 = vst [vmem:[%s997] ss:$9 sm:$0xff] %v661
      %v1008 = vld [vmem:[#allocation1] sm:$0xff]
      %v1009 = vsel %vm742, %v999, 0
      %v1011 = vsel %vm742, %v1008, 0
      %vm1013 = vcmask 1042432
      %v1015 = vsel %vm1013, %v983, 0
      %1017 = vmatpush.msra.mxu0 0.0
      %1018 = vmatpush.msra.mxu0 0.0
      %1019 = vmatpush.msra.mxu0 0.0
      %1020 = vmatpush.msra.mxu0 0.0
      %1021 = vmatpush.msra.mxu0 0.0
      %1022 = vmatpush.msra.mxu0 0.0
      %1023 = vmatpush.msra.mxu0 0.0
      %1024 = vmatpush.msra.mxu0 0.0
      %1025 = vmatpush.msra.mxu0 0.0
      %1026 = vmatpush.msra.mxu0 0.0
      %1027 = vmatpush.msra.mxu0 0.0
      %1028 = vmatpush.msra.mxu0 0.0
      %1029 = vmatpush.msra.mxu0 0.0
      %1030 = vmatpush.msra.mxu0 0.0
      %1031 = vmatpush.msra.mxu0 0.0
      %1032 = vmatpush.msra.mxu0 %v1015
      %1033 = vmatmul.f32.gmra.mxu0 %v1009
      %v1034 = vpop.f32.mrf.mxu0
      %v1035 = vadd.f32 0.0, %v1034
      %1036 = vmatmul.f32.gmra.mxu0 %v1011
      %v1037 = vpop.f32.mrf.mxu0
      %v1038 = vadd.f32 0.0, %v1037
      %1039 = vdwg.mxu0
      %v1040 = vld [vmem:[%s5] sm:$0x7]
      %v1042 = vsel %vm742, %v630, 0
      %v1045 = vsel %vm742, %v631, 0
      %v1048 = vsel %vm742, %v632, 0
      %v1051 = vsel %vm742, %v633, 0
      %v1054 = vsel %vm742, %v634, 0
      %v1057 = vsel %vm742, %v635, 0
      %v1060 = vsel %vm742, %v636, 0
      %v1063 = vsel %vm742, %v637, 0
      %v1066 = vsel %vm742, %v638, 0
      %v1069 = vsel %vm742, %v639, 0
      %v1072 = vsel %vm742, %v640, 0
      %v1075 = vsel %vm742, %v641, 0
      %v1078 = vsel %vm742, %v642, 0
      %v1081 = vsel %vm742, %v643, 0
      %v1084 = vsel %vm742, %v644, 0
      %v1087 = vsel %vm742, %v645, 0
      %v1090 = vsel %vm1013, %v1040, 0
      %1092 = vmatpush.msra.mxu0 0.0
      %1093 = vmatpush.msra.mxu0 0.0
      %1094 = vmatpush.msra.mxu0 0.0
      %1095 = vmatpush.msra.mxu0 0.0
      %1096 = vmatpush.msra.mxu0 0.0
      %1097 = vmatpush.msra.mxu0 0.0
      %1098 = vmatpush.msra.mxu0 0.0
      %1099 = vmatpush.msra.mxu0 0.0
      %1100 = vmatpush.msra.mxu0 0.0
      %1101 = vmatpush.msra.mxu0 0.0
      %1102 = vmatpush.msra.mxu0 0.0
      %1103 = vmatpush.msra.mxu0 0.0
      %1104 = vmatpush.msra.mxu0 0.0
      %1105 = vmatpush.msra.mxu0 0.0
      %1106 = vmatpush.msra.mxu0 0.0
      %1107 = vmatpush.msra.mxu0 %v1090
      %1108 = vmatmul.f32.gmra.mxu0 %v1042
      %v1109 = vpop.f32.mrf.mxu0
      %v1110 = vadd.f32 0.0, %v1109
      %1111 = vmatmul.f32.gmra.mxu0 %v1045
      %v1112 = vpop.f32.mrf.mxu0
      %v1113 = vadd.f32 0.0, %v1112
      %1114 = vmatmul.f32.gmra.mxu0 %v1048
      %v1115 = vpop.f32.mrf.mxu0
      %v1116 = vadd.f32 0.0, %v1115
      %1117 = vmatmul.f32.gmra.mxu0 %v1051
      %v1118 = vpop.f32.mrf.mxu0
      %v1119 = vadd.f32 0.0, %v1118
      %1120 = vmatmul.f32.gmra.mxu0 %v1054
      %v1121 = vpop.f32.mrf.mxu0
      %v1122 = vadd.f32 0.0, %v1121
      %1123 = vmatmul.f32.gmra.mxu0 %v1057
      %v1124 = vpop.f32.mrf.mxu0
      %v1125 = vadd.f32 0.0, %v1124
      %1126 = vmatmul.f32.gmra.mxu0 %v1060
      %v1127 = vpop.f32.mrf.mxu0
      %v1128 = vadd.f32 0.0, %v1127
      %1129 = vmatmul.f32.gmra.mxu0 %v1063
      %v1130 = vpop.f32.mrf.mxu0
      %v1131 = vadd.f32 0.0, %v1130
      %1132 = vmatmul.f32.gmra.mxu0 %v1066
      %v1133 = vpop.f32.mrf.mxu0
      %v1134 = vadd.f32 0.0, %v1133
      %1135 = vmatmul.f32.gmra.mxu0 %v1069
      %v1136 = vpop.f32.mrf.mxu0
      %v1137 = vadd.f32 0.0, %v1136
      %1138 = vmatmul.f32.gmra.mxu0 %v1072
      %v1139 = vpop.f32.mrf.mxu0
      %v1140 = vadd.f32 0.0, %v1139
      %1141 = vmatmul.f32.gmra.mxu0 %v1075
      %v1142 = vpop.f32.mrf.mxu0
      %v1143 = vadd.f32 0.0, %v1142
      %1144 = vmatmul.f32.gmra.mxu0 %v1078
      %v1145 = vpop.f32.mrf.mxu0
      %v1146 = vadd.f32 0.0, %v1145
      %1147 = vmatmul.f32.gmra.mxu0 %v1081
      %v1148 = vpop.f32.mrf.mxu0
      %v1149 = vadd.f32 0.0, %v1148
      %1150 = vmatmul.f32.gmra.mxu0 %v1084
      %v1151 = vpop.f32.mrf.mxu0
      %v1152 = vadd.f32 0.0, %v1151
      %1153 = vmatmul.f32.gmra.mxu0 %v1087
      %v1154 = vpop.f32.mrf.mxu0
      %v1155 = vadd.f32 0.0, %v1154
      %1156 = vdwg.mxu0
      %v1157 = vld [vmem:[%s3] sm:$0x1]
      %v1159 = vperm.slane %v1157, 0
      %v1161 = vmul.f32 %v802, %v1159
      %v1162 = vmul.f32 %v814, %v1159
      %v1163 = vmul.f32 %v826, %v1159
      %v1164 = vmul.f32 %v838, %v1159
      %v1165 = vmul.f32 %v850, %v1159
      %v1166 = vmul.f32 %v862, %v1159
      %v1167 = vmul.f32 %v874, %v1159
      %v1168 = vmul.f32 %v886, %v1159
      %v1169 = vmul.f32 %v898, %v1159
      %v1170 = vmul.f32 %v910, %v1159
      %v1171 = vmul.f32 %v922, %v1159
      %v1172 = vmul.f32 %v934, %v1159
      %v1173 = vmul.f32 %v946, %v1159
      %v1174 = vmul.f32 %v958, %v1159
      %v1175 = vmul.f32 %v970, %v1159
      %v1176 = vmul.f32 %v982, %v1159
      %v1177 = vadd.f32 %v1161, %v1110
      %v1178 = vadd.f32 %v1162, %v1113
      %v1179 = vadd.f32 %v1163, %v1116
      %v1180 = vadd.f32 %v1164, %v1119
      %v1181 = vadd.f32 %v1165, %v1122
      %v1182 = vadd.f32 %v1166, %v1125
      %v1183 = vadd.f32 %v1167, %v1128
      %v1184 = vadd.f32 %v1168, %v1131
      %v1185 = vadd.f32 %v1169, %v1134
      %v1186 = vadd.f32 %v1170, %v1137
      %v1187 = vadd.f32 %v1171, %v1140
      %v1188 = vadd.f32 %v1172, %v1143
      %v1189 = vadd.f32 %v1173, %v1146
      %v1190 = vadd.f32 %v1174, %v1149
      %v1191 = vadd.f32 %v1175, %v1152
      %v1192 = vadd.f32 %v1176, %v1155
      %v1195 = vrot.slane %v1035, 1
      %v1196 = vrot.slane %v1035, 2
      %v1197 = vrot.slane %v1035, 3
      %v1198 = vrot.slane %v1035, 4
      %v1199 = vrot.slane %v1035, 5
      %v1200 = vrot.slane %v1035, 6
      %v1201 = vrot.slane %v1035, 7
      %v1202 = vrot.slane %v1038, 1
      %v1203 = vrot.slane %v1038, 2
      %v1204 = vrot.slane %v1038, 3
      %v1205 = vrot.slane %v1038, 4
      %v1206 = vrot.slane %v1038, 5
      %v1207 = vrot.slane %v1038, 6
      %v1208 = vrot.slane %v1038, 7
      %v1209 = vperm.slane %v1035, 0
      %v1210 = vperm.slane %v1195, 0
      %v1211 = vperm.slane %v1196, 0
      %v1212 = vperm.slane %v1197, 0
      %v1213 = vperm.slane %v1198, 0
      %v1214 = vperm.slane %v1199, 0
      %v1215 = vperm.slane %v1200, 0
      %v1216 = vperm.slane %v1201, 0
      %v1217 = vperm.slane %v1038, 0
      %v1218 = vperm.slane %v1202, 0
      %v1219 = vperm.slane %v1203, 0
      %v1220 = vperm.slane %v1204, 0
      %v1221 = vperm.slane %v1205, 0
      %v1222 = vperm.slane %v1206, 0
      %v1223 = vperm.slane %v1207, 0
      %v1224 = vperm.slane %v1208, 0
      %v1241 = vadd.f32 %v1177, %v1209
      %v1242 = vadd.f32 %v1178, %v1210
      %v1243 = vadd.f32 %v1179, %v1211
      %v1244 = vadd.f32 %v1180, %v1212
      %v1245 = vadd.f32 %v1181, %v1213
      %v1246 = vadd.f32 %v1182, %v1214
      %v1247 = vadd.f32 %v1183, %v1215
      %v1248 = vadd.f32 %v1184, %v1216
      %v1249 = vadd.f32 %v1185, %v1217
      %v1250 = vadd.f32 %v1186, %v1218
      %v1251 = vadd.f32 %v1187, %v1219
      %v1252 = vadd.f32 %v1188, %v1220
      %v1253 = vadd.f32 %v1189, %v1221
      %v1254 = vadd.f32 %v1190, %v1222
      %v1255 = vadd.f32 %v1191, %v1223
      %v1256 = vadd.f32 %v1192, %v1224
      %v1257 = vld [vmem:[%s6] sm:$0x1]
      %v1259 = vperm.slane %v1257, 0
      %v1261 = vmul.f32 %v1241, %v1259
      %v1262 = vmul.f32 %v1242, %v1259
      %v1263 = vmul.f32 %v1243, %v1259
      %v1264 = vmul.f32 %v1244, %v1259
      %v1265 = vmul.f32 %v1245, %v1259
      %v1266 = vmul.f32 %v1246, %v1259
      %v1267 = vmul.f32 %v1247, %v1259
      %v1268 = vmul.f32 %v1248, %v1259
      %v1269 = vmul.f32 %v1249, %v1259
      %v1270 = vmul.f32 %v1250, %v1259
      %v1271 = vmul.f32 %v1251, %v1259
      %v1272 = vmul.f32 %v1252, %v1259
      %v1273 = vmul.f32 %v1253, %v1259
      %v1274 = vmul.f32 %v1254, %v1259
      %v1275 = vmul.f32 %v1255, %v1259
      %v1276 = vmul.f32 %v1256, %v1259
      %v1277 = vld [vmem:[%s7] sm:$0x1]
      %v1279 = vperm.slane %v1277, 0
      %v1281 = vadd.f32 %v1261, %v1279
      %v1282 = vadd.f32 %v1262, %v1279
      %v1283 = vadd.f32 %v1263, %v1279
      %v1284 = vadd.f32 %v1264, %v1279
      %v1285 = vadd.f32 %v1265, %v1279
      %v1286 = vadd.f32 %v1266, %v1279
      %v1287 = vadd.f32 %v1267, %v1279
      %v1288 = vadd.f32 %v1268, %v1279
      %v1289 = vadd.f32 %v1269, %v1279
      %v1290 = vadd.f32 %v1270, %v1279
      %v1291 = vadd.f32 %v1271, %v1279
      %v1292 = vadd.f32 %v1272, %v1279
      %v1293 = vadd.f32 %v1273, %v1279
      %v1294 = vadd.f32 %v1274, %v1279
      %v1295 = vadd.f32 %v1275, %v1279
      %v1296 = vadd.f32 %v1276, %v1279
      %v1297 = vmax.f32 %v1281, 0.0
      %v1298 = vmax.f32 %v1282, 0.0
      %v1299 = vmax.f32 %v1283, 0.0
      %v1300 = vmax.f32 %v1284, 0.0
      %v1301 = vmax.f32 %v1285, 0.0
      %v1302 = vmax.f32 %v1286, 0.0
      %v1303 = vmax.f32 %v1287, 0.0
      %v1304 = vmax.f32 %v1288, 0.0
      %v1305 = vmax.f32 %v1289, 0.0
      %v1306 = vmax.f32 %v1290, 0.0
      %v1307 = vmax.f32 %v1291, 0.0
      %v1308 = vmax.f32 %v1292, 0.0
      %v1309 = vmax.f32 %v1293, 0.0
      %v1310 = vmax.f32 %v1294, 0.0
      %v1311 = vmax.f32 %v1295, 0.0
      %v1312 = vmax.f32 %v1296, 0.0
      %v1313 = vld [vmem:[%s618] sm:$0xf]
      %v1314 = vld [vmem:[%s618 + $0x4] sm:$0xf]
      %v1315 = vld [vmem:[%s618 + $0x8] sm:$0xf]
      %v1316 = vld [vmem:[%s618 + $0xc] sm:$0xf]
      %v1317 = vld [vmem:[%s618 + $0x10] sm:$0xf]
      %v1318 = vld [vmem:[%s618 + $0x14] sm:$0xf]
      %v1319 = vld [vmem:[%s618 + $0x18] sm:$0xf]
      %v1320 = vld [vmem:[%s618 + $0x1c] sm:$0xf]
      %v1321 = vld [vmem:[%s618 + $0x20] sm:$0xf]
      %v1322 = vld [vmem:[%s618 + $0x24] sm:$0xf]
      %v1323 = vld [vmem:[%s618 + $0x28] sm:$0xf]
      %v1324 = vld [vmem:[%s618 + $0x2c] sm:$0xf]
      %v1325 = vld [vmem:[%s618 + $0x30] sm:$0xf]
      %v1326 = vld [vmem:[%s618 + $0x34] sm:$0xf]
      %v1327 = vld [vmem:[%s618 + $0x38] sm:$0xf]
      %v1328 = vld [vmem:[%s618 + $0x3c] sm:$0xf]
      %v1329 = vunpack.c.l.bf16 %v1313
      %v1330 = vunpack.c.l.bf16 %v1314
      %v1331 = vunpack.c.l.bf16 %v1315
      %v1332 = vunpack.c.l.bf16 %v1316
      %v1333 = vunpack.c.l.bf16 %v1317
      %v1334 = vunpack.c.l.bf16 %v1318
      %v1335 = vunpack.c.l.bf16 %v1319
      %v1336 = vunpack.c.l.bf16 %v1320
      %v1337 = vunpack.c.l.bf16 %v1321
      %v1338 = vunpack.c.l.bf16 %v1322
      %v1339 = vunpack.c.l.bf16 %v1323
      %v1340 = vunpack.c.l.bf16 %v1324
      %v1341 = vunpack.c.l.bf16 %v1325
      %v1342 = vunpack.c.l.bf16 %v1326
      %v1343 = vunpack.c.l.bf16 %v1327
      %v1344 = vunpack.c.l.bf16 %v1328
      %v1345 = vld [vmem:[%s8] sm:$0xff]
      %v1346 = vld [vmem:[%s10] sm:$0xff]
      %vm1347 = vcmask 64512
      %v1349 = vsel %vm1347, %v1297, 0
      %v1352 = vsel %vm1347, %v1298, 0
      %v1355 = vsel %vm1347, %v1299, 0
      %v1358 = vsel %vm1347, %v1300, 0
      %v1361 = vsel %vm1347, %v1301, 0
      %v1364 = vsel %vm1347, %v1302, 0
      %v1367 = vsel %vm1347, %v1303, 0
      %v1370 = vsel %vm1347, %v1304, 0
      %v1373 = vsel %vm1347, %v1305, 0
      %v1376 = vsel %vm1347, %v1306, 0
      %v1379 = vsel %vm1347, %v1307, 0
      %v1382 = vsel %vm1347, %v1308, 0
      %v1385 = vsel %vm1347, %v1309, 0
      %v1388 = vsel %vm1347, %v1310, 0
      %v1391 = vsel %vm1347, %v1311, 0
      %v1394 = vsel %vm1347, %v1312, 0
      %1396 = vmatpush.msra.mxu0 0.0
      %1397 = vmatpush.msra.mxu0 0.0
      %1398 = vmatpush.msra.mxu0 0.0
      %1399 = vmatpush.msra.mxu0 0.0
      %1400 = vmatpush.msra.mxu0 0.0
      %1401 = vmatpush.msra.mxu0 0.0
      %1402 = vmatpush.msra.mxu0 0.0
      %1403 = vmatpush.msra.mxu0 0.0
      %1404 = vmatpush.msra.mxu0 0.0
      %1405 = vmatpush.msra.mxu0 0.0
      %1406 = vmatpush.msra.mxu0 0.0
      %1407 = vmatpush.msra.mxu0 0.0
      %1408 = vmatpush.msra.mxu0 0.0
      %1409 = vmatpush.msra.mxu0 0.0
      %1410 = vmatpush.msra.mxu0 0.0
      %1411 = vmatpush.msra.mxu0 %v1346
      %1412 = vmatmul.f32.gmra.mxu0 %v1349
      %v1413 = vpop.f32.mrf.mxu0
      %v1414 = vadd.f32 0.0, %v1413
      %1415 = vmatmul.f32.gmra.mxu0 %v1352
      %v1416 = vpop.f32.mrf.mxu0
      %v1417 = vadd.f32 0.0, %v1416
      %1418 = vmatmul.f32.gmra.mxu0 %v1355
      %v1419 = vpop.f32.mrf.mxu0
      %v1420 = vadd.f32 0.0, %v1419
      %1421 = vmatmul.f32.gmra.mxu0 %v1358
      %v1422 = vpop.f32.mrf.mxu0
      %v1423 = vadd.f32 0.0, %v1422
      %1424 = vmatmul.f32.gmra.mxu0 %v1361
      %v1425 = vpop.f32.mrf.mxu0
      %v1426 = vadd.f32 0.0, %v1425
      %1427 = vmatmul.f32.gmra.mxu0 %v1364
      %v1428 = vpop.f32.mrf.mxu0
      %v1429 = vadd.f32 0.0, %v1428
      %1430 = vmatmul.f32.gmra.mxu0 %v1367
      %v1431 = vpop.f32.mrf.mxu0
      %v1432 = vadd.f32 0.0, %v1431
      %1433 = vmatmul.f32.gmra.mxu0 %v1370
      %v1434 = vpop.f32.mrf.mxu0
      %v1435 = vadd.f32 0.0, %v1434
      %1436 = vmatmul.f32.gmra.mxu0 %v1373
      %v1437 = vpop.f32.mrf.mxu0
      %v1438 = vadd.f32 0.0, %v1437
      %1439 = vmatmul.f32.gmra.mxu0 %v1376
      %v1440 = vpop.f32.mrf.mxu0
      %v1441 = vadd.f32 0.0, %v1440
      %1442 = vmatmul.f32.gmra.mxu0 %v1379
      %v1443 = vpop.f32.mrf.mxu0
      %v1444 = vadd.f32 0.0, %v1443
      %1445 = vmatmul.f32.gmra.mxu0 %v1382
      %v1446 = vpop.f32.mrf.mxu0
      %v1447 = vadd.f32 0.0, %v1446
      %1448 = vmatmul.f32.gmra.mxu0 %v1385
      %v1449 = vpop.f32.mrf.mxu0
      %v1450 = vadd.f32 0.0, %v1449
      %1451 = vmatmul.f32.gmra.mxu0 %v1388
      %v1452 = vpop.f32.mrf.mxu0
      %v1453 = vadd.f32 0.0, %v1452
      %1454 = vmatmul.f32.gmra.mxu0 %v1391
      %v1455 = vpop.f32.mrf.mxu0
      %v1456 = vadd.f32 0.0, %v1455
      %1457 = vmatmul.f32.gmra.mxu0 %v1394
      %v1458 = vpop.f32.mrf.mxu0
      %v1459 = vadd.f32 0.0, %v1458
      %1460 = vdwg.mxu0
      %v1462 = vsel %vm1347, %v1329, 0
      %v1465 = vsel %vm1347, %v1330, 0
      %v1468 = vsel %vm1347, %v1331, 0
      %v1471 = vsel %vm1347, %v1332, 0
      %v1474 = vsel %vm1347, %v1333, 0
      %v1477 = vsel %vm1347, %v1334, 0
      %v1480 = vsel %vm1347, %v1335, 0
      %v1483 = vsel %vm1347, %v1336, 0
      %v1486 = vsel %vm1347, %v1337, 0
      %v1489 = vsel %vm1347, %v1338, 0
      %v1492 = vsel %vm1347, %v1339, 0
      %v1495 = vsel %vm1347, %v1340, 0
      %v1498 = vsel %vm1347, %v1341, 0
      %v1501 = vsel %vm1347, %v1342, 0
      %v1504 = vsel %vm1347, %v1343, 0
      %v1507 = vsel %vm1347, %v1344, 0
      %1509 = vmatpush.msra.mxu0 0.0
      %1510 = vmatpush.msra.mxu0 0.0
      %1511 = vmatpush.msra.mxu0 0.0
      %1512 = vmatpush.msra.mxu0 0.0
      %1513 = vmatpush.msra.mxu0 0.0
      %1514 = vmatpush.msra.mxu0 0.0
      %1515 = vmatpush.msra.mxu0 0.0
      %1516 = vmatpush.msra.mxu0 0.0
      %1517 = vmatpush.msra.mxu0 0.0
      %1518 = vmatpush.msra.mxu0 0.0
      %1519 = vmatpush.msra.mxu0 0.0
      %1520 = vmatpush.msra.mxu0 0.0
      %1521 = vmatpush.msra.mxu0 0.0
      %1522 = vmatpush.msra.mxu0 0.0
      %1523 = vmatpush.msra.mxu0 0.0
      %1524 = vmatpush.msra.mxu0 %v1345
      %1525 = vmatmul.f32.gmra.mxu0 %v1462
      %v1526 = vpop.f32.mrf.mxu0
      %v1527 = vadd.f32 %v1414, %v1526
      %1528 = vmatmul.f32.gmra.mxu0 %v1465
      %v1529 = vpop.f32.mrf.mxu0
      %v1530 = vadd.f32 %v1417, %v1529
      %1531 = vmatmul.f32.gmra.mxu0 %v1468
      %v1532 = vpop.f32.mrf.mxu0
      %v1533 = vadd.f32 %v1420, %v1532
      %1534 = vmatmul.f32.gmra.mxu0 %v1471
      %v1535 = vpop.f32.mrf.mxu0
      %v1536 = vadd.f32 %v1423, %v1535
      %1537 = vmatmul.f32.gmra.mxu0 %v1474
      %v1538 = vpop.f32.mrf.mxu0
      %v1539 = vadd.f32 %v1426, %v1538
      %1540 = vmatmul.f32.gmra.mxu0 %v1477
      %v1541 = vpop.f32.mrf.mxu0
      %v1542 = vadd.f32 %v1429, %v1541
      %1543 = vmatmul.f32.gmra.mxu0 %v1480
      %v1544 = vpop.f32.mrf.mxu0
      %v1545 = vadd.f32 %v1432, %v1544
      %1546 = vmatmul.f32.gmra.mxu0 %v1483
      %v1547 = vpop.f32.mrf.mxu0
      %v1548 = vadd.f32 %v1435, %v1547
      %1549 = vmatmul.f32.gmra.mxu0 %v1486
      %v1550 = vpop.f32.mrf.mxu0
      %v1551 = vadd.f32 %v1438, %v1550
      %1552 = vmatmul.f32.gmra.mxu0 %v1489
      %v1553 = vpop.f32.mrf.mxu0
      %v1554 = vadd.f32 %v1441, %v1553
      %1555 = vmatmul.f32.gmra.mxu0 %v1492
      %v1556 = vpop.f32.mrf.mxu0
      %v1557 = vadd.f32 %v1444, %v1556
      %1558 = vmatmul.f32.gmra.mxu0 %v1495
      %v1559 = vpop.f32.mrf.mxu0
      %v1560 = vadd.f32 %v1447, %v1559
      %1561 = vmatmul.f32.gmra.mxu0 %v1498
      %v1562 = vpop.f32.mrf.mxu0
      %v1563 = vadd.f32 %v1450, %v1562
      %1564 = vmatmul.f32.gmra.mxu0 %v1501
      %v1565 = vpop.f32.mrf.mxu0
      %v1566 = vadd.f32 %v1453, %v1565
      %1567 = vmatmul.f32.gmra.mxu0 %v1504
      %v1568 = vpop.f32.mrf.mxu0
      %v1569 = vadd.f32 %v1456, %v1568
      %1570 = vmatmul.f32.gmra.mxu0 %v1507
      %v1571 = vpop.f32.mrf.mxu0
      %v1572 = vadd.f32 %v1459, %v1571
      %1573 = vdwg.mxu0
      %v1574 = vld [vmem:[%s9] sm:$0xff]
      %v1575 = vld [vmem:[%s11] sm:$0xff]
      %1576 = vmatpush.msra.mxu0 0.0
      %1577 = vmatpush.msra.mxu0 0.0
      %1578 = vmatpush.msra.mxu0 0.0
      %1579 = vmatpush.msra.mxu0 0.0
      %1580 = vmatpush.msra.mxu0 0.0
      %1581 = vmatpush.msra.mxu0 0.0
      %1582 = vmatpush.msra.mxu0 0.0
      %1583 = vmatpush.msra.mxu0 0.0
      %1584 = vmatpush.msra.mxu0 0.0
      %1585 = vmatpush.msra.mxu0 0.0
      %1586 = vmatpush.msra.mxu0 0.0
      %1587 = vmatpush.msra.mxu0 0.0
      %1588 = vmatpush.msra.mxu0 0.0
      %1589 = vmatpush.msra.mxu0 0.0
      %1590 = vmatpush.msra.mxu0 0.0
      %1591 = vmatpush.msra.mxu0 %v1575
      %1592 = vmatmul.f32.gmra.mxu0 %v1349
      %v1593 = vpop.f32.mrf.mxu0
      %v1594 = vadd.f32 0.0, %v1593
      %1595 = vmatmul.f32.gmra.mxu0 %v1352
      %v1596 = vpop.f32.mrf.mxu0
      %v1597 = vadd.f32 0.0, %v1596
      %1598 = vmatmul.f32.gmra.mxu0 %v1355
      %v1599 = vpop.f32.mrf.mxu0
      %v1600 = vadd.f32 0.0, %v1599
      %1601 = vmatmul.f32.gmra.mxu0 %v1358
      %v1602 = vpop.f32.mrf.mxu0
      %v1603 = vadd.f32 0.0, %v1602
      %1604 = vmatmul.f32.gmra.mxu0 %v1361
      %v1605 = vpop.f32.mrf.mxu0
      %v1606 = vadd.f32 0.0, %v1605
      %1607 = vmatmul.f32.gmra.mxu0 %v1364
      %v1608 = vpop.f32.mrf.mxu0
      %v1609 = vadd.f32 0.0, %v1608
      %1610 = vmatmul.f32.gmra.mxu0 %v1367
      %v1611 = vpop.f32.mrf.mxu0
      %v1612 = vadd.f32 0.0, %v1611
      %1613 = vmatmul.f32.gmra.mxu0 %v1370
      %v1614 = vpop.f32.mrf.mxu0
      %v1615 = vadd.f32 0.0, %v1614
      %1616 = vmatmul.f32.gmra.mxu0 %v1373
      %v1617 = vpop.f32.mrf.mxu0
      %v1618 = vadd.f32 0.0, %v1617
      %1619 = vmatmul.f32.gmra.mxu0 %v1376
      %v1620 = vpop.f32.mrf.mxu0
      %v1621 = vadd.f32 0.0, %v1620
      %1622 = vmatmul.f32.gmra.mxu0 %v1379
      %v1623 = vpop.f32.mrf.mxu0
      %v1624 = vadd.f32 0.0, %v1623
      %1625 = vmatmul.f32.gmra.mxu0 %v1382
      %v1626 = vpop.f32.mrf.mxu0
      %v1627 = vadd.f32 0.0, %v1626
      %1628 = vmatmul.f32.gmra.mxu0 %v1385
      %v1629 = vpop.f32.mrf.mxu0
      %v1630 = vadd.f32 0.0, %v1629
      %1631 = vmatmul.f32.gmra.mxu0 %v1388
      %v1632 = vpop.f32.mrf.mxu0
      %v1633 = vadd.f32 0.0, %v1632
      %1634 = vmatmul.f32.gmra.mxu0 %v1391
      %v1635 = vpop.f32.mrf.mxu0
      %v1636 = vadd.f32 0.0, %v1635
      %1637 = vmatmul.f32.gmra.mxu0 %v1394
      %v1638 = vpop.f32.mrf.mxu0
      %v1639 = vadd.f32 0.0, %v1638
      %1640 = vdwg.mxu0
      %1641 = vmatpush.msra.mxu0 0.0
      %1642 = vmatpush.msra.mxu0 0.0
      %1643 = vmatpush.msra.mxu0 0.0
      %1644 = vmatpush.msra.mxu0 0.0
      %1645 = vmatpush.msra.mxu0 0.0
      %1646 = vmatpush.msra.mxu0 0.0
      %1647 = vmatpush.msra.mxu0 0.0
      %1648 = vmatpush.msra.mxu0 0.0
      %1649 = vmatpush.msra.mxu0 0.0
      %1650 = vmatpush.msra.mxu0 0.0
      %1651 = vmatpush.msra.mxu0 0.0
      %1652 = vmatpush.msra.mxu0 0.0
      %1653 = vmatpush.msra.mxu0 0.0
      %1654 = vmatpush.msra.mxu0 0.0
      %1655 = vmatpush.msra.mxu0 0.0
      %1656 = vmatpush.msra.mxu0 %v1574
      %1657 = vmatmul.f32.gmra.mxu0 %v1462
      %v1658 = vpop.f32.mrf.mxu0
      %v1659 = vadd.f32 %v1594, %v1658
      %1660 = vmatmul.f32.gmra.mxu0 %v1465
      %v1661 = vpop.f32.mrf.mxu0
      %v1662 = vadd.f32 %v1597, %v1661
      %1663 = vmatmul.f32.gmra.mxu0 %v1468
      %v1664 = vpop.f32.mrf.mxu0
      %v1665 = vadd.f32 %v1600, %v1664
      %1666 = vmatmul.f32.gmra.mxu0 %v1471
      %v1667 = vpop.f32.mrf.mxu0
      %v1668 = vadd.f32 %v1603, %v1667
      %1669 = vmatmul.f32.gmra.mxu0 %v1474
      %v1670 = vpop.f32.mrf.mxu0
      %v1671 = vadd.f32 %v1606, %v1670
      %1672 = vmatmul.f32.gmra.mxu0 %v1477
      %v1673 = vpop.f32.mrf.mxu0
      %v1674 = vadd.f32 %v1609, %v1673
      %1675 = vmatmul.f32.gmra.mxu0 %v1480
      %v1676 = vpop.f32.mrf.mxu0
      %v1677 = vadd.f32 %v1612, %v1676
      %1678 = vmatmul.f32.gmra.mxu0 %v1483
      %v1679 = vpop.f32.mrf.mxu0
      %v1680 = vadd.f32 %v1615, %v1679
      %1681 = vmatmul.f32.gmra.mxu0 %v1486
      %v1682 = vpop.f32.mrf.mxu0
      %v1683 = vadd.f32 %v1618, %v1682
      %1684 = vmatmul.f32.gmra.mxu0 %v1489
      %v1685 = vpop.f32.mrf.mxu0
      %v1686 = vadd.f32 %v1621, %v1685
      %1687 = vmatmul.f32.gmra.mxu0 %v1492
      %v1688 = vpop.f32.mrf.mxu0
      %v1689 = vadd.f32 %v1624, %v1688
      %1690 = vmatmul.f32.gmra.mxu0 %v1495
      %v1691 = vpop.f32.mrf.mxu0
      %v1692 = vadd.f32 %v1627, %v1691
      %1693 = vmatmul.f32.gmra.mxu0 %v1498
      %v1694 = vpop.f32.mrf.mxu0
      %v1695 = vadd.f32 %v1630, %v1694
      %1696 = vmatmul.f32.gmra.mxu0 %v1501
      %v1697 = vpop.f32.mrf.mxu0
      %v1698 = vadd.f32 %v1633, %v1697
      %1699 = vmatmul.f32.gmra.mxu0 %v1504
      %v1700 = vpop.f32.mrf.mxu0
      %v1701 = vadd.f32 %v1636, %v1700
      %1702 = vmatmul.f32.gmra.mxu0 %v1507
      %v1703 = vpop.f32.mrf.mxu0
      %v1704 = vadd.f32 %v1639, %v1703
      %1705 = vdwg.mxu0
      %v1706 = vsel %vm1347, %v1527, -inf
      %v1707 = vrot.slane %v1706, 4
      %v1708 = vmax.f32 %v1706, %v1707
      %v1709 = vrot.slane %v1708, 2
      %v1710 = vmax.f32 %v1708, %v1709
      %v1711 = vrot.slane %v1710, 1
      %v1712 = vmax.f32 %v1710, %v1711
      %v1713 = vsel %vm1347, %v1530, -inf
      %v1714 = vrot.slane %v1713, 4
      %v1715 = vmax.f32 %v1713, %v1714
      %v1716 = vrot.slane %v1715, 2
      %v1717 = vmax.f32 %v1715, %v1716
      %v1718 = vrot.slane %v1717, 1
      %v1719 = vmax.f32 %v1717, %v1718
      %v1720 = vsel %vm1347, %v1533, -inf
      %v1721 = vrot.slane %v1720, 4
      %v1722 = vmax.f32 %v1720, %v1721
      %v1723 = vrot.slane %v1722, 2
      %v1724 = vmax.f32 %v1722, %v1723
      %v1725 = vrot.slane %v1724, 1
      %v1726 = vmax.f32 %v1724, %v1725
      %v1727 = vsel %vm1347, %v1536, -inf
      %v1728 = vrot.slane %v1727, 4
      %v1729 = vmax.f32 %v1727, %v1728
      %v1730 = vrot.slane %v1729, 2
      %v1731 = vmax.f32 %v1729, %v1730
      %v1732 = vrot.slane %v1731, 1
      %v1733 = vmax.f32 %v1731, %v1732
      %v1734 = vsel %vm1347, %v1539, -inf
      %v1735 = vrot.slane %v1734, 4
      %v1736 = vmax.f32 %v1734, %v1735
      %v1737 = vrot.slane %v1736, 2
      %v1738 = vmax.f32 %v1736, %v1737
      %v1739 = vrot.slane %v1738, 1
      %v1740 = vmax.f32 %v1738, %v1739
      %v1741 = vsel %vm1347, %v1542, -inf
      %v1742 = vrot.slane %v1741, 4
      %v1743 = vmax.f32 %v1741, %v1742
      %v1744 = vrot.slane %v1743, 2
      %v1745 = vmax.f32 %v1743, %v1744
      %v1746 = vrot.slane %v1745, 1
      %v1747 = vmax.f32 %v1745, %v1746
      %v1748 = vsel %vm1347, %v1545, -inf
      %v1749 = vrot.slane %v1748, 4
      %v1750 = vmax.f32 %v1748, %v1749
      %v1751 = vrot.slane %v1750, 2
      %v1752 = vmax.f32 %v1750, %v1751
      %v1753 = vrot.slane %v1752, 1
      %v1754 = vmax.f32 %v1752, %v1753
      %v1755 = vsel %vm1347, %v1548, -inf
      %v1756 = vrot.slane %v1755, 4
      %v1757 = vmax.f32 %v1755, %v1756
      %v1758 = vrot.slane %v1757, 2
      %v1759 = vmax.f32 %v1757, %v1758
      %v1760 = vrot.slane %v1759, 1
      %v1761 = vmax.f32 %v1759, %v1760
      %v1762 = vsel %vm1347, %v1551, -inf
      %v1763 = vrot.slane %v1762, 4
      %v1764 = vmax.f32 %v1762, %v1763
      %v1765 = vrot.slane %v1764, 2
      %v1766 = vmax.f32 %v1764, %v1765
      %v1767 = vrot.slane %v1766, 1
      %v1768 = vmax.f32 %v1766, %v1767
      %v1769 = vsel %vm1347, %v1554, -inf
      %v1770 = vrot.slane %v1769, 4
      %v1771 = vmax.f32 %v1769, %v1770
      %v1772 = vrot.slane %v1771, 2
      %v1773 = vmax.f32 %v1771, %v1772
      %v1774 = vrot.slane %v1773, 1
      %v1775 = vmax.f32 %v1773, %v1774
      %v1776 = vsel %vm1347, %v1557, -inf
      %v1777 = vrot.slane %v1776, 4
      %v1778 = vmax.f32 %v1776, %v1777
      %v1779 = vrot.slane %v1778, 2
      %v1780 = vmax.f32 %v1778, %v1779
      %v1781 = vrot.slane %v1780, 1
      %v1782 = vmax.f32 %v1780, %v1781
      %v1783 = vsel %vm1347, %v1560, -inf
      %v1784 = vrot.slane %v1783, 4
      %v1785 = vmax.f32 %v1783, %v1784
      %v1786 = vrot.slane %v1785, 2
      %v1787 = vmax.f32 %v1785, %v1786
      %v1788 = vrot.slane %v1787, 1
      %v1789 = vmax.f32 %v1787, %v1788
      %v1790 = vsel %vm1347, %v1563, -inf
      %v1791 = vrot.slane %v1790, 4
      %v1792 = vmax.f32 %v1790, %v1791
      %v1793 = vrot.slane %v1792, 2
      %v1794 = vmax.f32 %v1792, %v1793
      %v1795 = vrot.slane %v1794, 1
      %v1796 = vmax.f32 %v1794, %v1795
      %v1797 = vsel %vm1347, %v1566, -inf
      %v1798 = vrot.slane %v1797, 4
      %v1799 = vmax.f32 %v1797, %v1798
      %v1800 = vrot.slane %v1799, 2
      %v1801 = vmax.f32 %v1799, %v1800
      %v1802 = vrot.slane %v1801, 1
      %v1803 = vmax.f32 %v1801, %v1802
      %v1804 = vsel %vm1347, %v1569, -inf
      %v1805 = vrot.slane %v1804, 4
      %v1806 = vmax.f32 %v1804, %v1805
      %v1807 = vrot.slane %v1806, 2
      %v1808 = vmax.f32 %v1806, %v1807
      %v1809 = vrot.slane %v1808, 1
      %v1810 = vmax.f32 %v1808, %v1809
      %v1811 = vsel %vm1347, %v1572, -inf
      %v1812 = vrot.slane %v1811, 4
      %v1813 = vmax.f32 %v1811, %v1812
      %v1814 = vrot.slane %v1813, 2
      %v1815 = vmax.f32 %v1813, %v1814
      %v1816 = vrot.slane %v1815, 1
      %v1817 = vmax.f32 %v1815, %v1816
      %v1818 = vsub.f32 %v1527, %v1712
      %v1819 = vsub.f32 %v1530, %v1719
      %v1820 = vsub.f32 %v1533, %v1726
      %v1821 = vsub.f32 %v1536, %v1733
      %v1822 = vsub.f32 %v1539, %v1740
      %v1823 = vsub.f32 %v1542, %v1747
      %v1824 = vsub.f32 %v1545, %v1754
      %v1825 = vsub.f32 %v1548, %v1761
      %v1826 = vsub.f32 %v1551, %v1768
      %v1827 = vsub.f32 %v1554, %v1775
      %v1828 = vsub.f32 %v1557, %v1782
      %v1829 = vsub.f32 %v1560, %v1789
      %v1830 = vsub.f32 %v1563, %v1796
      %v1831 = vsub.f32 %v1566, %v1803
      %v1832 = vsub.f32 %v1569, %v1810
      %v1833 = vsub.f32 %v1572, %v1817
      %v1834 = vmul.f32 %v1818, 1.442695
      %v1835 = vpow.pop %v1834
      %v1836 = vmul.f32 %v1819, 1.442695
      %v1837 = vpow.pop %v1836
      %v1838 = vmul.f32 %v1820, 1.442695
      %v1839 = vpow.pop %v1838
      %v1840 = vmul.f32 %v1821, 1.442695
      %v1841 = vpow.pop %v1840
      %v1842 = vmul.f32 %v1822, 1.442695
      %v1843 = vpow.pop %v1842
      %v1844 = vmul.f32 %v1823, 1.442695
      %v1845 = vpow.pop %v1844
      %v1846 = vmul.f32 %v1824, 1.442695
      %v1847 = vpow.pop %v1846
      %v1848 = vmul.f32 %v1825, 1.442695
      %v1849 = vpow.pop %v1848
      %v1850 = vmul.f32 %v1826, 1.442695
      %v1851 = vpow.pop %v1850
      %v1852 = vmul.f32 %v1827, 1.442695
      %v1853 = vpow.pop %v1852
      %v1854 = vmul.f32 %v1828, 1.442695
      %v1855 = vpow.pop %v1854
      %v1856 = vmul.f32 %v1829, 1.442695
      %v1857 = vpow.pop %v1856
      %v1858 = vmul.f32 %v1830, 1.442695
      %v1859 = vpow.pop %v1858
      %v1860 = vmul.f32 %v1831, 1.442695
      %v1861 = vpow.pop %v1860
      %v1862 = vmul.f32 %v1832, 1.442695
      %v1863 = vpow.pop %v1862
      %v1864 = vmul.f32 %v1833, 1.442695
      %v1865 = vpow.pop %v1864
      %v1866 = vsel %vm1347, %v1835, 0.0
      %v1867 = vrot.slane %v1866, 4
      %v1868 = vadd.f32 %v1866, %v1867
      %v1869 = vrot.slane %v1868, 2
      %v1870 = vadd.f32 %v1868, %v1869
      %v1871 = vrot.slane %v1870, 1
      %v1872 = vadd.f32 %v1870, %v1871
      %v1873 = vsel %vm1347, %v1837, 0.0
      %v1874 = vrot.slane %v1873, 4
      %v1875 = vadd.f32 %v1873, %v1874
      %v1876 = vrot.slane %v1875, 2
      %v1877 = vadd.f32 %v1875, %v1876
      %v1878 = vrot.slane %v1877, 1
      %v1879 = vadd.f32 %v1877, %v1878
      %v1880 = vsel %vm1347, %v1839, 0.0
      %v1881 = vrot.slane %v1880, 4
      %v1882 = vadd.f32 %v1880, %v1881
      %v1883 = vrot.slane %v1882, 2
      %v1884 = vadd.f32 %v1882, %v1883
      %v1885 = vrot.slane %v1884, 1
      %v1886 = vadd.f32 %v1884, %v1885
      %v1887 = vsel %vm1347, %v1841, 0.0
      %v1888 = vrot.slane %v1887, 4
      %v1889 = vadd.f32 %v1887, %v1888
      %v1890 = vrot.slane %v1889, 2
      %v1891 = vadd.f32 %v1889, %v1890
      %v1892 = vrot.slane %v1891, 1
      %v1893 = vadd.f32 %v1891, %v1892
      %v1894 = vsel %vm1347, %v1843, 0.0
      %v1895 = vrot.slane %v1894, 4
      %v1896 = vadd.f32 %v1894, %v1895
      %v1897 = vrot.slane %v1896, 2
      %v1898 = vadd.f32 %v1896, %v1897
      %v1899 = vrot.slane %v1898, 1
      %v1900 = vadd.f32 %v1898, %v1899
      %v1901 = vsel %vm1347, %v1845, 0.0
      %v1902 = vrot.slane %v1901, 4
      %v1903 = vadd.f32 %v1901, %v1902
      %v1904 = vrot.slane %v1903, 2
      %v1905 = vadd.f32 %v1903, %v1904
      %v1906 = vrot.slane %v1905, 1
      %v1907 = vadd.f32 %v1905, %v1906
      %v1908 = vsel %vm1347, %v1847, 0.0
      %v1909 = vrot.slane %v1908, 4
      %v1910 = vadd.f32 %v1908, %v1909
      %v1911 = vrot.slane %v1910, 2
      %v1912 = vadd.f32 %v1910, %v1911
      %v1913 = vrot.slane %v1912, 1
      %v1914 = vadd.f32 %v1912, %v1913
      %v1915 = vsel %vm1347, %v1849, 0.0
      %v1916 = vrot.slane %v1915, 4
      %v1917 = vadd.f32 %v1915, %v1916
      %v1918 = vrot.slane %v1917, 2
      %v1919 = vadd.f32 %v1917, %v1918
      %v1920 = vrot.slane %v1919, 1
      %v1921 = vadd.f32 %v1919, %v1920
      %v1922 = vsel %vm1347, %v1851, 0.0
      %v1923 = vrot.slane %v1922, 4
      %v1924 = vadd.f32 %v1922, %v1923
      %v1925 = vrot.slane %v1924, 2
      %v1926 = vadd.f32 %v1924, %v1925
      %v1927 = vrot.slane %v1926, 1
      %v1928 = vadd.f32 %v1926, %v1927
      %v1929 = vsel %vm1347, %v1853, 0.0
      %v1930 = vrot.slane %v1929, 4
      %v1931 = vadd.f32 %v1929, %v1930
      %v1932 = vrot.slane %v1931, 2
      %v1933 = vadd.f32 %v1931, %v1932
      %v1934 = vrot.slane %v1933, 1
      %v1935 = vadd.f32 %v1933, %v1934
      %v1936 = vsel %vm1347, %v1855, 0.0
      %v1937 = vrot.slane %v1936, 4
      %v1938 = vadd.f32 %v1936, %v1937
      %v1939 = vrot.slane %v1938, 2
      %v1940 = vadd.f32 %v1938, %v1939
      %v1941 = vrot.slane %v1940, 1
      %v1942 = vadd.f32 %v1940, %v1941
      %v1943 = vsel %vm1347, %v1857, 0.0
      %v1944 = vrot.slane %v1943, 4
      %v1945 = vadd.f32 %v1943, %v1944
      %v1946 = vrot.slane %v1945, 2
      %v1947 = vadd.f32 %v1945, %v1946
      %v1948 = vrot.slane %v1947, 1
      %v1949 = vadd.f32 %v1947, %v1948
      %v1950 = vsel %vm1347, %v1859, 0.0
      %v1951 = vrot.slane %v1950, 4
      %v1952 = vadd.f32 %v1950, %v1951
      %v1953 = vrot.slane %v1952, 2
      %v1954 = vadd.f32 %v1952, %v1953
      %v1955 = vrot.slane %v1954, 1
      %v1956 = vadd.f32 %v1954, %v1955
      %v1957 = vsel %vm1347, %v1861, 0.0
      %v1958 = vrot.slane %v1957, 4
      %v1959 = vadd.f32 %v1957, %v1958
      %v1960 = vrot.slane %v1959, 2
      %v1961 = vadd.f32 %v1959, %v1960
      %v1962 = vrot.slane %v1961, 1
      %v1963 = vadd.f32 %v1961, %v1962
      %v1964 = vsel %vm1347, %v1863, 0.0
      %v1965 = vrot.slane %v1964, 4
      %v1966 = vadd.f32 %v1964, %v1965
      %v1967 = vrot.slane %v1966, 2
      %v1968 = vadd.f32 %v1966, %v1967
      %v1969 = vrot.slane %v1968, 1
      %v1970 = vadd.f32 %v1968, %v1969
      %v1971 = vsel %vm1347, %v1865, 0.0
      %v1972 = vrot.slane %v1971, 4
      %v1973 = vadd.f32 %v1971, %v1972
      %v1974 = vrot.slane %v1973, 2
      %v1975 = vadd.f32 %v1973, %v1974
      %v1976 = vrot.slane %v1975, 1
      %v1977 = vadd.f32 %v1975, %v1976
      %v1978 = vrcp.pop %v1872
      %v1979 = vrcp.pop %v1879
      %v1980 = vrcp.pop %v1886
      %v1981 = vrcp.pop %v1893
      %v1982 = vrcp.pop %v1900
      %v1983 = vrcp.pop %v1907
      %v1984 = vrcp.pop %v1914
      %v1985 = vrcp.pop %v1921
      %v1986 = vrcp.pop %v1928
      %v1987 = vrcp.pop %v1935
      %v1988 = vrcp.pop %v1942
      %v1989 = vrcp.pop %v1949
      %v1990 = vrcp.pop %v1956
      %v1991 = vrcp.pop %v1963
      %v1992 = vrcp.pop %v1970
      %v1993 = vrcp.pop %v1977
      %v1994 = vmul.f32 %v1835, %v1978
      %v1995 = vmul.f32 %v1837, %v1979
      %v1996 = vmul.f32 %v1839, %v1980
      %v1997 = vmul.f32 %v1841, %v1981
      %v1998 = vmul.f32 %v1843, %v1982
      %v1999 = vmul.f32 %v1845, %v1983
      %v2000 = vmul.f32 %v1847, %v1984
      %v2001 = vmul.f32 %v1849, %v1985
      %v2002 = vmul.f32 %v1851, %v1986
      %v2003 = vmul.f32 %v1853, %v1987
      %v2004 = vmul.f32 %v1855, %v1988
      %v2005 = vmul.f32 %v1857, %v1989
      %v2006 = vmul.f32 %v1859, %v1990
      %v2007 = vmul.f32 %v1861, %v1991
      %v2008 = vmul.f32 %v1863, %v1992
      %v2009 = vmul.f32 %v1865, %v1993
      %v2010 = vmul.f32 %v1329, %v1994
      %v2011 = vmul.f32 %v1330, %v1995
      %v2012 = vmul.f32 %v1331, %v1996
      %v2013 = vmul.f32 %v1332, %v1997
      %v2014 = vmul.f32 %v1333, %v1998
      %v2015 = vmul.f32 %v1334, %v1999
      %v2016 = vmul.f32 %v1335, %v2000
      %v2017 = vmul.f32 %v1336, %v2001
      %v2018 = vmul.f32 %v1337, %v2002
      %v2019 = vmul.f32 %v1338, %v2003
      %v2020 = vmul.f32 %v1339, %v2004
      %v2021 = vmul.f32 %v1340, %v2005
      %v2022 = vmul.f32 %v1341, %v2006
      %v2023 = vmul.f32 %v1342, %v2007
      %v2024 = vmul.f32 %v1343, %v2008
      %v2025 = vmul.f32 %v1344, %v2009
      %v2026 = vsel %vm1347, %v2010, 0.0
      %v2027 = vrot.slane %v2026, 4
      %v2028 = vadd.f32 %v2026, %v2027
      %v2029 = vrot.slane %v2028, 2
      %v2030 = vadd.f32 %v2028, %v2029
      %v2031 = vrot.slane %v2030, 1
      %v2032 = vadd.f32 %v2030, %v2031
      %v2033 = vsel %vm1347, %v2011, 0.0
      %v2034 = vrot.slane %v2033, 4
      %v2035 = vadd.f32 %v2033, %v2034
      %v2036 = vrot.slane %v2035, 2
      %v2037 = vadd.f32 %v2035, %v2036
      %v2038 = vrot.slane %v2037, 1
      %v2039 = vadd.f32 %v2037, %v2038
      %v2040 = vsel %vm1347, %v2012, 0.0
      %v2041 = vrot.slane %v2040, 4
      %v2042 = vadd.f32 %v2040, %v2041
      %v2043 = vrot.slane %v2042, 2
      %v2044 = vadd.f32 %v2042, %v2043
      %v2045 = vrot.slane %v2044, 1
      %v2046 = vadd.f32 %v2044, %v2045
      %v2047 = vsel %vm1347, %v2013, 0.0
      %v2048 = vrot.slane %v2047, 4
      %v2049 = vadd.f32 %v2047, %v2048
      %v2050 = vrot.slane %v2049, 2
      %v2051 = vadd.f32 %v2049, %v2050
      %v2052 = vrot.slane %v2051, 1
      %v2053 = vadd.f32 %v2051, %v2052
      %v2054 = vsel %vm1347, %v2014, 0.0
      %v2055 = vrot.slane %v2054, 4
      %v2056 = vadd.f32 %v2054, %v2055
      %v2057 = vrot.slane %v2056, 2
      %v2058 = vadd.f32 %v2056, %v2057
      %v2059 = vrot.slane %v2058, 1
      %v2060 = vadd.f32 %v2058, %v2059
      %v2061 = vsel %vm1347, %v2015, 0.0
      %v2062 = vrot.slane %v2061, 4
      %v2063 = vadd.f32 %v2061, %v2062
      %v2064 = vrot.slane %v2063, 2
      %v2065 = vadd.f32 %v2063, %v2064
      %v2066 = vrot.slane %v2065, 1
      %v2067 = vadd.f32 %v2065, %v2066
      %v2068 = vsel %vm1347, %v2016, 0.0
      %v2069 = vrot.slane %v2068, 4
      %v2070 = vadd.f32 %v2068, %v2069
      %v2071 = vrot.slane %v2070, 2
      %v2072 = vadd.f32 %v2070, %v2071
      %v2073 = vrot.slane %v2072, 1
      %v2074 = vadd.f32 %v2072, %v2073
      %v2075 = vsel %vm1347, %v2017, 0.0
      %v2076 = vrot.slane %v2075, 4
      %v2077 = vadd.f32 %v2075, %v2076
      %v2078 = vrot.slane %v2077, 2
      %v2079 = vadd.f32 %v2077, %v2078
      %v2080 = vrot.slane %v2079, 1
      %v2081 = vadd.f32 %v2079, %v2080
      %v2082 = vsel %vm1347, %v2018, 0.0
      %v2083 = vrot.slane %v2082, 4
      %v2084 = vadd.f32 %v2082, %v2083
      %v2085 = vrot.slane %v2084, 2
      %v2086 = vadd.f32 %v2084, %v2085
      %v2087 = vrot.slane %v2086, 1
      %v2088 = vadd.f32 %v2086, %v2087
      %v2089 = vsel %vm1347, %v2019, 0.0
      %v2090 = vrot.slane %v2089, 4
      %v2091 = vadd.f32 %v2089, %v2090
      %v2092 = vrot.slane %v2091, 2
      %v2093 = vadd.f32 %v2091, %v2092
      %v2094 = vrot.slane %v2093, 1
      %v2095 = vadd.f32 %v2093, %v2094
      %v2096 = vsel %vm1347, %v2020, 0.0
      %v2097 = vrot.slane %v2096, 4
      %v2098 = vadd.f32 %v2096, %v2097
      %v2099 = vrot.slane %v2098, 2
      %v2100 = vadd.f32 %v2098, %v2099
      %v2101 = vrot.slane %v2100, 1
      %v2102 = vadd.f32 %v2100, %v2101
      %v2103 = vsel %vm1347, %v2021, 0.0
      %v2104 = vrot.slane %v2103, 4
      %v2105 = vadd.f32 %v2103, %v2104
      %v2106 = vrot.slane %v2105, 2
      %v2107 = vadd.f32 %v2105, %v2106
      %v2108 = vrot.slane %v2107, 1
      %v2109 = vadd.f32 %v2107, %v2108
      %v2110 = vsel %vm1347, %v2022, 0.0
      %v2111 = vrot.slane %v2110, 4
      %v2112 = vadd.f32 %v2110, %v2111
      %v2113 = vrot.slane %v2112, 2
      %v2114 = vadd.f32 %v2112, %v2113
      %v2115 = vrot.slane %v2114, 1
      %v2116 = vadd.f32 %v2114, %v2115
      %v2117 = vsel %vm1347, %v2023, 0.0
      %v2118 = vrot.slane %v2117, 4
      %v2119 = vadd.f32 %v2117, %v2118
      %v2120 = vrot.slane %v2119, 2
      %v2121 = vadd.f32 %v2119, %v2120
      %v2122 = vrot.slane %v2121, 1
      %v2123 = vadd.f32 %v2121, %v2122
      %v2124 = vsel %vm1347, %v2024, 0.0
      %v2125 = vrot.slane %v2124, 4
      %v2126 = vadd.f32 %v2124, %v2125
      %v2127 = vrot.slane %v2126, 2
      %v2128 = vadd.f32 %v2126, %v2127
      %v2129 = vrot.slane %v2128, 1
      %v2130 = vadd.f32 %v2128, %v2129
      %v2131 = vsel %vm1347, %v2025, 0.0
      %v2132 = vrot.slane %v2131, 4
      %v2133 = vadd.f32 %v2131, %v2132
      %v2134 = vrot.slane %v2133, 2
      %v2135 = vadd.f32 %v2133, %v2134
      %v2136 = vrot.slane %v2135, 1
      %v2137 = vadd.f32 %v2135, %v2136
      %v2138 = vsel %vm1347, %v1659, -inf
      %v2139 = vrot.slane %v2138, 4
      %v2140 = vmax.f32 %v2138, %v2139
      %v2141 = vrot.slane %v2140, 2
      %v2142 = vmax.f32 %v2140, %v2141
      %v2143 = vrot.slane %v2142, 1
      %v2144 = vmax.f32 %v2142, %v2143
      %v2145 = vsel %vm1347, %v1662, -inf
      %v2146 = vrot.slane %v2145, 4
      %v2147 = vmax.f32 %v2145, %v2146
      %v2148 = vrot.slane %v2147, 2
      %v2149 = vmax.f32 %v2147, %v2148
      %v2150 = vrot.slane %v2149, 1
      %v2151 = vmax.f32 %v2149, %v2150
      %v2152 = vsel %vm1347, %v1665, -inf
      %v2153 = vrot.slane %v2152, 4
      %v2154 = vmax.f32 %v2152, %v2153
      %v2155 = vrot.slane %v2154, 2
      %v2156 = vmax.f32 %v2154, %v2155
      %v2157 = vrot.slane %v2156, 1
      %v2158 = vmax.f32 %v2156, %v2157
      %v2159 = vsel %vm1347, %v1668, -inf
      %v2160 = vrot.slane %v2159, 4
      %v2161 = vmax.f32 %v2159, %v2160
      %v2162 = vrot.slane %v2161, 2
      %v2163 = vmax.f32 %v2161, %v2162
      %v2164 = vrot.slane %v2163, 1
      %v2165 = vmax.f32 %v2163, %v2164
      %v2166 = vsel %vm1347, %v1671, -inf
      %v2167 = vrot.slane %v2166, 4
      %v2168 = vmax.f32 %v2166, %v2167
      %v2169 = vrot.slane %v2168, 2
      %v2170 = vmax.f32 %v2168, %v2169
      %v2171 = vrot.slane %v2170, 1
      %v2172 = vmax.f32 %v2170, %v2171
      %v2173 = vsel %vm1347, %v1674, -inf
      %v2174 = vrot.slane %v2173, 4
      %v2175 = vmax.f32 %v2173, %v2174
      %v2176 = vrot.slane %v2175, 2
      %v2177 = vmax.f32 %v2175, %v2176
      %v2178 = vrot.slane %v2177, 1
      %v2179 = vmax.f32 %v2177, %v2178
      %v2180 = vsel %vm1347, %v1677, -inf
      %v2181 = vrot.slane %v2180, 4
      %v2182 = vmax.f32 %v2180, %v2181
      %v2183 = vrot.slane %v2182, 2
      %v2184 = vmax.f32 %v2182, %v2183
      %v2185 = vrot.slane %v2184, 1
      %v2186 = vmax.f32 %v2184, %v2185
      %v2187 = vsel %vm1347, %v1680, -inf
      %v2188 = vrot.slane %v2187, 4
      %v2189 = vmax.f32 %v2187, %v2188
      %v2190 = vrot.slane %v2189, 2
      %v2191 = vmax.f32 %v2189, %v2190
      %v2192 = vrot.slane %v2191, 1
      %v2193 = vmax.f32 %v2191, %v2192
      %v2194 = vsel %vm1347, %v1683, -inf
      %v2195 = vrot.slane %v2194, 4
      %v2196 = vmax.f32 %v2194, %v2195
      %v2197 = vrot.slane %v2196, 2
      %v2198 = vmax.f32 %v2196, %v2197
      %v2199 = vrot.slane %v2198, 1
      %v2200 = vmax.f32 %v2198, %v2199
      %v2201 = vsel %vm1347, %v1686, -inf
      %v2202 = vrot.slane %v2201, 4
      %v2203 = vmax.f32 %v2201, %v2202
      %v2204 = vrot.slane %v2203, 2
      %v2205 = vmax.f32 %v2203, %v2204
      %v2206 = vrot.slane %v2205, 1
      %v2207 = vmax.f32 %v2205, %v2206
      %v2208 = vsel %vm1347, %v1689, -inf
      %v2209 = vrot.slane %v2208, 4
      %v2210 = vmax.f32 %v2208, %v2209
      %v2211 = vrot.slane %v2210, 2
      %v2212 = vmax.f32 %v2210, %v2211
      %v2213 = vrot.slane %v2212, 1
      %v2214 = vmax.f32 %v2212, %v2213
      %v2215 = vsel %vm1347, %v1692, -inf
      %v2216 = vrot.slane %v2215, 4
      %v2217 = vmax.f32 %v2215, %v2216
      %v2218 = vrot.slane %v2217, 2
      %v2219 = vmax.f32 %v2217, %v2218
      %v2220 = vrot.slane %v2219, 1
      %v2221 = vmax.f32 %v2219, %v2220
      %v2222 = vsel %vm1347, %v1695, -inf
      %v2223 = vrot.slane %v2222, 4
      %v2224 = vmax.f32 %v2222, %v2223
      %v2225 = vrot.slane %v2224, 2
      %v2226 = vmax.f32 %v2224, %v2225
      %v2227 = vrot.slane %v2226, 1
      %v2228 = vmax.f32 %v2226, %v2227
      %v2229 = vsel %vm1347, %v1698, -inf
      %v2230 = vrot.slane %v2229, 4
      %v2231 = vmax.f32 %v2229, %v2230
      %v2232 = vrot.slane %v2231, 2
      %v2233 = vmax.f32 %v2231, %v2232
      %v2234 = vrot.slane %v2233, 1
      %v2235 = vmax.f32 %v2233, %v2234
      %v2236 = vsel %vm1347, %v1701, -inf
      %v2237 = vrot.slane %v2236, 4
      %v2238 = vmax.f32 %v2236, %v2237
      %v2239 = vrot.slane %v2238, 2
      %v2240 = vmax.f32 %v2238, %v2239
      %v2241 = vrot.slane %v2240, 1
      %v2242 = vmax.f32 %v2240, %v2241
      %v2243 = vsel %vm1347, %v1704, -inf
      %v2244 = vrot.slane %v2243, 4
      %v2245 = vmax.f32 %v2243, %v2244
      %v2246 = vrot.slane %v2245, 2
      %v2247 = vmax.f32 %v2245, %v2246
      %v2248 = vrot.slane %v2247, 1
      %v2249 = vmax.f32 %v2247, %v2248
      %v2250 = vsub.f32 %v1659, %v2144
      %v2251 = vsub.f32 %v1662, %v2151
      %v2252 = vsub.f32 %v1665, %v2158
      %v2253 = vsub.f32 %v1668, %v2165
      %v2254 = vsub.f32 %v1671, %v2172
      %v2255 = vsub.f32 %v1674, %v2179
      %v2256 = vsub.f32 %v1677, %v2186
      %v2257 = vsub.f32 %v1680, %v2193
      %v2258 = vsub.f32 %v1683, %v2200
      %v2259 = vsub.f32 %v1686, %v2207
      %v2260 = vsub.f32 %v1689, %v2214
      %v2261 = vsub.f32 %v1692, %v2221
      %v2262 = vsub.f32 %v1695, %v2228
      %v2263 = vsub.f32 %v1698, %v2235
      %v2264 = vsub.f32 %v1701, %v2242
      %v2265 = vsub.f32 %v1704, %v2249
      %v2266 = vmul.f32 %v2250, 1.442695
      %v2267 = vpow.pop %v2266
      %v2268 = vmul.f32 %v2251, 1.442695
      %v2269 = vpow.pop %v2268
      %v2270 = vmul.f32 %v2252, 1.442695
      %v2271 = vpow.pop %v2270
      %v2272 = vmul.f32 %v2253, 1.442695
      %v2273 = vpow.pop %v2272
      %v2274 = vmul.f32 %v2254, 1.442695
      %v2275 = vpow.pop %v2274
      %v2276 = vmul.f32 %v2255, 1.442695
      %v2277 = vpow.pop %v2276
      %v2278 = vmul.f32 %v2256, 1.442695
      %v2279 = vpow.pop %v2278
      %v2280 = vmul.f32 %v2257, 1.442695
      %v2281 = vpow.pop %v2280
      %v2282 = vmul.f32 %v2258, 1.442695
      %v2283 = vpow.pop %v2282
      %v2284 = vmul.f32 %v2259, 1.442695
      %v2285 = vpow.pop %v2284
      %v2286 = vmul.f32 %v2260, 1.442695
      %v2287 = vpow.pop %v2286
      %v2288 = vmul.f32 %v2261, 1.442695
      %v2289 = vpow.pop %v2288
      %v2290 = vmul.f32 %v2262, 1.442695
      %v2291 = vpow.pop %v2290
      %v2292 = vmul.f32 %v2263, 1.442695
      %v2293 = vpow.pop %v2292
      %v2294 = vmul.f32 %v2264, 1.442695
      %v2295 = vpow.pop %v2294
      %v2296 = vmul.f32 %v2265, 1.442695
      %v2297 = vpow.pop %v2296
      %v2298 = vsel %vm1347, %v2267, 0.0
      %v2299 = vrot.slane %v2298, 4
      %v2300 = vadd.f32 %v2298, %v2299
      %v2301 = vrot.slane %v2300, 2
      %v2302 = vadd.f32 %v2300, %v2301
      %v2303 = vrot.slane %v2302, 1
      %v2304 = vadd.f32 %v2302, %v2303
      %v2305 = vsel %vm1347, %v2269, 0.0
      %v2306 = vrot.slane %v2305, 4
      %v2307 = vadd.f32 %v2305, %v2306
      %v2308 = vrot.slane %v2307, 2
      %v2309 = vadd.f32 %v2307, %v2308
      %v2310 = vrot.slane %v2309, 1
      %v2311 = vadd.f32 %v2309, %v2310
      %v2312 = vsel %vm1347, %v2271, 0.0
      %v2313 = vrot.slane %v2312, 4
      %v2314 = vadd.f32 %v2312, %v2313
      %v2315 = vrot.slane %v2314, 2
      %v2316 = vadd.f32 %v2314, %v2315
      %v2317 = vrot.slane %v2316, 1
      %v2318 = vadd.f32 %v2316, %v2317
      %v2319 = vsel %vm1347, %v2273, 0.0
      %v2320 = vrot.slane %v2319, 4
      %v2321 = vadd.f32 %v2319, %v2320
      %v2322 = vrot.slane %v2321, 2
      %v2323 = vadd.f32 %v2321, %v2322
      %v2324 = vrot.slane %v2323, 1
      %v2325 = vadd.f32 %v2323, %v2324
      %v2326 = vsel %vm1347, %v2275, 0.0
      %v2327 = vrot.slane %v2326, 4
      %v2328 = vadd.f32 %v2326, %v2327
      %v2329 = vrot.slane %v2328, 2
      %v2330 = vadd.f32 %v2328, %v2329
      %v2331 = vrot.slane %v2330, 1
      %v2332 = vadd.f32 %v2330, %v2331
      %v2333 = vsel %vm1347, %v2277, 0.0
      %v2334 = vrot.slane %v2333, 4
      %v2335 = vadd.f32 %v2333, %v2334
      %v2336 = vrot.slane %v2335, 2
      %v2337 = vadd.f32 %v2335, %v2336
      %v2338 = vrot.slane %v2337, 1
      %v2339 = vadd.f32 %v2337, %v2338
      %v2340 = vsel %vm1347, %v2279, 0.0
      %v2341 = vrot.slane %v2340, 4
      %v2342 = vadd.f32 %v2340, %v2341
      %v2343 = vrot.slane %v2342, 2
      %v2344 = vadd.f32 %v2342, %v2343
      %v2345 = vrot.slane %v2344, 1
      %v2346 = vadd.f32 %v2344, %v2345
      %v2347 = vsel %vm1347, %v2281, 0.0
      %v2348 = vrot.slane %v2347, 4
      %v2349 = vadd.f32 %v2347, %v2348
      %v2350 = vrot.slane %v2349, 2
      %v2351 = vadd.f32 %v2349, %v2350
      %v2352 = vrot.slane %v2351, 1
      %v2353 = vadd.f32 %v2351, %v2352
      %v2354 = vsel %vm1347, %v2283, 0.0
      %v2355 = vrot.slane %v2354, 4
      %v2356 = vadd.f32 %v2354, %v2355
      %v2357 = vrot.slane %v2356, 2
      %v2358 = vadd.f32 %v2356, %v2357
      %v2359 = vrot.slane %v2358, 1
      %v2360 = vadd.f32 %v2358, %v2359
      %v2361 = vsel %vm1347, %v2285, 0.0
      %v2362 = vrot.slane %v2361, 4
      %v2363 = vadd.f32 %v2361, %v2362
      %v2364 = vrot.slane %v2363, 2
      %v2365 = vadd.f32 %v2363, %v2364
      %v2366 = vrot.slane %v2365, 1
      %v2367 = vadd.f32 %v2365, %v2366
      %v2368 = vsel %vm1347, %v2287, 0.0
      %v2369 = vrot.slane %v2368, 4
      %v2370 = vadd.f32 %v2368, %v2369
      %v2371 = vrot.slane %v2370, 2
      %v2372 = vadd.f32 %v2370, %v2371
      %v2373 = vrot.slane %v2372, 1
      %v2374 = vadd.f32 %v2372, %v2373
      %v2375 = vsel %vm1347, %v2289, 0.0
      %v2376 = vrot.slane %v2375, 4
      %v2377 = vadd.f32 %v2375, %v2376
      %v2378 = vrot.slane %v2377, 2
      %v2379 = vadd.f32 %v2377, %v2378
      %v2380 = vrot.slane %v2379, 1
      %v2381 = vadd.f32 %v2379, %v2380
      %v2382 = vsel %vm1347, %v2291, 0.0
      %v2383 = vrot.slane %v2382, 4
      %v2384 = vadd.f32 %v2382, %v2383
      %v2385 = vrot.slane %v2384, 2
      %v2386 = vadd.f32 %v2384, %v2385
      %v2387 = vrot.slane %v2386, 1
      %v2388 = vadd.f32 %v2386, %v2387
      %v2389 = vsel %vm1347, %v2293, 0.0
      %v2390 = vrot.slane %v2389, 4
      %v2391 = vadd.f32 %v2389, %v2390
      %v2392 = vrot.slane %v2391, 2
      %v2393 = vadd.f32 %v2391, %v2392
      %v2394 = vrot.slane %v2393, 1
      %v2395 = vadd.f32 %v2393, %v2394
      %v2396 = vsel %vm1347, %v2295, 0.0
      %v2397 = vrot.slane %v2396, 4
      %v2398 = vadd.f32 %v2396, %v2397
      %v2399 = vrot.slane %v2398, 2
      %v2400 = vadd.f32 %v2398, %v2399
      %v2401 = vrot.slane %v2400, 1
      %v2402 = vadd.f32 %v2400, %v2401
      %v2403 = vsel %vm1347, %v2297, 0.0
      %v2404 = vrot.slane %v2403, 4
      %v2405 = vadd.f32 %v2403, %v2404
      %v2406 = vrot.slane %v2405, 2
      %v2407 = vadd.f32 %v2405, %v2406
      %v2408 = vrot.slane %v2407, 1
      %v2409 = vadd.f32 %v2407, %v2408
      %v2410 = vrcp.pop %v2304
      %v2411 = vrcp.pop %v2311
      %v2412 = vrcp.pop %v2318
      %v2413 = vrcp.pop %v2325
      %v2414 = vrcp.pop %v2332
      %v2415 = vrcp.pop %v2339
      %v2416 = vrcp.pop %v2346
      %v2417 = vrcp.pop %v2353
      %v2418 = vrcp.pop %v2360
      %v2419 = vrcp.pop %v2367
      %v2420 = vrcp.pop %v2374
      %v2421 = vrcp.pop %v2381
      %v2422 = vrcp.pop %v2388
      %v2423 = vrcp.pop %v2395
      %v2424 = vrcp.pop %v2402
      %v2425 = vrcp.pop %v2409
      %v2426 = vmul.f32 %v2267, %v2410
      %v2427 = vmul.f32 %v2269, %v2411
      %v2428 = vmul.f32 %v2271, %v2412
      %v2429 = vmul.f32 %v2273, %v2413
      %v2430 = vmul.f32 %v2275, %v2414
      %v2431 = vmul.f32 %v2277, %v2415
      %v2432 = vmul.f32 %v2279, %v2416
      %v2433 = vmul.f32 %v2281, %v2417
      %v2434 = vmul.f32 %v2283, %v2418
      %v2435 = vmul.f32 %v2285, %v2419
      %v2436 = vmul.f32 %v2287, %v2420
      %v2437 = vmul.f32 %v2289, %v2421
      %v2438 = vmul.f32 %v2291, %v2422
      %v2439 = vmul.f32 %v2293, %v2423
      %v2440 = vmul.f32 %v2295, %v2424
      %v2441 = vmul.f32 %v2297, %v2425
      %v2442 = vmul.f32 %v1297, %v2426
      %v2443 = vmul.f32 %v1298, %v2427
      %v2444 = vmul.f32 %v1299, %v2428
      %v2445 = vmul.f32 %v1300, %v2429
      %v2446 = vmul.f32 %v1301, %v2430
      %v2447 = vmul.f32 %v1302, %v2431
      %v2448 = vmul.f32 %v1303, %v2432
      %v2449 = vmul.f32 %v1304, %v2433
      %v2450 = vmul.f32 %v1305, %v2434
      %v2451 = vmul.f32 %v1306, %v2435
      %v2452 = vmul.f32 %v1307, %v2436
      %v2453 = vmul.f32 %v1308, %v2437
      %v2454 = vmul.f32 %v1309, %v2438
      %v2455 = vmul.f32 %v1310, %v2439
      %v2456 = vmul.f32 %v1311, %v2440
      %v2457 = vmul.f32 %v1312, %v2441
      %v2458 = vsel %vm1347, %v2442, 0.0
      %v2459 = vrot.slane %v2458, 4
      %v2460 = vadd.f32 %v2458, %v2459
      %v2461 = vrot.slane %v2460, 2
      %v2462 = vadd.f32 %v2460, %v2461
      %v2463 = vrot.slane %v2462, 1
      %v2464 = vadd.f32 %v2462, %v2463
      %v2465 = vsel %vm1347, %v2443, 0.0
      %v2466 = vrot.slane %v2465, 4
      %v2467 = vadd.f32 %v2465, %v2466
      %v2468 = vrot.slane %v2467, 2
      %v2469 = vadd.f32 %v2467, %v2468
      %v2470 = vrot.slane %v2469, 1
      %v2471 = vadd.f32 %v2469, %v2470
      %v2472 = vsel %vm1347, %v2444, 0.0
      %v2473 = vrot.slane %v2472, 4
      %v2474 = vadd.f32 %v2472, %v2473
      %v2475 = vrot.slane %v2474, 2
      %v2476 = vadd.f32 %v2474, %v2475
      %v2477 = vrot.slane %v2476, 1
      %v2478 = vadd.f32 %v2476, %v2477
      %v2479 = vsel %vm1347, %v2445, 0.0
      %v2480 = vrot.slane %v2479, 4
      %v2481 = vadd.f32 %v2479, %v2480
      %v2482 = vrot.slane %v2481, 2
      %v2483 = vadd.f32 %v2481, %v2482
      %v2484 = vrot.slane %v2483, 1
      %v2485 = vadd.f32 %v2483, %v2484
      %v2486 = vsel %vm1347, %v2446, 0.0
      %v2487 = vrot.slane %v2486, 4
      %v2488 = vadd.f32 %v2486, %v2487
      %v2489 = vrot.slane %v2488, 2
      %v2490 = vadd.f32 %v2488, %v2489
      %v2491 = vrot.slane %v2490, 1
      %v2492 = vadd.f32 %v2490, %v2491
      %v2493 = vsel %vm1347, %v2447, 0.0
      %v2494 = vrot.slane %v2493, 4
      %v2495 = vadd.f32 %v2493, %v2494
      %v2496 = vrot.slane %v2495, 2
      %v2497 = vadd.f32 %v2495, %v2496
      %v2498 = vrot.slane %v2497, 1
      %v2499 = vadd.f32 %v2497, %v2498
      %v2500 = vsel %vm1347, %v2448, 0.0
      %v2501 = vrot.slane %v2500, 4
      %v2502 = vadd.f32 %v2500, %v2501
      %v2503 = vrot.slane %v2502, 2
      %v2504 = vadd.f32 %v2502, %v2503
      %v2505 = vrot.slane %v2504, 1
      %v2506 = vadd.f32 %v2504, %v2505
      %v2507 = vsel %vm1347, %v2449, 0.0
      %v2508 = vrot.slane %v2507, 4
      %v2509 = vadd.f32 %v2507, %v2508
      %v2510 = vrot.slane %v2509, 2
      %v2511 = vadd.f32 %v2509, %v2510
      %v2512 = vrot.slane %v2511, 1
      %v2513 = vadd.f32 %v2511, %v2512
      %v2514 = vsel %vm1347, %v2450, 0.0
      %v2515 = vrot.slane %v2514, 4
      %v2516 = vadd.f32 %v2514, %v2515
      %v2517 = vrot.slane %v2516, 2
      %v2518 = vadd.f32 %v2516, %v2517
      %v2519 = vrot.slane %v2518, 1
      %v2520 = vadd.f32 %v2518, %v2519
      %v2521 = vsel %vm1347, %v2451, 0.0
      %v2522 = vrot.slane %v2521, 4
      %v2523 = vadd.f32 %v2521, %v2522
      %v2524 = vrot.slane %v2523, 2
      %v2525 = vadd.f32 %v2523, %v2524
      %v2526 = vrot.slane %v2525, 1
      %v2527 = vadd.f32 %v2525, %v2526
      %v2528 = vsel %vm1347, %v2452, 0.0
      %v2529 = vrot.slane %v2528, 4
      %v2530 = vadd.f32 %v2528, %v2529
      %v2531 = vrot.slane %v2530, 2
      %v2532 = vadd.f32 %v2530, %v2531
      %v2533 = vrot.slane %v2532, 1
      %v2534 = vadd.f32 %v2532, %v2533
      %v2535 = vsel %vm1347, %v2453, 0.0
      %v2536 = vrot.slane %v2535, 4
      %v2537 = vadd.f32 %v2535, %v2536
      %v2538 = vrot.slane %v2537, 2
      %v2539 = vadd.f32 %v2537, %v2538
      %v2540 = vrot.slane %v2539, 1
      %v2541 = vadd.f32 %v2539, %v2540
      %v2542 = vsel %vm1347, %v2454, 0.0
      %v2543 = vrot.slane %v2542, 4
      %v2544 = vadd.f32 %v2542, %v2543
      %v2545 = vrot.slane %v2544, 2
      %v2546 = vadd.f32 %v2544, %v2545
      %v2547 = vrot.slane %v2546, 1
      %v2548 = vadd.f32 %v2546, %v2547
      %v2549 = vsel %vm1347, %v2455, 0.0
      %v2550 = vrot.slane %v2549, 4
      %v2551 = vadd.f32 %v2549, %v2550
      %v2552 = vrot.slane %v2551, 2
      %v2553 = vadd.f32 %v2551, %v2552
      %v2554 = vrot.slane %v2553, 1
      %v2555 = vadd.f32 %v2553, %v2554
      %v2556 = vsel %vm1347, %v2456, 0.0
      %v2557 = vrot.slane %v2556, 4
      %v2558 = vadd.f32 %v2556, %v2557
      %v2559 = vrot.slane %v2558, 2
      %v2560 = vadd.f32 %v2558, %v2559
      %v2561 = vrot.slane %v2560, 1
      %v2562 = vadd.f32 %v2560, %v2561
      %v2563 = vsel %vm1347, %v2457, 0.0
      %v2564 = vrot.slane %v2563, 4
      %v2565 = vadd.f32 %v2563, %v2564
      %v2566 = vrot.slane %v2565, 2
      %v2567 = vadd.f32 %v2565, %v2566
      %v2568 = vrot.slane %v2567, 1
      %v2569 = vadd.f32 %v2567, %v2568
      %v2570 = vld [vmem:[%s12] sm:$0xff]
      %v2571 = vld [vmem:[%s13] sm:$0xff]
      %vm2588 = vcmask 1041409
      %v2589 = vsel %vm2588, %v2471, %v2464
      %vm2590 = vcmask 1042434
      %v2591 = vsel %vm2590, %v2478, %v2589
      %vm2592 = vcmask 1043459
      %v2593 = vsel %vm2592, %v2485, %v2591
      %vm2594 = vcmask 1044484
      %v2595 = vsel %vm2594, %v2492, %v2593
      %vm2596 = vcmask 1045509
      %v2597 = vsel %vm2596, %v2499, %v2595
      %vm2598 = vcmask 1046534
      %v2599 = vsel %vm2598, %v2506, %v2597
      %vm2600 = vcmask 1047559
      %v2601 = vsel %vm2600, %v2513, %v2599
      %v2602 = vsel %vm2588, %v2527, %v2520
      %v2603 = vsel %vm2590, %v2534, %v2602
      %v2604 = vsel %vm2592, %v2541, %v2603
      %v2605 = vsel %vm2594, %v2548, %v2604
      %v2606 = vsel %vm2596, %v2555, %v2605
      %v2607 = vsel %vm2598, %v2562, %v2606
      %v2608 = vsel %vm2600, %v2569, %v2607
      %v2609 = vsel %vm1347, %v2601, 0
      %v2611 = vsel %vm1347, %v2608, 0
      %2613 = vmatpush.msra.mxu0 0.0
      %2614 = vmatpush.msra.mxu0 0.0
      %2615 = vmatpush.msra.mxu0 0.0
      %2616 = vmatpush.msra.mxu0 0.0
      %2617 = vmatpush.msra.mxu0 0.0
      %2618 = vmatpush.msra.mxu0 0.0
      %2619 = vmatpush.msra.mxu0 0.0
      %2620 = vmatpush.msra.mxu0 0.0
      %2621 = vmatpush.msra.mxu0 0.0
      %2622 = vmatpush.msra.mxu0 0.0
      %2623 = vmatpush.msra.mxu0 0.0
      %2624 = vmatpush.msra.mxu0 0.0
      %2625 = vmatpush.msra.mxu0 0.0
      %2626 = vmatpush.msra.mxu0 0.0
      %2627 = vmatpush.msra.mxu0 0.0
      %2628 = vmatpush.msra.mxu0 %v2571
      %2629 = vmatmul.f32.gmra.mxu0 %v2609
      %v2630 = vpop.f32.mrf.mxu0
      %v2631 = vadd.f32 0.0, %v2630
      %2632 = vmatmul.f32.gmra.mxu0 %v2611
      %v2633 = vpop.f32.mrf.mxu0
      %v2634 = vadd.f32 0.0, %v2633
      %2635 = vdwg.mxu0
      %v2652 = vsel %vm2588, %v2039, %v2032
      %v2653 = vsel %vm2590, %v2046, %v2652
      %v2654 = vsel %vm2592, %v2053, %v2653
      %v2655 = vsel %vm2594, %v2060, %v2654
      %v2656 = vsel %vm2596, %v2067, %v2655
      %v2657 = vsel %vm2598, %v2074, %v2656
      %v2658 = vsel %vm2600, %v2081, %v2657
      %v2659 = vsel %vm2588, %v2095, %v2088
      %v2660 = vsel %vm2590, %v2102, %v2659
      %v2661 = vsel %vm2592, %v2109, %v2660
      %v2662 = vsel %vm2594, %v2116, %v2661
      %v2663 = vsel %vm2596, %v2123, %v2662
      %v2664 = vsel %vm2598, %v2130, %v2663
      %v2665 = vsel %vm2600, %v2137, %v2664
      %v2666 = vsel %vm1347, %v2658, 0
      %v2668 = vsel %vm1347, %v2665, 0
      %2670 = vmatpush.msra.mxu0 0.0
      %2671 = vmatpush.msra.mxu0 0.0
      %2672 = vmatpush.msra.mxu0 0.0
      %2673 = vmatpush.msra.mxu0 0.0
      %2674 = vmatpush.msra.mxu0 0.0
      %2675 = vmatpush.msra.mxu0 0.0
      %2676 = vmatpush.msra.mxu0 0.0
      %2677 = vmatpush.msra.mxu0 0.0
      %2678 = vmatpush.msra.mxu0 0.0
      %2679 = vmatpush.msra.mxu0 0.0
      %2680 = vmatpush.msra.mxu0 0.0
      %2681 = vmatpush.msra.mxu0 0.0
      %2682 = vmatpush.msra.mxu0 0.0
      %2683 = vmatpush.msra.mxu0 0.0
      %2684 = vmatpush.msra.mxu0 0.0
      %2685 = vmatpush.msra.mxu0 %v2570
      %2686 = vmatmul.f32.gmra.mxu0 %v2666
      %v2687 = vpop.f32.mrf.mxu0
      %v2688 = vadd.f32 %v2631, %v2687
      %2689 = vmatmul.f32.gmra.mxu0 %v2668
      %v2690 = vpop.f32.mrf.mxu0
      %v2691 = vadd.f32 %v2634, %v2690
      %2692 = vdwg.mxu0
      %v2693 = vld [vmem:[%s14] sm:$0x1]
      %v2695 = vperm.slane %v2693, 0
      %v2697 = vmul.f32 %v2688, %v2695
      %v2698 = vmul.f32 %v2691, %v2695
      %v2699 = vld [vmem:[%s15] sm:$0x1]
      %v2701 = vperm.slane %v2699, 0
      %v2703 = vadd.f32 %v2697, %v2701
      %v2704 = vadd.f32 %v2698, %v2701
      %v2705 = vmax.f32 %v2703, 0.0
      %v2706 = vmax.f32 %v2704, 0.0
      %2707 = vst.msk [vmem:[%s628] sm:$0xff] %vm1347, %v2705
      %2708 = vst.msk [vmem:[%s628 + $0x8] sm:$0xff] %vm1347, %v2706
      %s2709 = smul.u32 2, %s31
      %p2710 = scmp.lt.s32.totalorder %s32, 1
      %s2711 = scalar_select %p2710, %s32, 1
      %p2712 = scmp.lt.s32.totalorder %s2709, 1
      %s2713 = scalar_select %p2712, %s2709, 1
      %s2714 = smul.addr %s2711, 2
      %s2715 = sadd.s32 %s2713, %s2714
      %s2716 = smul.addr %s2715, 8
      %s2717 = scalar_lea.vmem %s16, %s2716
      // Predicated region
      $region85: #{dilated_res_block.5} parent=83 // pred_check
        %p2718 = pneg %p416
      $region86: #{dilated_res_block.5} parent=83 // pred_check_branch
        %2720 = sbr.rel (%p2718) target = $region88
      $region87: #{dilated_res_block.5} parent=83 // pred_region
        %s2721 = smul.u32 2, %s31
      $region88: #{dilated_res_block.5} parent=83 // pred_fallthru
        _
    $region84: #{dilated_res_block.5} parent=5 // pred_fallthru
      _
    %p2722 = scmp.le.s32.totalorder 2, %s22
    // Predicated region
    $region89: #{dilated_res_block.5} parent=5 // pred_check
      %p2723 = pneg %p2722
    $region90: #{dilated_res_block.5} parent=5 // pred_check_branch
      %2725 = sbr.rel (%p2723) target = $region92
    $region91: #{dilated_res_block.5} parent=5 // pred_region
      %s2726 = ssub.s32 %s22, 2
      // Predicated region
      $region93: #{dilated_res_block.5} parent=91 // pred_check
        %p2727 = pneg %p422
      $region94: #{dilated_res_block.5} parent=91 // pred_check_branch
        %2729 = sbr.rel (%p2727) target = $region96
      $region95: #{dilated_res_block.5} parent=91 // pred_region
        %s2730 = smul.u32 2, %s33
        %p2731 = scmp.lt.s32.totalorder %s34, 1
        %s2732 = scalar_select %p2731, %s34, 1
        %p2733 = scmp.lt.s32.totalorder %s2730, 1
        %s2734 = scalar_select %p2733, %s2730, 1
        %s2735 = smul.addr %s2732, 2
        %s2736 = sadd.s32 %s2734, %s2735
        %s2737 = smul.addr %s2736, 8
        %s2738 = scalar_lea.vmem %s16, %s2737
      $region96: #{dilated_res_block.5} parent=91 // pred_fallthru
        _
    $region92: #{dilated_res_block.5} parent=5 // pred_fallthru
      _
  $region6: #{dilated_res_block.5} parent=0 // loop_footer
    %s26 = sadd.s32 1, %s22
  $region7: #{dilated_res_block.5} parent=0 // loop_footer_branch
    %21 = sbr.rel target = $region3
  $region8: #{dilated_res_block.5} parent=0 // loop_exit
    _

// kernel: dilated_res_block.6
$region0: #{dilated_res_block.6}
  #allocation0 [shape = 'u32[]', space=smem, size = 0x4, offset = 0x4, fixed_abs, tag = 'smem constant byte address 0x4 - core index']
  #allocation1 [shape = 'u32[72,128]{1,0:T(1,128)}', space=vmem, size = 0x9000, scoped, tag = 'internal scratch']
  %s0 = inlined_call_operand.vmem [shape: f32[2,16,1,3], index: 0, kind: input, shape index: {}]
  %s1 = inlined_call_operand.vmem [shape: f32[2,16,8,3], index: 1, kind: input, shape index: {}]
  %s2 = inlined_call_operand.vmem [shape: bf16[2,16,8,8], index: 2, kind: input, shape index: {}]
  %s3 = inlined_call_operand.vmem [shape: f32[1,8], index: 3, kind: input, shape index: {}]
  %s4 = inlined_call_operand.vmem [shape: f32[3,8], index: 4, kind: input, shape index: {}]
  %s5 = inlined_call_operand.vmem [shape: f32[3,8], index: 5, kind: input, shape index: {}]
  %s6 = inlined_call_operand.vmem [shape: f32[1,8], index: 6, kind: input, shape index: {}]
  %s7 = inlined_call_operand.vmem [shape: f32[1,8], index: 7, kind: input, shape index: {}]
  %s8 = inlined_call_operand.vmem [shape: f32[8,8], index: 8, kind: input, shape index: {}]
  %s9 = inlined_call_operand.vmem [shape: f32[1,8], index: 9, kind: input, shape index: {}]
  %s10 = inlined_call_operand.vmem [shape: f32[1,8], index: 10, kind: input, shape index: {}]
  %s11 = inlined_call_operand.vmem [shape: f32[8,8], index: 11, kind: input, shape index: {}]
  %s12 = inlined_call_operand.vmem [shape: f32[8,8], index: 12, kind: input, shape index: {}]
  %s13 = inlined_call_operand.vmem [shape: f32[8,8], index: 13, kind: input, shape index: {}]
  %s14 = inlined_call_operand.vmem [shape: f32[8,8], index: 14, kind: input, shape index: {}]
  %s15 = inlined_call_operand.vmem [shape: f32[16,8], index: 15, kind: input, shape index: {}]
  %s16 = inlined_call_operand.vmem [shape: f32[16,8], index: 16, kind: input, shape index: {}]
  %s17 = inlined_call_operand.vmem [shape: f32[16,1], index: 17, kind: input, shape index: {}]
  %s18 = inlined_call_operand.vmem [shape: f32[16,1], index: 18, kind: input, shape index: {}]
  %s19 = inlined_call_operand.vmem [shape: f32[2,16,16], index: 19, kind: output, shape index: {}]
  %s20 = sld [smem:[#allocation0]]
  $region109: #{dilated_res_block.6} parent=0
    _
  %s22 = ssub.s32 1, %s20
  %s23 = scalar_select 0, %s22, %s20
  loop: start=0, step=1, limit=4
  $region2: #{dilated_res_block.6} parent=0 // loop_pre_header
    _
  $region3: #{dilated_res_block.6} parent=0 // loop_header
    %s25 = sphi 0, %s29
    %p26 = scmp.ge.s32.totalorder %s25, 4
    %s32 = sphi 0, %s44
    %s33 = sphi 0, %s40
    %s34 = sphi 0, %s32
    %s35 = sphi 0, %s33
    %s36 = sphi 0, %s34
    %s37 = sphi 0, %s35
    %s49 = sphi 0, %s51
    %s52 = sphi 0, %s49
    %s53 = sphi 0, %s52
    %s69 = sphi 0, %s53
    %s77 = sphi 0, %s79
    %s80 = sphi 0, %s77
    %s81 = sphi 0, %s80
    %s97 = sphi 0, %s81
    %s105 = sphi 0, %s107
    %s108 = sphi 0, %s105
    %s109 = sphi 0, %s108
    %s125 = sphi 0, %s109
    %s129 = sphi 0, %s129
    %s131 = sphi 0, %s129
    %s132 = sphi 0, %s131
    %s146 = sphi 0, %s132
    %s150 = sphi 0, %s150
    %s152 = sphi 0, %s150
    %s153 = sphi 0, %s152
    %s167 = sphi 0, %s153
    %s171 = sphi 0, %s171
    %s173 = sphi 0, %s171
    %s174 = sphi 0, %s173
    %s188 = sphi 0, %s174
    %s192 = sphi 0, %s192
    %s194 = sphi 0, %s192
    %s195 = sphi 0, %s194
    %s209 = sphi 0, %s195
    %s213 = sphi 0, %s213
    %s215 = sphi 0, %s213
    %s216 = sphi 0, %s215
    %s230 = sphi 0, %s216
    %s234 = sphi 0, %s234
    %s236 = sphi 0, %s234
    %s237 = sphi 0, %s236
    %s251 = sphi 0, %s237
    %s255 = sphi 0, %s255
    %s257 = sphi 0, %s255
    %s258 = sphi 0, %s257
    %s272 = sphi 0, %s258
    %s276 = sphi 0, %s276
    %s278 = sphi 0, %s276
    %s279 = sphi 0, %s278
    %s293 = sphi 0, %s279
    %s297 = sphi 0, %s297
    %s299 = sphi 0, %s297
    %s300 = sphi 0, %s299
    %s314 = sphi 0, %s300
    %s318 = sphi 0, %s318
    %s320 = sphi 0, %s318
    %s321 = sphi 0, %s320
    %s335 = sphi 0, %s321
    %s339 = sphi 0, %s339
    %s341 = sphi 0, %s339
    %s342 = sphi 0, %s341
    %s356 = sphi 0, %s342
    %s360 = sphi 0, %s360
    %s362 = sphi 0, %s360
    %s363 = sphi 0, %s362
    %s377 = sphi 0, %s363
    %s381 = sphi 0, %s381
    %s383 = sphi 0, %s381
    %s384 = sphi 0, %s383
    %s398 = sphi 0, %s384
    %s402 = sphi 0, %s402
    %s404 = sphi 0, %s402
    %s405 = sphi 0, %s404
    %s419 = sphi 0, %s405
    %s423 = sphi 0, %s423
    %s425 = sphi 0, %s423
    %s426 = sphi 0, %s425
    %s440 = sphi 0, %s426
    %s444 = sphi 0, %s444
    %s446 = sphi 0, %s444
    %s447 = sphi 0, %s446
    %s461 = sphi 0, %s447
    %s469 = sphi 0, %s471
    %s472 = sphi 0, %s469
    %s473 = sphi 0, %s472
    %s489 = sphi 0, %s473
  $region4: #{dilated_res_block.6} parent=0 // loop_header_branch
    %28 = sbr.rel (%p26) target = $region8
  $region5: #{dilated_res_block.6} parent=0 // loop_body
    %s30 = ssub.s32 %s25, 1
    %s31 = ssub.s32 %s25, 2
    %s38 = sadd.s32 1, %s33
    %p39 = scmp.ge.s32.totalorder %s38, 2
    %s40 = scalar_select %p39, 0, %s38
    %s41 = sadd.s32 1, %s32
    %s42 = scalar_select %p39, %s41, %s32
    %p43 = scmp.ge.s32.totalorder %s42, 1
    %s44 = scalar_select %p43, 0, %s42
    %s45 = ssub.s32 %s33, %s40
    %s46 = ssub.s32 %s32, %s44
    %s47 = sor.u32 %s45, %s46
    %p48 = scmp.eq.s32.totalorder %s47, 0
    %s50 = sadd.s32 %s49, 1
    %s51 = scalar_select %p48, %s49, %s50
    %p54 = pneg %p48
    %p55 = scmp.eq.s32.totalorder %s25, 1
    %p56 = por %p54, %p55
    %p57 = scmp.ne.s32.totalorder %s49, %s52
    %p58 = scmp.eq.s32.totalorder %s25, 0
    %p59 = por %p57, %p58
    %p60 = scmp.ne.s32.totalorder %s49, %s52
    %p61 = scmp.eq.s32.totalorder %s30, 1
    %p62 = por %p60, %p61
    %p63 = scmp.ne.s32.totalorder %s52, %s53
    %p64 = scmp.eq.s32.totalorder %s30, 0
    %p65 = por %p63, %p64
    %p66 = scmp.ne.s32.totalorder %s52, %s53
    %p67 = scmp.eq.s32.totalorder %s31, 1
    %p68 = por %p66, %p67
    %p70 = scmp.ne.s32.totalorder %s53, %s69
    %p71 = scmp.eq.s32.totalorder %s31, 0
    %p72 = por %p70, %p71
    %s73 = ssub.s32 %s33, %s40
    %s74 = ssub.s32 %s32, %s44
    %s75 = sor.u32 %s73, %s74
    %p76 = scmp.eq.s32.totalorder %s75, 0
    %s78 = sadd.s32 %s77, 1
    %s79 = scalar_select %p76, %s77, %s78
    %p82 = pneg %p76
    %p83 = scmp.eq.s32.totalorder %s25, 1
    %p84 = por %p82, %p83
    %p85 = scmp.ne.s32.totalorder %s77, %s80
    %p86 = scmp.eq.s32.totalorder %s25, 0
    %p87 = por %p85, %p86
    %p88 = scmp.ne.s32.totalorder %s77, %s80
    %p89 = scmp.eq.s32.totalorder %s30, 1
    %p90 = por %p88, %p89
    %p91 = scmp.ne.s32.totalorder %s80, %s81
    %p92 = scmp.eq.s32.totalorder %s30, 0
    %p93 = por %p91, %p92
    %p94 = scmp.ne.s32.totalorder %s80, %s81
    %p95 = scmp.eq.s32.totalorder %s31, 1
    %p96 = por %p94, %p95
    %p98 = scmp.ne.s32.totalorder %s81, %s97
    %p99 = scmp.eq.s32.totalorder %s31, 0
    %p100 = por %p98, %p99
    %s101 = ssub.s32 %s33, %s40
    %s102 = ssub.s32 %s32, %s44
    %s103 = sor.u32 %s101, %s102
    %p104 = scmp.eq.s32.totalorder %s103, 0
    %s106 = sadd.s32 %s105, 1
    %s107 = scalar_select %p104, %s105, %s106
    %p110 = pneg %p104
    %p111 = scmp.eq.s32.totalorder %s25, 1
    %p112 = por %p110, %p111
    %p113 = scmp.ne.s32.totalorder %s105, %s108
    %p114 = scmp.eq.s32.totalorder %s25, 0
    %p115 = por %p113, %p114
    %p116 = scmp.ne.s32.totalorder %s105, %s108
    %p117 = scmp.eq.s32.totalorder %s30, 1
    %p118 = por %p116, %p117
    %p119 = scmp.ne.s32.totalorder %s108, %s109
    %p120 = scmp.eq.s32.totalorder %s30, 0
    %p121 = por %p119, %p120
    %p122 = scmp.ne.s32.totalorder %s108, %s109
    %p123 = scmp.eq.s32.totalorder %s31, 1
    %p124 = por %p122, %p123
    %p126 = scmp.ne.s32.totalorder %s109, %s125
    %p127 = scmp.eq.s32.totalorder %s31, 0
    %p128 = por %p126, %p127
    %s130 = sadd.s32 %s129, 1
    %p133 = scmp.eq.s32.totalorder %s25, 1
    %p134 = scmp.ne.s32.totalorder %s129, %s131
    %p135 = scmp.eq.s32.totalorder %s25, 0
    %p136 = por %p134, %p135
    %p137 = scmp.ne.s32.totalorder %s129, %s131
    %p138 = scmp.eq.s32.totalorder %s30, 1
    %p139 = por %p137, %p138
    %p140 = scmp.ne.s32.totalorder %s131, %s132
    %p141 = scmp.eq.s32.totalorder %s30, 0
    %p142 = por %p140, %p141
    %p143 = scmp.ne.s32.totalorder %s131, %s132
    %p144 = scmp.eq.s32.totalorder %s31, 1
    %p145 = por %p143, %p144
    %p147 = scmp.ne.s32.totalorder %s132, %s146
    %p148 = scmp.eq.s32.totalorder %s31, 0
    %p149 = por %p147, %p148
    %s151 = sadd.s32 %s150, 1
    %p154 = scmp.eq.s32.totalorder %s25, 1
    %p155 = scmp.ne.s32.totalorder %s150, %s152
    %p156 = scmp.eq.s32.totalorder %s25, 0
    %p157 = por %p155, %p156
    %p158 = scmp.ne.s32.totalorder %s150, %s152
    %p159 = scmp.eq.s32.totalorder %s30, 1
    %p160 = por %p158, %p159
    %p161 = scmp.ne.s32.totalorder %s152, %s153
    %p162 = scmp.eq.s32.totalorder %s30, 0
    %p163 = por %p161, %p162
    %p164 = scmp.ne.s32.totalorder %s152, %s153
    %p165 = scmp.eq.s32.totalorder %s31, 1
    %p166 = por %p164, %p165
    %p168 = scmp.ne.s32.totalorder %s153, %s167
    %p169 = scmp.eq.s32.totalorder %s31, 0
    %p170 = por %p168, %p169
    %s172 = sadd.s32 %s171, 1
    %p175 = scmp.eq.s32.totalorder %s25, 1
    %p176 = scmp.ne.s32.totalorder %s171, %s173
    %p177 = scmp.eq.s32.totalorder %s25, 0
    %p178 = por %p176, %p177
    %p179 = scmp.ne.s32.totalorder %s171, %s173
    %p180 = scmp.eq.s32.totalorder %s30, 1
    %p181 = por %p179, %p180
    %p182 = scmp.ne.s32.totalorder %s173, %s174
    %p183 = scmp.eq.s32.totalorder %s30, 0
    %p184 = por %p182, %p183
    %p185 = scmp.ne.s32.totalorder %s173, %s174
    %p186 = scmp.eq.s32.totalorder %s31, 1
    %p187 = por %p185, %p186
    %p189 = scmp.ne.s32.totalorder %s174, %s188
    %p190 = scmp.eq.s32.totalorder %s31, 0
    %p191 = por %p189, %p190
    %s193 = sadd.s32 %s192, 1
    %p196 = scmp.eq.s32.totalorder %s25, 1
    %p197 = scmp.ne.s32.totalorder %s192, %s194
    %p198 = scmp.eq.s32.totalorder %s25, 0
    %p199 = por %p197, %p198
    %p200 = scmp.ne.s32.totalorder %s192, %s194
    %p201 = scmp.eq.s32.totalorder %s30, 1
    %p202 = por %p200, %p201
    %p203 = scmp.ne.s32.totalorder %s194, %s195
    %p204 = scmp.eq.s32.totalorder %s30, 0
    %p205 = por %p203, %p204
    %p206 = scmp.ne.s32.totalorder %s194, %s195
    %p207 = scmp.eq.s32.totalorder %s31, 1
    %p208 = por %p206, %p207
    %p210 = scmp.ne.s32.totalorder %s195, %s209
    %p211 = scmp.eq.s32.totalorder %s31, 0
    %p212 = por %p210, %p211
    %s214 = sadd.s32 %s213, 1
    %p217 = scmp.eq.s32.totalorder %s25, 1
    %p218 = scmp.ne.s32.totalorder %s213, %s215
    %p219 = scmp.eq.s32.totalorder %s25, 0
    %p220 = por %p218, %p219
    %p221 = scmp.ne.s32.totalorder %s213, %s215
    %p222 = scmp.eq.s32.totalorder %s30, 1
    %p223 = por %p221, %p222
    %p224 = scmp.ne.s32.totalorder %s215, %s216
    %p225 = scmp.eq.s32.totalorder %s30, 0
    %p226 = por %p224, %p225
    %p227 = scmp.ne.s32.totalorder %s215, %s216
    %p228 = scmp.eq.s32.totalorder %s31, 1
    %p229 = por %p227, %p228
    %p231 = scmp.ne.s32.totalorder %s216, %s230
    %p232 = scmp.eq.s32.totalorder %s31, 0
    %p233 = por %p231, %p232
    %s235 = sadd.s32 %s234, 1
    %p238 = scmp.eq.s32.totalorder %s25, 1
    %p239 = scmp.ne.s32.totalorder %s234, %s236
    %p240 = scmp.eq.s32.totalorder %s25, 0
    %p241 = por %p239, %p240
    %p242 = scmp.ne.s32.totalorder %s234, %s236
    %p243 = scmp.eq.s32.totalorder %s30, 1
    %p244 = por %p242, %p243
    %p245 = scmp.ne.s32.totalorder %s236, %s237
    %p246 = scmp.eq.s32.totalorder %s30, 0
    %p247 = por %p245, %p246
    %p248 = scmp.ne.s32.totalorder %s236, %s237
    %p249 = scmp.eq.s32.totalorder %s31, 1
    %p250 = por %p248, %p249
    %p252 = scmp.ne.s32.totalorder %s237, %s251
    %p253 = scmp.eq.s32.totalorder %s31, 0
    %p254 = por %p252, %p253
    %s256 = sadd.s32 %s255, 1
    %p259 = scmp.eq.s32.totalorder %s25, 1
    %p260 = scmp.ne.s32.totalorder %s255, %s257
    %p261 = scmp.eq.s32.totalorder %s25, 0
    %p262 = por %p260, %p261
    %p263 = scmp.ne.s32.totalorder %s255, %s257
    %p264 = scmp.eq.s32.totalorder %s30, 1
    %p265 = por %p263, %p264
    %p266 = scmp.ne.s32.totalorder %s257, %s258
    %p267 = scmp.eq.s32.totalorder %s30, 0
    %p268 = por %p266, %p267
    %p269 = scmp.ne.s32.totalorder %s257, %s258
    %p270 = scmp.eq.s32.totalorder %s31, 1
    %p271 = por %p269, %p270
    %p273 = scmp.ne.s32.totalorder %s258, %s272
    %p274 = scmp.eq.s32.totalorder %s31, 0
    %p275 = por %p273, %p274
    %s277 = sadd.s32 %s276, 1
    %p280 = scmp.eq.s32.totalorder %s25, 1
    %p281 = scmp.ne.s32.totalorder %s276, %s278
    %p282 = scmp.eq.s32.totalorder %s25, 0
    %p283 = por %p281, %p282
    %p284 = scmp.ne.s32.totalorder %s276, %s278
    %p285 = scmp.eq.s32.totalorder %s30, 1
    %p286 = por %p284, %p285
    %p287 = scmp.ne.s32.totalorder %s278, %s279
    %p288 = scmp.eq.s32.totalorder %s30, 0
    %p289 = por %p287, %p288
    %p290 = scmp.ne.s32.totalorder %s278, %s279
    %p291 = scmp.eq.s32.totalorder %s31, 1
    %p292 = por %p290, %p291
    %p294 = scmp.ne.s32.totalorder %s279, %s293
    %p295 = scmp.eq.s32.totalorder %s31, 0
    %p296 = por %p294, %p295
    %s298 = sadd.s32 %s297, 1
    %p301 = scmp.eq.s32.totalorder %s25, 1
    %p302 = scmp.ne.s32.totalorder %s297, %s299
    %p303 = scmp.eq.s32.totalorder %s25, 0
    %p304 = por %p302, %p303
    %p305 = scmp.ne.s32.totalorder %s297, %s299
    %p306 = scmp.eq.s32.totalorder %s30, 1
    %p307 = por %p305, %p306
    %p308 = scmp.ne.s32.totalorder %s299, %s300
    %p309 = scmp.eq.s32.totalorder %s30, 0
    %p310 = por %p308, %p309
    %p311 = scmp.ne.s32.totalorder %s299, %s300
    %p312 = scmp.eq.s32.totalorder %s31, 1
    %p313 = por %p311, %p312
    %p315 = scmp.ne.s32.totalorder %s300, %s314
    %p316 = scmp.eq.s32.totalorder %s31, 0
    %p317 = por %p315, %p316
    %s319 = sadd.s32 %s318, 1
    %p322 = scmp.eq.s32.totalorder %s25, 1
    %p323 = scmp.ne.s32.totalorder %s318, %s320
    %p324 = scmp.eq.s32.totalorder %s25, 0
    %p325 = por %p323, %p324
    %p326 = scmp.ne.s32.totalorder %s318, %s320
    %p327 = scmp.eq.s32.totalorder %s30, 1
    %p328 = por %p326, %p327
    %p329 = scmp.ne.s32.totalorder %s320, %s321
    %p330 = scmp.eq.s32.totalorder %s30, 0
    %p331 = por %p329, %p330
    %p332 = scmp.ne.s32.totalorder %s320, %s321
    %p333 = scmp.eq.s32.totalorder %s31, 1
    %p334 = por %p332, %p333
    %p336 = scmp.ne.s32.totalorder %s321, %s335
    %p337 = scmp.eq.s32.totalorder %s31, 0
    %p338 = por %p336, %p337
    %s340 = sadd.s32 %s339, 1
    %p343 = scmp.eq.s32.totalorder %s25, 1
    %p344 = scmp.ne.s32.totalorder %s339, %s341
    %p345 = scmp.eq.s32.totalorder %s25, 0
    %p346 = por %p344, %p345
    %p347 = scmp.ne.s32.totalorder %s339, %s341
    %p348 = scmp.eq.s32.totalorder %s30, 1
    %p349 = por %p347, %p348
    %p350 = scmp.ne.s32.totalorder %s341, %s342
    %p351 = scmp.eq.s32.totalorder %s30, 0
    %p352 = por %p350, %p351
    %p353 = scmp.ne.s32.totalorder %s341, %s342
    %p354 = scmp.eq.s32.totalorder %s31, 1
    %p355 = por %p353, %p354
    %p357 = scmp.ne.s32.totalorder %s342, %s356
    %p358 = scmp.eq.s32.totalorder %s31, 0
    %p359 = por %p357, %p358
    %s361 = sadd.s32 %s360, 1
    %p364 = scmp.eq.s32.totalorder %s25, 1
    %p365 = scmp.ne.s32.totalorder %s360, %s362
    %p366 = scmp.eq.s32.totalorder %s25, 0
    %p367 = por %p365, %p366
    %p368 = scmp.ne.s32.totalorder %s360, %s362
    %p369 = scmp.eq.s32.totalorder %s30, 1
    %p370 = por %p368, %p369
    %p371 = scmp.ne.s32.totalorder %s362, %s363
    %p372 = scmp.eq.s32.totalorder %s30, 0
    %p373 = por %p371, %p372
    %p374 = scmp.ne.s32.totalorder %s362, %s363
    %p375 = scmp.eq.s32.totalorder %s31, 1
    %p376 = por %p374, %p375
    %p378 = scmp.ne.s32.totalorder %s363, %s377
    %p379 = scmp.eq.s32.totalorder %s31, 0
    %p380 = por %p378, %p379
    %s382 = sadd.s32 %s381, 1
    %p385 = scmp.eq.s32.totalorder %s25, 1
    %p386 = scmp.ne.s32.totalorder %s381, %s383
    %p387 = scmp.eq.s32.totalorder %s25, 0
    %p388 = por %p386, %p387
    %p389 = scmp.ne.s32.totalorder %s381, %s383
    %p390 = scmp.eq.s32.totalorder %s30, 1
    %p391 = por %p389, %p390
    %p392 = scmp.ne.s32.totalorder %s383, %s384
    %p393 = scmp.eq.s32.totalorder %s30, 0
    %p394 = por %p392, %p393
    %p395 = scmp.ne.s32.totalorder %s383, %s384
    %p396 = scmp.eq.s32.totalorder %s31, 1
    %p397 = por %p395, %p396
    %p399 = scmp.ne.s32.totalorder %s384, %s398
    %p400 = scmp.eq.s32.totalorder %s31, 0
    %p401 = por %p399, %p400
    %s403 = sadd.s32 %s402, 1
    %p406 = scmp.eq.s32.totalorder %s25, 1
    %p407 = scmp.ne.s32.totalorder %s402, %s404
    %p408 = scmp.eq.s32.totalorder %s25, 0
    %p409 = por %p407, %p408
    %p410 = scmp.ne.s32.totalorder %s402, %s404
    %p411 = scmp.eq.s32.totalorder %s30, 1
    %p412 = por %p410, %p411
    %p413 = scmp.ne.s32.totalorder %s404, %s405
    %p414 = scmp.eq.s32.totalorder %s30, 0
    %p415 = por %p413, %p414
    %p416 = scmp.ne.s32.totalorder %s404, %s405
    %p417 = scmp.eq.s32.totalorder %s31, 1
    %p418 = por %p416, %p417
    %p420 = scmp.ne.s32.totalorder %s405, %s419
    %p421 = scmp.eq.s32.totalorder %s31, 0
    %p422 = por %p420, %p421
    %s424 = sadd.s32 %s423, 1
    %p427 = scmp.eq.s32.totalorder %s25, 1
    %p428 = scmp.ne.s32.totalorder %s423, %s425
    %p429 = scmp.eq.s32.totalorder %s25, 0
    %p430 = por %p428, %p429
    %p431 = scmp.ne.s32.totalorder %s423, %s425
    %p432 = scmp.eq.s32.totalorder %s30, 1
    %p433 = por %p431, %p432
    %p434 = scmp.ne.s32.totalorder %s425, %s426
    %p435 = scmp.eq.s32.totalorder %s30, 0
    %p436 = por %p434, %p435
    %p437 = scmp.ne.s32.totalorder %s425, %s426
    %p438 = scmp.eq.s32.totalorder %s31, 1
    %p439 = por %p437, %p438
    %p441 = scmp.ne.s32.totalorder %s426, %s440
    %p442 = scmp.eq.s32.totalorder %s31, 0
    %p443 = por %p441, %p442
    %s445 = sadd.s32 %s444, 1
    %p448 = scmp.eq.s32.totalorder %s25, 1
    %p449 = scmp.ne.s32.totalorder %s444, %s446
    %p450 = scmp.eq.s32.totalorder %s25, 0
    %p451 = por %p449, %p450
    %p452 = scmp.ne.s32.totalorder %s444, %s446
    %p453 = scmp.eq.s32.totalorder %s30, 1
    %p454 = por %p452, %p453
    %p455 = scmp.ne.s32.totalorder %s446, %s447
    %p456 = scmp.eq.s32.totalorder %s30, 0
    %p457 = por %p455, %p456
    %p458 = scmp.ne.s32.totalorder %s446, %s447
    %p459 = scmp.eq.s32.totalorder %s31, 1
    %p460 = por %p458, %p459
    %p462 = scmp.ne.s32.totalorder %s447, %s461
    %p463 = scmp.eq.s32.totalorder %s31, 0
    %p464 = por %p462, %p463
    %s465 = ssub.s32 %s33, %s40
    %s466 = ssub.s32 %s32, %s44
    %s467 = sor.u32 %s465, %s466
    %p468 = scmp.eq.s32.totalorder %s467, 0
    %s470 = sadd.s32 %s469, 1
    %s471 = scalar_select %p468, %s469, %s470
    %p474 = pneg %p468
    %p475 = scmp.eq.s32.totalorder %s25, 1
    %p476 = por %p474, %p475
    %p477 = scmp.ne.s32.totalorder %s469, %s472
    %p478 = scmp.eq.s32.totalorder %s25, 0
    %p479 = por %p477, %p478
    %p480 = scmp.ne.s32.totalorder %s469, %s472
    %p481 = scmp.eq.s32.totalorder %s30, 1
    %p482 = por %p480, %p481
    %p483 = scmp.ne.s32.totalorder %s472, %s473
    %p484 = scmp.eq.s32.totalorder %s30, 0
    %p485 = por %p483, %p484
    %p486 = scmp.ne.s32.totalorder %s472, %s473
    %p487 = scmp.eq.s32.totalorder %s31, 1
    %p488 = por %p486, %p487
    %p490 = scmp.ne.s32.totalorder %s473, %s489
    %p491 = scmp.eq.s32.totalorder %s31, 0
    %p492 = por %p490, %p491
    %p493 = scmp.le.s32.totalorder 1, %s25
    %p494 = scmp.lt.s32.totalorder %s25, 3
    %p495 = pnand %p493, %p494
    %p496 = pneg %p495
    // Predicated region
    $region9: #{dilated_res_block.6} parent=5 // pred_check
      _
    $region10: #{dilated_res_block.6} parent=5 // pred_check_branch
      %498 = sbr.rel (%p495) target = $region12
    $region11: #{dilated_res_block.6} parent=5 // pred_region
      %s499 = ssub.s32 %s25, 1
      // Predicated region
      $region13: #{dilated_res_block.6} parent=11 // pred_check
        %p500 = pneg %p142
      $region14: #{dilated_res_block.6} parent=11 // pred_check_branch
        %502 = sbr.rel (%p500) target = $region16
      $region15: #{dilated_res_block.6} parent=11 // pred_region
        _
      $region16: #{dilated_res_block.6} parent=11 // pred_fallthru
        _
      // Predicated region
      $region17: #{dilated_res_block.6} parent=11 // pred_check
        %p503 = pneg %p163
      $region18: #{dilated_res_block.6} parent=11 // pred_check_branch
        %505 = sbr.rel (%p503) target = $region20
      $region19: #{dilated_res_block.6} parent=11 // pred_region
        _
      $region20: #{dilated_res_block.6} parent=11 // pred_fallthru
        _
      // Predicated region
      $region21: #{dilated_res_block.6} parent=11 // pred_check
        %p506 = pneg %p184
      $region22: #{dilated_res_block.6} parent=11 // pred_check_branch
        %508 = sbr.rel (%p506) target = $region24
      $region23: #{dilated_res_block.6} parent=11 // pred_region
        _
      $region24: #{dilated_res_block.6} parent=11 // pred_fallthru
        _
      // Predicated region
      $region25: #{dilated_res_block.6} parent=11 // pred_check
        %p509 = pneg %p205
      $region26: #{dilated_res_block.6} parent=11 // pred_check_branch
        %511 = sbr.rel (%p509) target = $region28
      $region27: #{dilated_res_block.6} parent=11 // pred_region
        _
      $region28: #{dilated_res_block.6} parent=11 // pred_fallthru
        _
      // Predicated region
      $region29: #{dilated_res_block.6} parent=11 // pred_check
        %p512 = pneg %p226
      $region30: #{dilated_res_block.6} parent=11 // pred_check_branch
        %514 = sbr.rel (%p512) target = $region32
      $region31: #{dilated_res_block.6} parent=11 // pred_region
        _
      $region32: #{dilated_res_block.6} parent=11 // pred_fallthru
        _
      // Predicated region
      $region33: #{dilated_res_block.6} parent=11 // pred_check
        %p515 = pneg %p247
      $region34: #{dilated_res_block.6} parent=11 // pred_check_branch
        %517 = sbr.rel (%p515) target = $region36
      $region35: #{dilated_res_block.6} parent=11 // pred_region
        _
      $region36: #{dilated_res_block.6} parent=11 // pred_fallthru
        _
      // Predicated region
      $region37: #{dilated_res_block.6} parent=11 // pred_check
        %p518 = pneg %p268
      $region38: #{dilated_res_block.6} parent=11 // pred_check_branch
        %520 = sbr.rel (%p518) target = $region40
      $region39: #{dilated_res_block.6} parent=11 // pred_region
        _
      $region40: #{dilated_res_block.6} parent=11 // pred_fallthru
        _
      // Predicated region
      $region41: #{dilated_res_block.6} parent=11 // pred_check
        %p521 = pneg %p289
      $region42: #{dilated_res_block.6} parent=11 // pred_check_branch
        %523 = sbr.rel (%p521) target = $region44
      $region43: #{dilated_res_block.6} parent=11 // pred_region
        _
      $region44: #{dilated_res_block.6} parent=11 // pred_fallthru
        _
      // Predicated region
      $region45: #{dilated_res_block.6} parent=11 // pred_check
        %p524 = pneg %p310
      $region46: #{dilated_res_block.6} parent=11 // pred_check_branch
        %526 = sbr.rel (%p524) target = $region48
      $region47: #{dilated_res_block.6} parent=11 // pred_region
        _
      $region48: #{dilated_res_block.6} parent=11 // pred_fallthru
        _
      // Predicated region
      $region49: #{dilated_res_block.6} parent=11 // pred_check
        %p527 = pneg %p331
      $region50: #{dilated_res_block.6} parent=11 // pred_check_branch
        %529 = sbr.rel (%p527) target = $region52
      $region51: #{dilated_res_block.6} parent=11 // pred_region
        _
      $region52: #{dilated_res_block.6} parent=11 // pred_fallthru
        _
      // Predicated region
      $region53: #{dilated_res_block.6} parent=11 // pred_check
        %p530 = pneg %p352
      $region54: #{dilated_res_block.6} parent=11 // pred_check_branch
        %532 = sbr.rel (%p530) target = $region56
      $region55: #{dilated_res_block.6} parent=11 // pred_region
        _
      $region56: #{dilated_res_block.6} parent=11 // pred_fallthru
        _
      // Predicated region
      $region57: #{dilated_res_block.6} parent=11 // pred_check
        %p533 = pneg %p373
      $region58: #{dilated_res_block.6} parent=11 // pred_check_branch
        %535 = sbr.rel (%p533) target = $region60
      $region59: #{dilated_res_block.6} parent=11 // pred_region
        _
      $region60: #{dilated_res_block.6} parent=11 // pred_fallthru
        _
      // Predicated region
      $region61: #{dilated_res_block.6} parent=11 // pred_check
        %p536 = pneg %p394
      $region62: #{dilated_res_block.6} parent=11 // pred_check_branch
        %538 = sbr.rel (%p536) target = $region64
      $region63: #{dilated_res_block.6} parent=11 // pred_region
        _
      $region64: #{dilated_res_block.6} parent=11 // pred_fallthru
        _
      // Predicated region
      $region65: #{dilated_res_block.6} parent=11 // pred_check
        %p539 = pneg %p415
      $region66: #{dilated_res_block.6} parent=11 // pred_check_branch
        %541 = sbr.rel (%p539) target = $region68
      $region67: #{dilated_res_block.6} parent=11 // pred_region
        _
      $region68: #{dilated_res_block.6} parent=11 // pred_fallthru
        _
      // Predicated region
      $region69: #{dilated_res_block.6} parent=11 // pred_check
        %p542 = pneg %p436
      $region70: #{dilated_res_block.6} parent=11 // pred_check_branch
        %544 = sbr.rel (%p542) target = $region72
      $region71: #{dilated_res_block.6} parent=11 // pred_region
        _
      $region72: #{dilated_res_block.6} parent=11 // pred_fallthru
        _
      // Predicated region
      $region73: #{dilated_res_block.6} parent=11 // pred_check
        %p545 = pneg %p457
      $region74: #{dilated_res_block.6} parent=11 // pred_check_branch
        %547 = sbr.rel (%p545) target = $region76
      $region75: #{dilated_res_block.6} parent=11 // pred_region
        _
      $region76: #{dilated_res_block.6} parent=11 // pred_fallthru
        _
    $region12: #{dilated_res_block.6} parent=5 // pred_fallthru
      _
    %p548 = scmp.lt.s32.totalorder %s25, 2
    // Predicated region
    $region77: #{dilated_res_block.6} parent=5 // pred_check
      %p549 = pneg %p548
    $region78: #{dilated_res_block.6} parent=5 // pred_check_branch
      %551 = sbr.rel (%p549) target = $region80
    $region79: #{dilated_res_block.6} parent=5 // pred_region
      // Predicated region
      $region81: #{dilated_res_block.6} parent=79 // pred_check
        %p552 = pneg %p59
      $region82: #{dilated_res_block.6} parent=79 // pred_check_branch
        %554 = sbr.rel (%p552) target = $region84
      $region83: #{dilated_res_block.6} parent=79 // pred_region
        %s555 = smul.u32 16, %s32
        %p556 = scmp.lt.s32.totalorder %s33, 1
        %s557 = scalar_select %p556, %s33, 1
        %p558 = scmp.lt.s32.totalorder %s555, 15
        %s559 = scalar_select %p558, %s555, 15
        %s560 = smul.addr %s557, 16
        %s561 = sadd.s32 %s559, %s560
        %s562 = scalar_lea.vmem %s0, %s561
        %s563 = smul.u32 16, %s32
      $region84: #{dilated_res_block.6} parent=79 // pred_fallthru
        _
      // Predicated region
      $region85: #{dilated_res_block.6} parent=79 // pred_check
        %p564 = pneg %p87
      $region86: #{dilated_res_block.6} parent=79 // pred_check_branch
        %566 = sbr.rel (%p564) target = $region88
      $region87: #{dilated_res_block.6} parent=79 // pred_region
        %s567 = smul.u32 16, %s32
        %p568 = scmp.lt.s32.totalorder %s33, 1
        %s569 = scalar_select %p568, %s33, 1
        %p570 = scmp.lt.s32.totalorder %s567, 15
        %s571 = scalar_select %p570, %s567, 15
        %s572 = smul.addr %s569, 16
        %s573 = sadd.s32 %s571, %s572
        %s574 = smul.addr %s573, 8
        %s575 = scalar_lea.vmem %s1, %s574
        %s576 = smul.u32 16, %s32
      $region88: #{dilated_res_block.6} parent=79 // pred_fallthru
        _
      // Predicated region
      $region89: #{dilated_res_block.6} parent=79 // pred_check
        %p577 = pneg %p115
      $region90: #{dilated_res_block.6} parent=79 // pred_check_branch
        %579 = sbr.rel (%p577) target = $region92
      $region91: #{dilated_res_block.6} parent=79 // pred_region
        %s580 = smul.u32 16, %s32
        %p581 = scmp.lt.s32.totalorder %s33, 1
        %s582 = scalar_select %p581, %s33, 1
        %p583 = scmp.lt.s32.totalorder %s580, 15
        %s584 = scalar_select %p583, %s580, 15
        %s585 = smul.addr %s582, 16
        %s586 = sadd.s32 %s584, %s585
        %s587 = smul.addr %s586, 4
        %s588 = scalar_lea.vmem %s2, %s587
        %s589 = smul.u32 16, %s32
      $region92: #{dilated_res_block.6} parent=79 // pred_fallthru
        _
    $region80: #{dilated_res_block.6} parent=5 // pred_fallthru
      _
    %p590 = scmp.le.s32.totalorder 1, %s25
    %p591 = scmp.lt.s32.totalorder %s25, 3
    %p592 = pnand %p590, %p591
    %p593 = pneg %p592
    // Predicated region
    $region93: #{dilated_res_block.6} parent=5 // pred_check
      _
    $region94: #{dilated_res_block.6} parent=5 // pred_check_branch
      %595 = sbr.rel (%p592) target = $region96
    $region95: #{dilated_res_block.6} parent=5 // pred_region
      %s596 = ssub.s32 %s25, 1
      %s597 = smul.u32 16, %s34
      %p598 = scmp.lt.s32.totalorder %s35, 1
      %s599 = scalar_select %p598, %s35, 1
      %p600 = scmp.lt.s32.totalorder %s597, 15
      %s601 = scalar_select %p600, %s597, 15
      %s602 = smul.addr %s599, 16
      %s603 = sadd.s32 %s601, %s602
      %s604 = scalar_lea.vmem %s0, %s603
      %p605 = pneg %p65
      %p606 = pneg %p62
      %s607 = smul.u32 16, %s34
      %p608 = scmp.lt.s32.totalorder %s35, 1
      %s609 = scalar_select %p608, %s35, 1
      %p610 = scmp.lt.s32.totalorder %s607, 15
      %s611 = scalar_select %p610, %s607, 15
      %s612 = smul.addr %s609, 16
      %s613 = sadd.s32 %s611, %s612
      %s614 = smul.addr %s613, 8
      %s615 = scalar_lea.vmem %s1, %s614
      %p616 = pneg %p93
      %p617 = pneg %p90
      %s618 = smul.u32 16, %s34
      %p619 = scmp.lt.s32.totalorder %s35, 1
      %s620 = scalar_select %p619, %s35, 1
      %p621 = scmp.lt.s32.totalorder %s618, 15
      %s622 = scalar_select %p621, %s618, 15
      %s623 = smul.addr %s620, 16
      %s624 = sadd.s32 %s622, %s623
      %s625 = smul.addr %s624, 4
      %s626 = scalar_lea.vmem %s2, %s625
      %p627 = pneg %p121
      %p628 = pneg %p118
      %p629 = pneg %p142
      %p630 = pneg %p139
      %p631 = pneg %p163
      %p632 = pneg %p160
      %p633 = pneg %p184
      %p634 = pneg %p181
      %p635 = pneg %p205
      %p636 = pneg %p202
      %p637 = pneg %p226
      %p638 = pneg %p223
      %p639 = pneg %p247
      %p640 = pneg %p244
      %p641 = pneg %p268
      %p642 = pneg %p265
      %p643 = pneg %p289
      %p644 = pneg %p286
      %p645 = pneg %p310
      %p646 = pneg %p307
      %p647 = pneg %p331
      %p648 = pneg %p328
      %p649 = pneg %p352
      %p650 = pneg %p349
      %p651 = pneg %p373
      %p652 = pneg %p370
      %p653 = pneg %p394
      %p654 = pneg %p391
      %p655 = pneg %p415
      %p656 = pneg %p412
      %p657 = pneg %p436
      %p658 = pneg %p433
      %p659 = pneg %p457
      %p660 = pneg %p454
      %p661 = pneg %p485
      %p662 = pneg %p482
      %p663 = scmp.lt.s32.totalorder %s35, 1
      %s664 = scalar_select %p663, %s35, 1
      %p665 = scmp.lt.s32.totalorder %s34, 0
      %s666 = scalar_select %p665, %s34, 0
      %s667 = smul.addr %s664, 2
      %s668 = sadd.s32 %s666, %s667
      %s669 = smul.addr %s668, 8
      %s670 = scalar_lea.vmem %s19, %s669
      %s671 = smul.u32 16, %s34
      %p672 = scmp.lt.s32.totalorder %s35, 1
      %s673 = scalar_select %p672, %s35, 1
      %p674 = scmp.lt.s32.totalorder %s671, 15
      %s675 = scalar_select %p674, %s671, 15
      %s676 = smul.addr %s673, 16
      %s677 = sadd.s32 %s675, %s676
      %s678 = scalar_lea.vmem %s0, %s677
      %s679 = smul.u32 16, %s34
      %s680 = smul.u32 16, %s34
      %p681 = scmp.lt.s32.totalorder %s35, 1
      %s682 = scalar_select %p681, %s35, 1
      %p683 = scmp.lt.s32.totalorder %s680, 15
      %s684 = scalar_select %p683, %s680, 15
      %s685 = smul.addr %s682, 16
      %s686 = sadd.s32 %s684, %s685
      %s687 = smul.addr %s686, 8
      %s688 = scalar_lea.vmem %s1, %s687
      %s689 = smul.u32 16, %s34
      %s690 = smul.u32 16, %s34
      %p691 = scmp.lt.s32.totalorder %s35, 1
      %s692 = scalar_select %p691, %s35, 1
      %p693 = scmp.lt.s32.totalorder %s690, 15
      %s694 = scalar_select %p693, %s690, 15
      %s695 = smul.addr %s692, 16
      %s696 = sadd.s32 %s694, %s695
      %s697 = smul.addr %s696, 4
      %s698 = scalar_lea.vmem %s2, %s697
      %s699 = smul.u32 16, %s34
      %p700 = scmp.lt.s32.totalorder %s35, 1
      %s701 = scalar_select %p700, %s35, 1
      %p702 = scmp.lt.s32.totalorder %s34, 0
      %s703 = scalar_select %p702, %s34, 0
      %s704 = smul.addr %s701, 2
      %s705 = sadd.s32 %s703, %s704
      %s706 = smul.addr %s705, 8
      %s707 = scalar_lea.vmem %s19, %s706
      %v708 = vld [vmem:[%s688] sm:$0xff]
      %v709 = vld [vmem:[%s688 + $0x8] sm:$0xff]
      %v710 = vld [vmem:[%s688 + $0x10] sm:$0xff]
      %v711 = vld [vmem:[%s688 + $0x18] sm:$0xff]
      %v712 = vld [vmem:[%s688 + $0x20] sm:$0xff]
      %v713 = vld [vmem:[%s688 + $0x28] sm:$0xff]
      %v714 = vld [vmem:[%s688 + $0x30] sm:$0xff]
      %v715 = vld [vmem:[%s688 + $0x38] sm:$0xff]
      %v716 = vld [vmem:[%s688 + $0x40] sm:$0xff]
      %v717 = vld [vmem:[%s688 + $0x48] sm:$0xff]
      %v718 = vld [vmem:[%s688 + $0x50] sm:$0xff]
      %v719 = vld [vmem:[%s688 + $0x58] sm:$0xff]
      %v720 = vld [vmem:[%s688 + $0x60] sm:$0xff]
      %v721 = vld [vmem:[%s688 + $0x68] sm:$0xff]
      %v722 = vld [vmem:[%s688 + $0x70] sm:$0xff]
      %v723 = vld [vmem:[%s688 + $0x78] sm:$0xff]
      %v724 = vld [vmem:[%s678] sm:$0x1]
      %v725 = vld [vmem:[%s678 + $0x1] sm:$0x1]
      %v726 = vld [vmem:[%s678 + $0x2] sm:$0x1]
      %v727 = vld [vmem:[%s678 + $0x3] sm:$0x1]
      %v728 = vld [vmem:[%s678 + $0x4] sm:$0x1]
      %v729 = vld [vmem:[%s678 + $0x5] sm:$0x1]
      %v730 = vld [vmem:[%s678 + $0x6] sm:$0x1]
      %v731 = vld [vmem:[%s678 + $0x7] sm:$0x1]
      %v732 = vld [vmem:[%s678 + $0x8] sm:$0x1]
      %v733 = vld [vmem:[%s678 + $0x9] sm:$0x1]
      %v734 = vld [vmem:[%s678 + $0xa] sm:$0x1]
      %v735 = vld [vmem:[%s678 + $0xb] sm:$0x1]
      %v736 = vld [vmem:[%s678 + $0xc] sm:$0x1]
      %v737 = vld [vmem:[%s678 + $0xd] sm:$0x1]
      %v738 = vld [vmem:[%s678 + $0xe] sm:$0x1]
      %v739 = vld [vmem:[%s678 + $0xf] sm:$0x1]
      %v756 = vperm.slane %v724, 0
      %v757 = vperm.slane %v725, 0
      %v758 = vperm.slane %v726, 0
      %v759 = vperm.slane %v727, 0
      %v760 = vperm.slane %v728, 0
      %v761 = vperm.slane %v729, 0
      %v762 = vperm.slane %v730, 0
      %v763 = vperm.slane %v731, 0
      %v764 = vperm.slane %v732, 0
      %v765 = vperm.slane %v733, 0
      %v766 = vperm.slane %v734, 0
      %v767 = vperm.slane %v735, 0
      %v768 = vperm.slane %v736, 0
      %v769 = vperm.slane %v737, 0
      %v770 = vperm.slane %v738, 0
      %v771 = vperm.slane %v739, 0
      %v788 = vsub.f32 %v756, %v708
      %v789 = vsub.f32 %v757, %v709
      %v790 = vsub.f32 %v758, %v710
      %v791 = vsub.f32 %v759, %v711
      %v792 = vsub.f32 %v760, %v712
      %v793 = vsub.f32 %v761, %v713
      %v794 = vsub.f32 %v762, %v714
      %v795 = vsub.f32 %v763, %v715
      %v796 = vsub.f32 %v764, %v716
      %v797 = vsub.f32 %v765, %v717
      %v798 = vsub.f32 %v766, %v718
      %v799 = vsub.f32 %v767, %v719
      %v800 = vsub.f32 %v768, %v720
      %v801 = vsub.f32 %v769, %v721
      %v802 = vsub.f32 %v770, %v722
      %v803 = vsub.f32 %v771, %v723
      %v804 = vmul.f32 %v788, %v788
      %v805 = vmul.f32 %v789, %v789
      %v806 = vmul.f32 %v790, %v790
      %v807 = vmul.f32 %v791, %v791
      %v808 = vmul.f32 %v792, %v792
      %v809 = vmul.f32 %v793, %v793
      %v810 = vmul.f32 %v794, %v794
      %v811 = vmul.f32 %v795, %v795
      %v812 = vmul.f32 %v796, %v796
      %v813 = vmul.f32 %v797, %v797
      %v814 = vmul.f32 %v798, %v798
      %v815 = vmul.f32 %v799, %v799
      %v816 = vmul.f32 %v800, %v800
      %v817 = vmul.f32 %v801, %v801
      %v818 = vmul.f32 %v802, %v802
      %v819 = vmul.f32 %v803, %v803
      %vm820 = vcmask 23552
      %v821 = vsel %vm820, %v804, 0.0
      %822 = vadd.xlane.f32.xlu0 %v821
      %v823 = vpop.xlane.xlu0 %822
      %v824 = vsel %vm820, %v805, 0.0
      %825 = vadd.xlane.f32.xlu0 %v824
      %v826 = vpop.xlane.xlu0 %825
      %v827 = vsel %vm820, %v806, 0.0
      %828 = vadd.xlane.f32.xlu0 %v827
      %v829 = vpop.xlane.xlu0 %828
      %v830 = vsel %vm820, %v807, 0.0
      %831 = vadd.xlane.f32.xlu0 %v830
      %v832 = vpop.xlane.xlu0 %831
      %v833 = vsel %vm820, %v808, 0.0
      %834 = vadd.xlane.f32.xlu0 %v833
      %v835 = vpop.xlane.xlu0 %834
      %v836 = vsel %vm820, %v809, 0.0
      %837 = vadd.xlane.f32.xlu0 %v836
      %v838 = vpop.xlane.xlu0 %837
      %v839 = vsel %vm820, %v810, 0.0
      %840 = vadd.xlane.f32.xlu0 %v839
      %v841 = vpop.xlane.xlu0 %840
      %v842 = vsel %vm820, %v811, 0.0
      %843 = vadd.xlane.f32.xlu0 %v842
      %v844 = vpop.xlane.xlu0 %843
      %v845 = vsel %vm820, %v812, 0.0
      %846 = vadd.xlane.f32.xlu0 %v845
      %v847 = vpop.xlane.xlu0 %846
      %v848 = vsel %vm820, %v813, 0.0
      %849 = vadd.xlane.f32.xlu0 %v848
      %v850 = vpop.xlane.xlu0 %849
      %v851 = vsel %vm820, %v814, 0.0
      %852 = vadd.xlane.f32.xlu0 %v851
      %v853 = vpop.xlane.xlu0 %852
      %v854 = vsel %vm820, %v815, 0.0
      %855 = vadd.xlane.f32.xlu0 %v854
      %v856 = vpop.xlane.xlu0 %855
      %v857 = vsel %vm820, %v816, 0.0
      %858 = vadd.xlane.f32.xlu0 %v857
      %v859 = vpop.xlane.xlu0 %858
      %v860 = vsel %vm820, %v817, 0.0
      %861 = vadd.xlane.f32.xlu0 %v860
      %v862 = vpop.xlane.xlu0 %861
      %v863 = vsel %vm820, %v818, 0.0
      %864 = vadd.xlane.f32.xlu0 %v863
      %v865 = vpop.xlane.xlu0 %864
      %v866 = vsel %vm820, %v819, 0.0
      %867 = vadd.xlane.f32.xlu0 %v866
      %v868 = vpop.xlane.xlu0 %867
      %v869 = vrsqrt.pop %v823
      %v870 = vmul.f32 %v869, %v823
      %v871 = vmul.f32 %v870, %v869
      %v872 = vmul.f32 0.5, %v871
      %v873 = vsub.f32 1.5, %v872
      %v874 = vmul.f32 %v869, %v873
      %v875 = vmul.f32 %v823, %v874
      %vm876 = vcmp.eq.f32.partialorder %v823, inf
      %v877 = vsel %vm876, %v823, %v875
      %vm878 = vcmp.eq.f32.partialorder %v823, 0.0
      %v879 = vand.u32 %v823, 2147483648
      %v880 = vsel %vm878, %v879, %v877
      %v881 = vrsqrt.pop %v826
      %v882 = vmul.f32 %v881, %v826
      %v883 = vmul.f32 %v882, %v881
      %v884 = vmul.f32 0.5, %v883
      %v885 = vsub.f32 1.5, %v884
      %v886 = vmul.f32 %v881, %v885
      %v887 = vmul.f32 %v826, %v886
      %vm888 = vcmp.eq.f32.partialorder %v826, inf
      %v889 = vsel %vm888, %v826, %v887
      %vm890 = vcmp.eq.f32.partialorder %v826, 0.0
      %v891 = vand.u32 %v826, 2147483648
      %v892 = vsel %vm890, %v891, %v889
      %v893 = vrsqrt.pop %v829
      %v894 = vmul.f32 %v893, %v829
      %v895 = vmul.f32 %v894, %v893
      %v896 = vmul.f32 0.5, %v895
      %v897 = vsub.f32 1.5, %v896
      %v898 = vmul.f32 %v893, %v897
      %v899 = vmul.f32 %v829, %v898
      %vm900 = vcmp.eq.f32.partialorder %v829, inf
      %v901 = vsel %vm900, %v829, %v899
      %vm902 = vcmp.eq.f32.partialorder %v829, 0.0
      %v903 = vand.u32 %v829, 2147483648
      %v904 = vsel %vm902, %v903, %v901
      %v905 = vrsqrt.pop %v832
      %v906 = vmul.f32 %v905, %v832
      %v907 = vmul.f32 %v906, %v905
      %v908 = vmul.f32 0.5, %v907
      %v909 = vsub.f32 1.5, %v908
      %v910 = vmul.f32 %v905, %v909
      %v911 = vmul.f32 %v832, %v910
      %vm912 = vcmp.eq.f32.partialorder %v832, inf
      %v913 = vsel %vm912, %v832, %v911
      %vm914 = vcmp.eq.f32.partialorder %v832, 0.0
      %v915 = vand.u32 %v832, 2147483648
      %v916 = vsel %vm914, %v915, %v913
      %v917 = vrsqrt.pop %v835
      %v918 = vmul.f32 %v917, %v835
      %v919 = vmul.f32 %v918, %v917
      %v920 = vmul.f32 0.5, %v919
      %v921 = vsub.f32 1.5, %v920
      %v922 = vmul.f32 %v917, %v921
      %v923 = vmul.f32 %v835, %v922
      %vm924 = vcmp.eq.f32.partialorder %v835, inf
      %v925 = vsel %vm924, %v835, %v923
      %vm926 = vcmp.eq.f32.partialorder %v835, 0.0
      %v927 = vand.u32 %v835, 2147483648
      %v928 = vsel %vm926, %v927, %v925
      %v929 = vrsqrt.pop %v838
      %v930 = vmul.f32 %v929, %v838
      %v931 = vmul.f32 %v930, %v929
      %v932 = vmul.f32 0.5, %v931
      %v933 = vsub.f32 1.5, %v932
      %v934 = vmul.f32 %v929, %v933
      %v935 = vmul.f32 %v838, %v934
      %vm936 = vcmp.eq.f32.partialorder %v838, inf
      %v937 = vsel %vm936, %v838, %v935
      %vm938 = vcmp.eq.f32.partialorder %v838, 0.0
      %v939 = vand.u32 %v838, 2147483648
      %v940 = vsel %vm938, %v939, %v937
      %v941 = vrsqrt.pop %v841
      %v942 = vmul.f32 %v941, %v841
      %v943 = vmul.f32 %v942, %v941
      %v944 = vmul.f32 0.5, %v943
      %v945 = vsub.f32 1.5, %v944
      %v946 = vmul.f32 %v941, %v945
      %v947 = vmul.f32 %v841, %v946
      %vm948 = vcmp.eq.f32.partialorder %v841, inf
      %v949 = vsel %vm948, %v841, %v947
      %vm950 = vcmp.eq.f32.partialorder %v841, 0.0
      %v951 = vand.u32 %v841, 2147483648
      %v952 = vsel %vm950, %v951, %v949
      %v953 = vrsqrt.pop %v844
      %v954 = vmul.f32 %v953, %v844
      %v955 = vmul.f32 %v954, %v953
      %v956 = vmul.f32 0.5, %v955
      %v957 = vsub.f32 1.5, %v956
      %v958 = vmul.f32 %v953, %v957
      %v959 = vmul.f32 %v844, %v958
      %vm960 = vcmp.eq.f32.partialorder %v844, inf
      %v961 = vsel %vm960, %v844, %v959
      %vm962 = vcmp.eq.f32.partialorder %v844, 0.0
      %v963 = vand.u32 %v844, 2147483648
      %v964 = vsel %vm962, %v963, %v961
      %v965 = vrsqrt.pop %v847
      %v966 = vmul.f32 %v965, %v847
      %v967 = vmul.f32 %v966, %v965
      %v968 = vmul.f32 0.5, %v967
      %v969 = vsub.f32 1.5, %v968
      %v970 = vmul.f32 %v965, %v969
      %v971 = vmul.f32 %v847, %v970
      %vm972 = vcmp.eq.f32.partialorder %v847, inf
      %v973 = vsel %vm972, %v847, %v971
      %vm974 = vcmp.eq.f32.partialorder %v847, 0.0
      %v975 = vand.u32 %v847, 2147483648
      %v976 = vsel %vm974, %v975, %v973
      %v977 = vrsqrt.pop %v850
      %v978 = vmul.f32 %v977, %v850
      %v979 = vmul.f32 %v978, %v977
      %v980 = vmul.f32 0.5, %v979
      %v981 = vsub.f32 1.5, %v980
      %v982 = vmul.f32 %v977, %v981
      %v983 = vmul.f32 %v850, %v982
      %vm984 = vcmp.eq.f32.partialorder %v850, inf
      %v985 = vsel %vm984, %v850, %v983
      %vm986 = vcmp.eq.f32.partialorder %v850, 0.0
      %v987 = vand.u32 %v850, 2147483648
      %v988 = vsel %vm986, %v987, %v985
      %v989 = vrsqrt.pop %v853
      %v990 = vmul.f32 %v989, %v853
      %v991 = vmul.f32 %v990, %v989
      %v992 = vmul.f32 0.5, %v991
      %v993 = vsub.f32 1.5, %v992
      %v994 = vmul.f32 %v989, %v993
      %v995 = vmul.f32 %v853, %v994
      %vm996 = vcmp.eq.f32.partialorder %v853, inf
      %v997 = vsel %vm996, %v853, %v995
      %vm998 = vcmp.eq.f32.partialorder %v853, 0.0
      %v999 = vand.u32 %v853, 2147483648
      %v1000 = vsel %vm998, %v999, %v997
      %v1001 = vrsqrt.pop %v856
      %v1002 = vmul.f32 %v1001, %v856
      %v1003 = vmul.f32 %v1002, %v1001
      %v1004 = vmul.f32 0.5, %v1003
      %v1005 = vsub.f32 1.5, %v1004
      %v1006 = vmul.f32 %v1001, %v1005
      %v1007 = vmul.f32 %v856, %v1006
      %vm1008 = vcmp.eq.f32.partialorder %v856, inf
      %v1009 = vsel %vm1008, %v856, %v1007
      %vm1010 = vcmp.eq.f32.partialorder %v856, 0.0
      %v1011 = vand.u32 %v856, 2147483648
      %v1012 = vsel %vm1010, %v1011, %v1009
      %v1013 = vrsqrt.pop %v859
      %v1014 = vmul.f32 %v1013, %v859
      %v1015 = vmul.f32 %v1014, %v1013
      %v1016 = vmul.f32 0.5, %v1015
      %v1017 = vsub.f32 1.5, %v1016
      %v1018 = vmul.f32 %v1013, %v1017
      %v1019 = vmul.f32 %v859, %v1018
      %vm1020 = vcmp.eq.f32.partialorder %v859, inf
      %v1021 = vsel %vm1020, %v859, %v1019
      %vm1022 = vcmp.eq.f32.partialorder %v859, 0.0
      %v1023 = vand.u32 %v859, 2147483648
      %v1024 = vsel %vm1022, %v1023, %v1021
      %v1025 = vrsqrt.pop %v862
      %v1026 = vmul.f32 %v1025, %v862
      %v1027 = vmul.f32 %v1026, %v1025
      %v1028 = vmul.f32 0.5, %v1027
      %v1029 = vsub.f32 1.5, %v1028
      %v1030 = vmul.f32 %v1025, %v1029
      %v1031 = vmul.f32 %v862, %v1030
      %vm1032 = vcmp.eq.f32.partialorder %v862, inf
      %v1033 = vsel %vm1032, %v862, %v1031
      %vm1034 = vcmp.eq.f32.partialorder %v862, 0.0
      %v1035 = vand.u32 %v862, 2147483648
      %v1036 = vsel %vm1034, %v1035, %v1033
      %v1037 = vrsqrt.pop %v865
      %v1038 = vmul.f32 %v1037, %v865
      %v1039 = vmul.f32 %v1038, %v1037
      %v1040 = vmul.f32 0.5, %v1039
      %v1041 = vsub.f32 1.5, %v1040
      %v1042 = vmul.f32 %v1037, %v1041
      %v1043 = vmul.f32 %v865, %v1042
      %vm1044 = vcmp.eq.f32.partialorder %v865, inf
      %v1045 = vsel %vm1044, %v865, %v1043
      %vm1046 = vcmp.eq.f32.partialorder %v865, 0.0
      %v1047 = vand.u32 %v865, 2147483648
      %v1048 = vsel %vm1046, %v1047, %v1045
      %v1049 = vrsqrt.pop %v868
      %v1050 = vmul.f32 %v1049, %v868
      %v1051 = vmul.f32 %v1050, %v1049
      %v1052 = vmul.f32 0.5, %v1051
      %v1053 = vsub.f32 1.5, %v1052
      %v1054 = vmul.f32 %v1049, %v1053
      %v1055 = vmul.f32 %v868, %v1054
      %vm1056 = vcmp.eq.f32.partialorder %v868, inf
      %v1057 = vsel %vm1056, %v868, %v1055
      %vm1058 = vcmp.eq.f32.partialorder %v868, 0.0
      %v1059 = vand.u32 %v868, 2147483648
      %v1060 = vsel %vm1058, %v1059, %v1057
      %v1061 = vld [vmem:[%s4] sm:$0x7]
      %1062 = vst [vmem:[#allocation1] ss:$9 sm:$0xff] %v724
      %s1063 = scalar_lea.vmem [#allocation1], 1
      %1064 = vst [vmem:[%s1063] ss:$9 sm:$0xff] %v725
      %s1065 = scalar_lea.vmem [#allocation1], 2
      %1066 = vst [vmem:[%s1065] ss:$9 sm:$0xff] %v726
      %s1067 = scalar_lea.vmem [#allocation1], 3
      %1068 = vst [vmem:[%s1067] ss:$9 sm:$0xff] %v727
      %s1069 = scalar_lea.vmem [#allocation1], 4
      %1070 = vst [vmem:[%s1069] ss:$9 sm:$0xff] %v728
      %s1071 = scalar_lea.vmem [#allocation1], 5
      %1072 = vst [vmem:[%s1071] ss:$9 sm:$0xff] %v729
      %s1073 = scalar_lea.vmem [#allocation1], 6
      %1074 = vst [vmem:[%s1073] ss:$9 sm:$0xff] %v730
      %s1075 = scalar_lea.vmem [#allocation1], 7
      %1076 = vst [vmem:[%s1075] ss:$9 sm:$0xff] %v731
      %v1077 = vld [vmem:[#allocation1] sm:$0xff]
      %1078 = vst [vmem:[#allocation1] ss:$9 sm:$0xff] %v732
      %1079 = vst [vmem:[%s1063] ss:$9 sm:$0xff] %v733
      %1080 = vst [vmem:[%s1065] ss:$9 sm:$0xff] %v734
      %1081 = vst [vmem:[%s1067] ss:$9 sm:$0xff] %v735
      %1082 = vst [vmem:[%s1069] ss:$9 sm:$0xff] %v736
      %1083 = vst [vmem:[%s1071] ss:$9 sm:$0xff] %v737
      %1084 = vst [vmem:[%s1073] ss:$9 sm:$0xff] %v738
      %1085 = vst [vmem:[%s1075] ss:$9 sm:$0xff] %v739
      %v1086 = vld [vmem:[#allocation1] sm:$0xff]
      %v1087 = vsel %vm820, %v1077, 0
      %v1089 = vsel %vm820, %v1086, 0
      %vm1091 = vcmask 1042432
      %v1093 = vsel %vm1091, %v1061, 0
      %1095 = vmatpush.msra.mxu0 0.0
      %1096 = vmatpush.msra.mxu0 0.0
      %1097 = vmatpush.msra.mxu0 0.0
      %1098 = vmatpush.msra.mxu0 0.0
      %1099 = vmatpush.msra.mxu0 0.0
      %1100 = vmatpush.msra.mxu0 0.0
      %1101 = vmatpush.msra.mxu0 0.0
      %1102 = vmatpush.msra.mxu0 0.0
      %1103 = vmatpush.msra.mxu0 0.0
      %1104 = vmatpush.msra.mxu0 0.0
      %1105 = vmatpush.msra.mxu0 0.0
      %1106 = vmatpush.msra.mxu0 0.0
      %1107 = vmatpush.msra.mxu0 0.0
      %1108 = vmatpush.msra.mxu0 0.0
      %1109 = vmatpush.msra.mxu0 0.0
      %1110 = vmatpush.msra.mxu0 %v1093
      %1111 = vmatmul.f32.gmra.mxu0 %v1087
      %v1112 = vpop.f32.mrf.mxu0
      %v1113 = vadd.f32 0.0, %v1112
      %1114 = vmatmul.f32.gmra.mxu0 %v1089
      %v1115 = vpop.f32.mrf.mxu0
      %v1116 = vadd.f32 0.0, %v1115
      %1117 = vdwg.mxu0
      %v1118 = vld [vmem:[%s5] sm:$0x7]
      %v1120 = vsel %vm820, %v708, 0
      %v1123 = vsel %vm820, %v709, 0
      %v1126 = vsel %vm820, %v710, 0
      %v1129 = vsel %vm820, %v711, 0
      %v1132 = vsel %vm820, %v712, 0
      %v1135 = vsel %vm820, %v713, 0
      %v1138 = vsel %vm820, %v714, 0
      %v1141 = vsel %vm820, %v715, 0
      %v1144 = vsel %vm820, %v716, 0
      %v1147 = vsel %vm820, %v717, 0
      %v1150 = vsel %vm820, %v718, 0
      %v1153 = vsel %vm820, %v719, 0
      %v1156 = vsel %vm820, %v720, 0
      %v1159 = vsel %vm820, %v721, 0
      %v1162 = vsel %vm820, %v722, 0
      %v1165 = vsel %vm820, %v723, 0
      %v1168 = vsel %vm1091, %v1118, 0
      %1170 = vmatpush.msra.mxu0 0.0
      %1171 = vmatpush.msra.mxu0 0.0
      %1172 = vmatpush.msra.mxu0 0.0
      %1173 = vmatpush.msra.mxu0 0.0
      %1174 = vmatpush.msra.mxu0 0.0
      %1175 = vmatpush.msra.mxu0 0.0
      %1176 = vmatpush.msra.mxu0 0.0
      %1177 = vmatpush.msra.mxu0 0.0
      %1178 = vmatpush.msra.mxu0 0.0
      %1179 = vmatpush.msra.mxu0 0.0
      %1180 = vmatpush.msra.mxu0 0.0
      %1181 = vmatpush.msra.mxu0 0.0
      %1182 = vmatpush.msra.mxu0 0.0
      %1183 = vmatpush.msra.mxu0 0.0
      %1184 = vmatpush.msra.mxu0 0.0
      %1185 = vmatpush.msra.mxu0 %v1168
      %1186 = vmatmul.f32.gmra.mxu0 %v1120
      %v1187 = vpop.f32.mrf.mxu0
      %v1188 = vadd.f32 0.0, %v1187
      %1189 = vmatmul.f32.gmra.mxu0 %v1123
      %v1190 = vpop.f32.mrf.mxu0
      %v1191 = vadd.f32 0.0, %v1190
      %1192 = vmatmul.f32.gmra.mxu0 %v1126
      %v1193 = vpop.f32.mrf.mxu0
      %v1194 = vadd.f32 0.0, %v1193
      %1195 = vmatmul.f32.gmra.mxu0 %v1129
      %v1196 = vpop.f32.mrf.mxu0
      %v1197 = vadd.f32 0.0, %v1196
      %1198 = vmatmul.f32.gmra.mxu0 %v1132
      %v1199 = vpop.f32.mrf.mxu0
      %v1200 = vadd.f32 0.0, %v1199
      %1201 = vmatmul.f32.gmra.mxu0 %v1135
      %v1202 = vpop.f32.mrf.mxu0
      %v1203 = vadd.f32 0.0, %v1202
      %1204 = vmatmul.f32.gmra.mxu0 %v1138
      %v1205 = vpop.f32.mrf.mxu0
      %v1206 = vadd.f32 0.0, %v1205
      %1207 = vmatmul.f32.gmra.mxu0 %v1141
      %v1208 = vpop.f32.mrf.mxu0
      %v1209 = vadd.f32 0.0, %v1208
      %1210 = vmatmul.f32.gmra.mxu0 %v1144
      %v1211 = vpop.f32.mrf.mxu0
      %v1212 = vadd.f32 0.0, %v1211
      %1213 = vmatmul.f32.gmra.mxu0 %v1147
      %v1214 = vpop.f32.mrf.mxu0
      %v1215 = vadd.f32 0.0, %v1214
      %1216 = vmatmul.f32.gmra.mxu0 %v1150
      %v1217 = vpop.f32.mrf.mxu0
      %v1218 = vadd.f32 0.0, %v1217
      %1219 = vmatmul.f32.gmra.mxu0 %v1153
      %v1220 = vpop.f32.mrf.mxu0
      %v1221 = vadd.f32 0.0, %v1220
      %1222 = vmatmul.f32.gmra.mxu0 %v1156
      %v1223 = vpop.f32.mrf.mxu0
      %v1224 = vadd.f32 0.0, %v1223
      %1225 = vmatmul.f32.gmra.mxu0 %v1159
      %v1226 = vpop.f32.mrf.mxu0
      %v1227 = vadd.f32 0.0, %v1226
      %1228 = vmatmul.f32.gmra.mxu0 %v1162
      %v1229 = vpop.f32.mrf.mxu0
      %v1230 = vadd.f32 0.0, %v1229
      %1231 = vmatmul.f32.gmra.mxu0 %v1165
      %v1232 = vpop.f32.mrf.mxu0
      %v1233 = vadd.f32 0.0, %v1232
      %1234 = vdwg.mxu0
      %v1235 = vld [vmem:[%s3] sm:$0x1]
      %v1237 = vperm.slane %v1235, 0
      %v1239 = vmul.f32 %v880, %v1237
      %v1240 = vmul.f32 %v892, %v1237
      %v1241 = vmul.f32 %v904, %v1237
      %v1242 = vmul.f32 %v916, %v1237
      %v1243 = vmul.f32 %v928, %v1237
      %v1244 = vmul.f32 %v940, %v1237
      %v1245 = vmul.f32 %v952, %v1237
      %v1246 = vmul.f32 %v964, %v1237
      %v1247 = vmul.f32 %v976, %v1237
      %v1248 = vmul.f32 %v988, %v1237
      %v1249 = vmul.f32 %v1000, %v1237
      %v1250 = vmul.f32 %v1012, %v1237
      %v1251 = vmul.f32 %v1024, %v1237
      %v1252 = vmul.f32 %v1036, %v1237
      %v1253 = vmul.f32 %v1048, %v1237
      %v1254 = vmul.f32 %v1060, %v1237
      %v1255 = vadd.f32 %v1239, %v1188
      %v1256 = vadd.f32 %v1240, %v1191
      %v1257 = vadd.f32 %v1241, %v1194
      %v1258 = vadd.f32 %v1242, %v1197
      %v1259 = vadd.f32 %v1243, %v1200
      %v1260 = vadd.f32 %v1244, %v1203
      %v1261 = vadd.f32 %v1245, %v1206
      %v1262 = vadd.f32 %v1246, %v1209
      %v1263 = vadd.f32 %v1247, %v1212
      %v1264 = vadd.f32 %v1248, %v1215
      %v1265 = vadd.f32 %v1249, %v1218
      %v1266 = vadd.f32 %v1250, %v1221
      %v1267 = vadd.f32 %v1251, %v1224
      %v1268 = vadd.f32 %v1252, %v1227
      %v1269 = vadd.f32 %v1253, %v1230
      %v1270 = vadd.f32 %v1254, %v1233
      %v1273 = vrot.slane %v1113, 1
      %v1274 = vrot.slane %v1113, 2
      %v1275 = vrot.slane %v1113, 3
      %v1276 = vrot.slane %v1113, 4
      %v1277 = vrot.slane %v1113, 5
      %v1278 = vrot.slane %v1113, 6
      %v1279 = vrot.slane %v1113, 7
      %v1280 = vrot.slane %v1116, 1
      %v1281 = vrot.slane %v1116, 2
      %v1282 = vrot.slane %v1116, 3
      %v1283 = vrot.slane %v1116, 4
      %v1284 = vrot.slane %v1116, 5
      %v1285 = vrot.slane %v1116, 6
      %v1286 = vrot.slane %v1116, 7
      %v1287 = vperm.slane %v1113, 0
      %v1288 = vperm.slane %v1273, 0
      %v1289 = vperm.slane %v1274, 0
      %v1290 = vperm.slane %v1275, 0
      %v1291 = vperm.slane %v1276, 0
      %v1292 = vperm.slane %v1277, 0
      %v1293 = vperm.slane %v1278, 0
      %v1294 = vperm.slane %v1279, 0
      %v1295 = vperm.slane %v1116, 0
      %v1296 = vperm.slane %v1280, 0
      %v1297 = vperm.slane %v1281, 0
      %v1298 = vperm.slane %v1282, 0
      %v1299 = vperm.slane %v1283, 0
      %v1300 = vperm.slane %v1284, 0
      %v1301 = vperm.slane %v1285, 0
      %v1302 = vperm.slane %v1286, 0
      %v1319 = vadd.f32 %v1255, %v1287
      %v1320 = vadd.f32 %v1256, %v1288
      %v1321 = vadd.f32 %v1257, %v1289
      %v1322 = vadd.f32 %v1258, %v1290
      %v1323 = vadd.f32 %v1259, %v1291
      %v1324 = vadd.f32 %v1260, %v1292
      %v1325 = vadd.f32 %v1261, %v1293
      %v1326 = vadd.f32 %v1262, %v1294
      %v1327 = vadd.f32 %v1263, %v1295
      %v1328 = vadd.f32 %v1264, %v1296
      %v1329 = vadd.f32 %v1265, %v1297
      %v1330 = vadd.f32 %v1266, %v1298
      %v1331 = vadd.f32 %v1267, %v1299
      %v1332 = vadd.f32 %v1268, %v1300
      %v1333 = vadd.f32 %v1269, %v1301
      %v1334 = vadd.f32 %v1270, %v1302
      %v1335 = vld [vmem:[%s6] sm:$0x1]
      %v1337 = vperm.slane %v1335, 0
      %v1339 = vmul.f32 %v1319, %v1337
      %v1340 = vmul.f32 %v1320, %v1337
      %v1341 = vmul.f32 %v1321, %v1337
      %v1342 = vmul.f32 %v1322, %v1337
      %v1343 = vmul.f32 %v1323, %v1337
      %v1344 = vmul.f32 %v1324, %v1337
      %v1345 = vmul.f32 %v1325, %v1337
      %v1346 = vmul.f32 %v1326, %v1337
      %v1347 = vmul.f32 %v1327, %v1337
      %v1348 = vmul.f32 %v1328, %v1337
      %v1349 = vmul.f32 %v1329, %v1337
      %v1350 = vmul.f32 %v1330, %v1337
      %v1351 = vmul.f32 %v1331, %v1337
      %v1352 = vmul.f32 %v1332, %v1337
      %v1353 = vmul.f32 %v1333, %v1337
      %v1354 = vmul.f32 %v1334, %v1337
      %v1355 = vld [vmem:[%s7] sm:$0x1]
      %v1357 = vperm.slane %v1355, 0
      %v1359 = vadd.f32 %v1339, %v1357
      %v1360 = vadd.f32 %v1340, %v1357
      %v1361 = vadd.f32 %v1341, %v1357
      %v1362 = vadd.f32 %v1342, %v1357
      %v1363 = vadd.f32 %v1343, %v1357
      %v1364 = vadd.f32 %v1344, %v1357
      %v1365 = vadd.f32 %v1345, %v1357
      %v1366 = vadd.f32 %v1346, %v1357
      %v1367 = vadd.f32 %v1347, %v1357
      %v1368 = vadd.f32 %v1348, %v1357
      %v1369 = vadd.f32 %v1349, %v1357
      %v1370 = vadd.f32 %v1350, %v1357
      %v1371 = vadd.f32 %v1351, %v1357
      %v1372 = vadd.f32 %v1352, %v1357
      %v1373 = vadd.f32 %v1353, %v1357
      %v1374 = vadd.f32 %v1354, %v1357
      %v1375 = vmax.f32 %v1359, 0.0
      %v1376 = vmax.f32 %v1360, 0.0
      %v1377 = vmax.f32 %v1361, 0.0
      %v1378 = vmax.f32 %v1362, 0.0
      %v1379 = vmax.f32 %v1363, 0.0
      %v1380 = vmax.f32 %v1364, 0.0
      %v1381 = vmax.f32 %v1365, 0.0
      %v1382 = vmax.f32 %v1366, 0.0
      %v1383 = vmax.f32 %v1367, 0.0
      %v1384 = vmax.f32 %v1368, 0.0
      %v1385 = vmax.f32 %v1369, 0.0
      %v1386 = vmax.f32 %v1370, 0.0
      %v1387 = vmax.f32 %v1371, 0.0
      %v1388 = vmax.f32 %v1372, 0.0
      %v1389 = vmax.f32 %v1373, 0.0
      %v1390 = vmax.f32 %v1374, 0.0
      %v1391 = vld [vmem:[%s8] sm:$0xff]
      %vm1392 = vcmask 64512
      %v1394 = vsel %vm1392, %v1375, 0
      %v1397 = vsel %vm1392, %v1376, 0
      %v1400 = vsel %vm1392, %v1377, 0
      %v1403 = vsel %vm1392, %v1378, 0
      %v1406 = vsel %vm1392, %v1379, 0
      %v1409 = vsel %vm1392, %v1380, 0
      %v1412 = vsel %vm1392, %v1381, 0
      %v1415 = vsel %vm1392, %v1382, 0
      %v1418 = vsel %vm1392, %v1383, 0
      %v1421 = vsel %vm1392, %v1384, 0
      %v1424 = vsel %vm1392, %v1385, 0
      %v1427 = vsel %vm1392, %v1386, 0
      %v1430 = vsel %vm1392, %v1387, 0
      %v1433 = vsel %vm1392, %v1388, 0
      %v1436 = vsel %vm1392, %v1389, 0
      %v1439 = vsel %vm1392, %v1390, 0
      %1441 = vmatpush.msra.mxu0 0.0
      %1442 = vmatpush.msra.mxu0 0.0
      %1443 = vmatpush.msra.mxu0 0.0
      %1444 = vmatpush.msra.mxu0 0.0
      %1445 = vmatpush.msra.mxu0 0.0
      %1446 = vmatpush.msra.mxu0 0.0
      %1447 = vmatpush.msra.mxu0 0.0
      %1448 = vmatpush.msra.mxu0 0.0
      %1449 = vmatpush.msra.mxu0 0.0
      %1450 = vmatpush.msra.mxu0 0.0
      %1451 = vmatpush.msra.mxu0 0.0
      %1452 = vmatpush.msra.mxu0 0.0
      %1453 = vmatpush.msra.mxu0 0.0
      %1454 = vmatpush.msra.mxu0 0.0
      %1455 = vmatpush.msra.mxu0 0.0
      %1456 = vmatpush.msra.mxu0 %v1391
      %1457 = vmatmul.f32.gmra.mxu0 %v1394
      %v1458 = vpop.f32.mrf.mxu0
      %v1459 = vadd.f32 0.0, %v1458
      %1460 = vmatmul.f32.gmra.mxu0 %v1397
      %v1461 = vpop.f32.mrf.mxu0
      %v1462 = vadd.f32 0.0, %v1461
      %1463 = vmatmul.f32.gmra.mxu0 %v1400
      %v1464 = vpop.f32.mrf.mxu0
      %v1465 = vadd.f32 0.0, %v1464
      %1466 = vmatmul.f32.gmra.mxu0 %v1403
      %v1467 = vpop.f32.mrf.mxu0
      %v1468 = vadd.f32 0.0, %v1467
      %1469 = vmatmul.f32.gmra.mxu0 %v1406
      %v1470 = vpop.f32.mrf.mxu0
      %v1471 = vadd.f32 0.0, %v1470
      %1472 = vmatmul.f32.gmra.mxu0 %v1409
      %v1473 = vpop.f32.mrf.mxu0
      %v1474 = vadd.f32 0.0, %v1473
      %1475 = vmatmul.f32.gmra.mxu0 %v1412
      %v1476 = vpop.f32.mrf.mxu0
      %v1477 = vadd.f32 0.0, %v1476
      %1478 = vmatmul.f32.gmra.mxu0 %v1415
      %v1479 = vpop.f32.mrf.mxu0
      %v1480 = vadd.f32 0.0, %v1479
      %1481 = vmatmul.f32.gmra.mxu0 %v1418
      %v1482 = vpop.f32.mrf.mxu0
      %v1483 = vadd.f32 0.0, %v1482
      %1484 = vmatmul.f32.gmra.mxu0 %v1421
      %v1485 = vpop.f32.mrf.mxu0
      %v1486 = vadd.f32 0.0, %v1485
      %1487 = vmatmul.f32.gmra.mxu0 %v1424
      %v1488 = vpop.f32.mrf.mxu0
      %v1489 = vadd.f32 0.0, %v1488
      %1490 = vmatmul.f32.gmra.mxu0 %v1427
      %v1491 = vpop.f32.mrf.mxu0
      %v1492 = vadd.f32 0.0, %v1491
      %1493 = vmatmul.f32.gmra.mxu0 %v1430
      %v1494 = vpop.f32.mrf.mxu0
      %v1495 = vadd.f32 0.0, %v1494
      %1496 = vmatmul.f32.gmra.mxu0 %v1433
      %v1497 = vpop.f32.mrf.mxu0
      %v1498 = vadd.f32 0.0, %v1497
      %1499 = vmatmul.f32.gmra.mxu0 %v1436
      %v1500 = vpop.f32.mrf.mxu0
      %v1501 = vadd.f32 0.0, %v1500
      %1502 = vmatmul.f32.gmra.mxu0 %v1439
      %v1503 = vpop.f32.mrf.mxu0
      %v1504 = vadd.f32 0.0, %v1503
      %1505 = vdwg.mxu0
      %v1506 = vld [vmem:[%s9] sm:$0x1]
      %v1508 = vperm.slane %v1506, 0
      %v1510 = vmul.f32 %v1459, %v1508
      %v1511 = vmul.f32 %v1462, %v1508
      %v1512 = vmul.f32 %v1465, %v1508
      %v1513 = vmul.f32 %v1468, %v1508
      %v1514 = vmul.f32 %v1471, %v1508
      %v1515 = vmul.f32 %v1474, %v1508
      %v1516 = vmul.f32 %v1477, %v1508
      %v1517 = vmul.f32 %v1480, %v1508
      %v1518 = vmul.f32 %v1483, %v1508
      %v1519 = vmul.f32 %v1486, %v1508
      %v1520 = vmul.f32 %v1489, %v1508
      %v1521 = vmul.f32 %v1492, %v1508
      %v1522 = vmul.f32 %v1495, %v1508
      %v1523 = vmul.f32 %v1498, %v1508
      %v1524 = vmul.f32 %v1501, %v1508
      %v1525 = vmul.f32 %v1504, %v1508
      %v1526 = vld [vmem:[%s10] sm:$0x1]
      %v1528 = vperm.slane %v1526, 0
      %v1530 = vadd.f32 %v1510, %v1528
      %v1531 = vadd.f32 %v1511, %v1528
      %v1532 = vadd.f32 %v1512, %v1528
      %v1533 = vadd.f32 %v1513, %v1528
      %v1534 = vadd.f32 %v1514, %v1528
      %v1535 = vadd.f32 %v1515, %v1528
      %v1536 = vadd.f32 %v1516, %v1528
      %v1537 = vadd.f32 %v1517, %v1528
      %v1538 = vadd.f32 %v1518, %v1528
      %v1539 = vadd.f32 %v1519, %v1528
      %v1540 = vadd.f32 %v1520, %v1528
      %v1541 = vadd.f32 %v1521, %v1528
      %v1542 = vadd.f32 %v1522, %v1528
      %v1543 = vadd.f32 %v1523, %v1528
      %v1544 = vadd.f32 %v1524, %v1528
      %v1545 = vadd.f32 %v1525, %v1528
      %v1546 = vmax.f32 %v1530, 0.0
      %v1547 = vmax.f32 %v1531, 0.0
      %v1548 = vmax.f32 %v1532, 0.0
      %v1549 = vmax.f32 %v1533, 0.0
      %v1550 = vmax.f32 %v1534, 0.0
      %v1551 = vmax.f32 %v1535, 0.0
      %v1552 = vmax.f32 %v1536, 0.0
      %v1553 = vmax.f32 %v1537, 0.0
      %v1554 = vmax.f32 %v1538, 0.0
      %v1555 = vmax.f32 %v1539, 0.0
      %v1556 = vmax.f32 %v1540, 0.0
      %v1557 = vmax.f32 %v1541, 0.0
      %v1558 = vmax.f32 %v1542, 0.0
      %v1559 = vmax.f32 %v1543, 0.0
      %v1560 = vmax.f32 %v1544, 0.0
      %v1561 = vmax.f32 %v1545, 0.0
      %v1562 = vld [vmem:[%s698] sm:$0xf]
      %v1563 = vld [vmem:[%s698 + $0x4] sm:$0xf]
      %v1564 = vld [vmem:[%s698 + $0x8] sm:$0xf]
      %v1565 = vld [vmem:[%s698 + $0xc] sm:$0xf]
      %v1566 = vld [vmem:[%s698 + $0x10] sm:$0xf]
      %v1567 = vld [vmem:[%s698 + $0x14] sm:$0xf]
      %v1568 = vld [vmem:[%s698 + $0x18] sm:$0xf]
      %v1569 = vld [vmem:[%s698 + $0x1c] sm:$0xf]
      %v1570 = vld [vmem:[%s698 + $0x20] sm:$0xf]
      %v1571 = vld [vmem:[%s698 + $0x24] sm:$0xf]
      %v1572 = vld [vmem:[%s698 + $0x28] sm:$0xf]
      %v1573 = vld [vmem:[%s698 + $0x2c] sm:$0xf]
      %v1574 = vld [vmem:[%s698 + $0x30] sm:$0xf]
      %v1575 = vld [vmem:[%s698 + $0x34] sm:$0xf]
      %v1576 = vld [vmem:[%s698 + $0x38] sm:$0xf]
      %v1577 = vld [vmem:[%s698 + $0x3c] sm:$0xf]
      %v1578 = vunpack.c.l.bf16 %v1562
      %v1579 = vunpack.c.l.bf16 %v1563
      %v1580 = vunpack.c.l.bf16 %v1564
      %v1581 = vunpack.c.l.bf16 %v1565
      %v1582 = vunpack.c.l.bf16 %v1566
      %v1583 = vunpack.c.l.bf16 %v1567
      %v1584 = vunpack.c.l.bf16 %v1568
      %v1585 = vunpack.c.l.bf16 %v1569
      %v1586 = vunpack.c.l.bf16 %v1570
      %v1587 = vunpack.c.l.bf16 %v1571
      %v1588 = vunpack.c.l.bf16 %v1572
      %v1589 = vunpack.c.l.bf16 %v1573
      %v1590 = vunpack.c.l.bf16 %v1574
      %v1591 = vunpack.c.l.bf16 %v1575
      %v1592 = vunpack.c.l.bf16 %v1576
      %v1593 = vunpack.c.l.bf16 %v1577
      %v1594 = vld [vmem:[%s11] sm:$0xff]
      %v1595 = vld [vmem:[%s13] sm:$0xff]
      %v1597 = vsel %vm1392, %v1546, 0
      %v1600 = vsel %vm1392, %v1547, 0
      %v1603 = vsel %vm1392, %v1548, 0
      %v1606 = vsel %vm1392, %v1549, 0
      %v1609 = vsel %vm1392, %v1550, 0
      %v1612 = vsel %vm1392, %v1551, 0
      %v1615 = vsel %vm1392, %v1552, 0
      %v1618 = vsel %vm1392, %v1553, 0
      %v1621 = vsel %vm1392, %v1554, 0
      %v1624 = vsel %vm1392, %v1555, 0
      %v1627 = vsel %vm1392, %v1556, 0
      %v1630 = vsel %vm1392, %v1557, 0
      %v1633 = vsel %vm1392, %v1558, 0
      %v1636 = vsel %vm1392, %v1559, 0
      %v1639 = vsel %vm1392, %v1560, 0
      %v1642 = vsel %vm1392, %v1561, 0
      %1644 = vmatpush.msra.mxu0 0.0
      %1645 = vmatpush.msra.mxu0 0.0
      %1646 = vmatpush.msra.mxu0 0.0
      %1647 = vmatpush.msra.mxu0 0.0
      %1648 = vmatpush.msra.mxu0 0.0
      %1649 = vmatpush.msra.mxu0 0.0
      %1650 = vmatpush.msra.mxu0 0.0
      %1651 = vmatpush.msra.mxu0 0.0
      %1652 = vmatpush.msra.mxu0 0.0
      %1653 = vmatpush.msra.mxu0 0.0
      %1654 = vmatpush.msra.mxu0 0.0
      %1655 = vmatpush.msra.mxu0 0.0
      %1656 = vmatpush.msra.mxu0 0.0
      %1657 = vmatpush.msra.mxu0 0.0
      %1658 = vmatpush.msra.mxu0 0.0
      %1659 = vmatpush.msra.mxu0 %v1595
      %1660 = vmatmul.f32.gmra.mxu0 %v1597
      %v1661 = vpop.f32.mrf.mxu0
      %v1662 = vadd.f32 0.0, %v1661
      %1663 = vmatmul.f32.gmra.mxu0 %v1600
      %v1664 = vpop.f32.mrf.mxu0
      %v1665 = vadd.f32 0.0, %v1664
      %1666 = vmatmul.f32.gmra.mxu0 %v1603
      %v1667 = vpop.f32.mrf.mxu0
      %v1668 = vadd.f32 0.0, %v1667
      %1669 = vmatmul.f32.gmra.mxu0 %v1606
      %v1670 = vpop.f32.mrf.mxu0
      %v1671 = vadd.f32 0.0, %v1670
      %1672 = vmatmul.f32.gmra.mxu0 %v1609
      %v1673 = vpop.f32.mrf.mxu0
      %v1674 = vadd.f32 0.0, %v1673
      %1675 = vmatmul.f32.gmra.mxu0 %v1612
      %v1676 = vpop.f32.mrf.mxu0
      %v1677 = vadd.f32 0.0, %v1676
      %1678 = vmatmul.f32.gmra.mxu0 %v1615
      %v1679 = vpop.f32.mrf.mxu0
      %v1680 = vadd.f32 0.0, %v1679
      %1681 = vmatmul.f32.gmra.mxu0 %v1618
      %v1682 = vpop.f32.mrf.mxu0
      %v1683 = vadd.f32 0.0, %v1682
      %1684 = vmatmul.f32.gmra.mxu0 %v1621
      %v1685 = vpop.f32.mrf.mxu0
      %v1686 = vadd.f32 0.0, %v1685
      %1687 = vmatmul.f32.gmra.mxu0 %v1624
      %v1688 = vpop.f32.mrf.mxu0
      %v1689 = vadd.f32 0.0, %v1688
      %1690 = vmatmul.f32.gmra.mxu0 %v1627
      %v1691 = vpop.f32.mrf.mxu0
      %v1692 = vadd.f32 0.0, %v1691
      %1693 = vmatmul.f32.gmra.mxu0 %v1630
      %v1694 = vpop.f32.mrf.mxu0
      %v1695 = vadd.f32 0.0, %v1694
      %1696 = vmatmul.f32.gmra.mxu0 %v1633
      %v1697 = vpop.f32.mrf.mxu0
      %v1698 = vadd.f32 0.0, %v1697
      %1699 = vmatmul.f32.gmra.mxu0 %v1636
      %v1700 = vpop.f32.mrf.mxu0
      %v1701 = vadd.f32 0.0, %v1700
      %1702 = vmatmul.f32.gmra.mxu0 %v1639
      %v1703 = vpop.f32.mrf.mxu0
      %v1704 = vadd.f32 0.0, %v1703
      %1705 = vmatmul.f32.gmra.mxu0 %v1642
      %v1706 = vpop.f32.mrf.mxu0
      %v1707 = vadd.f32 0.0, %v1706
      %1708 = vdwg.mxu0
      %v1710 = vsel %vm1392, %v1578, 0
      %v1713 = vsel %vm1392, %v1579, 0
      %v1716 = vsel %vm1392, %v1580, 0
      %v1719 = vsel %vm1392, %v1581, 0
      %v1722 = vsel %vm1392, %v1582, 0
      %v1725 = vsel %vm1392, %v1583, 0
      %v1728 = vsel %vm1392, %v1584, 0
      %v1731 = vsel %vm1392, %v1585, 0
      %v1734 = vsel %vm1392, %v1586, 0
      %v1737 = vsel %vm1392, %v1587, 0
      %v1740 = vsel %vm1392, %v1588, 0
      %v1743 = vsel %vm1392, %v1589, 0
      %v1746 = vsel %vm1392, %v1590, 0
      %v1749 = vsel %vm1392, %v1591, 0
      %v1752 = vsel %vm1392, %v1592, 0
      %v1755 = vsel %vm1392, %v1593, 0
      %1757 = vmatpush.msra.mxu0 0.0
      %1758 = vmatpush.msra.mxu0 0.0
      %1759 = vmatpush.msra.mxu0 0.0
      %1760 = vmatpush.msra.mxu0 0.0
      %1761 = vmatpush.msra.mxu0 0.0
      %1762 = vmatpush.msra.mxu0 0.0
      %1763 = vmatpush.msra.mxu0 0.0
      %1764 = vmatpush.msra.mxu0 0.0
      %1765 = vmatpush.msra.mxu0 0.0
      %1766 = vmatpush.msra.mxu0 0.0
      %1767 = vmatpush.msra.mxu0 0.0
      %1768 = vmatpush.msra.mxu0 0.0
      %1769 = vmatpush.msra.mxu0 0.0
      %1770 = vmatpush.msra.mxu0 0.0
      %1771 = vmatpush.msra.mxu0 0.0
      %1772 = vmatpush.msra.mxu0 %v1594
      %1773 = vmatmul.f32.gmra.mxu0 %v1710
      %v1774 = vpop.f32.mrf.mxu0
      %v1775 = vadd.f32 %v1662, %v1774
      %1776 = vmatmul.f32.gmra.mxu0 %v1713
      %v1777 = vpop.f32.mrf.mxu0
      %v1778 = vadd.f32 %v1665, %v1777
      %1779 = vmatmul.f32.gmra.mxu0 %v1716
      %v1780 = vpop.f32.mrf.mxu0
      %v1781 = vadd.f32 %v1668, %v1780
      %1782 = vmatmul.f32.gmra.mxu0 %v1719
      %v1783 = vpop.f32.mrf.mxu0
      %v1784 = vadd.f32 %v1671, %v1783
      %1785 = vmatmul.f32.gmra.mxu0 %v1722
      %v1786 = vpop.f32.mrf.mxu0
      %v1787 = vadd.f32 %v1674, %v1786
      %1788 = vmatmul.f32.gmra.mxu0 %v1725
      %v1789 = vpop.f32.mrf.mxu0
      %v1790 = vadd.f32 %v1677, %v1789
      %1791 = vmatmul.f32.gmra.mxu0 %v1728
      %v1792 = vpop.f32.mrf.mxu0
      %v1793 = vadd.f32 %v1680, %v1792
      %1794 = vmatmul.f32.gmra.mxu0 %v1731
      %v1795 = vpop.f32.mrf.mxu0
      %v1796 = vadd.f32 %v1683, %v1795
      %1797 = vmatmul.f32.gmra.mxu0 %v1734
      %v1798 = vpop.f32.mrf.mxu0
      %v1799 = vadd.f32 %v1686, %v1798
      %1800 = vmatmul.f32.gmra.mxu0 %v1737
      %v1801 = vpop.f32.mrf.mxu0
      %v1802 = vadd.f32 %v1689, %v1801
      %1803 = vmatmul.f32.gmra.mxu0 %v1740
      %v1804 = vpop.f32.mrf.mxu0
      %v1805 = vadd.f32 %v1692, %v1804
      %1806 = vmatmul.f32.gmra.mxu0 %v1743
      %v1807 = vpop.f32.mrf.mxu0
      %v1808 = vadd.f32 %v1695, %v1807
      %1809 = vmatmul.f32.gmra.mxu0 %v1746
      %v1810 = vpop.f32.mrf.mxu0
      %v1811 = vadd.f32 %v1698, %v1810
      %1812 = vmatmul.f32.gmra.mxu0 %v1749
      %v1813 = vpop.f32.mrf.mxu0
      %v1814 = vadd.f32 %v1701, %v1813
      %1815 = vmatmul.f32.gmra.mxu0 %v1752
      %v1816 = vpop.f32.mrf.mxu0
      %v1817 = vadd.f32 %v1704, %v1816
      %1818 = vmatmul.f32.gmra.mxu0 %v1755
      %v1819 = vpop.f32.mrf.mxu0
      %v1820 = vadd.f32 %v1707, %v1819
      %1821 = vdwg.mxu0
      %v1822 = vld [vmem:[%s12] sm:$0xff]
      %v1823 = vld [vmem:[%s14] sm:$0xff]
      %1824 = vmatpush.msra.mxu0 0.0
      %1825 = vmatpush.msra.mxu0 0.0
      %1826 = vmatpush.msra.mxu0 0.0
      %1827 = vmatpush.msra.mxu0 0.0
      %1828 = vmatpush.msra.mxu0 0.0
      %1829 = vmatpush.msra.mxu0 0.0
      %1830 = vmatpush.msra.mxu0 0.0
      %1831 = vmatpush.msra.mxu0 0.0
      %1832 = vmatpush.msra.mxu0 0.0
      %1833 = vmatpush.msra.mxu0 0.0
      %1834 = vmatpush.msra.mxu0 0.0
      %1835 = vmatpush.msra.mxu0 0.0
      %1836 = vmatpush.msra.mxu0 0.0
      %1837 = vmatpush.msra.mxu0 0.0
      %1838 = vmatpush.msra.mxu0 0.0
      %1839 = vmatpush.msra.mxu0 %v1823
      %1840 = vmatmul.f32.gmra.mxu0 %v1597
      %v1841 = vpop.f32.mrf.mxu0
      %v1842 = vadd.f32 0.0, %v1841
      %1843 = vmatmul.f32.gmra.mxu0 %v1600
      %v1844 = vpop.f32.mrf.mxu0
      %v1845 = vadd.f32 0.0, %v1844
      %1846 = vmatmul.f32.gmra.mxu0 %v1603
      %v1847 = vpop.f32.mrf.mxu0
      %v1848 = vadd.f32 0.0, %v1847
      %1849 = vmatmul.f32.gmra.mxu0 %v1606
      %v1850 = vpop.f32.mrf.mxu0
      %v1851 = vadd.f32 0.0, %v1850
      %1852 = vmatmul.f32.gmra.mxu0 %v1609
      %v1853 = vpop.f32.mrf.mxu0
      %v1854 = vadd.f32 0.0, %v1853
      %1855 = vmatmul.f32.gmra.mxu0 %v1612
      %v1856 = vpop.f32.mrf.mxu0
      %v1857 = vadd.f32 0.0, %v1856
      %1858 = vmatmul.f32.gmra.mxu0 %v1615
      %v1859 = vpop.f32.mrf.mxu0
      %v1860 = vadd.f32 0.0, %v1859
      %1861 = vmatmul.f32.gmra.mxu0 %v1618
      %v1862 = vpop.f32.mrf.mxu0
      %v1863 = vadd.f32 0.0, %v1862
      %1864 = vmatmul.f32.gmra.mxu0 %v1621
      %v1865 = vpop.f32.mrf.mxu0
      %v1866 = vadd.f32 0.0, %v1865
      %1867 = vmatmul.f32.gmra.mxu0 %v1624
      %v1868 = vpop.f32.mrf.mxu0
      %v1869 = vadd.f32 0.0, %v1868
      %1870 = vmatmul.f32.gmra.mxu0 %v1627
      %v1871 = vpop.f32.mrf.mxu0
      %v1872 = vadd.f32 0.0, %v1871
      %1873 = vmatmul.f32.gmra.mxu0 %v1630
      %v1874 = vpop.f32.mrf.mxu0
      %v1875 = vadd.f32 0.0, %v1874
      %1876 = vmatmul.f32.gmra.mxu0 %v1633
      %v1877 = vpop.f32.mrf.mxu0
      %v1878 = vadd.f32 0.0, %v1877
      %1879 = vmatmul.f32.gmra.mxu0 %v1636
      %v1880 = vpop.f32.mrf.mxu0
      %v1881 = vadd.f32 0.0, %v1880
      %1882 = vmatmul.f32.gmra.mxu0 %v1639
      %v1883 = vpop.f32.mrf.mxu0
      %v1884 = vadd.f32 0.0, %v1883
      %1885 = vmatmul.f32.gmra.mxu0 %v1642
      %v1886 = vpop.f32.mrf.mxu0
      %v1887 = vadd.f32 0.0, %v1886
      %1888 = vdwg.mxu0
      %1889 = vmatpush.msra.mxu0 0.0
      %1890 = vmatpush.msra.mxu0 0.0
      %1891 = vmatpush.msra.mxu0 0.0
      %1892 = vmatpush.msra.mxu0 0.0
      %1893 = vmatpush.msra.mxu0 0.0
      %1894 = vmatpush.msra.mxu0 0.0
      %1895 = vmatpush.msra.mxu0 0.0
      %1896 = vmatpush.msra.mxu0 0.0
      %1897 = vmatpush.msra.mxu0 0.0
      %1898 = vmatpush.msra.mxu0 0.0
      %1899 = vmatpush.msra.mxu0 0.0
      %1900 = vmatpush.msra.mxu0 0.0
      %1901 = vmatpush.msra.mxu0 0.0
      %1902 = vmatpush.msra.mxu0 0.0
      %1903 = vmatpush.msra.mxu0 0.0
      %1904 = vmatpush.msra.mxu0 %v1822
      %1905 = vmatmul.f32.gmra.mxu0 %v1710
      %v1906 = vpop.f32.mrf.mxu0
      %v1907 = vadd.f32 %v1842, %v1906
      %1908 = vmatmul.f32.gmra.mxu0 %v1713
      %v1909 = vpop.f32.mrf.mxu0
      %v1910 = vadd.f32 %v1845, %v1909
      %1911 = vmatmul.f32.gmra.mxu0 %v1716
      %v1912 = vpop.f32.mrf.mxu0
      %v1913 = vadd.f32 %v1848, %v1912
      %1914 = vmatmul.f32.gmra.mxu0 %v1719
      %v1915 = vpop.f32.mrf.mxu0
      %v1916 = vadd.f32 %v1851, %v1915
      %1917 = vmatmul.f32.gmra.mxu0 %v1722
      %v1918 = vpop.f32.mrf.mxu0
      %v1919 = vadd.f32 %v1854, %v1918
      %1920 = vmatmul.f32.gmra.mxu0 %v1725
      %v1921 = vpop.f32.mrf.mxu0
      %v1922 = vadd.f32 %v1857, %v1921
      %1923 = vmatmul.f32.gmra.mxu0 %v1728
      %v1924 = vpop.f32.mrf.mxu0
      %v1925 = vadd.f32 %v1860, %v1924
      %1926 = vmatmul.f32.gmra.mxu0 %v1731
      %v1927 = vpop.f32.mrf.mxu0
      %v1928 = vadd.f32 %v1863, %v1927
      %1929 = vmatmul.f32.gmra.mxu0 %v1734
      %v1930 = vpop.f32.mrf.mxu0
      %v1931 = vadd.f32 %v1866, %v1930
      %1932 = vmatmul.f32.gmra.mxu0 %v1737
      %v1933 = vpop.f32.mrf.mxu0
      %v1934 = vadd.f32 %v1869, %v1933
      %1935 = vmatmul.f32.gmra.mxu0 %v1740
      %v1936 = vpop.f32.mrf.mxu0
      %v1937 = vadd.f32 %v1872, %v1936
      %1938 = vmatmul.f32.gmra.mxu0 %v1743
      %v1939 = vpop.f32.mrf.mxu0
      %v1940 = vadd.f32 %v1875, %v1939
      %1941 = vmatmul.f32.gmra.mxu0 %v1746
      %v1942 = vpop.f32.mrf.mxu0
      %v1943 = vadd.f32 %v1878, %v1942
      %1944 = vmatmul.f32.gmra.mxu0 %v1749
      %v1945 = vpop.f32.mrf.mxu0
      %v1946 = vadd.f32 %v1881, %v1945
      %1947 = vmatmul.f32.gmra.mxu0 %v1752
      %v1948 = vpop.f32.mrf.mxu0
      %v1949 = vadd.f32 %v1884, %v1948
      %1950 = vmatmul.f32.gmra.mxu0 %v1755
      %v1951 = vpop.f32.mrf.mxu0
      %v1952 = vadd.f32 %v1887, %v1951
      %1953 = vdwg.mxu0
      %v1954 = vsel %vm1392, %v1775, -inf
      %v1955 = vrot.slane %v1954, 4
      %v1956 = vmax.f32 %v1954, %v1955
      %v1957 = vrot.slane %v1956, 2
      %v1958 = vmax.f32 %v1956, %v1957
      %v1959 = vrot.slane %v1958, 1
      %v1960 = vmax.f32 %v1958, %v1959
      %v1961 = vsel %vm1392, %v1778, -inf
      %v1962 = vrot.slane %v1961, 4
      %v1963 = vmax.f32 %v1961, %v1962
      %v1964 = vrot.slane %v1963, 2
      %v1965 = vmax.f32 %v1963, %v1964
      %v1966 = vrot.slane %v1965, 1
      %v1967 = vmax.f32 %v1965, %v1966
      %v1968 = vsel %vm1392, %v1781, -inf
      %v1969 = vrot.slane %v1968, 4
      %v1970 = vmax.f32 %v1968, %v1969
      %v1971 = vrot.slane %v1970, 2
      %v1972 = vmax.f32 %v1970, %v1971
      %v1973 = vrot.slane %v1972, 1
      %v1974 = vmax.f32 %v1972, %v1973
      %v1975 = vsel %vm1392, %v1784, -inf
      %v1976 = vrot.slane %v1975, 4
      %v1977 = vmax.f32 %v1975, %v1976
      %v1978 = vrot.slane %v1977, 2
      %v1979 = vmax.f32 %v1977, %v1978
      %v1980 = vrot.slane %v1979, 1
      %v1981 = vmax.f32 %v1979, %v1980
      %v1982 = vsel %vm1392, %v1787, -inf
      %v1983 = vrot.slane %v1982, 4
      %v1984 = vmax.f32 %v1982, %v1983
      %v1985 = vrot.slane %v1984, 2
      %v1986 = vmax.f32 %v1984, %v1985
      %v1987 = vrot.slane %v1986, 1
      %v1988 = vmax.f32 %v1986, %v1987
      %v1989 = vsel %vm1392, %v1790, -inf
      %v1990 = vrot.slane %v1989, 4
      %v1991 = vmax.f32 %v1989, %v1990
      %v1992 = vrot.slane %v1991, 2
      %v1993 = vmax.f32 %v1991, %v1992
      %v1994 = vrot.slane %v1993, 1
      %v1995 = vmax.f32 %v1993, %v1994
      %v1996 = vsel %vm1392, %v1793, -inf
      %v1997 = vrot.slane %v1996, 4
      %v1998 = vmax.f32 %v1996, %v1997
      %v1999 = vrot.slane %v1998, 2
      %v2000 = vmax.f32 %v1998, %v1999
      %v2001 = vrot.slane %v2000, 1
      %v2002 = vmax.f32 %v2000, %v2001
      %v2003 = vsel %vm1392, %v1796, -inf
      %v2004 = vrot.slane %v2003, 4
      %v2005 = vmax.f32 %v2003, %v2004
      %v2006 = vrot.slane %v2005, 2
      %v2007 = vmax.f32 %v2005, %v2006
      %v2008 = vrot.slane %v2007, 1
      %v2009 = vmax.f32 %v2007, %v2008
      %v2010 = vsel %vm1392, %v1799, -inf
      %v2011 = vrot.slane %v2010, 4
      %v2012 = vmax.f32 %v2010, %v2011
      %v2013 = vrot.slane %v2012, 2
      %v2014 = vmax.f32 %v2012, %v2013
      %v2015 = vrot.slane %v2014, 1
      %v2016 = vmax.f32 %v2014, %v2015
      %v2017 = vsel %vm1392, %v1802, -inf
      %v2018 = vrot.slane %v2017, 4
      %v2019 = vmax.f32 %v2017, %v2018
      %v2020 = vrot.slane %v2019, 2
      %v2021 = vmax.f32 %v2019, %v2020
      %v2022 = vrot.slane %v2021, 1
      %v2023 = vmax.f32 %v2021, %v2022
      %v2024 = vsel %vm1392, %v1805, -inf
      %v2025 = vrot.slane %v2024, 4
      %v2026 = vmax.f32 %v2024, %v2025
      %v2027 = vrot.slane %v2026, 2
      %v2028 = vmax.f32 %v2026, %v2027
      %v2029 = vrot.slane %v2028, 1
      %v2030 = vmax.f32 %v2028, %v2029
      %v2031 = vsel %vm1392, %v1808, -inf
      %v2032 = vrot.slane %v2031, 4
      %v2033 = vmax.f32 %v2031, %v2032
      %v2034 = vrot.slane %v2033, 2
      %v2035 = vmax.f32 %v2033, %v2034
      %v2036 = vrot.slane %v2035, 1
      %v2037 = vmax.f32 %v2035, %v2036
      %v2038 = vsel %vm1392, %v1811, -inf
      %v2039 = vrot.slane %v2038, 4
      %v2040 = vmax.f32 %v2038, %v2039
      %v2041 = vrot.slane %v2040, 2
      %v2042 = vmax.f32 %v2040, %v2041
      %v2043 = vrot.slane %v2042, 1
      %v2044 = vmax.f32 %v2042, %v2043
      %v2045 = vsel %vm1392, %v1814, -inf
      %v2046 = vrot.slane %v2045, 4
      %v2047 = vmax.f32 %v2045, %v2046
      %v2048 = vrot.slane %v2047, 2
      %v2049 = vmax.f32 %v2047, %v2048
      %v2050 = vrot.slane %v2049, 1
      %v2051 = vmax.f32 %v2049, %v2050
      %v2052 = vsel %vm1392, %v1817, -inf
      %v2053 = vrot.slane %v2052, 4
      %v2054 = vmax.f32 %v2052, %v2053
      %v2055 = vrot.slane %v2054, 2
      %v2056 = vmax.f32 %v2054, %v2055
      %v2057 = vrot.slane %v2056, 1
      %v2058 = vmax.f32 %v2056, %v2057
      %v2059 = vsel %vm1392, %v1820, -inf
      %v2060 = vrot.slane %v2059, 4
      %v2061 = vmax.f32 %v2059, %v2060
      %v2062 = vrot.slane %v2061, 2
      %v2063 = vmax.f32 %v2061, %v2062
      %v2064 = vrot.slane %v2063, 1
      %v2065 = vmax.f32 %v2063, %v2064
      %v2066 = vsub.f32 %v1775, %v1960
      %v2067 = vsub.f32 %v1778, %v1967
      %v2068 = vsub.f32 %v1781, %v1974
      %v2069 = vsub.f32 %v1784, %v1981
      %v2070 = vsub.f32 %v1787, %v1988
      %v2071 = vsub.f32 %v1790, %v1995
      %v2072 = vsub.f32 %v1793, %v2002
      %v2073 = vsub.f32 %v1796, %v2009
      %v2074 = vsub.f32 %v1799, %v2016
      %v2075 = vsub.f32 %v1802, %v2023
      %v2076 = vsub.f32 %v1805, %v2030
      %v2077 = vsub.f32 %v1808, %v2037
      %v2078 = vsub.f32 %v1811, %v2044
      %v2079 = vsub.f32 %v1814, %v2051
      %v2080 = vsub.f32 %v1817, %v2058
      %v2081 = vsub.f32 %v1820, %v2065
      %v2082 = vmul.f32 %v2066, 1.442695
      %v2083 = vpow.pop %v2082
      %v2084 = vmul.f32 %v2067, 1.442695
      %v2085 = vpow.pop %v2084
      %v2086 = vmul.f32 %v2068, 1.442695
      %v2087 = vpow.pop %v2086
      %v2088 = vmul.f32 %v2069, 1.442695
      %v2089 = vpow.pop %v2088
      %v2090 = vmul.f32 %v2070, 1.442695
      %v2091 = vpow.pop %v2090
      %v2092 = vmul.f32 %v2071, 1.442695
      %v2093 = vpow.pop %v2092
      %v2094 = vmul.f32 %v2072, 1.442695
      %v2095 = vpow.pop %v2094
      %v2096 = vmul.f32 %v2073, 1.442695
      %v2097 = vpow.pop %v2096
      %v2098 = vmul.f32 %v2074, 1.442695
      %v2099 = vpow.pop %v2098
      %v2100 = vmul.f32 %v2075, 1.442695
      %v2101 = vpow.pop %v2100
      %v2102 = vmul.f32 %v2076, 1.442695
      %v2103 = vpow.pop %v2102
      %v2104 = vmul.f32 %v2077, 1.442695
      %v2105 = vpow.pop %v2104
      %v2106 = vmul.f32 %v2078, 1.442695
      %v2107 = vpow.pop %v2106
      %v2108 = vmul.f32 %v2079, 1.442695
      %v2109 = vpow.pop %v2108
      %v2110 = vmul.f32 %v2080, 1.442695
      %v2111 = vpow.pop %v2110
      %v2112 = vmul.f32 %v2081, 1.442695
      %v2113 = vpow.pop %v2112
      %v2114 = vsel %vm1392, %v2083, 0.0
      %v2115 = vrot.slane %v2114, 4
      %v2116 = vadd.f32 %v2114, %v2115
      %v2117 = vrot.slane %v2116, 2
      %v2118 = vadd.f32 %v2116, %v2117
      %v2119 = vrot.slane %v2118, 1
      %v2120 = vadd.f32 %v2118, %v2119
      %v2121 = vsel %vm1392, %v2085, 0.0
      %v2122 = vrot.slane %v2121, 4
      %v2123 = vadd.f32 %v2121, %v2122
      %v2124 = vrot.slane %v2123, 2
      %v2125 = vadd.f32 %v2123, %v2124
      %v2126 = vrot.slane %v2125, 1
      %v2127 = vadd.f32 %v2125, %v2126
      %v2128 = vsel %vm1392, %v2087, 0.0
      %v2129 = vrot.slane %v2128, 4
      %v2130 = vadd.f32 %v2128, %v2129
      %v2131 = vrot.slane %v2130, 2
      %v2132 = vadd.f32 %v2130, %v2131
      %v2133 = vrot.slane %v2132, 1
      %v2134 = vadd.f32 %v2132, %v2133
      %v2135 = vsel %vm1392, %v2089, 0.0
      %v2136 = vrot.slane %v2135, 4
      %v2137 = vadd.f32 %v2135, %v2136
      %v2138 = vrot.slane %v2137, 2
      %v2139 = vadd.f32 %v2137, %v2138
      %v2140 = vrot.slane %v2139, 1
      %v2141 = vadd.f32 %v2139, %v2140
      %v2142 = vsel %vm1392, %v2091, 0.0
      %v2143 = vrot.slane %v2142, 4
      %v2144 = vadd.f32 %v2142, %v2143
      %v2145 = vrot.slane %v2144, 2
      %v2146 = vadd.f32 %v2144, %v2145
      %v2147 = vrot.slane %v2146, 1
      %v2148 = vadd.f32 %v2146, %v2147
      %v2149 = vsel %vm1392, %v2093, 0.0
      %v2150 = vrot.slane %v2149, 4
      %v2151 = vadd.f32 %v2149, %v2150
      %v2152 = vrot.slane %v2151, 2
      %v2153 = vadd.f32 %v2151, %v2152
      %v2154 = vrot.slane %v2153, 1
      %v2155 = vadd.f32 %v2153, %v2154
      %v2156 = vsel %vm1392, %v2095, 0.0
      %v2157 = vrot.slane %v2156, 4
      %v2158 = vadd.f32 %v2156, %v2157
      %v2159 = vrot.slane %v2158, 2
      %v2160 = vadd.f32 %v2158, %v2159
      %v2161 = vrot.slane %v2160, 1
      %v2162 = vadd.f32 %v2160, %v2161
      %v2163 = vsel %vm1392, %v2097, 0.0
      %v2164 = vrot.slane %v2163, 4
      %v2165 = vadd.f32 %v2163, %v2164
      %v2166 = vrot.slane %v2165, 2
      %v2167 = vadd.f32 %v2165, %v2166
      %v2168 = vrot.slane %v2167, 1
      %v2169 = vadd.f32 %v2167, %v2168
      %v2170 = vsel %vm1392, %v2099, 0.0
      %v2171 = vrot.slane %v2170, 4
      %v2172 = vadd.f32 %v2170, %v2171
      %v2173 = vrot.slane %v2172, 2
      %v2174 = vadd.f32 %v2172, %v2173
      %v2175 = vrot.slane %v2174, 1
      %v2176 = vadd.f32 %v2174, %v2175
      %v2177 = vsel %vm1392, %v2101, 0.0
      %v2178 = vrot.slane %v2177, 4
      %v2179 = vadd.f32 %v2177, %v2178
      %v2180 = vrot.slane %v2179, 2
      %v2181 = vadd.f32 %v2179, %v2180
      %v2182 = vrot.slane %v2181, 1
      %v2183 = vadd.f32 %v2181, %v2182
      %v2184 = vsel %vm1392, %v2103, 0.0
      %v2185 = vrot.slane %v2184, 4
      %v2186 = vadd.f32 %v2184, %v2185
      %v2187 = vrot.slane %v2186, 2
      %v2188 = vadd.f32 %v2186, %v2187
      %v2189 = vrot.slane %v2188, 1
      %v2190 = vadd.f32 %v2188, %v2189
      %v2191 = vsel %vm1392, %v2105, 0.0
      %v2192 = vrot.slane %v2191, 4
      %v2193 = vadd.f32 %v2191, %v2192
      %v2194 = vrot.slane %v2193, 2
      %v2195 = vadd.f32 %v2193, %v2194
      %v2196 = vrot.slane %v2195, 1
      %v2197 = vadd.f32 %v2195, %v2196
      %v2198 = vsel %vm1392, %v2107, 0.0
      %v2199 = vrot.slane %v2198, 4
      %v2200 = vadd.f32 %v2198, %v2199
      %v2201 = vrot.slane %v2200, 2
      %v2202 = vadd.f32 %v2200, %v2201
      %v2203 = vrot.slane %v2202, 1
      %v2204 = vadd.f32 %v2202, %v2203
      %v2205 = vsel %vm1392, %v2109, 0.0
      %v2206 = vrot.slane %v2205, 4
      %v2207 = vadd.f32 %v2205, %v2206
      %v2208 = vrot.slane %v2207, 2
      %v2209 = vadd.f32 %v2207, %v2208
      %v2210 = vrot.slane %v2209, 1
      %v2211 = vadd.f32 %v2209, %v2210
      %v2212 = vsel %vm1392, %v2111, 0.0
      %v2213 = vrot.slane %v2212, 4
      %v2214 = vadd.f32 %v2212, %v2213
      %v2215 = vrot.slane %v2214, 2
      %v2216 = vadd.f32 %v2214, %v2215
      %v2217 = vrot.slane %v2216, 1
      %v2218 = vadd.f32 %v2216, %v2217
      %v2219 = vsel %vm1392, %v2113, 0.0
      %v2220 = vrot.slane %v2219, 4
      %v2221 = vadd.f32 %v2219, %v2220
      %v2222 = vrot.slane %v2221, 2
      %v2223 = vadd.f32 %v2221, %v2222
      %v2224 = vrot.slane %v2223, 1
      %v2225 = vadd.f32 %v2223, %v2224
      %v2226 = vrcp.pop %v2120
      %v2227 = vrcp.pop %v2127
      %v2228 = vrcp.pop %v2134
      %v2229 = vrcp.pop %v2141
      %v2230 = vrcp.pop %v2148
      %v2231 = vrcp.pop %v2155
      %v2232 = vrcp.pop %v2162
      %v2233 = vrcp.pop %v2169
      %v2234 = vrcp.pop %v2176
      %v2235 = vrcp.pop %v2183
      %v2236 = vrcp.pop %v2190
      %v2237 = vrcp.pop %v2197
      %v2238 = vrcp.pop %v2204
      %v2239 = vrcp.pop %v2211
      %v2240 = vrcp.pop %v2218
      %v2241 = vrcp.pop %v2225
      %v2242 = vmul.f32 %v2083, %v2226
      %v2243 = vmul.f32 %v2085, %v2227
      %v2244 = vmul.f32 %v2087, %v2228
      %v2245 = vmul.f32 %v2089, %v2229
      %v2246 = vmul.f32 %v2091, %v2230
      %v2247 = vmul.f32 %v2093, %v2231
      %v2248 = vmul.f32 %v2095, %v2232
      %v2249 = vmul.f32 %v2097, %v2233
      %v2250 = vmul.f32 %v2099, %v2234
      %v2251 = vmul.f32 %v2101, %v2235
      %v2252 = vmul.f32 %v2103, %v2236
      %v2253 = vmul.f32 %v2105, %v2237
      %v2254 = vmul.f32 %v2107, %v2238
      %v2255 = vmul.f32 %v2109, %v2239
      %v2256 = vmul.f32 %v2111, %v2240
      %v2257 = vmul.f32 %v2113, %v2241
      %v2258 = vmul.f32 %v1578, %v2242
      %v2259 = vmul.f32 %v1579, %v2243
      %v2260 = vmul.f32 %v1580, %v2244
      %v2261 = vmul.f32 %v1581, %v2245
      %v2262 = vmul.f32 %v1582, %v2246
      %v2263 = vmul.f32 %v1583, %v2247
      %v2264 = vmul.f32 %v1584, %v2248
      %v2265 = vmul.f32 %v1585, %v2249
      %v2266 = vmul.f32 %v1586, %v2250
      %v2267 = vmul.f32 %v1587, %v2251
      %v2268 = vmul.f32 %v1588, %v2252
      %v2269 = vmul.f32 %v1589, %v2253
      %v2270 = vmul.f32 %v1590, %v2254
      %v2271 = vmul.f32 %v1591, %v2255
      %v2272 = vmul.f32 %v1592, %v2256
      %v2273 = vmul.f32 %v1593, %v2257
      %v2274 = vsel %vm1392, %v2258, 0.0
      %v2275 = vrot.slane %v2274, 4
      %v2276 = vadd.f32 %v2274, %v2275
      %v2277 = vrot.slane %v2276, 2
      %v2278 = vadd.f32 %v2276, %v2277
      %v2279 = vrot.slane %v2278, 1
      %v2280 = vadd.f32 %v2278, %v2279
      %v2281 = vsel %vm1392, %v2259, 0.0
      %v2282 = vrot.slane %v2281, 4
      %v2283 = vadd.f32 %v2281, %v2282
      %v2284 = vrot.slane %v2283, 2
      %v2285 = vadd.f32 %v2283, %v2284
      %v2286 = vrot.slane %v2285, 1
      %v2287 = vadd.f32 %v2285, %v2286
      %v2288 = vsel %vm1392, %v2260, 0.0
      %v2289 = vrot.slane %v2288, 4
      %v2290 = vadd.f32 %v2288, %v2289
      %v2291 = vrot.slane %v2290, 2
      %v2292 = vadd.f32 %v2290, %v2291
      %v2293 = vrot.slane %v2292, 1
      %v2294 = vadd.f32 %v2292, %v2293
      %v2295 = vsel %vm1392, %v2261, 0.0
      %v2296 = vrot.slane %v2295, 4
      %v2297 = vadd.f32 %v2295, %v2296
      %v2298 = vrot.slane %v2297, 2
      %v2299 = vadd.f32 %v2297, %v2298
      %v2300 = vrot.slane %v2299, 1
      %v2301 = vadd.f32 %v2299, %v2300
      %v2302 = vsel %vm1392, %v2262, 0.0
      %v2303 = vrot.slane %v2302, 4
      %v2304 = vadd.f32 %v2302, %v2303
      %v2305 = vrot.slane %v2304, 2
      %v2306 = vadd.f32 %v2304, %v2305
      %v2307 = vrot.slane %v2306, 1
      %v2308 = vadd.f32 %v2306, %v2307
      %v2309 = vsel %vm1392, %v2263, 0.0
      %v2310 = vrot.slane %v2309, 4
      %v2311 = vadd.f32 %v2309, %v2310
      %v2312 = vrot.slane %v2311, 2
      %v2313 = vadd.f32 %v2311, %v2312
      %v2314 = vrot.slane %v2313, 1
      %v2315 = vadd.f32 %v2313, %v2314
      %v2316 = vsel %vm1392, %v2264, 0.0
      %v2317 = vrot.slane %v2316, 4
      %v2318 = vadd.f32 %v2316, %v2317
      %v2319 = vrot.slane %v2318, 2
      %v2320 = vadd.f32 %v2318, %v2319
      %v2321 = vrot.slane %v2320, 1
      %v2322 = vadd.f32 %v2320, %v2321
      %v2323 = vsel %vm1392, %v2265, 0.0
      %v2324 = vrot.slane %v2323, 4
      %v2325 = vadd.f32 %v2323, %v2324
      %v2326 = vrot.slane %v2325, 2
      %v2327 = vadd.f32 %v2325, %v2326
      %v2328 = vrot.slane %v2327, 1
      %v2329 = vadd.f32 %v2327, %v2328
      %v2330 = vsel %vm1392, %v2266, 0.0
      %v2331 = vrot.slane %v2330, 4
      %v2332 = vadd.f32 %v2330, %v2331
      %v2333 = vrot.slane %v2332, 2
      %v2334 = vadd.f32 %v2332, %v2333
      %v2335 = vrot.slane %v2334, 1
      %v2336 = vadd.f32 %v2334, %v2335
      %v2337 = vsel %vm1392, %v2267, 0.0
      %v2338 = vrot.slane %v2337, 4
      %v2339 = vadd.f32 %v2337, %v2338
      %v2340 = vrot.slane %v2339, 2
      %v2341 = vadd.f32 %v2339, %v2340
      %v2342 = vrot.slane %v2341, 1
      %v2343 = vadd.f32 %v2341, %v2342
      %v2344 = vsel %vm1392, %v2268, 0.0
      %v2345 = vrot.slane %v2344, 4
      %v2346 = vadd.f32 %v2344, %v2345
      %v2347 = vrot.slane %v2346, 2
      %v2348 = vadd.f32 %v2346, %v2347
      %v2349 = vrot.slane %v2348, 1
      %v2350 = vadd.f32 %v2348, %v2349
      %v2351 = vsel %vm1392, %v2269, 0.0
      %v2352 = vrot.slane %v2351, 4
      %v2353 = vadd.f32 %v2351, %v2352
      %v2354 = vrot.slane %v2353, 2
      %v2355 = vadd.f32 %v2353, %v2354
      %v2356 = vrot.slane %v2355, 1
      %v2357 = vadd.f32 %v2355, %v2356
      %v2358 = vsel %vm1392, %v2270, 0.0
      %v2359 = vrot.slane %v2358, 4
      %v2360 = vadd.f32 %v2358, %v2359
      %v2361 = vrot.slane %v2360, 2
      %v2362 = vadd.f32 %v2360, %v2361
      %v2363 = vrot.slane %v2362, 1
      %v2364 = vadd.f32 %v2362, %v2363
      %v2365 = vsel %vm1392, %v2271, 0.0
      %v2366 = vrot.slane %v2365, 4
      %v2367 = vadd.f32 %v2365, %v2366
      %v2368 = vrot.slane %v2367, 2
      %v2369 = vadd.f32 %v2367, %v2368
      %v2370 = vrot.slane %v2369, 1
      %v2371 = vadd.f32 %v2369, %v2370
      %v2372 = vsel %vm1392, %v2272, 0.0
      %v2373 = vrot.slane %v2372, 4
      %v2374 = vadd.f32 %v2372, %v2373
      %v2375 = vrot.slane %v2374, 2
      %v2376 = vadd.f32 %v2374, %v2375
      %v2377 = vrot.slane %v2376, 1
      %v2378 = vadd.f32 %v2376, %v2377
      %v2379 = vsel %vm1392, %v2273, 0.0
      %v2380 = vrot.slane %v2379, 4
      %v2381 = vadd.f32 %v2379, %v2380
      %v2382 = vrot.slane %v2381, 2
      %v2383 = vadd.f32 %v2381, %v2382
      %v2384 = vrot.slane %v2383, 1
      %v2385 = vadd.f32 %v2383, %v2384
      %v2386 = vsel %vm1392, %v1907, -inf
      %v2387 = vrot.slane %v2386, 4
      %v2388 = vmax.f32 %v2386, %v2387
      %v2389 = vrot.slane %v2388, 2
      %v2390 = vmax.f32 %v2388, %v2389
      %v2391 = vrot.slane %v2390, 1
      %v2392 = vmax.f32 %v2390, %v2391
      %v2393 = vsel %vm1392, %v1910, -inf
      %v2394 = vrot.slane %v2393, 4
      %v2395 = vmax.f32 %v2393, %v2394
      %v2396 = vrot.slane %v2395, 2
      %v2397 = vmax.f32 %v2395, %v2396
      %v2398 = vrot.slane %v2397, 1
      %v2399 = vmax.f32 %v2397, %v2398
      %v2400 = vsel %vm1392, %v1913, -inf
      %v2401 = vrot.slane %v2400, 4
      %v2402 = vmax.f32 %v2400, %v2401
      %v2403 = vrot.slane %v2402, 2
      %v2404 = vmax.f32 %v2402, %v2403
      %v2405 = vrot.slane %v2404, 1
      %v2406 = vmax.f32 %v2404, %v2405
      %v2407 = vsel %vm1392, %v1916, -inf
      %v2408 = vrot.slane %v2407, 4
      %v2409 = vmax.f32 %v2407, %v2408
      %v2410 = vrot.slane %v2409, 2
      %v2411 = vmax.f32 %v2409, %v2410
      %v2412 = vrot.slane %v2411, 1
      %v2413 = vmax.f32 %v2411, %v2412
      %v2414 = vsel %vm1392, %v1919, -inf
      %v2415 = vrot.slane %v2414, 4
      %v2416 = vmax.f32 %v2414, %v2415
      %v2417 = vrot.slane %v2416, 2
      %v2418 = vmax.f32 %v2416, %v2417
      %v2419 = vrot.slane %v2418, 1
      %v2420 = vmax.f32 %v2418, %v2419
      %v2421 = vsel %vm1392, %v1922, -inf
      %v2422 = vrot.slane %v2421, 4
      %v2423 = vmax.f32 %v2421, %v2422
      %v2424 = vrot.slane %v2423, 2
      %v2425 = vmax.f32 %v2423, %v2424
      %v2426 = vrot.slane %v2425, 1
      %v2427 = vmax.f32 %v2425, %v2426
      %v2428 = vsel %vm1392, %v1925, -inf
      %v2429 = vrot.slane %v2428, 4
      %v2430 = vmax.f32 %v2428, %v2429
      %v2431 = vrot.slane %v2430, 2
      %v2432 = vmax.f32 %v2430, %v2431
      %v2433 = vrot.slane %v2432, 1
      %v2434 = vmax.f32 %v2432, %v2433
      %v2435 = vsel %vm1392, %v1928, -inf
      %v2436 = vrot.slane %v2435, 4
      %v2437 = vmax.f32 %v2435, %v2436
      %v2438 = vrot.slane %v2437, 2
      %v2439 = vmax.f32 %v2437, %v2438
      %v2440 = vrot.slane %v2439, 1
      %v2441 = vmax.f32 %v2439, %v2440
      %v2442 = vsel %vm1392, %v1931, -inf
      %v2443 = vrot.slane %v2442, 4
      %v2444 = vmax.f32 %v2442, %v2443
      %v2445 = vrot.slane %v2444, 2
      %v2446 = vmax.f32 %v2444, %v2445
      %v2447 = vrot.slane %v2446, 1
      %v2448 = vmax.f32 %v2446, %v2447
      %v2449 = vsel %vm1392, %v1934, -inf
      %v2450 = vrot.slane %v2449, 4
      %v2451 = vmax.f32 %v2449, %v2450
      %v2452 = vrot.slane %v2451, 2
      %v2453 = vmax.f32 %v2451, %v2452
      %v2454 = vrot.slane %v2453, 1
      %v2455 = vmax.f32 %v2453, %v2454
      %v2456 = vsel %vm1392, %v1937, -inf
      %v2457 = vrot.slane %v2456, 4
      %v2458 = vmax.f32 %v2456, %v2457
      %v2459 = vrot.slane %v2458, 2
      %v2460 = vmax.f32 %v2458, %v2459
      %v2461 = vrot.slane %v2460, 1
      %v2462 = vmax.f32 %v2460, %v2461
      %v2463 = vsel %vm1392, %v1940, -inf
      %v2464 = vrot.slane %v2463, 4
      %v2465 = vmax.f32 %v2463, %v2464
      %v2466 = vrot.slane %v2465, 2
      %v2467 = vmax.f32 %v2465, %v2466
      %v2468 = vrot.slane %v2467, 1
      %v2469 = vmax.f32 %v2467, %v2468
      %v2470 = vsel %vm1392, %v1943, -inf
      %v2471 = vrot.slane %v2470, 4
      %v2472 = vmax.f32 %v2470, %v2471
      %v2473 = vrot.slane %v2472, 2
      %v2474 = vmax.f32 %v2472, %v2473
      %v2475 = vrot.slane %v2474, 1
      %v2476 = vmax.f32 %v2474, %v2475
      %v2477 = vsel %vm1392, %v1946, -inf
      %v2478 = vrot.slane %v2477, 4
      %v2479 = vmax.f32 %v2477, %v2478
      %v2480 = vrot.slane %v2479, 2
      %v2481 = vmax.f32 %v2479, %v2480
      %v2482 = vrot.slane %v2481, 1
      %v2483 = vmax.f32 %v2481, %v2482
      %v2484 = vsel %vm1392, %v1949, -inf
      %v2485 = vrot.slane %v2484, 4
      %v2486 = vmax.f32 %v2484, %v2485
      %v2487 = vrot.slane %v2486, 2
      %v2488 = vmax.f32 %v2486, %v2487
      %v2489 = vrot.slane %v2488, 1
      %v2490 = vmax.f32 %v2488, %v2489
      %v2491 = vsel %vm1392, %v1952, -inf
      %v2492 = vrot.slane %v2491, 4
      %v2493 = vmax.f32 %v2491, %v2492
      %v2494 = vrot.slane %v2493, 2
      %v2495 = vmax.f32 %v2493, %v2494
      %v2496 = vrot.slane %v2495, 1
      %v2497 = vmax.f32 %v2495, %v2496
      %v2498 = vsub.f32 %v1907, %v2392
      %v2499 = vsub.f32 %v1910, %v2399
      %v2500 = vsub.f32 %v1913, %v2406
      %v2501 = vsub.f32 %v1916, %v2413
      %v2502 = vsub.f32 %v1919, %v2420
      %v2503 = vsub.f32 %v1922, %v2427
      %v2504 = vsub.f32 %v1925, %v2434
      %v2505 = vsub.f32 %v1928, %v2441
      %v2506 = vsub.f32 %v1931, %v2448
      %v2507 = vsub.f32 %v1934, %v2455
      %v2508 = vsub.f32 %v1937, %v2462
      %v2509 = vsub.f32 %v1940, %v2469
      %v2510 = vsub.f32 %v1943, %v2476
      %v2511 = vsub.f32 %v1946, %v2483
      %v2512 = vsub.f32 %v1949, %v2490
      %v2513 = vsub.f32 %v1952, %v2497
      %v2514 = vmul.f32 %v2498, 1.442695
      %v2515 = vpow.pop %v2514
      %v2516 = vmul.f32 %v2499, 1.442695
      %v2517 = vpow.pop %v2516
      %v2518 = vmul.f32 %v2500, 1.442695
      %v2519 = vpow.pop %v2518
      %v2520 = vmul.f32 %v2501, 1.442695
      %v2521 = vpow.pop %v2520
      %v2522 = vmul.f32 %v2502, 1.442695
      %v2523 = vpow.pop %v2522
      %v2524 = vmul.f32 %v2503, 1.442695
      %v2525 = vpow.pop %v2524
      %v2526 = vmul.f32 %v2504, 1.442695
      %v2527 = vpow.pop %v2526
      %v2528 = vmul.f32 %v2505, 1.442695
      %v2529 = vpow.pop %v2528
      %v2530 = vmul.f32 %v2506, 1.442695
      %v2531 = vpow.pop %v2530
      %v2532 = vmul.f32 %v2507, 1.442695
      %v2533 = vpow.pop %v2532
      %v2534 = vmul.f32 %v2508, 1.442695
      %v2535 = vpow.pop %v2534
      %v2536 = vmul.f32 %v2509, 1.442695
      %v2537 = vpow.pop %v2536
      %v2538 = vmul.f32 %v2510, 1.442695
      %v2539 = vpow.pop %v2538
      %v2540 = vmul.f32 %v2511, 1.442695
      %v2541 = vpow.pop %v2540
      %v2542 = vmul.f32 %v2512, 1.442695
      %v2543 = vpow.pop %v2542
      %v2544 = vmul.f32 %v2513, 1.442695
      %v2545 = vpow.pop %v2544
      %v2546 = vsel %vm1392, %v2515, 0.0
      %v2547 = vrot.slane %v2546, 4
      %v2548 = vadd.f32 %v2546, %v2547
      %v2549 = vrot.slane %v2548, 2
      %v2550 = vadd.f32 %v2548, %v2549
      %v2551 = vrot.slane %v2550, 1
      %v2552 = vadd.f32 %v2550, %v2551
      %v2553 = vsel %vm1392, %v2517, 0.0
      %v2554 = vrot.slane %v2553, 4
      %v2555 = vadd.f32 %v2553, %v2554
      %v2556 = vrot.slane %v2555, 2
      %v2557 = vadd.f32 %v2555, %v2556
      %v2558 = vrot.slane %v2557, 1
      %v2559 = vadd.f32 %v2557, %v2558
      %v2560 = vsel %vm1392, %v2519, 0.0
      %v2561 = vrot.slane %v2560, 4
      %v2562 = vadd.f32 %v2560, %v2561
      %v2563 = vrot.slane %v2562, 2
      %v2564 = vadd.f32 %v2562, %v2563
      %v2565 = vrot.slane %v2564, 1
      %v2566 = vadd.f32 %v2564, %v2565
      %v2567 = vsel %vm1392, %v2521, 0.0
      %v2568 = vrot.slane %v2567, 4
      %v2569 = vadd.f32 %v2567, %v2568
      %v2570 = vrot.slane %v2569, 2
      %v2571 = vadd.f32 %v2569, %v2570
      %v2572 = vrot.slane %v2571, 1
      %v2573 = vadd.f32 %v2571, %v2572
      %v2574 = vsel %vm1392, %v2523, 0.0
      %v2575 = vrot.slane %v2574, 4
      %v2576 = vadd.f32 %v2574, %v2575
      %v2577 = vrot.slane %v2576, 2
      %v2578 = vadd.f32 %v2576, %v2577
      %v2579 = vrot.slane %v2578, 1
      %v2580 = vadd.f32 %v2578, %v2579
      %v2581 = vsel %vm1392, %v2525, 0.0
      %v2582 = vrot.slane %v2581, 4
      %v2583 = vadd.f32 %v2581, %v2582
      %v2584 = vrot.slane %v2583, 2
      %v2585 = vadd.f32 %v2583, %v2584
      %v2586 = vrot.slane %v2585, 1
      %v2587 = vadd.f32 %v2585, %v2586
      %v2588 = vsel %vm1392, %v2527, 0.0
      %v2589 = vrot.slane %v2588, 4
      %v2590 = vadd.f32 %v2588, %v2589
      %v2591 = vrot.slane %v2590, 2
      %v2592 = vadd.f32 %v2590, %v2591
      %v2593 = vrot.slane %v2592, 1
      %v2594 = vadd.f32 %v2592, %v2593
      %v2595 = vsel %vm1392, %v2529, 0.0
      %v2596 = vrot.slane %v2595, 4
      %v2597 = vadd.f32 %v2595, %v2596
      %v2598 = vrot.slane %v2597, 2
      %v2599 = vadd.f32 %v2597, %v2598
      %v2600 = vrot.slane %v2599, 1
      %v2601 = vadd.f32 %v2599, %v2600
      %v2602 = vsel %vm1392, %v2531, 0.0
      %v2603 = vrot.slane %v2602, 4
      %v2604 = vadd.f32 %v2602, %v2603
      %v2605 = vrot.slane %v2604, 2
      %v2606 = vadd.f32 %v2604, %v2605
      %v2607 = vrot.slane %v2606, 1
      %v2608 = vadd.f32 %v2606, %v2607
      %v2609 = vsel %vm1392, %v2533, 0.0
      %v2610 = vrot.slane %v2609, 4
      %v2611 = vadd.f32 %v2609, %v2610
      %v2612 = vrot.slane %v2611, 2
      %v2613 = vadd.f32 %v2611, %v2612
      %v2614 = vrot.slane %v2613, 1
      %v2615 = vadd.f32 %v2613, %v2614
      %v2616 = vsel %vm1392, %v2535, 0.0
      %v2617 = vrot.slane %v2616, 4
      %v2618 = vadd.f32 %v2616, %v2617
      %v2619 = vrot.slane %v2618, 2
      %v2620 = vadd.f32 %v2618, %v2619
      %v2621 = vrot.slane %v2620, 1
      %v2622 = vadd.f32 %v2620, %v2621
      %v2623 = vsel %vm1392, %v2537, 0.0
      %v2624 = vrot.slane %v2623, 4
      %v2625 = vadd.f32 %v2623, %v2624
      %v2626 = vrot.slane %v2625, 2
      %v2627 = vadd.f32 %v2625, %v2626
      %v2628 = vrot.slane %v2627, 1
      %v2629 = vadd.f32 %v2627, %v2628
      %v2630 = vsel %vm1392, %v2539, 0.0
      %v2631 = vrot.slane %v2630, 4
      %v2632 = vadd.f32 %v2630, %v2631
      %v2633 = vrot.slane %v2632, 2
      %v2634 = vadd.f32 %v2632, %v2633
      %v2635 = vrot.slane %v2634, 1
      %v2636 = vadd.f32 %v2634, %v2635
      %v2637 = vsel %vm1392, %v2541, 0.0
      %v2638 = vrot.slane %v2637, 4
      %v2639 = vadd.f32 %v2637, %v2638
      %v2640 = vrot.slane %v2639, 2
      %v2641 = vadd.f32 %v2639, %v2640
      %v2642 = vrot.slane %v2641, 1
      %v2643 = vadd.f32 %v2641, %v2642
      %v2644 = vsel %vm1392, %v2543, 0.0
      %v2645 = vrot.slane %v2644, 4
      %v2646 = vadd.f32 %v2644, %v2645
      %v2647 = vrot.slane %v2646, 2
      %v2648 = vadd.f32 %v2646, %v2647
      %v2649 = vrot.slane %v2648, 1
      %v2650 = vadd.f32 %v2648, %v2649
      %v2651 = vsel %vm1392, %v2545, 0.0
      %v2652 = vrot.slane %v2651, 4
      %v2653 = vadd.f32 %v2651, %v2652
      %v2654 = vrot.slane %v2653, 2
      %v2655 = vadd.f32 %v2653, %v2654
      %v2656 = vrot.slane %v2655, 1
      %v2657 = vadd.f32 %v2655, %v2656
      %v2658 = vrcp.pop %v2552
      %v2659 = vrcp.pop %v2559
      %v2660 = vrcp.pop %v2566
      %v2661 = vrcp.pop %v2573
      %v2662 = vrcp.pop %v2580
      %v2663 = vrcp.pop %v2587
      %v2664 = vrcp.pop %v2594
      %v2665 = vrcp.pop %v2601
      %v2666 = vrcp.pop %v2608
      %v2667 = vrcp.pop %v2615
      %v2668 = vrcp.pop %v2622
      %v2669 = vrcp.pop %v2629
      %v2670 = vrcp.pop %v2636
      %v2671 = vrcp.pop %v2643
      %v2672 = vrcp.pop %v2650
      %v2673 = vrcp.pop %v2657
      %v2674 = vmul.f32 %v2515, %v2658
      %v2675 = vmul.f32 %v2517, %v2659
      %v2676 = vmul.f32 %v2519, %v2660
      %v2677 = vmul.f32 %v2521, %v2661
      %v2678 = vmul.f32 %v2523, %v2662
      %v2679 = vmul.f32 %v2525, %v2663
      %v2680 = vmul.f32 %v2527, %v2664
      %v2681 = vmul.f32 %v2529, %v2665
      %v2682 = vmul.f32 %v2531, %v2666
      %v2683 = vmul.f32 %v2533, %v2667
      %v2684 = vmul.f32 %v2535, %v2668
      %v2685 = vmul.f32 %v2537, %v2669
      %v2686 = vmul.f32 %v2539, %v2670
      %v2687 = vmul.f32 %v2541, %v2671
      %v2688 = vmul.f32 %v2543, %v2672
      %v2689 = vmul.f32 %v2545, %v2673
      %v2690 = vmul.f32 %v1546, %v2674
      %v2691 = vmul.f32 %v1547, %v2675
      %v2692 = vmul.f32 %v1548, %v2676
      %v2693 = vmul.f32 %v1549, %v2677
      %v2694 = vmul.f32 %v1550, %v2678
      %v2695 = vmul.f32 %v1551, %v2679
      %v2696 = vmul.f32 %v1552, %v2680
      %v2697 = vmul.f32 %v1553, %v2681
      %v2698 = vmul.f32 %v1554, %v2682
      %v2699 = vmul.f32 %v1555, %v2683
      %v2700 = vmul.f32 %v1556, %v2684
      %v2701 = vmul.f32 %v1557, %v2685
      %v2702 = vmul.f32 %v1558, %v2686
      %v2703 = vmul.f32 %v1559, %v2687
      %v2704 = vmul.f32 %v1560, %v2688
      %v2705 = vmul.f32 %v1561, %v2689
      %v2706 = vsel %vm1392, %v2690, 0.0
      %v2707 = vrot.slane %v2706, 4
      %v2708 = vadd.f32 %v2706, %v2707
      %v2709 = vrot.slane %v2708, 2
      %v2710 = vadd.f32 %v2708, %v2709
      %v2711 = vrot.slane %v2710, 1
      %v2712 = vadd.f32 %v2710, %v2711
      %v2713 = vsel %vm1392, %v2691, 0.0
      %v2714 = vrot.slane %v2713, 4
      %v2715 = vadd.f32 %v2713, %v2714
      %v2716 = vrot.slane %v2715, 2
      %v2717 = vadd.f32 %v2715, %v2716
      %v2718 = vrot.slane %v2717, 1
      %v2719 = vadd.f32 %v2717, %v2718
      %v2720 = vsel %vm1392, %v2692, 0.0
      %v2721 = vrot.slane %v2720, 4
      %v2722 = vadd.f32 %v2720, %v2721
      %v2723 = vrot.slane %v2722, 2
      %v2724 = vadd.f32 %v2722, %v2723
      %v2725 = vrot.slane %v2724, 1
      %v2726 = vadd.f32 %v2724, %v2725
      %v2727 = vsel %vm1392, %v2693, 0.0
      %v2728 = vrot.slane %v2727, 4
      %v2729 = vadd.f32 %v2727, %v2728
      %v2730 = vrot.slane %v2729, 2
      %v2731 = vadd.f32 %v2729, %v2730
      %v2732 = vrot.slane %v2731, 1
      %v2733 = vadd.f32 %v2731, %v2732
      %v2734 = vsel %vm1392, %v2694, 0.0
      %v2735 = vrot.slane %v2734, 4
      %v2736 = vadd.f32 %v2734, %v2735
      %v2737 = vrot.slane %v2736, 2
      %v2738 = vadd.f32 %v2736, %v2737
      %v2739 = vrot.slane %v2738, 1
      %v2740 = vadd.f32 %v2738, %v2739
      %v2741 = vsel %vm1392, %v2695, 0.0
      %v2742 = vrot.slane %v2741, 4
      %v2743 = vadd.f32 %v2741, %v2742
      %v2744 = vrot.slane %v2743, 2
      %v2745 = vadd.f32 %v2743, %v2744
      %v2746 = vrot.slane %v2745, 1
      %v2747 = vadd.f32 %v2745, %v2746
      %v2748 = vsel %vm1392, %v2696, 0.0
      %v2749 = vrot.slane %v2748, 4
      %v2750 = vadd.f32 %v2748, %v2749
      %v2751 = vrot.slane %v2750, 2
      %v2752 = vadd.f32 %v2750, %v2751
      %v2753 = vrot.slane %v2752, 1
      %v2754 = vadd.f32 %v2752, %v2753
      %v2755 = vsel %vm1392, %v2697, 0.0
      %v2756 = vrot.slane %v2755, 4
      %v2757 = vadd.f32 %v2755, %v2756
      %v2758 = vrot.slane %v2757, 2
      %v2759 = vadd.f32 %v2757, %v2758
      %v2760 = vrot.slane %v2759, 1
      %v2761 = vadd.f32 %v2759, %v2760
      %v2762 = vsel %vm1392, %v2698, 0.0
      %v2763 = vrot.slane %v2762, 4
      %v2764 = vadd.f32 %v2762, %v2763
      %v2765 = vrot.slane %v2764, 2
      %v2766 = vadd.f32 %v2764, %v2765
      %v2767 = vrot.slane %v2766, 1
      %v2768 = vadd.f32 %v2766, %v2767
      %v2769 = vsel %vm1392, %v2699, 0.0
      %v2770 = vrot.slane %v2769, 4
      %v2771 = vadd.f32 %v2769, %v2770
      %v2772 = vrot.slane %v2771, 2
      %v2773 = vadd.f32 %v2771, %v2772
      %v2774 = vrot.slane %v2773, 1
      %v2775 = vadd.f32 %v2773, %v2774
      %v2776 = vsel %vm1392, %v2700, 0.0
      %v2777 = vrot.slane %v2776, 4
      %v2778 = vadd.f32 %v2776, %v2777
      %v2779 = vrot.slane %v2778, 2
      %v2780 = vadd.f32 %v2778, %v2779
      %v2781 = vrot.slane %v2780, 1
      %v2782 = vadd.f32 %v2780, %v2781
      %v2783 = vsel %vm1392, %v2701, 0.0
      %v2784 = vrot.slane %v2783, 4
      %v2785 = vadd.f32 %v2783, %v2784
      %v2786 = vrot.slane %v2785, 2
      %v2787 = vadd.f32 %v2785, %v2786
      %v2788 = vrot.slane %v2787, 1
      %v2789 = vadd.f32 %v2787, %v2788
      %v2790 = vsel %vm1392, %v2702, 0.0
      %v2791 = vrot.slane %v2790, 4
      %v2792 = vadd.f32 %v2790, %v2791
      %v2793 = vrot.slane %v2792, 2
      %v2794 = vadd.f32 %v2792, %v2793
      %v2795 = vrot.slane %v2794, 1
      %v2796 = vadd.f32 %v2794, %v2795
      %v2797 = vsel %vm1392, %v2703, 0.0
      %v2798 = vrot.slane %v2797, 4
      %v2799 = vadd.f32 %v2797, %v2798
      %v2800 = vrot.slane %v2799, 2
      %v2801 = vadd.f32 %v2799, %v2800
      %v2802 = vrot.slane %v2801, 1
      %v2803 = vadd.f32 %v2801, %v2802
      %v2804 = vsel %vm1392, %v2704, 0.0
      %v2805 = vrot.slane %v2804, 4
      %v2806 = vadd.f32 %v2804, %v2805
      %v2807 = vrot.slane %v2806, 2
      %v2808 = vadd.f32 %v2806, %v2807
      %v2809 = vrot.slane %v2808, 1
      %v2810 = vadd.f32 %v2808, %v2809
      %v2811 = vsel %vm1392, %v2705, 0.0
      %v2812 = vrot.slane %v2811, 4
      %v2813 = vadd.f32 %v2811, %v2812
      %v2814 = vrot.slane %v2813, 2
      %v2815 = vadd.f32 %v2813, %v2814
      %v2816 = vrot.slane %v2815, 1
      %v2817 = vadd.f32 %v2815, %v2816
      %v2818 = vld [vmem:[%s15] sm:$0xff]
      %v2819 = vld [vmem:[%s15 + $0x8] sm:$0xff]
      %v2820 = vld [vmem:[%s16] sm:$0xff]
      %v2821 = vld [vmem:[%s16 + $0x8] sm:$0xff]
      %vm2838 = vcmask 1041409
      %v2839 = vsel %vm2838, %v2719, %v2712
      %vm2840 = vcmask 1042434
      %v2841 = vsel %vm2840, %v2726, %v2839
      %vm2842 = vcmask 1043459
      %v2843 = vsel %vm2842, %v2733, %v2841
      %vm2844 = vcmask 1044484
      %v2845 = vsel %vm2844, %v2740, %v2843
      %vm2846 = vcmask 1045509
      %v2847 = vsel %vm2846, %v2747, %v2845
      %vm2848 = vcmask 1046534
      %v2849 = vsel %vm2848, %v2754, %v2847
      %vm2850 = vcmask 1047559
      %v2851 = vsel %vm2850, %v2761, %v2849
      %v2852 = vsel %vm2838, %v2775, %v2768
      %v2853 = vsel %vm2840, %v2782, %v2852
      %v2854 = vsel %vm2842, %v2789, %v2853
      %v2855 = vsel %vm2844, %v2796, %v2854
      %v2856 = vsel %vm2846, %v2803, %v2855
      %v2857 = vsel %vm2848, %v2810, %v2856
      %v2858 = vsel %vm2850, %v2817, %v2857
      %v2860 = vsel %vm1392, %v2820, 0
      %v2863 = vsel %vm1392, %v2821, 0
      %v2865 = vsel %vm1392, %v2851, 0
      %v2867 = vsel %vm1392, %v2858, 0
      %2869 = vmatpush.xpose.msra.mxu0 0.0
      %2870 = vmatpush.xpose.msra.mxu0 0.0
      %2871 = vmatpush.xpose.msra.mxu0 0.0
      %2872 = vmatpush.xpose.msra.mxu0 0.0
      %2873 = vmatpush.xpose.msra.mxu0 0.0
      %2874 = vmatpush.xpose.msra.mxu0 0.0
      %2875 = vmatpush.xpose.msra.mxu0 0.0
      %2876 = vmatpush.xpose.msra.mxu0 0.0
      %2877 = vmatpush.xpose.msra.mxu0 0.0
      %2878 = vmatpush.xpose.msra.mxu0 0.0
      %2879 = vmatpush.xpose.msra.mxu0 0.0
      %2880 = vmatpush.xpose.msra.mxu0 0.0
      %2881 = vmatpush.xpose.msra.mxu0 0.0
      %2882 = vmatpush.xpose.msra.mxu0 0.0
      %2883 = vmatpush.xpose.msra.mxu0 %v2867
      %2884 = vmatpush.xpose.msra.mxu0 %v2865
      %2885 = vmatmul.f32.gmra.mxu0 %v2860
      %v2886 = vpop.f32.mrf.mxu0
      %v2887 = vadd.f32 0.0, %v2886
      %2888 = vmatmul.f32.gmra.mxu0 %v2863
      %v2889 = vpop.f32.mrf.mxu0
      %v2890 = vadd.f32 0.0, %v2889
      %2891 = vdwg.mxu0
      %v2908 = vsel %vm2838, %v2287, %v2280
      %v2909 = vsel %vm2840, %v2294, %v2908
      %v2910 = vsel %vm2842, %v2301, %v2909
      %v2911 = vsel %vm2844, %v2308, %v2910
      %v2912 = vsel %vm2846, %v2315, %v2911
      %v2913 = vsel %vm2848, %v2322, %v2912
      %v2914 = vsel %vm2850, %v2329, %v2913
      %v2915 = vsel %vm2838, %v2343, %v2336
      %v2916 = vsel %vm2840, %v2350, %v2915
      %v2917 = vsel %vm2842, %v2357, %v2916
      %v2918 = vsel %vm2844, %v2364, %v2917
      %v2919 = vsel %vm2846, %v2371, %v2918
      %v2920 = vsel %vm2848, %v2378, %v2919
      %v2921 = vsel %vm2850, %v2385, %v2920
      %v2923 = vsel %vm1392, %v2818, 0
      %v2926 = vsel %vm1392, %v2819, 0
      %v2928 = vsel %vm1392, %v2914, 0
      %v2930 = vsel %vm1392, %v2921, 0
      %2932 = vmatpush.xpose.msra.mxu0 0.0
      %2933 = vmatpush.xpose.msra.mxu0 0.0
      %2934 = vmatpush.xpose.msra.mxu0 0.0
      %2935 = vmatpush.xpose.msra.mxu0 0.0
      %2936 = vmatpush.xpose.msra.mxu0 0.0
      %2937 = vmatpush.xpose.msra.mxu0 0.0
      %2938 = vmatpush.xpose.msra.mxu0 0.0
      %2939 = vmatpush.xpose.msra.mxu0 0.0
      %2940 = vmatpush.xpose.msra.mxu0 0.0
      %2941 = vmatpush.xpose.msra.mxu0 0.0
      %2942 = vmatpush.xpose.msra.mxu0 0.0
      %2943 = vmatpush.xpose.msra.mxu0 0.0
      %2944 = vmatpush.xpose.msra.mxu0 0.0
      %2945 = vmatpush.xpose.msra.mxu0 0.0
      %2946 = vmatpush.xpose.msra.mxu0 %v2930
      %2947 = vmatpush.xpose.msra.mxu0 %v2928
      %2948 = vmatmul.f32.gmra.mxu0 %v2923
      %v2949 = vpop.f32.mrf.mxu0
      %v2950 = vadd.f32 %v2887, %v2949
      %2951 = vmatmul.f32.gmra.mxu0 %v2926
      %v2952 = vpop.f32.mrf.mxu0
      %v2953 = vadd.f32 %v2890, %v2952
      %2954 = vdwg.mxu0
      %v2955 = vld [vmem:[%s17] sm:$0xff]
      %v2956 = vld [vmem:[%s17 + $0x8] sm:$0xff]
      %2958 = vset.pattern.permute.xlu0 0
      %2959 = vperm.xlu0 %2958, %v2955
      %v2960 = vpop.permute.xlu0 %2959
      %2963 = vset.pattern.permute.xlu0 0
      %2964 = vperm.xlu0 %2963, %v2956
      %v2965 = vpop.permute.xlu0 %2964
      %v2967 = vmul.f32 %v2950, %v2960
      %v2968 = vmul.f32 %v2953, %v2965
      %v2969 = vld [vmem:[%s18] sm:$0xff]
      %v2970 = vld [vmem:[%s18 + $0x8] sm:$0xff]
      %2972 = vset.pattern.permute.xlu0 0
      %2973 = vperm.xlu0 %2972, %v2969
      %v2974 = vpop.permute.xlu0 %2973
      %2977 = vset.pattern.permute.xlu0 0
      %2978 = vperm.xlu0 %2977, %v2970
      %v2979 = vpop.permute.xlu0 %2978
      %v2981 = vadd.f32 %v2967, %v2974
      %v2982 = vadd.f32 %v2968, %v2979
      %v2983 = vmax.f32 %v2981, 0.0
      %v2984 = vmax.f32 %v2982, 0.0
      %vm2985 = vcmask 130048
      %2986 = vst.msk [vmem:[%s707] sm:$0xff] %vm2985, %v2983
      %2987 = vst.msk [vmem:[%s707 + $0x8] sm:$0xff] %vm2985, %v2984
      %p2988 = scmp.lt.s32.totalorder %s35, 1
      %s2989 = scalar_select %p2988, %s35, 1
      %p2990 = scmp.lt.s32.totalorder %s34, 0
      %s2991 = scalar_select %p2990, %s34, 0
      %s2992 = smul.addr %s2989, 2
      %s2993 = sadd.s32 %s2991, %s2992
      %s2994 = smul.addr %s2993, 8
      %s2995 = scalar_lea.vmem %s19, %s2994
      // Predicated region
      $region97: #{dilated_res_block.6} parent=95 // pred_check
        %p2996 = pneg %p482
      $region98: #{dilated_res_block.6} parent=95 // pred_check_branch
        %2998 = sbr.rel (%p2996) target = $region100
      $region99: #{dilated_res_block.6} parent=95 // pred_region
        _
      $region100: #{dilated_res_block.6} parent=95 // pred_fallthru
        _
    $region96: #{dilated_res_block.6} parent=5 // pred_fallthru
      _
    %p2999 = scmp.le.s32.totalorder 2, %s25
    // Predicated region
    $region101: #{dilated_res_block.6} parent=5 // pred_check
      %p3000 = pneg %p2999
    $region102: #{dilated_res_block.6} parent=5 // pred_check_branch
      %3002 = sbr.rel (%p3000) target = $region104
    $region103: #{dilated_res_block.6} parent=5 // pred_region
      %s3003 = ssub.s32 %s25, 2
      // Predicated region
      $region105: #{dilated_res_block.6} parent=103 // pred_check
        %p3004 = pneg %p488
      $region106: #{dilated_res_block.6} parent=103 // pred_check_branch
        %3006 = sbr.rel (%p3004) target = $region108
      $region107: #{dilated_res_block.6} parent=103 // pred_region
        %p3007 = scmp.lt.s32.totalorder %s37, 1
        %s3008 = scalar_select %p3007, %s37, 1
        %p3009 = scmp.lt.s32.totalorder %s36, 0
        %s3010 = scalar_select %p3009, %s36, 0
        %s3011 = smul.addr %s3008, 2
        %s3012 = sadd.s32 %s3010, %s3011
        %s3013 = smul.addr %s3012, 8
        %s3014 = scalar_lea.vmem %s19, %s3013
      $region108: #{dilated_res_block.6} parent=103 // pred_fallthru
        _
    $region104: #{dilated_res_block.6} parent=5 // pred_fallthru
      _
  $region6: #{dilated_res_block.6} parent=0 // loop_footer
    %s29 = sadd.s32 1, %s25
  $region7: #{dilated_res_block.6} parent=0 // loop_footer_branch
    %24 = sbr.rel target = $region3
  $region8: #{dilated_res_block.6} parent=0 // loop_exit
    _

// kernel: dilated_res_block.7
$region0: #{dilated_res_block.7}
  #allocation0 [shape = 'u32[]', space=smem, size = 0x4, offset = 0x4, fixed_abs, tag = 'smem constant byte address 0x4 - core index']
  #allocation1 [shape = 'u32[72,128]{1,0:T(1,128)}', space=vmem, size = 0x9000, scoped, tag = 'internal scratch']
  %s0 = inlined_call_operand.vmem [shape: f32[2,16,16], index: 0, kind: input, shape index: {}]
  %s1 = inlined_call_operand.vmem [shape: f32[2,4,16], index: 1, kind: input, shape index: {}]
  %s2 = inlined_call_operand.vmem [shape: f32[32,16], index: 2, kind: input, shape index: {}]
  %s3 = inlined_call_operand.vmem [shape: f32[32,1], index: 3, kind: input, shape index: {}]
  %s4 = inlined_call_operand.vmem [shape: f32[32,1], index: 4, kind: input, shape index: {}]
  %s5 = inlined_call_operand.vmem [shape: f32[32,4], index: 5, kind: input, shape index: {}]
  %s6 = inlined_call_operand.vmem [shape: f32[32,1], index: 6, kind: input, shape index: {}]
  %s7 = inlined_call_operand.vmem [shape: f32[32,1], index: 7, kind: input, shape index: {}]
  %s8 = inlined_call_operand.vmem [shape: f32[2,32,16], index: 8, kind: output, shape index: {}]
  %s9 = sld [smem:[#allocation0]]
  $region65: #{dilated_res_block.7} parent=0
    _
  %s11 = ssub.s32 1, %s9
  %s12 = scalar_select 0, %s11, %s9
  loop: start=0, step=1, limit=4
  $region2: #{dilated_res_block.7} parent=0 // loop_pre_header
    _
  $region3: #{dilated_res_block.7} parent=0 // loop_header
    %s14 = sphi 0, %s18
    %p15 = scmp.ge.s32.totalorder %s14, 4
    %s21 = sphi 0, %s33
    %s22 = sphi 0, %s29
    %s23 = sphi 0, %s21
    %s24 = sphi 0, %s22
    %s25 = sphi 0, %s23
    %s26 = sphi 0, %s24
    %s38 = sphi 0, %s40
    %s41 = sphi 0, %s38
    %s42 = sphi 0, %s41
    %s58 = sphi 0, %s42
    %s66 = sphi 0, %s68
    %s69 = sphi 0, %s66
    %s70 = sphi 0, %s69
    %s86 = sphi 0, %s70
    %s90 = sphi 0, %s90
    %s92 = sphi 0, %s90
    %s93 = sphi 0, %s92
    %s107 = sphi 0, %s93
    %s111 = sphi 0, %s111
    %s113 = sphi 0, %s111
    %s114 = sphi 0, %s113
    %s128 = sphi 0, %s114
    %s132 = sphi 0, %s132
    %s134 = sphi 0, %s132
    %s135 = sphi 0, %s134
    %s149 = sphi 0, %s135
    %s153 = sphi 0, %s153
    %s155 = sphi 0, %s153
    %s156 = sphi 0, %s155
    %s170 = sphi 0, %s156
    %s174 = sphi 0, %s174
    %s176 = sphi 0, %s174
    %s177 = sphi 0, %s176
    %s191 = sphi 0, %s177
    %s195 = sphi 0, %s195
    %s197 = sphi 0, %s195
    %s198 = sphi 0, %s197
    %s212 = sphi 0, %s198
    %s220 = sphi 0, %s222
    %s223 = sphi 0, %s220
    %s224 = sphi 0, %s223
    %s240 = sphi 0, %s224
  $region4: #{dilated_res_block.7} parent=0 // loop_header_branch
    %17 = sbr.rel (%p15) target = $region8
  $region5: #{dilated_res_block.7} parent=0 // loop_body
    %s19 = ssub.s32 %s14, 1
    %s20 = ssub.s32 %s14, 2
    %s27 = sadd.s32 1, %s22
    %p28 = scmp.ge.s32.totalorder %s27, 2
    %s29 = scalar_select %p28, 0, %s27
    %s30 = sadd.s32 1, %s21
    %s31 = scalar_select %p28, %s30, %s21
    %p32 = scmp.ge.s32.totalorder %s31, 1
    %s33 = scalar_select %p32, 0, %s31
    %s34 = ssub.s32 %s22, %s29
    %s35 = ssub.s32 %s21, %s33
    %s36 = sor.u32 %s34, %s35
    %p37 = scmp.eq.s32.totalorder %s36, 0
    %s39 = sadd.s32 %s38, 1
    %s40 = scalar_select %p37, %s38, %s39
    %p43 = pneg %p37
    %p44 = scmp.eq.s32.totalorder %s14, 1
    %p45 = por %p43, %p44
    %p46 = scmp.ne.s32.totalorder %s38, %s41
    %p47 = scmp.eq.s32.totalorder %s14, 0
    %p48 = por %p46, %p47
    %p49 = scmp.ne.s32.totalorder %s38, %s41
    %p50 = scmp.eq.s32.totalorder %s19, 1
    %p51 = por %p49, %p50
    %p52 = scmp.ne.s32.totalorder %s41, %s42
    %p53 = scmp.eq.s32.totalorder %s19, 0
    %p54 = por %p52, %p53
    %p55 = scmp.ne.s32.totalorder %s41, %s42
    %p56 = scmp.eq.s32.totalorder %s20, 1
    %p57 = por %p55, %p56
    %p59 = scmp.ne.s32.totalorder %s42, %s58
    %p60 = scmp.eq.s32.totalorder %s20, 0
    %p61 = por %p59, %p60
    %s62 = ssub.s32 %s22, %s29
    %s63 = ssub.s32 %s21, %s33
    %s64 = sor.u32 %s62, %s63
    %p65 = scmp.eq.s32.totalorder %s64, 0
    %s67 = sadd.s32 %s66, 1
    %s68 = scalar_select %p65, %s66, %s67
    %p71 = pneg %p65
    %p72 = scmp.eq.s32.totalorder %s14, 1
    %p73 = por %p71, %p72
    %p74 = scmp.ne.s32.totalorder %s66, %s69
    %p75 = scmp.eq.s32.totalorder %s14, 0
    %p76 = por %p74, %p75
    %p77 = scmp.ne.s32.totalorder %s66, %s69
    %p78 = scmp.eq.s32.totalorder %s19, 1
    %p79 = por %p77, %p78
    %p80 = scmp.ne.s32.totalorder %s69, %s70
    %p81 = scmp.eq.s32.totalorder %s19, 0
    %p82 = por %p80, %p81
    %p83 = scmp.ne.s32.totalorder %s69, %s70
    %p84 = scmp.eq.s32.totalorder %s20, 1
    %p85 = por %p83, %p84
    %p87 = scmp.ne.s32.totalorder %s70, %s86
    %p88 = scmp.eq.s32.totalorder %s20, 0
    %p89 = por %p87, %p88
    %s91 = sadd.s32 %s90, 1
    %p94 = scmp.eq.s32.totalorder %s14, 1
    %p95 = scmp.ne.s32.totalorder %s90, %s92
    %p96 = scmp.eq.s32.totalorder %s14, 0
    %p97 = por %p95, %p96
    %p98 = scmp.ne.s32.totalorder %s90, %s92
    %p99 = scmp.eq.s32.totalorder %s19, 1
    %p100 = por %p98, %p99
    %p101 = scmp.ne.s32.totalorder %s92, %s93
    %p102 = scmp.eq.s32.totalorder %s19, 0
    %p103 = por %p101, %p102
    %p104 = scmp.ne.s32.totalorder %s92, %s93
    %p105 = scmp.eq.s32.totalorder %s20, 1
    %p106 = por %p104, %p105
    %p108 = scmp.ne.s32.totalorder %s93, %s107
    %p109 = scmp.eq.s32.totalorder %s20, 0
    %p110 = por %p108, %p109
    %s112 = sadd.s32 %s111, 1
    %p115 = scmp.eq.s32.totalorder %s14, 1
    %p116 = scmp.ne.s32.totalorder %s111, %s113
    %p117 = scmp.eq.s32.totalorder %s14, 0
    %p118 = por %p116, %p117
    %p119 = scmp.ne.s32.totalorder %s111, %s113
    %p120 = scmp.eq.s32.totalorder %s19, 1
    %p121 = por %p119, %p120
    %p122 = scmp.ne.s32.totalorder %s113, %s114
    %p123 = scmp.eq.s32.totalorder %s19, 0
    %p124 = por %p122, %p123
    %p125 = scmp.ne.s32.totalorder %s113, %s114
    %p126 = scmp.eq.s32.totalorder %s20, 1
    %p127 = por %p125, %p126
    %p129 = scmp.ne.s32.totalorder %s114, %s128
    %p130 = scmp.eq.s32.totalorder %s20, 0
    %p131 = por %p129, %p130
    %s133 = sadd.s32 %s132, 1
    %p136 = scmp.eq.s32.totalorder %s14, 1
    %p137 = scmp.ne.s32.totalorder %s132, %s134
    %p138 = scmp.eq.s32.totalorder %s14, 0
    %p139 = por %p137, %p138
    %p140 = scmp.ne.s32.totalorder %s132, %s134
    %p141 = scmp.eq.s32.totalorder %s19, 1
    %p142 = por %p140, %p141
    %p143 = scmp.ne.s32.totalorder %s134, %s135
    %p144 = scmp.eq.s32.totalorder %s19, 0
    %p145 = por %p143, %p144
    %p146 = scmp.ne.s32.totalorder %s134, %s135
    %p147 = scmp.eq.s32.totalorder %s20, 1
    %p148 = por %p146, %p147
    %p150 = scmp.ne.s32.totalorder %s135, %s149
    %p151 = scmp.eq.s32.totalorder %s20, 0
    %p152 = por %p150, %p151
    %s154 = sadd.s32 %s153, 1
    %p157 = scmp.eq.s32.totalorder %s14, 1
    %p158 = scmp.ne.s32.totalorder %s153, %s155
    %p159 = scmp.eq.s32.totalorder %s14, 0
    %p160 = por %p158, %p159
    %p161 = scmp.ne.s32.totalorder %s153, %s155
    %p162 = scmp.eq.s32.totalorder %s19, 1
    %p163 = por %p161, %p162
    %p164 = scmp.ne.s32.totalorder %s155, %s156
    %p165 = scmp.eq.s32.totalorder %s19, 0
    %p166 = por %p164, %p165
    %p167 = scmp.ne.s32.totalorder %s155, %s156
    %p168 = scmp.eq.s32.totalorder %s20, 1
    %p169 = por %p167, %p168
    %p171 = scmp.ne.s32.totalorder %s156, %s170
    %p172 = scmp.eq.s32.totalorder %s20, 0
    %p173 = por %p171, %p172
    %s175 = sadd.s32 %s174, 1
    %p178 = scmp.eq.s32.totalorder %s14, 1
    %p179 = scmp.ne.s32.totalorder %s174, %s176
    %p180 = scmp.eq.s32.totalorder %s14, 0
    %p181 = por %p179, %p180
    %p182 = scmp.ne.s32.totalorder %s174, %s176
    %p183 = scmp.eq.s32.totalorder %s19, 1
    %p184 = por %p182, %p183
    %p185 = scmp.ne.s32.totalorder %s176, %s177
    %p186 = scmp.eq.s32.totalorder %s19, 0
    %p187 = por %p185, %p186
    %p188 = scmp.ne.s32.totalorder %s176, %s177
    %p189 = scmp.eq.s32.totalorder %s20, 1
    %p190 = por %p188, %p189
    %p192 = scmp.ne.s32.totalorder %s177, %s191
    %p193 = scmp.eq.s32.totalorder %s20, 0
    %p194 = por %p192, %p193
    %s196 = sadd.s32 %s195, 1
    %p199 = scmp.eq.s32.totalorder %s14, 1
    %p200 = scmp.ne.s32.totalorder %s195, %s197
    %p201 = scmp.eq.s32.totalorder %s14, 0
    %p202 = por %p200, %p201
    %p203 = scmp.ne.s32.totalorder %s195, %s197
    %p204 = scmp.eq.s32.totalorder %s19, 1
    %p205 = por %p203, %p204
    %p206 = scmp.ne.s32.totalorder %s197, %s198
    %p207 = scmp.eq.s32.totalorder %s19, 0
    %p208 = por %p206, %p207
    %p209 = scmp.ne.s32.totalorder %s197, %s198
    %p210 = scmp.eq.s32.totalorder %s20, 1
    %p211 = por %p209, %p210
    %p213 = scmp.ne.s32.totalorder %s198, %s212
    %p214 = scmp.eq.s32.totalorder %s20, 0
    %p215 = por %p213, %p214
    %s216 = ssub.s32 %s22, %s29
    %s217 = ssub.s32 %s21, %s33
    %s218 = sor.u32 %s216, %s217
    %p219 = scmp.eq.s32.totalorder %s218, 0
    %s221 = sadd.s32 %s220, 1
    %s222 = scalar_select %p219, %s220, %s221
    %p225 = pneg %p219
    %p226 = scmp.eq.s32.totalorder %s14, 1
    %p227 = por %p225, %p226
    %p228 = scmp.ne.s32.totalorder %s220, %s223
    %p229 = scmp.eq.s32.totalorder %s14, 0
    %p230 = por %p228, %p229
    %p231 = scmp.ne.s32.totalorder %s220, %s223
    %p232 = scmp.eq.s32.totalorder %s19, 1
    %p233 = por %p231, %p232
    %p234 = scmp.ne.s32.totalorder %s223, %s224
    %p235 = scmp.eq.s32.totalorder %s19, 0
    %p236 = por %p234, %p235
    %p237 = scmp.ne.s32.totalorder %s223, %s224
    %p238 = scmp.eq.s32.totalorder %s20, 1
    %p239 = por %p237, %p238
    %p241 = scmp.ne.s32.totalorder %s224, %s240
    %p242 = scmp.eq.s32.totalorder %s20, 0
    %p243 = por %p241, %p242
    %p244 = scmp.le.s32.totalorder 1, %s14
    %p245 = scmp.lt.s32.totalorder %s14, 3
    %p246 = pnand %p244, %p245
    %p247 = pneg %p246
    // Predicated region
    $region9: #{dilated_res_block.7} parent=5 // pred_check
      _
    $region10: #{dilated_res_block.7} parent=5 // pred_check_branch
      %249 = sbr.rel (%p246) target = $region12
    $region11: #{dilated_res_block.7} parent=5 // pred_region
      %s250 = ssub.s32 %s14, 1
      // Predicated region
      $region13: #{dilated_res_block.7} parent=11 // pred_check
        %p251 = pneg %p103
      $region14: #{dilated_res_block.7} parent=11 // pred_check_branch
        %253 = sbr.rel (%p251) target = $region16
      $region15: #{dilated_res_block.7} parent=11 // pred_region
        _
      $region16: #{dilated_res_block.7} parent=11 // pred_fallthru
        _
      // Predicated region
      $region17: #{dilated_res_block.7} parent=11 // pred_check
        %p254 = pneg %p124
      $region18: #{dilated_res_block.7} parent=11 // pred_check_branch
        %256 = sbr.rel (%p254) target = $region20
      $region19: #{dilated_res_block.7} parent=11 // pred_region
        _
      $region20: #{dilated_res_block.7} parent=11 // pred_fallthru
        _
      // Predicated region
      $region21: #{dilated_res_block.7} parent=11 // pred_check
        %p257 = pneg %p145
      $region22: #{dilated_res_block.7} parent=11 // pred_check_branch
        %259 = sbr.rel (%p257) target = $region24
      $region23: #{dilated_res_block.7} parent=11 // pred_region
        _
      $region24: #{dilated_res_block.7} parent=11 // pred_fallthru
        _
      // Predicated region
      $region25: #{dilated_res_block.7} parent=11 // pred_check
        %p260 = pneg %p166
      $region26: #{dilated_res_block.7} parent=11 // pred_check_branch
        %262 = sbr.rel (%p260) target = $region28
      $region27: #{dilated_res_block.7} parent=11 // pred_region
        _
      $region28: #{dilated_res_block.7} parent=11 // pred_fallthru
        _
      // Predicated region
      $region29: #{dilated_res_block.7} parent=11 // pred_check
        %p263 = pneg %p187
      $region30: #{dilated_res_block.7} parent=11 // pred_check_branch
        %265 = sbr.rel (%p263) target = $region32
      $region31: #{dilated_res_block.7} parent=11 // pred_region
        _
      $region32: #{dilated_res_block.7} parent=11 // pred_fallthru
        _
      // Predicated region
      $region33: #{dilated_res_block.7} parent=11 // pred_check
        %p266 = pneg %p208
      $region34: #{dilated_res_block.7} parent=11 // pred_check_branch
        %268 = sbr.rel (%p266) target = $region36
      $region35: #{dilated_res_block.7} parent=11 // pred_region
        _
      $region36: #{dilated_res_block.7} parent=11 // pred_fallthru
        _
    $region12: #{dilated_res_block.7} parent=5 // pred_fallthru
      _
    %p269 = scmp.lt.s32.totalorder %s14, 2
    // Predicated region
    $region37: #{dilated_res_block.7} parent=5 // pred_check
      %p270 = pneg %p269
    $region38: #{dilated_res_block.7} parent=5 // pred_check_branch
      %272 = sbr.rel (%p270) target = $region40
    $region39: #{dilated_res_block.7} parent=5 // pred_region
      // Predicated region
      $region41: #{dilated_res_block.7} parent=39 // pred_check
        %p273 = pneg %p48
      $region42: #{dilated_res_block.7} parent=39 // pred_check_branch
        %275 = sbr.rel (%p273) target = $region44
      $region43: #{dilated_res_block.7} parent=39 // pred_region
        %p276 = scmp.lt.s32.totalorder %s22, 1
        %s277 = scalar_select %p276, %s22, 1
        %p278 = scmp.lt.s32.totalorder %s21, 0
        %s279 = scalar_select %p278, %s21, 0
        %s280 = smul.addr %s277, 2
        %s281 = sadd.s32 %s279, %s280
        %s282 = smul.addr %s281, 8
        %s283 = scalar_lea.vmem %s0, %s282
      $region44: #{dilated_res_block.7} parent=39 // pred_fallthru
        _
      // Predicated region
      $region45: #{dilated_res_block.7} parent=39 // pred_check
        %p284 = pneg %p76
      $region46: #{dilated_res_block.7} parent=39 // pred_check_branch
        %286 = sbr.rel (%p284) target = $region48
      $region47: #{dilated_res_block.7} parent=39 // pred_region
        %p287 = scmp.lt.s32.totalorder %s22, 1
        %s288 = scalar_select %p287, %s22, 1
        %p289 = scmp.lt.s32.totalorder %s21, 0
        %s290 = scalar_select %p289, %s21, 0
        %s291 = sadd.s32 %s290, %s288
        %s292 = smul.addr %s291, 4
        %s293 = scalar_lea.vmem %s1, %s292
      $region48: #{dilated_res_block.7} parent=39 // pred_fallthru
        _
    $region40: #{dilated_res_block.7} parent=5 // pred_fallthru
      _
    %p294 = scmp.le.s32.totalorder 1, %s14
    %p295 = scmp.lt.s32.totalorder %s14, 3
    %p296 = pnand %p294, %p295
    %p297 = pneg %p296
    // Predicated region
    $region49: #{dilated_res_block.7} parent=5 // pred_check
      _
    $region50: #{dilated_res_block.7} parent=5 // pred_check_branch
      %299 = sbr.rel (%p296) target = $region52
    $region51: #{dilated_res_block.7} parent=5 // pred_region
      %s300 = ssub.s32 %s14, 1
      %p301 = scmp.lt.s32.totalorder %s24, 1
      %s302 = scalar_select %p301, %s24, 1
      %p303 = scmp.lt.s32.totalorder %s23, 0
      %s304 = scalar_select %p303, %s23, 0
      %s305 = smul.addr %s302, 2
      %s306 = sadd.s32 %s304, %s305
      %s307 = smul.addr %s306, 8
      %s308 = scalar_lea.vmem %s0, %s307
      %p309 = pneg %p54
      %p310 = pneg %p51
      %p311 = scmp.lt.s32.totalorder %s24, 1
      %s312 = scalar_select %p311, %s24, 1
      %p313 = scmp.lt.s32.totalorder %s23, 0
      %s314 = scalar_select %p313, %s23, 0
      %s315 = sadd.s32 %s314, %s312
      %s316 = smul.addr %s315, 4
      %s317 = scalar_lea.vmem %s1, %s316
      %p318 = pneg %p82
      %p319 = pneg %p79
      %p320 = pneg %p103
      %p321 = pneg %p100
      %p322 = pneg %p124
      %p323 = pneg %p121
      %p324 = pneg %p145
      %p325 = pneg %p142
      %p326 = pneg %p166
      %p327 = pneg %p163
      %p328 = pneg %p187
      %p329 = pneg %p184
      %p330 = pneg %p208
      %p331 = pneg %p205
      %p332 = pneg %p236
      %p333 = pneg %p233
      %p334 = scmp.lt.s32.totalorder %s24, 1
      %s335 = scalar_select %p334, %s24, 1
      %p336 = scmp.lt.s32.totalorder %s23, 0
      %s337 = scalar_select %p336, %s23, 0
      %s338 = smul.addr %s335, 4
      %s339 = sadd.s32 %s337, %s338
      %s340 = smul.addr %s339, 8
      %s341 = scalar_lea.vmem %s8, %s340
      %p342 = scmp.lt.s32.totalorder %s24, 1
      %s343 = scalar_select %p342, %s24, 1
      %p344 = scmp.lt.s32.totalorder %s23, 0
      %s345 = scalar_select %p344, %s23, 0
      %s346 = smul.addr %s343, 2
      %s347 = sadd.s32 %s345, %s346
      %s348 = smul.addr %s347, 8
      %s349 = scalar_lea.vmem %s0, %s348
      %p350 = scmp.lt.s32.totalorder %s24, 1
      %s351 = scalar_select %p350, %s24, 1
      %p352 = scmp.lt.s32.totalorder %s23, 0
      %s353 = scalar_select %p352, %s23, 0
      %s354 = sadd.s32 %s353, %s351
      %s355 = smul.addr %s354, 4
      %s356 = scalar_lea.vmem %s1, %s355
      %p357 = scmp.lt.s32.totalorder %s24, 1
      %s358 = scalar_select %p357, %s24, 1
      %p359 = scmp.lt.s32.totalorder %s23, 0
      %s360 = scalar_select %p359, %s23, 0
      %s361 = smul.addr %s358, 4
      %s362 = sadd.s32 %s360, %s361
      %s363 = smul.addr %s362, 8
      %s364 = scalar_lea.vmem %s8, %s363
      %v365 = vld [vmem:[%s2] sm:$0xff]
      %v366 = vld [vmem:[%s2 + $0x8] sm:$0xff]
      %v367 = vld [vmem:[%s2 + $0x10] sm:$0xff]
      %v368 = vld [vmem:[%s2 + $0x18] sm:$0xff]
      %v369 = vld [vmem:[%s349] sm:$0xff]
      %v370 = vld [vmem:[%s349 + $0x8] sm:$0xff]
      %vm371 = vcmask 130048
      %v373 = vsel %vm371, %v365, 0
      %v376 = vsel %vm371, %v366, 0
      %v379 = vsel %vm371, %v367, 0
      %v382 = vsel %vm371, %v368, 0
      %384 = vmatpush.msra.mxu0 0.0
      %385 = vmatpush.msra.mxu0 0.0
      %386 = vmatpush.msra.mxu0 0.0
      %387 = vmatpush.msra.mxu0 0.0
      %388 = vmatpush.msra.mxu0 0.0
      %389 = vmatpush.msra.mxu0 0.0
      %390 = vmatpush.msra.mxu0 0.0
      %391 = vmatpush.msra.mxu0 0.0
      %392 = vmatpush.msra.mxu0 0.0
      %393 = vmatpush.msra.mxu0 0.0
      %394 = vmatpush.msra.mxu0 0.0
      %395 = vmatpush.msra.mxu0 0.0
      %396 = vmatpush.msra.mxu0 0.0
      %397 = vmatpush.msra.mxu0 0.0
      %398 = vmatpush.msra.mxu0 %v370
      %399 = vmatpush.msra.mxu0 %v369
      %400 = vmatmul.f32.gmra.mxu0 %v373
      %v401 = vpop.f32.mrf.mxu0
      %v402 = vadd.f32 0.0, %v401
      %403 = vmatmul.f32.gmra.mxu0 %v376
      %v404 = vpop.f32.mrf.mxu0
      %v405 = vadd.f32 0.0, %v404
      %406 = vmatmul.f32.gmra.mxu0 %v379
      %v407 = vpop.f32.mrf.mxu0
      %v408 = vadd.f32 0.0, %v407
      %409 = vmatmul.f32.gmra.mxu0 %v382
      %v410 = vpop.f32.mrf.mxu0
      %v411 = vadd.f32 0.0, %v410
      %412 = vdwg.mxu0
      %v413 = vld [vmem:[%s3] sm:$0xff]
      %v414 = vld [vmem:[%s3 + $0x8] sm:$0xff]
      %v415 = vld [vmem:[%s3 + $0x10] sm:$0xff]
      %v416 = vld [vmem:[%s3 + $0x18] sm:$0xff]
      %418 = vset.pattern.permute.xlu0 0
      %419 = vperm.xlu0 %418, %v413
      %v420 = vpop.permute.xlu0 %419
      %423 = vset.pattern.permute.xlu0 0
      %424 = vperm.xlu0 %423, %v414
      %v425 = vpop.permute.xlu0 %424
      %428 = vset.pattern.permute.xlu0 0
      %429 = vperm.xlu0 %428, %v415
      %v430 = vpop.permute.xlu0 %429
      %433 = vset.pattern.permute.xlu0 0
      %434 = vperm.xlu0 %433, %v416
      %v435 = vpop.permute.xlu0 %434
      %v437 = vmul.f32 %v402, %v420
      %v438 = vmul.f32 %v405, %v425
      %v439 = vmul.f32 %v408, %v430
      %v440 = vmul.f32 %v411, %v435
      %v441 = vld [vmem:[%s4] sm:$0xff]
      %v442 = vld [vmem:[%s4 + $0x8] sm:$0xff]
      %v443 = vld [vmem:[%s4 + $0x10] sm:$0xff]
      %v444 = vld [vmem:[%s4 + $0x18] sm:$0xff]
      %446 = vset.pattern.permute.xlu0 0
      %447 = vperm.xlu0 %446, %v441
      %v448 = vpop.permute.xlu0 %447
      %451 = vset.pattern.permute.xlu0 0
      %452 = vperm.xlu0 %451, %v442
      %v453 = vpop.permute.xlu0 %452
      %456 = vset.pattern.permute.xlu0 0
      %457 = vperm.xlu0 %456, %v443
      %v458 = vpop.permute.xlu0 %457
      %461 = vset.pattern.permute.xlu0 0
      %462 = vperm.xlu0 %461, %v444
      %v463 = vpop.permute.xlu0 %462
      %v465 = vadd.f32 %v437, %v448
      %v466 = vadd.f32 %v438, %v453
      %v467 = vadd.f32 %v439, %v458
      %v468 = vadd.f32 %v440, %v463
      %v469 = vld [vmem:[%s5] sm:$0xff]
      %v470 = vld [vmem:[%s5 + $0x8] sm:$0xff]
      %v471 = vld [vmem:[%s5 + $0x10] sm:$0xff]
      %v472 = vld [vmem:[%s5 + $0x18] sm:$0xff]
      %v473 = vld [vmem:[%s356] sm:$0xf]
      %vm474 = vcmask 31744
      %v476 = vsel %vm474, %v469, 0
      %v479 = vsel %vm474, %v470, 0
      %v482 = vsel %vm474, %v471, 0
      %v485 = vsel %vm474, %v472, 0
      %vm487 = vcmask 1043456
      %v489 = vsel %vm487, %v473, 0
      %491 = vmatpush.msra.mxu0 0.0
      %492 = vmatpush.msra.mxu0 0.0
      %493 = vmatpush.msra.mxu0 0.0
      %494 = vmatpush.msra.mxu0 0.0
      %495 = vmatpush.msra.mxu0 0.0
      %496 = vmatpush.msra.mxu0 0.0
      %497 = vmatpush.msra.mxu0 0.0
      %498 = vmatpush.msra.mxu0 0.0
      %499 = vmatpush.msra.mxu0 0.0
      %500 = vmatpush.msra.mxu0 0.0
      %501 = vmatpush.msra.mxu0 0.0
      %502 = vmatpush.msra.mxu0 0.0
      %503 = vmatpush.msra.mxu0 0.0
      %504 = vmatpush.msra.mxu0 0.0
      %505 = vmatpush.msra.mxu0 0.0
      %506 = vmatpush.msra.mxu0 %v489
      %507 = vmatmul.f32.gmra.mxu0 %v476
      %v508 = vpop.f32.mrf.mxu0
      %v509 = vadd.f32 0.0, %v508
      %510 = vmatmul.f32.gmra.mxu0 %v479
      %v511 = vpop.f32.mrf.mxu0
      %v512 = vadd.f32 0.0, %v511
      %513 = vmatmul.f32.gmra.mxu0 %v482
      %v514 = vpop.f32.mrf.mxu0
      %v515 = vadd.f32 0.0, %v514
      %516 = vmatmul.f32.gmra.mxu0 %v485
      %v517 = vpop.f32.mrf.mxu0
      %v518 = vadd.f32 0.0, %v517
      %519 = vdwg.mxu0
      %v520 = vld [vmem:[%s6] sm:$0xff]
      %v521 = vld [vmem:[%s6 + $0x8] sm:$0xff]
      %v522 = vld [vmem:[%s6 + $0x10] sm:$0xff]
      %v523 = vld [vmem:[%s6 + $0x18] sm:$0xff]
      %525 = vset.pattern.permute.xlu0 0
      %526 = vperm.xlu0 %525, %v520
      %v527 = vpop.permute.xlu0 %526
      %530 = vset.pattern.permute.xlu0 0
      %531 = vperm.xlu0 %530, %v521
      %v532 = vpop.permute.xlu0 %531
      %535 = vset.pattern.permute.xlu0 0
      %536 = vperm.xlu0 %535, %v522
      %v537 = vpop.permute.xlu0 %536
      %540 = vset.pattern.permute.xlu0 0
      %541 = vperm.xlu0 %540, %v523
      %v542 = vpop.permute.xlu0 %541
      %v544 = vmul.f32 %v509, %v527
      %v545 = vmul.f32 %v512, %v532
      %v546 = vmul.f32 %v515, %v537
      %v547 = vmul.f32 %v518, %v542
      %v548 = vld [vmem:[%s7] sm:$0xff]
      %v549 = vld [vmem:[%s7 + $0x8] sm:$0xff]
      %v550 = vld [vmem:[%s7 + $0x10] sm:$0xff]
      %v551 = vld [vmem:[%s7 + $0x18] sm:$0xff]
      %553 = vset.pattern.permute.xlu0 0
      %554 = vperm.xlu0 %553, %v548
      %v555 = vpop.permute.xlu0 %554
      %558 = vset.pattern.permute.xlu0 0
      %559 = vperm.xlu0 %558, %v549
      %v560 = vpop.permute.xlu0 %559
      %563 = vset.pattern.permute.xlu0 0
      %564 = vperm.xlu0 %563, %v550
      %v565 = vpop.permute.xlu0 %564
      %568 = vset.pattern.permute.xlu0 0
      %569 = vperm.xlu0 %568, %v551
      %v570 = vpop.permute.xlu0 %569
      %v572 = vadd.f32 %v544, %v555
      %v573 = vadd.f32 %v545, %v560
      %v574 = vadd.f32 %v546, %v565
      %v575 = vadd.f32 %v547, %v570
      %v576 = vadd.f32 %v465, %v572
      %v577 = vadd.f32 %v466, %v573
      %v578 = vadd.f32 %v467, %v574
      %v579 = vadd.f32 %v468, %v575
      %vm580 = vcmp.ge.f32.partialorder %v576, 0.0
      %vm581 = vcmp.ge.f32.partialorder %v577, 0.0
      %vm582 = vcmp.ge.f32.partialorder %v578, 0.0
      %vm583 = vcmp.ge.f32.partialorder %v579, 0.0
      %v584 = vmul.f32 %v576, 0.2
      %v585 = vmul.f32 %v577, 0.2
      %v586 = vmul.f32 %v578, 0.2
      %v587 = vmul.f32 %v579, 0.2
      %v588 = vsel %vm580, %v576, %v584
      %v589 = vsel %vm581, %v577, %v585
      %v590 = vsel %vm582, %v578, %v586
      %v591 = vsel %vm583, %v579, %v587
      %592 = vst.msk [vmem:[%s364] sm:$0xff] %vm371, %v588
      %593 = vst.msk [vmem:[%s364 + $0x8] sm:$0xff] %vm371, %v589
      %594 = vst.msk [vmem:[%s364 + $0x10] sm:$0xff] %vm371, %v590
      %595 = vst.msk [vmem:[%s364 + $0x18] sm:$0xff] %vm371, %v591
      %p596 = scmp.lt.s32.totalorder %s24, 1
      %s597 = scalar_select %p596, %s24, 1
      %p598 = scmp.lt.s32.totalorder %s23, 0
      %s599 = scalar_select %p598, %s23, 0
      %s600 = smul.addr %s597, 4
      %s601 = sadd.s32 %s599, %s600
      %s602 = smul.addr %s601, 8
      %s603 = scalar_lea.vmem %s8, %s602
      // Predicated region
      $region53: #{dilated_res_block.7} parent=51 // pred_check
        %p604 = pneg %p233
      $region54: #{dilated_res_block.7} parent=51 // pred_check_branch
        %606 = sbr.rel (%p604) target = $region56
      $region55: #{dilated_res_block.7} parent=51 // pred_region
        _
      $region56: #{dilated_res_block.7} parent=51 // pred_fallthru
        _
    $region52: #{dilated_res_block.7} parent=5 // pred_fallthru
      _
    %p607 = scmp.le.s32.totalorder 2, %s14
    // Predicated region
    $region57: #{dilated_res_block.7} parent=5 // pred_check
      %p608 = pneg %p607
    $region58: #{dilated_res_block.7} parent=5 // pred_check_branch
      %610 = sbr.rel (%p608) target = $region60
    $region59: #{dilated_res_block.7} parent=5 // pred_region
      %s611 = ssub.s32 %s14, 2
      // Predicated region
      $region61: #{dilated_res_block.7} parent=59 // pred_check
        %p612 = pneg %p239
      $region62: #{dilated_res_block.7} parent=59 // pred_check_branch
        %614 = sbr.rel (%p612) target = $region64
      $region63: #{dilated_res_block.7} parent=59 // pred_region
        %p615 = scmp.lt.s32.totalorder %s26, 1
        %s616 = scalar_select %p615, %s26, 1
        %p617 = scmp.lt.s32.totalorder %s25, 0
        %s618 = scalar_select %p617, %s25, 0
        %s619 = smul.addr %s616, 4
        %s620 = sadd.s32 %s618, %s619
        %s621 = smul.addr %s620, 8
        %s622 = scalar_lea.vmem %s8, %s621
      $region64: #{dilated_res_block.7} parent=59 // pred_fallthru
        _
    $region60: #{dilated_res_block.7} parent=5 // pred_fallthru
      _
  $region6: #{dilated_res_block.7} parent=0 // loop_footer
    %s18 = sadd.s32 1, %s14
  $region7: #{dilated_res_block.7} parent=0 // loop_footer_branch
    %13 = sbr.rel target = $region3
  $region8: #{dilated_res_block.7} parent=0 // loop_exit
    _

</llo_original>
